<compile_context>
chip_gen: v7x
topology: tpu7x:2x2x1
jax: 0.10.0
libtpu: 0.0.40
codegen_flags: <defaults>
</compile_context>

<pallas_src>
import functools

import jax
import jax.numpy as jnp
from jax.experimental import pallas as pl
from jax.experimental.pallas import tpu as pltpu

EXPANSION = 4
BN_EPS = 1e-5
LANE = 128


# ---------------------------------------------------------------------------
# small helpers
# ---------------------------------------------------------------------------
def _round_up(n, m=LANE):
    return ((n + m - 1) // m) * m


def _pad_axis(a, axis, target):
    pad = target - a.shape[axis]
    if pad == 0:
        return a
    cfg = [(0, 0)] * a.ndim
    cfg[axis] = (0, pad)
    return jnp.pad(a, cfg)


def _pad2(a, rows, cols):
    return _pad_axis(_pad_axis(a, 0, rows), 1, cols)


# ---------------------------------------------------------------------------
# fused bottleneck kernel
# ---------------------------------------------------------------------------
def _make_bottleneck_kernel(H, W, has_proj, emit_pre, compute_dtype):
    """Fused conv1+bn1+relu -> conv2(3x3)+bn2+relu -> conv3+bn3+shortcut+relu.

    Ref order: x, w1, w2, w3, [ws], s1, b1, s2, b2, s3, b3, [ss, bs],
               out, [pre], out1_padded_scratch, acc_scratch
    """
    HW = H * W

    def kernel(*refs):
        x_ref, w1_ref, w2_ref, w3_ref = refs[0:4]
        i = 4
        if has_proj:
            ws_ref = refs[i]
            i += 1
        s1, b1, s2, b2, s3, b3 = refs[i:i + 6]
        i += 6
        if has_proj:
            ss, bs = refs[i:i + 2]
            i += 2
        out_ref = refs[i]
        i += 1
        if emit_pre:
            pre_ref = refs[i]
            i += 1
        out1p_ref, acc_ref = refs[i], refs[i + 1]

        CP = w1_ref.shape[1]

        # ---- conv1 (1x1) + bn1 + relu -----------------------------------
        x2d = x_ref[...]                                    # (HW, CinP), bf16/f32
        y1 = jnp.dot(x2d, w1_ref[...], preferred_element_type=jnp.float32)
        y1 = jnp.maximum(y1 * s1[...] + b1[...], 0.0).astype(compute_dtype)

        # Stage conv1 output into a zero-padded VMEM scratch: the 1-pixel halo
        # for the 3x3 conv is created here, in-kernel (no jnp.pad HBM pass).
        out1p_ref[...] = jnp.zeros_like(out1p_ref)
        out1p_ref[1:H + 1, 1:W + 1, :] = y1.reshape(H, W, CP)

        # ---- conv2 (3x3, pad=1) + bn2 + relu ----------------------------
        # Nine 2-D MXU dots accumulated into an f32 VMEM scratch accumulator.
        for k in range(9):                                   # static unroll
            ky, kx = k // 3, k % 3
            patch = out1p_ref[ky:ky + H, kx:kx + W, :].reshape(HW, CP)
            contrib = jnp.dot(patch, w2_ref[k],
                              preferred_element_type=jnp.float32)
            if k == 0:
                acc_ref[...] = contrib
            else:
                acc_ref[...] += contrib
        y2 = jnp.maximum(acc_ref[...] * s2[...] + b2[...], 0.0)
        y2 = y2.astype(compute_dtype)

        # ---- conv3 (1x1) + bn3 ------------------------------------------
        y3 = jnp.dot(y2, w3_ref[...], preferred_element_type=jnp.float32)
        y3 = y3 * s3[...] + b3[...]

        # ---- shortcut -----------------------------------------------------
        if has_proj:
            sc = jnp.dot(x2d, ws_ref[...], preferred_element_type=jnp.float32)
            sc = sc * ss[...] + bs[...]
        else:
            sc = x2d.astype(jnp.float32)

        pre = y3 + sc
        out_ref[...] = jnp.maximum(pre, 0.0).astype(out_ref.dtype)
        if emit_pre:
            pre_ref[...] = pre.astype(pre_ref.dtype)

    return kernel


# ---------------------------------------------------------------------------
# wrapper (NHWC, channels-last)
# ---------------------------------------------------------------------------
def bottleneck_forward_nhwc(x, params, *, is_last=False,
                            compute_dtype=jnp.bfloat16):
    N, H, W, Cin = x.shape
    planes = params["w1"].shape[1]
    cout = EXPANSION * planes
    has_proj = "ws" in params
    if not has_proj and Cin != cout:
        raise ValueError("identity shortcut requires Cin == expansion*planes")

    HW = H * W
    if HW % 8 != 0:
        # TODO(synk): support H*W not a multiple of 8 (pad spatially).
        raise NotImplementedError("H*W must be a multiple of 8")

    CinP, CP, CoutP = _round_up(Cin), _round_up(planes), _round_up(cout)
    cdt = compute_dtype

    # channel-pad + cast activations / weights (lane-dense, bf16 operands)
    x2d = _pad_axis(x.reshape(N * HW, Cin), 1, CinP).astype(cdt)
    w1 = _pad2(params["w1"], CinP, CP).astype(cdt)
    w2 = _pad_axis(_pad_axis(params["w2"], 1, CP), 2, CP).astype(cdt)
    w3 = _pad2(params["w3"], CP, CoutP).astype(cdt)

    def pb(v, target):                      # (C,) -> (1, target) f32
        return _pad_axis(v.reshape(1, -1).astype(jnp.float32), 1, target)

    inputs = [x2d, w1, w2, w3]
    in_specs = [
        pl.BlockSpec((HW, CinP), lambda b: (b, 0)),
        pl.BlockSpec((CinP, CP), lambda b: (0, 0)),
        pl.BlockSpec((9, CP, CP), lambda b: (0, 0, 0)),
        pl.BlockSpec((CP, CoutP), lambda b: (0, 0)),
    ]
    if has_proj:
        inputs.append(_pad2(params["ws"], CinP, CoutP).astype(cdt))
        in_specs.append(pl.BlockSpec((CinP, CoutP), lambda b: (0, 0)))

    inputs += [pb(params["scale1"], CP), pb(params["bias1"], CP),
               pb(params["scale2"], CP), pb(params["bias2"], CP),
               pb(params["scale3"], CoutP), pb(params["bias3"], CoutP)]
    in_specs += [pl.BlockSpec((1, CP), lambda b: (0, 0))] * 4
    in_specs += [pl.BlockSpec((1, CoutP), lambda b: (0, 0))] * 2
    if has_proj:
        inputs += [pb(params["scale_s"], CoutP), pb(params["bias_s"], CoutP)]
        in_specs += [pl.BlockSpec((1, CoutP), lambda b: (0, 0))] * 2

    out_dtype = x.dtype
    if is_last:
        out_shape = (jax.ShapeDtypeStruct((N * HW, CoutP), out_dtype),
                     jax.ShapeDtypeStruct((N * HW, CoutP), out_dtype))
        out_specs = (pl.BlockSpec((HW, CoutP), lambda b: (b, 0)),
                     pl.BlockSpec((HW, CoutP), lambda b: (b, 0)))
    else:
        out_shape = jax.ShapeDtypeStruct((N * HW, CoutP), out_dtype)
        out_specs = pl.BlockSpec((HW, CoutP), lambda b: (b, 0))

    kernel = _make_bottleneck_kernel(H, W, has_proj, is_last, cdt)

    res = pl.pallas_call(
        kernel,
        out_shape=out_shape,
        grid=(N,),
        in_specs=in_specs,
        out_specs=out_specs,
        scratch_shapes=[
            pltpu.VMEM((H + 2, W + 2, CP), cdt),      # zero-padded conv1 output
            pltpu.VMEM((HW, CP), jnp.float32),        # 3x3 conv accumulator
        ],
        # per-image blocks are small (<= a few MiB for ResNet shapes), so the
        # default scoped-VMEM limit is fine on v5e/v6e/v7x.
        compiler_params=pltpu.CompilerParams(dimension_semantics=("parallel",)),
    )(*inputs)

    if is_last:
        out2d, pre2d = res
        out = out2d[:, :cout].reshape(N, H, W, cout)
        pre = pre2d[:, :cout].reshape(N, H, W, cout)
        return out, pre
    out = res[:, :cout].reshape(N, H, W, cout)
    return out


def bottleneck_forward(x_nchw, params, *, stride=1, is_last=False,
                       compute_dtype=jnp.bfloat16):
    """PyTorch-interface wrapper: NCHW in / NCHW out.

    When stacking many bottlenecks, call bottleneck_forward_nhwc directly to
    avoid a full-tensor NCHW<->NHWC transpose per block.
    """
    if stride != 1:
        # TODO(synk): stride>1 for conv2 / shortcut not implemented.
        raise NotImplementedError("only stride=1 supported in this Pallas port")

    x = jnp.transpose(x_nchw, (0, 2, 3, 1))          # NCHW -> NHWC
    res = bottleneck_forward_nhwc(x, params, is_last=is_last,
                                  compute_dtype=compute_dtype)
    if is_last:
        out, pre = res
        return (jnp.transpose(out, (0, 3, 1, 2)),
                jnp.transpose(pre, (0, 3, 1, 2)))
    return jnp.transpose(res, (0, 3, 1, 2))


# ---------------------------------------------------------------------------
# Deterministic parameter initialization (synthetic, no checkpoint)
# ---------------------------------------------------------------------------
def _folded_bn(key, c):
    k1, k2, k3, k4 = jax.random.split(key, 4)
    gamma = jax.random.uniform(k1, (c,), minval=0.5, maxval=1.5, dtype=jnp.float32)
    beta = 0.1 * jax.random.normal(k2, (c,), dtype=jnp.float32)
    mean = 0.1 * jax.random.normal(k3, (c,), dtype=jnp.float32)
    var = jax.random.uniform(k4, (c,), minval=0.5, maxval=1.5, dtype=jnp.float32)
    scale = gamma / jnp.sqrt(var + BN_EPS)
    bias = beta - mean * scale
    return scale, bias


def init_params(key, in_planes, planes, stride=1):
    cout = EXPANSION * planes
    ks = jax.random.split(key, 8)
    p = {}
    p["w1"] = 0.1 * jax.random.normal(ks[0], (in_planes, planes), dtype=jnp.float32)
    p["w2"] = 0.1 * jax.random.normal(ks[1], (9, planes, planes), dtype=jnp.float32)
    p["w3"] = 0.1 * jax.random.normal(ks[2], (planes, cout), dtype=jnp.float32)
    p["scale1"], p["bias1"] = _folded_bn(ks[3], planes)
    p["scale2"], p["bias2"] = _folded_bn(ks[4], planes)
    p["scale3"], p["bias3"] = _folded_bn(ks[5], cout)
    if stride != 1 or in_planes != cout:
        p["ws"] = 0.1 * jax.random.normal(ks[6], (in_planes, cout), dtype=jnp.float32)
        p["scale_s"], p["bias_s"] = _folded_bn(ks[7], cout)
    return p


# ---------------------------------------------------------------------------
# Pure-JAX reference (NHWC convs, HIGHEST precision) for correctness check
# ---------------------------------------------------------------------------
def reference_forward(x_nchw, params, *, stride=1):
    x = jnp.transpose(x_nchw, (0, 2, 3, 1))
    planes = params["w1"].shape[1]
    dn = ("NHWC", "HWIO", "NHWC")
    prec = jax.lax.Precision.HIGHEST

    def conv(x, w_hwio, s):
        return jax.lax.conv_general_dilated(
            x, w_hwio, (s, s), "SAME", dimension_numbers=dn, precision=prec)

    w1 = params["w1"].reshape(1, 1, *params["w1"].shape)
    w2 = params["w2"].reshape(3, 3, planes, planes)
    w3 = params["w3"].reshape(1, 1, *params["w3"].shape)

    o = jax.nn.relu(conv(x, w1, 1) * params["scale1"] + params["bias1"])
    o = jax.nn.relu(conv(o, w2, stride) * params["scale2"] + params["bias2"])
    o = conv(o, w3, 1) * params["scale3"] + params["bias3"]
    if "ws" in params:
        ws = params["ws"].reshape(1, 1, *params["ws"].shape)
        sc = conv(x, ws, stride) * params["scale_s"] + params["bias_s"]
    else:
        sc = x
    pre = o + sc
    out = jax.nn.relu(pre)
    return (jnp.transpose(out, (0, 3, 1, 2)), jnp.transpose(pre, (0, 3, 1, 2)))


# ---------------------------------------------------------------------------
if __name__ == "__main__":
    key = jax.random.PRNGKey(0)
    k_x, k_p, k_x2, k_p2 = jax.random.split(key, 4)

    # --- config A: projection shortcut, is_last=True ----------------------
    N, in_planes, H, W = 2, 4, 16, 16
    planes = 4
    x = jax.random.normal(k_x, (N, in_planes, H, W), dtype=jnp.float32)
    params = init_params(k_p, in_planes, planes)
    ref_out, ref_pre = reference_forward(x, params)

    # bf16 operands (v6e/v7x production path)
    fwd_bf16 = jax.jit(functools.partial(bottleneck_forward, is_last=True,
                                         compute_dtype=jnp.bfloat16))
    out, pre = fwd_bf16(x, params)
    out = jax.block_until_ready(out)
    pre = jax.block_until_ready(pre)
    assert out.shape == (N, EXPANSION * planes, H, W)
    assert jnp.allclose(out, ref_out, atol=3e-2, rtol=3e-2)
    assert jnp.allclose(pre, ref_pre, atol=3e-2, rtol=3e-2)

    # f32 operands (tighter numerical check)
    fwd_f32 = jax.jit(functools.partial(bottleneck_forward, is_last=True,
                                        compute_dtype=jnp.float32))
    out32, pre32 = fwd_f32(x, params)
    out32 = jax.block_until_ready(out32)
    pre32 = jax.block_until_ready(pre32)
    assert jnp.allclose(out32, ref_out, atol=1e-2, rtol=1e-2)
    assert jnp.allclose(pre32, ref_pre, atol=1e-2, rtol=1e-2)

    # --- config B: identity shortcut, is_last=False ------------------------
    in_planes2 = EXPANSION * planes          # == cout -> identity shortcut
    x2 = jax.random.normal(k_x2, (N, in_planes2, H, W), dtype=jnp.float32)
    params2 = init_params(k_p2, in_planes2, planes)
    fwd_id = jax.jit(functools.partial(bottleneck_forward, is_last=False,
                                       compute_dtype=jnp.bfloat16))
    out2 = jax.block_until_ready(fwd_id(x2, params2))
    ref_out2, _ = reference_forward(x2, params2)
    assert out2.shape == (N, EXPANSION * planes, H, W)
    assert jnp.allclose(out2, ref_out2, atol=3e-2, rtol=3e-2)

    print("KERNEL_OK")
</pallas_src>

<mosaic_0001>
module attributes {stable_mosaic.version = 11 : i64} {
  func.func @kernel(%arg0: i32, %arg1: memref<256x128xbf16, #tpu.memory_space<vmem>>, %arg2: memref<128x128xbf16, #tpu.memory_space<vmem>>, %arg3: memref<9x128x128xbf16, #tpu.memory_space<vmem>>, %arg4: memref<128x128xbf16, #tpu.memory_space<vmem>>, %arg5: memref<128x128xbf16, #tpu.memory_space<vmem>>, %arg6: memref<1x128xf32, #tpu.memory_space<vmem>>, %arg7: memref<1x128xf32, #tpu.memory_space<vmem>>, %arg8: memref<1x128xf32, #tpu.memory_space<vmem>>, %arg9: memref<1x128xf32, #tpu.memory_space<vmem>>, %arg10: memref<1x128xf32, #tpu.memory_space<vmem>>, %arg11: memref<1x128xf32, #tpu.memory_space<vmem>>, %arg12: memref<1x128xf32, #tpu.memory_space<vmem>>, %arg13: memref<1x128xf32, #tpu.memory_space<vmem>>, %arg14: memref<256x128xf32, #tpu.memory_space<vmem>>, %arg15: memref<256x128xf32, #tpu.memory_space<vmem>>, %arg16: memref<18x18x128xbf16, #tpu.memory_space<vmem>>, %arg17: memref<256x128xf32, #tpu.memory_space<vmem>>) attributes {dimension_semantics = [#tpu.dimension_semantics<parallel>], iteration_bounds = array<i64: 2>, scalar_prefetch = 0 : i64, scratch_operands = 2 : i64, tpu.core_type = #tpu.core_type<tc>, window_params = [{transform_indices = @transform_0, window_bounds = array<i64: 256, 128>}, {pipeline_mode = #tpu.pipeline_mode<synchronous>, transform_indices = @transform_1, window_bounds = array<i64: 128, 128>}, {pipeline_mode = #tpu.pipeline_mode<synchronous>, transform_indices = @transform_2, window_bounds = array<i64: 9, 128, 128>}, {pipeline_mode = #tpu.pipeline_mode<synchronous>, transform_indices = @transform_3, window_bounds = array<i64: 128, 128>}, {pipeline_mode = #tpu.pipeline_mode<synchronous>, transform_indices = @transform_4, window_bounds = array<i64: 128, 128>}, {pipeline_mode = #tpu.pipeline_mode<synchronous>, transform_indices = @transform_5, window_bounds = array<i64: 1, 128>}, {pipeline_mode = #tpu.pipeline_mode<synchronous>, transform_indices = @transform_6, window_bounds = array<i64: 1, 128>}, {pipeline_mode = #tpu.pipeline_mode<synchronous>, transform_indices = @transform_7, window_bounds = array<i64: 1, 128>}, {pipeline_mode = #tpu.pipeline_mode<synchronous>, transform_indices = @transform_8, window_bounds = array<i64: 1, 128>}, {pipeline_mode = #tpu.pipeline_mode<synchronous>, transform_indices = @transform_9, window_bounds = array<i64: 1, 128>}, {pipeline_mode = #tpu.pipeline_mode<synchronous>, transform_indices = @transform_10, window_bounds = array<i64: 1, 128>}, {pipeline_mode = #tpu.pipeline_mode<synchronous>, transform_indices = @transform_11, window_bounds = array<i64: 1, 128>}, {pipeline_mode = #tpu.pipeline_mode<synchronous>, transform_indices = @transform_12, window_bounds = array<i64: 1, 128>}, {transform_indices = @transform_13, window_bounds = array<i64: 256, 128>}, {transform_indices = @transform_14, window_bounds = array<i64: 256, 128>}]} {
    %c0 = arith.constant 0 : index
    %c0_0 = arith.constant 0 : index
    %0 = vector.load %arg1[%c0, %c0_0] : memref<256x128xbf16, #tpu.memory_space<vmem>>, vector<256x128xbf16>
    %c0_1 = arith.constant 0 : index
    %c0_2 = arith.constant 0 : index
    %1 = vector.load %arg2[%c0_1, %c0_2] : memref<128x128xbf16, #tpu.memory_space<vmem>>, vector<128x128xbf16>
    %cst = arith.constant dense<0.000000e+00> : vector<256x128xf32>
    %2 = tpu.matmul %0, %1, %cst {dimension_numbers = #tpu.dot_dimension_numbers<[1], [0], [0], [1], [0, 0, 1, 1], [], []>} : vector<256x128xbf16>, vector<128x128xbf16>, vector<256x128xf32> -> vector<256x128xf32>
    %c0_3 = arith.constant 0 : index
    %c0_4 = arith.constant 0 : index
    %3 = vector.load %arg6[%c0_3, %c0_4] : memref<1x128xf32, #tpu.memory_space<vmem>>, vector<1x128xf32>
    %4 = vector.broadcast %3 : vector<1x128xf32> to vector<256x128xf32>
    %5 = arith.mulf %2, %4 : vector<256x128xf32>
    %c0_5 = arith.constant 0 : index
    %c0_6 = arith.constant 0 : index
    %6 = vector.load %arg7[%c0_5, %c0_6] : memref<1x128xf32, #tpu.memory_space<vmem>>, vector<1x128xf32>
    %7 = vector.broadcast %6 : vector<1x128xf32> to vector<256x128xf32>
    %8 = arith.addf %5, %7 : vector<256x128xf32>
    %cst_7 = arith.constant 0.000000e+00 : f32
    %9 = vector.broadcast %cst_7 : f32 to vector<256x128xf32>
    %10 = arith.maximumf %8, %9 : vector<256x128xf32>
    %11 = arith.truncf %10 : vector<256x128xf32> to vector<256x128xbf16>
    %cst_8 = arith.constant 0.000000e+00 : bf16
    %12 = vector.broadcast %cst_8 : bf16 to vector<18x18x128xbf16>
    %c0_9 = arith.constant 0 : index
    %c0_10 = arith.constant 0 : index
    %c0_11 = arith.constant 0 : index
    %13 = vector.load %arg16[%c0_9, %c0_10, %c0_11] : memref<18x18x128xbf16, #tpu.memory_space<vmem>>, vector<18x18x128xbf16>
    tpu.vector_store %arg16[%c0_9, %c0_10, %c0_11], %12 {strides = array<i32>} : memref<18x18x128xbf16, #tpu.memory_space<vmem>>, vector<18x18x128xbf16>,
    %14 = vector.shape_cast %11 : vector<256x128xbf16> to vector<16x16x128xbf16>
    %c1 = arith.constant 1 : index
    %c1_12 = arith.constant 1 : index
    %c0_13 = arith.constant 0 : index
    %15 = vector.load %arg16[%c1, %c1_12, %c0_13] : memref<18x18x128xbf16, #tpu.memory_space<vmem>>, vector<16x16x128xbf16>
    tpu.vector_store %arg16[%c1, %c1_12, %c0_13], %14 {strides = array<i32>} : memref<18x18x128xbf16, #tpu.memory_space<vmem>>, vector<16x16x128xbf16>,
    %c0_14 = arith.constant 0 : index
    %c0_15 = arith.constant 0 : index
    %c0_16 = arith.constant 0 : index
    %16 = vector.load %arg16[%c0_14, %c0_15, %c0_16] : memref<18x18x128xbf16, #tpu.memory_space<vmem>>, vector<16x16x128xbf16>
    %17 = vector.shape_cast %16 : vector<16x16x128xbf16> to vector<256x128xbf16>
    %c0_17 = arith.constant 0 : index
    %c0_18 = arith.constant 0 : index
    %c0_19 = arith.constant 0 : index
    %18 = vector.load %arg3[%c0_17, %c0_18, %c0_19] : memref<9x128x128xbf16, #tpu.memory_space<vmem>>, vector<1x128x128xbf16>
    %19 = vector.shape_cast %18 : vector<1x128x128xbf16> to vector<128x128xbf16>
    %cst_20 = arith.constant dense<0.000000e+00> : vector<256x128xf32>
    %20 = tpu.matmul %17, %19, %cst_20 {dimension_numbers = #tpu.dot_dimension_numbers<[1], [0], [0], [1], [0, 0, 1, 1], [], []>} : vector<256x128xbf16>, vector<128x128xbf16>, vector<256x128xf32> -> vector<256x128xf32>
    %c0_21 = arith.constant 0 : index
    %c0_22 = arith.constant 0 : index
    %21 = vector.load %arg17[%c0_21, %c0_22] : memref<256x128xf32, #tpu.memory_space<vmem>>, vector<256x128xf32>
    tpu.vector_store %arg17[%c0_21, %c0_22], %20 {strides = array<i32>} : memref<256x128xf32, #tpu.memory_space<vmem>>, vector<256x128xf32>,
    %c0_23 = arith.constant 0 : index
    %c1_24 = arith.constant 1 : index
    %c0_25 = arith.constant 0 : index
    %22 = vector.load %arg16[%c0_23, %c1_24, %c0_25] : memref<18x18x128xbf16, #tpu.memory_space<vmem>>, vector<16x16x128xbf16>
    %23 = vector.shape_cast %22 : vector<16x16x128xbf16> to vector<256x128xbf16>
    %c1_26 = arith.constant 1 : index
    %c0_27 = arith.constant 0 : index
    %c0_28 = arith.constant 0 : index
    %24 = vector.load %arg3[%c1_26, %c0_27, %c0_28] : memref<9x128x128xbf16, #tpu.memory_space<vmem>>, vector<1x128x128xbf16>
    %25 = vector.shape_cast %24 : vector<1x128x128xbf16> to vector<128x128xbf16>
    %cst_29 = arith.constant dense<0.000000e+00> : vector<256x128xf32>
    %26 = tpu.matmul %23, %25, %cst_29 {dimension_numbers = #tpu.dot_dimension_numbers<[1], [0], [0], [1], [0, 0, 1, 1], [], []>} : vector<256x128xbf16>, vector<128x128xbf16>, vector<256x128xf32> -> vector<256x128xf32>
    %c0_30 = arith.constant 0 : index
    %c0_31 = arith.constant 0 : index
    %27 = vector.load %arg17[%c0_30, %c0_31] : memref<256x128xf32, #tpu.memory_space<vmem>>, vector<256x128xf32>
    %28 = arith.addf %27, %26 : vector<256x128xf32>
    %c0_32 = arith.constant 0 : index
    %c0_33 = arith.constant 0 : index
    %29 = vector.load %arg17[%c0_32, %c0_33] : memref<256x128xf32, #tpu.memory_space<vmem>>, vector<256x128xf32>
    tpu.vector_store %arg17[%c0_32, %c0_33], %28 {strides = array<i32>} : memref<256x128xf32, #tpu.memory_space<vmem>>, vector<256x128xf32>,
    %c0_34 = arith.constant 0 : index
    %c2 = arith.constant 2 : index
    %c0_35 = arith.constant 0 : index
    %30 = vector.load %arg16[%c0_34, %c2, %c0_35] : memref<18x18x128xbf16, #tpu.memory_space<vmem>>, vector<16x16x128xbf16>
    %31 = vector.shape_cast %30 : vector<16x16x128xbf16> to vector<256x128xbf16>
    %c2_36 = arith.constant 2 : index
    %c0_37 = arith.constant 0 : index
    %c0_38 = arith.constant 0 : index
    %32 = vector.load %arg3[%c2_36, %c0_37, %c0_38] : memref<9x128x128xbf16, #tpu.memory_space<vmem>>, vector<1x128x128xbf16>
    %33 = vector.shape_cast %32 : vector<1x128x128xbf16> to vector<128x128xbf16>
    %cst_39 = arith.constant dense<0.000000e+00> : vector<256x128xf32>
    %34 = tpu.matmul %31, %33, %cst_39 {dimension_numbers = #tpu.dot_dimension_numbers<[1], [0], [0], [1], [0, 0, 1, 1], [], []>} : vector<256x128xbf16>, vector<128x128xbf16>, vector<256x128xf32> -> vector<256x128xf32>
    %c0_40 = arith.constant 0 : index
    %c0_41 = arith.constant 0 : index
    %35 = vector.load %arg17[%c0_40, %c0_41] : memref<256x128xf32, #tpu.memory_space<vmem>>, vector<256x128xf32>
    %36 = arith.addf %35, %34 : vector<256x128xf32>
    %c0_42 = arith.constant 0 : index
    %c0_43 = arith.constant 0 : index
    %37 = vector.load %arg17[%c0_42, %c0_43] : memref<256x128xf32, #tpu.memory_space<vmem>>, vector<256x128xf32>
    tpu.vector_store %arg17[%c0_42, %c0_43], %36 {strides = array<i32>} : memref<256x128xf32, #tpu.memory_space<vmem>>, vector<256x128xf32>,
    %c1_44 = arith.constant 1 : index
    %c0_45 = arith.constant 0 : index
    %c0_46 = arith.constant 0 : index
    %38 = vector.load %arg16[%c1_44, %c0_45, %c0_46] : memref<18x18x128xbf16, #tpu.memory_space<vmem>>, vector<16x16x128xbf16>
    %39 = vector.shape_cast %38 : vector<16x16x128xbf16> to vector<256x128xbf16>
    %c3 = arith.constant 3 : index
    %c0_47 = arith.constant 0 : index
    %c0_48 = arith.constant 0 : index
    %40 = vector.load %arg3[%c3, %c0_47, %c0_48] : memref<9x128x128xbf16, #tpu.memory_space<vmem>>, vector<1x128x128xbf16>
    %41 = vector.shape_cast %40 : vector<1x128x128xbf16> to vector<128x128xbf16>
    %cst_49 = arith.constant dense<0.000000e+00> : vector<256x128xf32>
    %42 = tpu.matmul %39, %41, %cst_49 {dimension_numbers = #tpu.dot_dimension_numbers<[1], [0], [0], [1], [0, 0, 1, 1], [], []>} : vector<256x128xbf16>, vector<128x128xbf16>, vector<256x128xf32> -> vector<256x128xf32>
    %c0_50 = arith.constant 0 : index
    %c0_51 = arith.constant 0 : index
    %43 = vector.load %arg17[%c0_50, %c0_51] : memref<256x128xf32, #tpu.memory_space<vmem>>, vector<256x128xf32>
    %44 = arith.addf %43, %42 : vector<256x128xf32>
    %c0_52 = arith.constant 0 : index
    %c0_53 = arith.constant 0 : index
    %45 = vector.load %arg17[%c0_52, %c0_53] : memref<256x128xf32, #tpu.memory_space<vmem>>, vector<256x128xf32>
    tpu.vector_store %arg17[%c0_52, %c0_53], %44 {strides = array<i32>} : memref<256x128xf32, #tpu.memory_space<vmem>>, vector<256x128xf32>,
    %c1_54 = arith.constant 1 : index
    %c1_55 = arith.constant 1 : index
    %c0_56 = arith.constant 0 : index
    %46 = vector.load %arg16[%c1_54, %c1_55, %c0_56] : memref<18x18x128xbf16, #tpu.memory_space<vmem>>, vector<16x16x128xbf16>
    %47 = vector.shape_cast %46 : vector<16x16x128xbf16> to vector<256x128xbf16>
    %c4 = arith.constant 4 : index
    %c0_57 = arith.constant 0 : index
    %c0_58 = arith.constant 0 : index
    %48 = vector.load %arg3[%c4, %c0_57, %c0_58] : memref<9x128x128xbf16, #tpu.memory_space<vmem>>, vector<1x128x128xbf16>
    %49 = vector.shape_cast %48 : vector<1x128x128xbf16> to vector<128x128xbf16>
    %cst_59 = arith.constant dense<0.000000e+00> : vector<256x128xf32>
    %50 = tpu.matmul %47, %49, %cst_59 {dimension_numbers = #tpu.dot_dimension_numbers<[1], [0], [0], [1], [0, 0, 1, 1], [], []>} : vector<256x128xbf16>, vector<128x128xbf16>, vector<256x128xf32> -> vector<256x128xf32>
    %c0_60 = arith.constant 0 : index
    %c0_61 = arith.constant 0 : index
    %51 = vector.load %arg17[%c0_60, %c0_61] : memref<256x128xf32, #tpu.memory_space<vmem>>, vector<256x128xf32>
    %52 = arith.addf %51, %50 : vector<256x128xf32>
    %c0_62 = arith.constant 0 : index
    %c0_63 = arith.constant 0 : index
    %53 = vector.load %arg17[%c0_62, %c0_63] : memref<256x128xf32, #tpu.memory_space<vmem>>, vector<256x128xf32>
    tpu.vector_store %arg17[%c0_62, %c0_63], %52 {strides = array<i32>} : memref<256x128xf32, #tpu.memory_space<vmem>>, vector<256x128xf32>,
    %c1_64 = arith.constant 1 : index
    %c2_65 = arith.constant 2 : index
    %c0_66 = arith.constant 0 : index
    %54 = vector.load %arg16[%c1_64, %c2_65, %c0_66] : memref<18x18x128xbf16, #tpu.memory_space<vmem>>, vector<16x16x128xbf16>
    %55 = vector.shape_cast %54 : vector<16x16x128xbf16> to vector<256x128xbf16>
    %c5 = arith.constant 5 : index
    %c0_67 = arith.constant 0 : index
    %c0_68 = arith.constant 0 : index
    %56 = vector.load %arg3[%c5, %c0_67, %c0_68] : memref<9x128x128xbf16, #tpu.memory_space<vmem>>, vector<1x128x128xbf16>
    %57 = vector.shape_cast %56 : vector<1x128x128xbf16> to vector<128x128xbf16>
    %cst_69 = arith.constant dense<0.000000e+00> : vector<256x128xf32>
    %58 = tpu.matmul %55, %57, %cst_69 {dimension_numbers = #tpu.dot_dimension_numbers<[1], [0], [0], [1], [0, 0, 1, 1], [], []>} : vector<256x128xbf16>, vector<128x128xbf16>, vector<256x128xf32> -> vector<256x128xf32>
    %c0_70 = arith.constant 0 : index
    %c0_71 = arith.constant 0 : index
    %59 = vector.load %arg17[%c0_70, %c0_71] : memref<256x128xf32, #tpu.memory_space<vmem>>, vector<256x128xf32>
    %60 = arith.addf %59, %58 : vector<256x128xf32>
    %c0_72 = arith.constant 0 : index
    %c0_73 = arith.constant 0 : index
    %61 = vector.load %arg17[%c0_72, %c0_73] : memref<256x128xf32, #tpu.memory_space<vmem>>, vector<256x128xf32>
    tpu.vector_store %arg17[%c0_72, %c0_73], %60 {strides = array<i32>} : memref<256x128xf32, #tpu.memory_space<vmem>>, vector<256x128xf32>,
    %c2_74 = arith.constant 2 : index
    %c0_75 = arith.constant 0 : index
    %c0_76 = arith.constant 0 : index
    %62 = vector.load %arg16[%c2_74, %c0_75, %c0_76] : memref<18x18x128xbf16, #tpu.memory_space<vmem>>, vector<16x16x128xbf16>
    %63 = vector.shape_cast %62 : vector<16x16x128xbf16> to vector<256x128xbf16>
    %c6 = arith.constant 6 : index
    %c0_77 = arith.constant 0 : index
    %c0_78 = arith.constant 0 : index
    %64 = vector.load %arg3[%c6, %c0_77, %c0_78] : memref<9x128x128xbf16, #tpu.memory_space<vmem>>, vector<1x128x128xbf16>
    %65 = vector.shape_cast %64 : vector<1x128x128xbf16> to vector<128x128xbf16>
    %cst_79 = arith.constant dense<0.000000e+00> : vector<256x128xf32>
    %66 = tpu.matmul %63, %65, %cst_79 {dimension_numbers = #tpu.dot_dimension_numbers<[1], [0], [0], [1], [0, 0, 1, 1], [], []>} : vector<256x128xbf16>, vector<128x128xbf16>, vector<256x128xf32> -> vector<256x128xf32>
    %c0_80 = arith.constant 0 : index
    %c0_81 = arith.constant 0 : index
    %67 = vector.load %arg17[%c0_80, %c0_81] : memref<256x128xf32, #tpu.memory_space<vmem>>, vector<256x128xf32>
    %68 = arith.addf %67, %66 : vector<256x128xf32>
    %c0_82 = arith.constant 0 : index
    %c0_83 = arith.constant 0 : index
    %69 = vector.load %arg17[%c0_82, %c0_83] : memref<256x128xf32, #tpu.memory_space<vmem>>, vector<256x128xf32>
    tpu.vector_store %arg17[%c0_82, %c0_83], %68 {strides = array<i32>} : memref<256x128xf32, #tpu.memory_space<vmem>>, vector<256x128xf32>,
    %c2_84 = arith.constant 2 : index
    %c1_85 = arith.constant 1 : index
    %c0_86 = arith.constant 0 : index
    %70 = vector.load %arg16[%c2_84, %c1_85, %c0_86] : memref<18x18x128xbf16, #tpu.memory_space<vmem>>, vector<16x16x128xbf16>
    %71 = vector.shape_cast %70 : vector<16x16x128xbf16> to vector<256x128xbf16>
    %c7 = arith.constant 7 : index
    %c0_87 = arith.constant 0 : index
    %c0_88 = arith.constant 0 : index
    %72 = vector.load %arg3[%c7, %c0_87, %c0_88] : memref<9x128x128xbf16, #tpu.memory_space<vmem>>, vector<1x128x128xbf16>
    %73 = vector.shape_cast %72 : vector<1x128x128xbf16> to vector<128x128xbf16>
    %cst_89 = arith.constant dense<0.000000e+00> : vector<256x128xf32>
    %74 = tpu.matmul %71, %73, %cst_89 {dimension_numbers = #tpu.dot_dimension_numbers<[1], [0], [0], [1], [0, 0, 1, 1], [], []>} : vector<256x128xbf16>, vector<128x128xbf16>, vector<256x128xf32> -> vector<256x128xf32>
    %c0_90 = arith.constant 0 : index
    %c0_91 = arith.constant 0 : index
    %75 = vector.load %arg17[%c0_90, %c0_91] : memref<256x128xf32, #tpu.memory_space<vmem>>, vector<256x128xf32>
    %76 = arith.addf %75, %74 : vector<256x128xf32>
    %c0_92 = arith.constant 0 : index
    %c0_93 = arith.constant 0 : index
    %77 = vector.load %arg17[%c0_92, %c0_93] : memref<256x128xf32, #tpu.memory_space<vmem>>, vector<256x128xf32>
    tpu.vector_store %arg17[%c0_92, %c0_93], %76 {strides = array<i32>} : memref<256x128xf32, #tpu.memory_space<vmem>>, vector<256x128xf32>,
    %c2_94 = arith.constant 2 : index
    %c2_95 = arith.constant 2 : index
    %c0_96 = arith.constant 0 : index
    %78 = vector.load %arg16[%c2_94, %c2_95, %c0_96] : memref<18x18x128xbf16, #tpu.memory_space<vmem>>, vector<16x16x128xbf16>
    %79 = vector.shape_cast %78 : vector<16x16x128xbf16> to vector<256x128xbf16>
    %c8 = arith.constant 8 : index
    %c0_97 = arith.constant 0 : index
    %c0_98 = arith.constant 0 : index
    %80 = vector.load %arg3[%c8, %c0_97, %c0_98] : memref<9x128x128xbf16, #tpu.memory_space<vmem>>, vector<1x128x128xbf16>
    %81 = vector.shape_cast %80 : vector<1x128x128xbf16> to vector<128x128xbf16>
    %cst_99 = arith.constant dense<0.000000e+00> : vector<256x128xf32>
    %82 = tpu.matmul %79, %81, %cst_99 {dimension_numbers = #tpu.dot_dimension_numbers<[1], [0], [0], [1], [0, 0, 1, 1], [], []>} : vector<256x128xbf16>, vector<128x128xbf16>, vector<256x128xf32> -> vector<256x128xf32>
    %c0_100 = arith.constant 0 : index
    %c0_101 = arith.constant 0 : index
    %83 = vector.load %arg17[%c0_100, %c0_101] : memref<256x128xf32, #tpu.memory_space<vmem>>, vector<256x128xf32>
    %84 = arith.addf %83, %82 : vector<256x128xf32>
    %c0_102 = arith.constant 0 : index
    %c0_103 = arith.constant 0 : index
    %85 = vector.load %arg17[%c0_102, %c0_103] : memref<256x128xf32, #tpu.memory_space<vmem>>, vector<256x128xf32>
    tpu.vector_store %arg17[%c0_102, %c0_103], %84 {strides = array<i32>} : memref<256x128xf32, #tpu.memory_space<vmem>>, vector<256x128xf32>,
    %c0_104 = arith.constant 0 : index
    %c0_105 = arith.constant 0 : index
    %86 = vector.load %arg17[%c0_104, %c0_105] : memref<256x128xf32, #tpu.memory_space<vmem>>, vector<256x128xf32>
    %c0_106 = arith.constant 0 : index
    %c0_107 = arith.constant 0 : index
    %87 = vector.load %arg8[%c0_106, %c0_107] : memref<1x128xf32, #tpu.memory_space<vmem>>, vector<1x128xf32>
    %88 = vector.broadcast %87 : vector<1x128xf32> to vector<256x128xf32>
    %89 = arith.mulf %86, %88 : vector<256x128xf32>
    %c0_108 = arith.constant 0 : index
    %c0_109 = arith.constant 0 : index
    %90 = vector.load %arg9[%c0_108, %c0_109] : memref<1x128xf32, #tpu.memory_space<vmem>>, vector<1x128xf32>
    %91 = vector.broadcast %90 : vector<1x128xf32> to vector<256x128xf32>
    %92 = arith.addf %89, %91 : vector<256x128xf32>
    %cst_110 = arith.constant 0.000000e+00 : f32
    %93 = vector.broadcast %cst_110 : f32 to vector<256x128xf32>
    %94 = arith.maximumf %92, %93 : vector<256x128xf32>
    %95 = arith.truncf %94 : vector<256x128xf32> to vector<256x128xbf16>
    %c0_111 = arith.constant 0 : index
    %c0_112 = arith.constant 0 : index
    %96 = vector.load %arg4[%c0_111, %c0_112] : memref<128x128xbf16, #tpu.memory_space<vmem>>, vector<128x128xbf16>
    %cst_113 = arith.constant dense<0.000000e+00> : vector<256x128xf32>
    %97 = tpu.matmul %95, %96, %cst_113 {dimension_numbers = #tpu.dot_dimension_numbers<[1], [0], [0], [1], [0, 0, 1, 1], [], []>} : vector<256x128xbf16>, vector<128x128xbf16>, vector<256x128xf32> -> vector<256x128xf32>
    %c0_114 = arith.constant 0 : index
    %c0_115 = arith.constant 0 : index
    %98 = vector.load %arg10[%c0_114, %c0_115] : memref<1x128xf32, #tpu.memory_space<vmem>>, vector<1x128xf32>
    %99 = vector.broadcast %98 : vector<1x128xf32> to vector<256x128xf32>
    %100 = arith.mulf %97, %99 : vector<256x128xf32>
    %c0_116 = arith.constant 0 : index
    %c0_117 = arith.constant 0 : index
    %101 = vector.load %arg11[%c0_116, %c0_117] : memref<1x128xf32, #tpu.memory_space<vmem>>, vector<1x128xf32>
    %102 = vector.broadcast %101 : vector<1x128xf32> to vector<256x128xf32>
    %103 = arith.addf %100, %102 : vector<256x128xf32>
    %c0_118 = arith.constant 0 : index
    %c0_119 = arith.constant 0 : index
    %104 = vector.load %arg5[%c0_118, %c0_119] : memref<128x128xbf16, #tpu.memory_space<vmem>>, vector<128x128xbf16>
    %cst_120 = arith.constant dense<0.000000e+00> : vector<256x128xf32>
    %105 = tpu.matmul %0, %104, %cst_120 {dimension_numbers = #tpu.dot_dimension_numbers<[1], [0], [0], [1], [0, 0, 1, 1], [], []>} : vector<256x128xbf16>, vector<128x128xbf16>, vector<256x128xf32> -> vector<256x128xf32>
    %c0_121 = arith.constant 0 : index
    %c0_122 = arith.constant 0 : index
    %106 = vector.load %arg12[%c0_121, %c0_122] : memref<1x128xf32, #tpu.memory_space<vmem>>, vector<1x128xf32>
    %107 = vector.broadcast %106 : vector<1x128xf32> to vector<256x128xf32>
    %108 = arith.mulf %105, %107 : vector<256x128xf32>
    %c0_123 = arith.constant 0 : index
    %c0_124 = arith.constant 0 : index
    %109 = vector.load %arg13[%c0_123, %c0_124] : memref<1x128xf32, #tpu.memory_space<vmem>>, vector<1x128xf32>
    %110 = vector.broadcast %109 : vector<1x128xf32> to vector<256x128xf32>
    %111 = arith.addf %108, %110 : vector<256x128xf32>
    %112 = arith.addf %103, %111 : vector<256x128xf32>
    %cst_125 = arith.constant 0.000000e+00 : f32
    %113 = vector.broadcast %cst_125 : f32 to vector<256x128xf32>
    %114 = arith.maximumf %112, %113 : vector<256x128xf32>
    %c0_126 = arith.constant 0 : index
    %c0_127 = arith.constant 0 : index
    %115 = vector.load %arg14[%c0_126, %c0_127] : memref<256x128xf32, #tpu.memory_space<vmem>>, vector<256x128xf32>
    tpu.vector_store %arg14[%c0_126, %c0_127], %114 {strides = array<i32>} : memref<256x128xf32, #tpu.memory_space<vmem>>, vector<256x128xf32>,
    %c0_128 = arith.constant 0 : index
    %c0_129 = arith.constant 0 : index
    %116 = vector.load %arg15[%c0_128, %c0_129] : memref<256x128xf32, #tpu.memory_space<vmem>>, vector<256x128xf32>
    tpu.vector_store %arg15[%c0_128, %c0_129], %112 {strides = array<i32>} : memref<256x128xf32, #tpu.memory_space<vmem>>, vector<256x128xf32>,
    return
  }
  func.func @transform_0(%arg0: i32) -> (i32, i32) {
    %c0_i32 = arith.constant 0 : i32
    %c0_i32_0 = arith.constant 0 : i32
    return %arg0, %c0_i32 : i32, i32
  }
  func.func @transform_1(%arg0: i32) -> (i32, i32) {
    %c0_i32 = arith.constant 0 : i32
    %c0_i32_0 = arith.constant 0 : i32
    %c0_i32_1 = arith.constant 0 : i32
    return %c0_i32, %c0_i32_0 : i32, i32
  }
  func.func @transform_2(%arg0: i32) -> (i32, i32, i32) {
    %c0_i32 = arith.constant 0 : i32
    %c0_i32_0 = arith.constant 0 : i32
    %c0_i32_1 = arith.constant 0 : i32
    %c0_i32_2 = arith.constant 0 : i32
    return %c0_i32, %c0_i32_0, %c0_i32_1 : i32, i32, i32
  }
  func.func @transform_3(%arg0: i32) -> (i32, i32) {
    %c0_i32 = arith.constant 0 : i32
    %c0_i32_0 = arith.constant 0 : i32
    %c0_i32_1 = arith.constant 0 : i32
    return %c0_i32, %c0_i32_0 : i32, i32
  }
  func.func @transform_4(%arg0: i32) -> (i32, i32) {
    %c0_i32 = arith.constant 0 : i32
    %c0_i32_0 = arith.constant 0 : i32
    %c0_i32_1 = arith.constant 0 : i32
    return %c0_i32, %c0_i32_0 : i32, i32
  }
  func.func @transform_5(%arg0: i32) -> (i32, i32) {
    %c0_i32 = arith.constant 0 : i32
    %c0_i32_0 = arith.constant 0 : i32
    %c0_i32_1 = arith.constant 0 : i32
    return %c0_i32, %c0_i32_0 : i32, i32
  }
  func.func @transform_6(%arg0: i32) -> (i32, i32) {
    %c0_i32 = arith.constant 0 : i32
    %c0_i32_0 = arith.constant 0 : i32
    %c0_i32_1 = arith.constant 0 : i32
    return %c0_i32, %c0_i32_0 : i32, i32
  }
  func.func @transform_7(%arg0: i32) -> (i32, i32) {
    %c0_i32 = arith.constant 0 : i32
    %c0_i32_0 = arith.constant 0 : i32
    %c0_i32_1 = arith.constant 0 : i32
    return %c0_i32, %c0_i32_0 : i32, i32
  }
  func.func @transform_8(%arg0: i32) -> (i32, i32) {
    %c0_i32 = arith.constant 0 : i32
    %c0_i32_0 = arith.constant 0 : i32
    %c0_i32_1 = arith.constant 0 : i32
    return %c0_i32, %c0_i32_0 : i32, i32
  }
  func.func @transform_9(%arg0: i32) -> (i32, i32) {
    %c0_i32 = arith.constant 0 : i32
    %c0_i32_0 = arith.constant 0 : i32
    %c0_i32_1 = arith.constant 0 : i32
    return %c0_i32, %c0_i32_0 : i32, i32
  }
  func.func @transform_10(%arg0: i32) -> (i32, i32) {
    %c0_i32 = arith.constant 0 : i32
    %c0_i32_0 = arith.constant 0 : i32
    %c0_i32_1 = arith.constant 0 : i32
    return %c0_i32, %c0_i32_0 : i32, i32
  }
  func.func @transform_11(%arg0: i32) -> (i32, i32) {
    %c0_i32 = arith.constant 0 : i32
    %c0_i32_0 = arith.constant 0 : i32
    %c0_i32_1 = arith.constant 0 : i32
    return %c0_i32, %c0_i32_0 : i32, i32
  }
  func.func @transform_12(%arg0: i32) -> (i32, i32) {
    %c0_i32 = arith.constant 0 : i32
    %c0_i32_0 = arith.constant 0 : i32
    %c0_i32_1 = arith.constant 0 : i32
    return %c0_i32, %c0_i32_0 : i32, i32
  }
  func.func @transform_13(%arg0: i32) -> (i32, i32) {
    %c0_i32 = arith.constant 0 : i32
    %c0_i32_0 = arith.constant 0 : i32
    return %arg0, %c0_i32 : i32, i32
  }
  func.func @transform_14(%arg0: i32) -> (i32, i32) {
    %c0_i32 = arith.constant 0 : i32
    %c0_i32_0 = arith.constant 0 : i32
    return %arg0, %c0_i32 : i32, i32
  }
}

</mosaic_0001>

<llo_original>
// kernel: bottleneck_forward.1
$region0: #{bottleneck_forward.1}
  #allocation0 [shape = 'u32[]', space=smem, size = 0x4, offset = 0x4, fixed_abs, tag = 'smem constant byte address 0x4 - core index']
  #allocation1 [shape = 'u32[144,128]{1,0:T(1,128)}', space=vmem, size = 0x12000, scoped, tag = 'internal scratch']
  #allocation2 [shape = 'bf16[18,18,128]{2,1,0:T(8,128)(2,1)}', space=vmem, size = 0x1b000, scoped, tag = 'scratch operand']
  #allocation3 [shape = 'f32[256,128]{1,0:T(8,128)}', space=vmem, size = 0x20000, scoped, tag = 'scratch operand']
  %s0 = inlined_call_operand.vmem [shape: bf16[512,128], index: 0, kind: input, shape index: {}]
  %s1 = inlined_call_operand.vmem [shape: bf16[128,128], index: 1, kind: input, shape index: {}]
  %s2 = inlined_call_operand.vmem [shape: bf16[9,128,128], index: 2, kind: input, shape index: {}]
  %s3 = inlined_call_operand.vmem [shape: bf16[128,128], index: 3, kind: input, shape index: {}]
  %s4 = inlined_call_operand.vmem [shape: bf16[128,128], index: 4, kind: input, shape index: {}]
  %s5 = inlined_call_operand.vmem [shape: f32[1,128], index: 5, kind: input, shape index: {}]
  %s6 = inlined_call_operand.vmem [shape: f32[1,128], index: 6, kind: input, shape index: {}]
  %s7 = inlined_call_operand.vmem [shape: f32[1,128], index: 7, kind: input, shape index: {}]
  %s8 = inlined_call_operand.vmem [shape: f32[1,128], index: 8, kind: input, shape index: {}]
  %s9 = inlined_call_operand.vmem [shape: f32[1,128], index: 9, kind: input, shape index: {}]
  %s10 = inlined_call_operand.vmem [shape: f32[1,128], index: 10, kind: input, shape index: {}]
  %s11 = inlined_call_operand.vmem [shape: f32[1,128], index: 11, kind: input, shape index: {}]
  %s12 = inlined_call_operand.vmem [shape: f32[1,128], index: 12, kind: input, shape index: {}]
  %s13 = inlined_call_operand.vmem [shape: f32[512,128], index: 13, kind: output, shape index: {0}]
  %s14 = inlined_call_operand.vmem [shape: f32[512,128], index: 14, kind: output, shape index: {1}]
  %15 = xla_tuple %s13, %s14
  %s16 = sld [smem:[#allocation0]]
  $region93: #{bottleneck_forward.1} parent=0
    _
  %s18 = ssub.s32 1, %s16
  %s19 = scalar_select 0, %s18, %s16
  loop: start=0, step=1, limit=4
  $region2: #{bottleneck_forward.1} parent=0 // loop_pre_header
    _
  $region3: #{bottleneck_forward.1} parent=0 // loop_header
    %s21 = sphi 0, %s25
    %p22 = scmp.ge.s32.totalorder %s21, 4
    %s31 = sphi 0, %s33
    %s34 = sphi 0, %s31
    %s35 = sphi 0, %s34
    %s51 = sphi 0, %s35
    %s55 = sphi 0, %s55
    %s57 = sphi 0, %s55
    %s58 = sphi 0, %s57
    %s72 = sphi 0, %s58
    %s76 = sphi 0, %s76
    %s78 = sphi 0, %s76
    %s79 = sphi 0, %s78
    %s93 = sphi 0, %s79
    %s97 = sphi 0, %s97
    %s99 = sphi 0, %s97
    %s100 = sphi 0, %s99
    %s114 = sphi 0, %s100
    %s118 = sphi 0, %s118
    %s120 = sphi 0, %s118
    %s121 = sphi 0, %s120
    %s135 = sphi 0, %s121
    %s139 = sphi 0, %s139
    %s141 = sphi 0, %s139
    %s142 = sphi 0, %s141
    %s156 = sphi 0, %s142
    %s160 = sphi 0, %s160
    %s162 = sphi 0, %s160
    %s163 = sphi 0, %s162
    %s177 = sphi 0, %s163
    %s181 = sphi 0, %s181
    %s183 = sphi 0, %s181
    %s184 = sphi 0, %s183
    %s198 = sphi 0, %s184
    %s202 = sphi 0, %s202
    %s204 = sphi 0, %s202
    %s205 = sphi 0, %s204
    %s219 = sphi 0, %s205
    %s223 = sphi 0, %s223
    %s225 = sphi 0, %s223
    %s226 = sphi 0, %s225
    %s240 = sphi 0, %s226
    %s244 = sphi 0, %s244
    %s246 = sphi 0, %s244
    %s247 = sphi 0, %s246
    %s261 = sphi 0, %s247
    %s265 = sphi 0, %s265
    %s267 = sphi 0, %s265
    %s268 = sphi 0, %s267
    %s282 = sphi 0, %s268
    %s286 = sphi 0, %s286
    %s288 = sphi 0, %s286
    %s289 = sphi 0, %s288
    %s303 = sphi 0, %s289
    %s309 = sphi 0, %s311
    %s312 = sphi 0, %s309
    %s313 = sphi 0, %s312
    %s329 = sphi 0, %s313
    %s335 = sphi 0, %s337
    %s338 = sphi 0, %s335
    %s339 = sphi 0, %s338
    %s355 = sphi 0, %s339
  $region4: #{bottleneck_forward.1} parent=0 // loop_header_branch
    %24 = sbr.rel (%p22) target = $region8
  $region5: #{bottleneck_forward.1} parent=0 // loop_body
    %s26 = ssub.s32 %s21, 1
    %s27 = ssub.s32 %s21, 2
    %s28 = sadd.s32 %s21, 1
    %s29 = ssub.s32 %s21, %s28
    %p30 = scmp.eq.s32.totalorder %s29, 0
    %s32 = sadd.s32 %s31, 1
    %s33 = scalar_select %p30, %s31, %s32
    %p36 = pneg %p30
    %p37 = scmp.eq.s32.totalorder %s21, 1
    %p38 = por %p36, %p37
    %p39 = scmp.ne.s32.totalorder %s31, %s34
    %p40 = scmp.eq.s32.totalorder %s21, 0
    %p41 = por %p39, %p40
    %p42 = scmp.ne.s32.totalorder %s31, %s34
    %p43 = scmp.eq.s32.totalorder %s26, 1
    %p44 = por %p42, %p43
    %p45 = scmp.ne.s32.totalorder %s34, %s35
    %p46 = scmp.eq.s32.totalorder %s26, 0
    %p47 = por %p45, %p46
    %p48 = scmp.ne.s32.totalorder %s34, %s35
    %p49 = scmp.eq.s32.totalorder %s27, 1
    %p50 = por %p48, %p49
    %p52 = scmp.ne.s32.totalorder %s35, %s51
    %p53 = scmp.eq.s32.totalorder %s27, 0
    %p54 = por %p52, %p53
    %s56 = sadd.s32 %s55, 1
    %p59 = scmp.eq.s32.totalorder %s21, 1
    %p60 = scmp.ne.s32.totalorder %s55, %s57
    %p61 = scmp.eq.s32.totalorder %s21, 0
    %p62 = por %p60, %p61
    %p63 = scmp.ne.s32.totalorder %s55, %s57
    %p64 = scmp.eq.s32.totalorder %s26, 1
    %p65 = por %p63, %p64
    %p66 = scmp.ne.s32.totalorder %s57, %s58
    %p67 = scmp.eq.s32.totalorder %s26, 0
    %p68 = por %p66, %p67
    %p69 = scmp.ne.s32.totalorder %s57, %s58
    %p70 = scmp.eq.s32.totalorder %s27, 1
    %p71 = por %p69, %p70
    %p73 = scmp.ne.s32.totalorder %s58, %s72
    %p74 = scmp.eq.s32.totalorder %s27, 0
    %p75 = por %p73, %p74
    %s77 = sadd.s32 %s76, 1
    %p80 = scmp.eq.s32.totalorder %s21, 1
    %p81 = scmp.ne.s32.totalorder %s76, %s78
    %p82 = scmp.eq.s32.totalorder %s21, 0
    %p83 = por %p81, %p82
    %p84 = scmp.ne.s32.totalorder %s76, %s78
    %p85 = scmp.eq.s32.totalorder %s26, 1
    %p86 = por %p84, %p85
    %p87 = scmp.ne.s32.totalorder %s78, %s79
    %p88 = scmp.eq.s32.totalorder %s26, 0
    %p89 = por %p87, %p88
    %p90 = scmp.ne.s32.totalorder %s78, %s79
    %p91 = scmp.eq.s32.totalorder %s27, 1
    %p92 = por %p90, %p91
    %p94 = scmp.ne.s32.totalorder %s79, %s93
    %p95 = scmp.eq.s32.totalorder %s27, 0
    %p96 = por %p94, %p95
    %s98 = sadd.s32 %s97, 1
    %p101 = scmp.eq.s32.totalorder %s21, 1
    %p102 = scmp.ne.s32.totalorder %s97, %s99
    %p103 = scmp.eq.s32.totalorder %s21, 0
    %p104 = por %p102, %p103
    %p105 = scmp.ne.s32.totalorder %s97, %s99
    %p106 = scmp.eq.s32.totalorder %s26, 1
    %p107 = por %p105, %p106
    %p108 = scmp.ne.s32.totalorder %s99, %s100
    %p109 = scmp.eq.s32.totalorder %s26, 0
    %p110 = por %p108, %p109
    %p111 = scmp.ne.s32.totalorder %s99, %s100
    %p112 = scmp.eq.s32.totalorder %s27, 1
    %p113 = por %p111, %p112
    %p115 = scmp.ne.s32.totalorder %s100, %s114
    %p116 = scmp.eq.s32.totalorder %s27, 0
    %p117 = por %p115, %p116
    %s119 = sadd.s32 %s118, 1
    %p122 = scmp.eq.s32.totalorder %s21, 1
    %p123 = scmp.ne.s32.totalorder %s118, %s120
    %p124 = scmp.eq.s32.totalorder %s21, 0
    %p125 = por %p123, %p124
    %p126 = scmp.ne.s32.totalorder %s118, %s120
    %p127 = scmp.eq.s32.totalorder %s26, 1
    %p128 = por %p126, %p127
    %p129 = scmp.ne.s32.totalorder %s120, %s121
    %p130 = scmp.eq.s32.totalorder %s26, 0
    %p131 = por %p129, %p130
    %p132 = scmp.ne.s32.totalorder %s120, %s121
    %p133 = scmp.eq.s32.totalorder %s27, 1
    %p134 = por %p132, %p133
    %p136 = scmp.ne.s32.totalorder %s121, %s135
    %p137 = scmp.eq.s32.totalorder %s27, 0
    %p138 = por %p136, %p137
    %s140 = sadd.s32 %s139, 1
    %p143 = scmp.eq.s32.totalorder %s21, 1
    %p144 = scmp.ne.s32.totalorder %s139, %s141
    %p145 = scmp.eq.s32.totalorder %s21, 0
    %p146 = por %p144, %p145
    %p147 = scmp.ne.s32.totalorder %s139, %s141
    %p148 = scmp.eq.s32.totalorder %s26, 1
    %p149 = por %p147, %p148
    %p150 = scmp.ne.s32.totalorder %s141, %s142
    %p151 = scmp.eq.s32.totalorder %s26, 0
    %p152 = por %p150, %p151
    %p153 = scmp.ne.s32.totalorder %s141, %s142
    %p154 = scmp.eq.s32.totalorder %s27, 1
    %p155 = por %p153, %p154
    %p157 = scmp.ne.s32.totalorder %s142, %s156
    %p158 = scmp.eq.s32.totalorder %s27, 0
    %p159 = por %p157, %p158
    %s161 = sadd.s32 %s160, 1
    %p164 = scmp.eq.s32.totalorder %s21, 1
    %p165 = scmp.ne.s32.totalorder %s160, %s162
    %p166 = scmp.eq.s32.totalorder %s21, 0
    %p167 = por %p165, %p166
    %p168 = scmp.ne.s32.totalorder %s160, %s162
    %p169 = scmp.eq.s32.totalorder %s26, 1
    %p170 = por %p168, %p169
    %p171 = scmp.ne.s32.totalorder %s162, %s163
    %p172 = scmp.eq.s32.totalorder %s26, 0
    %p173 = por %p171, %p172
    %p174 = scmp.ne.s32.totalorder %s162, %s163
    %p175 = scmp.eq.s32.totalorder %s27, 1
    %p176 = por %p174, %p175
    %p178 = scmp.ne.s32.totalorder %s163, %s177
    %p179 = scmp.eq.s32.totalorder %s27, 0
    %p180 = por %p178, %p179
    %s182 = sadd.s32 %s181, 1
    %p185 = scmp.eq.s32.totalorder %s21, 1
    %p186 = scmp.ne.s32.totalorder %s181, %s183
    %p187 = scmp.eq.s32.totalorder %s21, 0
    %p188 = por %p186, %p187
    %p189 = scmp.ne.s32.totalorder %s181, %s183
    %p190 = scmp.eq.s32.totalorder %s26, 1
    %p191 = por %p189, %p190
    %p192 = scmp.ne.s32.totalorder %s183, %s184
    %p193 = scmp.eq.s32.totalorder %s26, 0
    %p194 = por %p192, %p193
    %p195 = scmp.ne.s32.totalorder %s183, %s184
    %p196 = scmp.eq.s32.totalorder %s27, 1
    %p197 = por %p195, %p196
    %p199 = scmp.ne.s32.totalorder %s184, %s198
    %p200 = scmp.eq.s32.totalorder %s27, 0
    %p201 = por %p199, %p200
    %s203 = sadd.s32 %s202, 1
    %p206 = scmp.eq.s32.totalorder %s21, 1
    %p207 = scmp.ne.s32.totalorder %s202, %s204
    %p208 = scmp.eq.s32.totalorder %s21, 0
    %p209 = por %p207, %p208
    %p210 = scmp.ne.s32.totalorder %s202, %s204
    %p211 = scmp.eq.s32.totalorder %s26, 1
    %p212 = por %p210, %p211
    %p213 = scmp.ne.s32.totalorder %s204, %s205
    %p214 = scmp.eq.s32.totalorder %s26, 0
    %p215 = por %p213, %p214
    %p216 = scmp.ne.s32.totalorder %s204, %s205
    %p217 = scmp.eq.s32.totalorder %s27, 1
    %p218 = por %p216, %p217
    %p220 = scmp.ne.s32.totalorder %s205, %s219
    %p221 = scmp.eq.s32.totalorder %s27, 0
    %p222 = por %p220, %p221
    %s224 = sadd.s32 %s223, 1
    %p227 = scmp.eq.s32.totalorder %s21, 1
    %p228 = scmp.ne.s32.totalorder %s223, %s225
    %p229 = scmp.eq.s32.totalorder %s21, 0
    %p230 = por %p228, %p229
    %p231 = scmp.ne.s32.totalorder %s223, %s225
    %p232 = scmp.eq.s32.totalorder %s26, 1
    %p233 = por %p231, %p232
    %p234 = scmp.ne.s32.totalorder %s225, %s226
    %p235 = scmp.eq.s32.totalorder %s26, 0
    %p236 = por %p234, %p235
    %p237 = scmp.ne.s32.totalorder %s225, %s226
    %p238 = scmp.eq.s32.totalorder %s27, 1
    %p239 = por %p237, %p238
    %p241 = scmp.ne.s32.totalorder %s226, %s240
    %p242 = scmp.eq.s32.totalorder %s27, 0
    %p243 = por %p241, %p242
    %s245 = sadd.s32 %s244, 1
    %p248 = scmp.eq.s32.totalorder %s21, 1
    %p249 = scmp.ne.s32.totalorder %s244, %s246
    %p250 = scmp.eq.s32.totalorder %s21, 0
    %p251 = por %p249, %p250
    %p252 = scmp.ne.s32.totalorder %s244, %s246
    %p253 = scmp.eq.s32.totalorder %s26, 1
    %p254 = por %p252, %p253
    %p255 = scmp.ne.s32.totalorder %s246, %s247
    %p256 = scmp.eq.s32.totalorder %s26, 0
    %p257 = por %p255, %p256
    %p258 = scmp.ne.s32.totalorder %s246, %s247
    %p259 = scmp.eq.s32.totalorder %s27, 1
    %p260 = por %p258, %p259
    %p262 = scmp.ne.s32.totalorder %s247, %s261
    %p263 = scmp.eq.s32.totalorder %s27, 0
    %p264 = por %p262, %p263
    %s266 = sadd.s32 %s265, 1
    %p269 = scmp.eq.s32.totalorder %s21, 1
    %p270 = scmp.ne.s32.totalorder %s265, %s267
    %p271 = scmp.eq.s32.totalorder %s21, 0
    %p272 = por %p270, %p271
    %p273 = scmp.ne.s32.totalorder %s265, %s267
    %p274 = scmp.eq.s32.totalorder %s26, 1
    %p275 = por %p273, %p274
    %p276 = scmp.ne.s32.totalorder %s267, %s268
    %p277 = scmp.eq.s32.totalorder %s26, 0
    %p278 = por %p276, %p277
    %p279 = scmp.ne.s32.totalorder %s267, %s268
    %p280 = scmp.eq.s32.totalorder %s27, 1
    %p281 = por %p279, %p280
    %p283 = scmp.ne.s32.totalorder %s268, %s282
    %p284 = scmp.eq.s32.totalorder %s27, 0
    %p285 = por %p283, %p284
    %s287 = sadd.s32 %s286, 1
    %p290 = scmp.eq.s32.totalorder %s21, 1
    %p291 = scmp.ne.s32.totalorder %s286, %s288
    %p292 = scmp.eq.s32.totalorder %s21, 0
    %p293 = por %p291, %p292
    %p294 = scmp.ne.s32.totalorder %s286, %s288
    %p295 = scmp.eq.s32.totalorder %s26, 1
    %p296 = por %p294, %p295
    %p297 = scmp.ne.s32.totalorder %s288, %s289
    %p298 = scmp.eq.s32.totalorder %s26, 0
    %p299 = por %p297, %p298
    %p300 = scmp.ne.s32.totalorder %s288, %s289
    %p301 = scmp.eq.s32.totalorder %s27, 1
    %p302 = por %p300, %p301
    %p304 = scmp.ne.s32.totalorder %s289, %s303
    %p305 = scmp.eq.s32.totalorder %s27, 0
    %p306 = por %p304, %p305
    %s307 = ssub.s32 %s21, %s28
    %p308 = scmp.eq.s32.totalorder %s307, 0
    %s310 = sadd.s32 %s309, 1
    %s311 = scalar_select %p308, %s309, %s310
    %p314 = pneg %p308
    %p315 = scmp.eq.s32.totalorder %s21, 1
    %p316 = por %p314, %p315
    %p317 = scmp.ne.s32.totalorder %s309, %s312
    %p318 = scmp.eq.s32.totalorder %s21, 0
    %p319 = por %p317, %p318
    %p320 = scmp.ne.s32.totalorder %s309, %s312
    %p321 = scmp.eq.s32.totalorder %s26, 1
    %p322 = por %p320, %p321
    %p323 = scmp.ne.s32.totalorder %s312, %s313
    %p324 = scmp.eq.s32.totalorder %s26, 0
    %p325 = por %p323, %p324
    %p326 = scmp.ne.s32.totalorder %s312, %s313
    %p327 = scmp.eq.s32.totalorder %s27, 1
    %p328 = por %p326, %p327
    %p330 = scmp.ne.s32.totalorder %s313, %s329
    %p331 = scmp.eq.s32.totalorder %s27, 0
    %p332 = por %p330, %p331
    %s333 = ssub.s32 %s21, %s28
    %p334 = scmp.eq.s32.totalorder %s333, 0
    %s336 = sadd.s32 %s335, 1
    %s337 = scalar_select %p334, %s335, %s336
    %p340 = pneg %p334
    %p341 = scmp.eq.s32.totalorder %s21, 1
    %p342 = por %p340, %p341
    %p343 = scmp.ne.s32.totalorder %s335, %s338
    %p344 = scmp.eq.s32.totalorder %s21, 0
    %p345 = por %p343, %p344
    %p346 = scmp.ne.s32.totalorder %s335, %s338
    %p347 = scmp.eq.s32.totalorder %s26, 1
    %p348 = por %p346, %p347
    %p349 = scmp.ne.s32.totalorder %s338, %s339
    %p350 = scmp.eq.s32.totalorder %s26, 0
    %p351 = por %p349, %p350
    %p352 = scmp.ne.s32.totalorder %s338, %s339
    %p353 = scmp.eq.s32.totalorder %s27, 1
    %p354 = por %p352, %p353
    %p356 = scmp.ne.s32.totalorder %s339, %s355
    %p357 = scmp.eq.s32.totalorder %s27, 0
    %p358 = por %p356, %p357
    %p359 = scmp.le.s32.totalorder 1, %s21
    %p360 = scmp.lt.s32.totalorder %s21, 3
    %p361 = pnand %p359, %p360
    %p362 = pneg %p361
    // Predicated region
    $region9: #{bottleneck_forward.1} parent=5 // pred_check
      _
    $region10: #{bottleneck_forward.1} parent=5 // pred_check_branch
      %364 = sbr.rel (%p361) target = $region12
    $region11: #{bottleneck_forward.1} parent=5 // pred_region
      %s365 = ssub.s32 %s21, 1
      // Predicated region
      $region13: #{bottleneck_forward.1} parent=11 // pred_check
        %p366 = pneg %p68
      $region14: #{bottleneck_forward.1} parent=11 // pred_check_branch
        %368 = sbr.rel (%p366) target = $region16
      $region15: #{bottleneck_forward.1} parent=11 // pred_region
        _
      $region16: #{bottleneck_forward.1} parent=11 // pred_fallthru
        _
      // Predicated region
      $region17: #{bottleneck_forward.1} parent=11 // pred_check
        %p369 = pneg %p89
      $region18: #{bottleneck_forward.1} parent=11 // pred_check_branch
        %371 = sbr.rel (%p369) target = $region20
      $region19: #{bottleneck_forward.1} parent=11 // pred_region
        _
      $region20: #{bottleneck_forward.1} parent=11 // pred_fallthru
        _
      // Predicated region
      $region21: #{bottleneck_forward.1} parent=11 // pred_check
        %p372 = pneg %p110
      $region22: #{bottleneck_forward.1} parent=11 // pred_check_branch
        %374 = sbr.rel (%p372) target = $region24
      $region23: #{bottleneck_forward.1} parent=11 // pred_region
        _
      $region24: #{bottleneck_forward.1} parent=11 // pred_fallthru
        _
      // Predicated region
      $region25: #{bottleneck_forward.1} parent=11 // pred_check
        %p375 = pneg %p131
      $region26: #{bottleneck_forward.1} parent=11 // pred_check_branch
        %377 = sbr.rel (%p375) target = $region28
      $region27: #{bottleneck_forward.1} parent=11 // pred_region
        _
      $region28: #{bottleneck_forward.1} parent=11 // pred_fallthru
        _
      // Predicated region
      $region29: #{bottleneck_forward.1} parent=11 // pred_check
        %p378 = pneg %p152
      $region30: #{bottleneck_forward.1} parent=11 // pred_check_branch
        %380 = sbr.rel (%p378) target = $region32
      $region31: #{bottleneck_forward.1} parent=11 // pred_region
        _
      $region32: #{bottleneck_forward.1} parent=11 // pred_fallthru
        _
      // Predicated region
      $region33: #{bottleneck_forward.1} parent=11 // pred_check
        %p381 = pneg %p173
      $region34: #{bottleneck_forward.1} parent=11 // pred_check_branch
        %383 = sbr.rel (%p381) target = $region36
      $region35: #{bottleneck_forward.1} parent=11 // pred_region
        _
      $region36: #{bottleneck_forward.1} parent=11 // pred_fallthru
        _
      // Predicated region
      $region37: #{bottleneck_forward.1} parent=11 // pred_check
        %p384 = pneg %p194
      $region38: #{bottleneck_forward.1} parent=11 // pred_check_branch
        %386 = sbr.rel (%p384) target = $region40
      $region39: #{bottleneck_forward.1} parent=11 // pred_region
        _
      $region40: #{bottleneck_forward.1} parent=11 // pred_fallthru
        _
      // Predicated region
      $region41: #{bottleneck_forward.1} parent=11 // pred_check
        %p387 = pneg %p215
      $region42: #{bottleneck_forward.1} parent=11 // pred_check_branch
        %389 = sbr.rel (%p387) target = $region44
      $region43: #{bottleneck_forward.1} parent=11 // pred_region
        _
      $region44: #{bottleneck_forward.1} parent=11 // pred_fallthru
        _
      // Predicated region
      $region45: #{bottleneck_forward.1} parent=11 // pred_check
        %p390 = pneg %p236
      $region46: #{bottleneck_forward.1} parent=11 // pred_check_branch
        %392 = sbr.rel (%p390) target = $region48
      $region47: #{bottleneck_forward.1} parent=11 // pred_region
        _
      $region48: #{bottleneck_forward.1} parent=11 // pred_fallthru
        _
      // Predicated region
      $region49: #{bottleneck_forward.1} parent=11 // pred_check
        %p393 = pneg %p257
      $region50: #{bottleneck_forward.1} parent=11 // pred_check_branch
        %395 = sbr.rel (%p393) target = $region52
      $region51: #{bottleneck_forward.1} parent=11 // pred_region
        _
      $region52: #{bottleneck_forward.1} parent=11 // pred_fallthru
        _
      // Predicated region
      $region53: #{bottleneck_forward.1} parent=11 // pred_check
        %p396 = pneg %p278
      $region54: #{bottleneck_forward.1} parent=11 // pred_check_branch
        %398 = sbr.rel (%p396) target = $region56
      $region55: #{bottleneck_forward.1} parent=11 // pred_region
        _
      $region56: #{bottleneck_forward.1} parent=11 // pred_fallthru
        _
      // Predicated region
      $region57: #{bottleneck_forward.1} parent=11 // pred_check
        %p399 = pneg %p299
      $region58: #{bottleneck_forward.1} parent=11 // pred_check_branch
        %401 = sbr.rel (%p399) target = $region60
      $region59: #{bottleneck_forward.1} parent=11 // pred_region
        _
      $region60: #{bottleneck_forward.1} parent=11 // pred_fallthru
        _
    $region12: #{bottleneck_forward.1} parent=5 // pred_fallthru
      _
    %p402 = scmp.lt.s32.totalorder %s21, 2
    // Predicated region
    $region61: #{bottleneck_forward.1} parent=5 // pred_check
      %p403 = pneg %p402
    $region62: #{bottleneck_forward.1} parent=5 // pred_check_branch
      %405 = sbr.rel (%p403) target = $region64
    $region63: #{bottleneck_forward.1} parent=5 // pred_region
      // Predicated region
      $region65: #{bottleneck_forward.1} parent=63 // pred_check
        %p406 = pneg %p41
      $region66: #{bottleneck_forward.1} parent=63 // pred_check_branch
        %408 = sbr.rel (%p406) target = $region68
      $region67: #{bottleneck_forward.1} parent=63 // pred_region
        %s409 = smul.u32 32, %s21
        %p410 = scmp.lt.s32.totalorder %s409, 63
        %s411 = scalar_select %p410, %s409, 63
        %s412 = smul.addr %s411, 4
        %s413 = scalar_lea.vmem %s0, %s412
        %s414 = smul.u32 32, %s21
      $region68: #{bottleneck_forward.1} parent=63 // pred_fallthru
        _
    $region64: #{bottleneck_forward.1} parent=5 // pred_fallthru
      _
    %p415 = scmp.le.s32.totalorder 1, %s21
    %p416 = scmp.lt.s32.totalorder %s21, 3
    %p417 = pnand %p415, %p416
    %p418 = pneg %p417
    // Predicated region
    $region69: #{bottleneck_forward.1} parent=5 // pred_check
      _
    $region70: #{bottleneck_forward.1} parent=5 // pred_check_branch
      %420 = sbr.rel (%p417) target = $region72
    $region71: #{bottleneck_forward.1} parent=5 // pred_region
      %s421 = ssub.s32 %s21, 1
      %s422 = smul.u32 32, %s26
      %p423 = scmp.lt.s32.totalorder %s422, 63
      %s424 = scalar_select %p423, %s422, 63
      %s425 = smul.addr %s424, 4
      %s426 = scalar_lea.vmem %s0, %s425
      %p427 = pneg %p47
      %p428 = pneg %p44
      %p429 = pneg %p68
      %p430 = pneg %p65
      %p431 = pneg %p89
      %p432 = pneg %p86
      %p433 = pneg %p110
      %p434 = pneg %p107
      %p435 = pneg %p131
      %p436 = pneg %p128
      %p437 = pneg %p152
      %p438 = pneg %p149
      %p439 = pneg %p173
      %p440 = pneg %p170
      %p441 = pneg %p194
      %p442 = pneg %p191
      %p443 = pneg %p215
      %p444 = pneg %p212
      %p445 = pneg %p236
      %p446 = pneg %p233
      %p447 = pneg %p257
      %p448 = pneg %p254
      %p449 = pneg %p278
      %p450 = pneg %p275
      %p451 = pneg %p299
      %p452 = pneg %p296
      %p453 = pneg %p325
      %p454 = pneg %p322
      %s455 = smul.u32 32, %s26
      %p456 = scmp.lt.s32.totalorder %s455, 63
      %s457 = scalar_select %p456, %s455, 63
      %s458 = smul.addr %s457, 8
      %s459 = scalar_lea.vmem %s13, %s458
      %p460 = pneg %p351
      %p461 = pneg %p348
      %s462 = smul.u32 32, %s26
      %p463 = scmp.lt.s32.totalorder %s462, 63
      %s464 = scalar_select %p463, %s462, 63
      %s465 = smul.addr %s464, 8
      %s466 = scalar_lea.vmem %s14, %s465
      %s467 = smul.u32 32, %s26
      %p468 = scmp.lt.s32.totalorder %s467, 63
      %s469 = scalar_select %p468, %s467, 63
      %s470 = smul.addr %s469, 4
      %s471 = scalar_lea.vmem %s0, %s470
      %s472 = smul.u32 32, %s26
      %s473 = smul.u32 32, %s26
      %p474 = scmp.lt.s32.totalorder %s473, 63
      %s475 = scalar_select %p474, %s473, 63
      %s476 = smul.addr %s475, 8
      %s477 = scalar_lea.vmem %s13, %s476
      %s478 = smul.u32 32, %s26
      %s479 = smul.u32 32, %s26
      %p480 = scmp.lt.s32.totalorder %s479, 63
      %s481 = scalar_select %p480, %s479, 63
      %s482 = smul.addr %s481, 8
      %s483 = scalar_lea.vmem %s14, %s482
      %s484 = smul.u32 32, %s26
      %v486 = vld [vmem:[%s471] sm:$0xf]
      %v487 = vld [vmem:[%s471 + $0x4] sm:$0xf]
      %v488 = vld [vmem:[%s471 + $0x8] sm:$0xf]
      %v489 = vld [vmem:[%s471 + $0xc] sm:$0xf]
      %v490 = vld [vmem:[%s471 + $0x10] sm:$0xf]
      %v491 = vld [vmem:[%s471 + $0x14] sm:$0xf]
      %v492 = vld [vmem:[%s471 + $0x18] sm:$0xf]
      %v493 = vld [vmem:[%s471 + $0x1c] sm:$0xf]
      %v494 = vld [vmem:[%s471 + $0x20] sm:$0xf]
      %v495 = vld [vmem:[%s471 + $0x24] sm:$0xf]
      %v496 = vld [vmem:[%s471 + $0x28] sm:$0xf]
      %v497 = vld [vmem:[%s471 + $0x2c] sm:$0xf]
      %v498 = vld [vmem:[%s471 + $0x30] sm:$0xf]
      %v499 = vld [vmem:[%s471 + $0x34] sm:$0xf]
      %v500 = vld [vmem:[%s471 + $0x38] sm:$0xf]
      %v501 = vld [vmem:[%s471 + $0x3c] sm:$0xf]
      %v502 = vld [vmem:[%s471 + $0x40] sm:$0xf]
      %v503 = vld [vmem:[%s471 + $0x44] sm:$0xf]
      %v504 = vld [vmem:[%s471 + $0x48] sm:$0xf]
      %v505 = vld [vmem:[%s471 + $0x4c] sm:$0xf]
      %v506 = vld [vmem:[%s471 + $0x50] sm:$0xf]
      %v507 = vld [vmem:[%s471 + $0x54] sm:$0xf]
      %v508 = vld [vmem:[%s471 + $0x58] sm:$0xf]
      %v509 = vld [vmem:[%s471 + $0x5c] sm:$0xf]
      %v510 = vld [vmem:[%s471 + $0x60] sm:$0xf]
      %v511 = vld [vmem:[%s471 + $0x64] sm:$0xf]
      %v512 = vld [vmem:[%s471 + $0x68] sm:$0xf]
      %v513 = vld [vmem:[%s471 + $0x6c] sm:$0xf]
      %v514 = vld [vmem:[%s471 + $0x70] sm:$0xf]
      %v515 = vld [vmem:[%s471 + $0x74] sm:$0xf]
      %v516 = vld [vmem:[%s471 + $0x78] sm:$0xf]
      %v517 = vld [vmem:[%s471 + $0x7c] sm:$0xf]
      %v518 = vld [vmem:[%s1] sm:$0xf]
      %v519 = vld [vmem:[%s1 + $0x4] sm:$0xf]
      %v520 = vld [vmem:[%s1 + $0x8] sm:$0xf]
      %v521 = vld [vmem:[%s1 + $0xc] sm:$0xf]
      %v522 = vld [vmem:[%s1 + $0x10] sm:$0xf]
      %v523 = vld [vmem:[%s1 + $0x14] sm:$0xf]
      %v524 = vld [vmem:[%s1 + $0x18] sm:$0xf]
      %v525 = vld [vmem:[%s1 + $0x1c] sm:$0xf]
      %v526 = vld [vmem:[%s1 + $0x20] sm:$0xf]
      %v527 = vld [vmem:[%s1 + $0x24] sm:$0xf]
      %v528 = vld [vmem:[%s1 + $0x28] sm:$0xf]
      %v529 = vld [vmem:[%s1 + $0x2c] sm:$0xf]
      %v530 = vld [vmem:[%s1 + $0x30] sm:$0xf]
      %v531 = vld [vmem:[%s1 + $0x34] sm:$0xf]
      %v532 = vld [vmem:[%s1 + $0x38] sm:$0xf]
      %v533 = vld [vmem:[%s1 + $0x3c] sm:$0xf]
      %v566 = vunpack.c.l.b16 %v486
      %v567 = vunpack.c.l.b16 %v487
      %v568 = vunpack.c.l.b16 %v488
      %v569 = vunpack.c.l.b16 %v489
      %v570 = vunpack.c.l.b16 %v490
      %v571 = vunpack.c.l.b16 %v491
      %v572 = vunpack.c.l.b16 %v492
      %v573 = vunpack.c.l.b16 %v493
      %v574 = vunpack.c.l.b16 %v494
      %v575 = vunpack.c.l.b16 %v495
      %v576 = vunpack.c.l.b16 %v496
      %v577 = vunpack.c.l.b16 %v497
      %v578 = vunpack.c.l.b16 %v498
      %v579 = vunpack.c.l.b16 %v499
      %v580 = vunpack.c.l.b16 %v500
      %v581 = vunpack.c.l.b16 %v501
      %v582 = vunpack.c.l.b16 %v502
      %v583 = vunpack.c.l.b16 %v503
      %v584 = vunpack.c.l.b16 %v504
      %v585 = vunpack.c.l.b16 %v505
      %v586 = vunpack.c.l.b16 %v506
      %v587 = vunpack.c.l.b16 %v507
      %v588 = vunpack.c.l.b16 %v508
      %v589 = vunpack.c.l.b16 %v509
      %v590 = vunpack.c.l.b16 %v510
      %v591 = vunpack.c.l.b16 %v511
      %v592 = vunpack.c.l.b16 %v512
      %v593 = vunpack.c.l.b16 %v513
      %v594 = vunpack.c.l.b16 %v514
      %v595 = vunpack.c.l.b16 %v515
      %v596 = vunpack.c.l.b16 %v516
      %v597 = vunpack.c.l.b16 %v517
      %v598 = vpack.c.b16 %v567, %v566
      %v599 = vpack.c.b16 %v569, %v568
      %v600 = vpack.c.b16 %v571, %v570
      %v601 = vpack.c.b16 %v573, %v572
      %v602 = vpack.c.b16 %v575, %v574
      %v603 = vpack.c.b16 %v577, %v576
      %v604 = vpack.c.b16 %v579, %v578
      %v605 = vpack.c.b16 %v581, %v580
      %v606 = vpack.c.b16 %v583, %v582
      %v607 = vpack.c.b16 %v585, %v584
      %v608 = vpack.c.b16 %v587, %v586
      %v609 = vpack.c.b16 %v589, %v588
      %v610 = vpack.c.b16 %v591, %v590
      %v611 = vpack.c.b16 %v593, %v592
      %v612 = vpack.c.b16 %v595, %v594
      %v613 = vpack.c.b16 %v597, %v596
      %v646 = vunpack.c.l.b16 %v518
      %v647 = vunpack.c.l.b16 %v519
      %v648 = vunpack.c.l.b16 %v520
      %v649 = vunpack.c.l.b16 %v521
      %v650 = vunpack.c.l.b16 %v522
      %v651 = vunpack.c.l.b16 %v523
      %v652 = vunpack.c.l.b16 %v524
      %v653 = vunpack.c.l.b16 %v525
      %v654 = vunpack.c.l.b16 %v526
      %v655 = vunpack.c.l.b16 %v527
      %v656 = vunpack.c.l.b16 %v528
      %v657 = vunpack.c.l.b16 %v529
      %v658 = vunpack.c.l.b16 %v530
      %v659 = vunpack.c.l.b16 %v531
      %v660 = vunpack.c.l.b16 %v532
      %v661 = vunpack.c.l.b16 %v533
      %v662 = vpack.c.b16 %v647, %v646
      %v663 = vpack.c.b16 %v649, %v648
      %v664 = vpack.c.b16 %v651, %v650
      %v665 = vpack.c.b16 %v653, %v652
      %v666 = vpack.c.b16 %v655, %v654
      %v667 = vpack.c.b16 %v657, %v656
      %v668 = vpack.c.b16 %v659, %v658
      %v669 = vpack.c.b16 %v661, %v660
      %678 = vmatprep.subr.bf16.mxu0 0
      %679 = vmatpush1.bf16.msra.mxu0 %v662
      %680 = vmatprep.subr.bf16.mxu0 0
      %681 = vmatpush1.bf16.msra.mxu0 %v663
      %682 = vmatprep.subr.bf16.mxu0 0
      %683 = vmatpush1.bf16.msra.mxu0 %v664
      %684 = vmatprep.subr.bf16.mxu0 0
      %685 = vmatpush1.bf16.msra.mxu0 %v665
      %686 = vmatprep.subr.bf16.mxu0 0
      %687 = vmatpush1.bf16.msra.mxu0 %v666
      %688 = vmatprep.subr.bf16.mxu0 0
      %689 = vmatpush1.bf16.msra.mxu0 %v667
      %690 = vmatprep.subr.bf16.mxu0 0
      %691 = vmatpush1.bf16.msra.mxu0 %v668
      %692 = vmatprep.subr.bf16.mxu0 0
      %693 = vmatpush1.bf16.msra.mxu0 %v669
      %694 = vmatprep.subr.bf16.mxu0 0
      %695 = vmatpush1.bf16.msra.mxu0 0
      %696 = vmatprep.subr.bf16.mxu0 0
      %697 = vmatpush1.bf16.msra.mxu0 0
      %698 = vmatprep.subr.bf16.mxu0 0
      %699 = vmatpush1.bf16.msra.mxu0 0
      %700 = vmatprep.subr.bf16.mxu0 0
      %701 = vmatpush1.bf16.msra.mxu0 0
      %702 = vmatprep.subr.bf16.mxu0 0
      %703 = vmatpush1.bf16.msra.mxu0 0
      %704 = vmatprep.subr.bf16.mxu0 0
      %705 = vmatpush1.bf16.msra.mxu0 0
      %706 = vmatprep.subr.bf16.mxu0 0
      %707 = vmatpush1.bf16.msra.mxu0 0
      %708 = vmatprep.subr.bf16.mxu0 0
      %709 = vmatpush1.bf16.msra.mxu0 0
      %710 = vmatprep.mubr.bf16.mxu0 0
      %711 = vmatmul.mubr.bf16.gmra.mrb[0].mxu0 %v598
      %v712 = vpop.f32.mrb[0].mxu0
      %v713 = vadd.f32 0.0, %v712
      %v714 = vpop.f32.mrb[0].mxu0
      %v715 = vpop.f32.mrb[0].mxu0
      %v716 = vadd.f32 0.0, %v715
      %v717 = vpop.f32.mrb[0].mxu0
      %718 = vmatprep.mubr.bf16.mxu0 0
      %719 = vmatmul.mubr.bf16.gmra.mrb[0].mxu0 %v599
      %v720 = vpop.f32.mrb[0].mxu0
      %v721 = vadd.f32 0.0, %v720
      %v722 = vpop.f32.mrb[0].mxu0
      %v723 = vpop.f32.mrb[0].mxu0
      %v724 = vadd.f32 0.0, %v723
      %v725 = vpop.f32.mrb[0].mxu0
      %726 = vmatprep.mubr.bf16.mxu0 0
      %727 = vmatmul.mubr.bf16.gmra.mrb[0].mxu0 %v600
      %v728 = vpop.f32.mrb[0].mxu0
      %v729 = vadd.f32 0.0, %v728
      %v730 = vpop.f32.mrb[0].mxu0
      %v731 = vpop.f32.mrb[0].mxu0
      %v732 = vadd.f32 0.0, %v731
      %v733 = vpop.f32.mrb[0].mxu0
      %734 = vmatprep.mubr.bf16.mxu0 0
      %735 = vmatmul.mubr.bf16.gmra.mrb[0].mxu0 %v601
      %v736 = vpop.f32.mrb[0].mxu0
      %v737 = vadd.f32 0.0, %v736
      %v738 = vpop.f32.mrb[0].mxu0
      %v739 = vpop.f32.mrb[0].mxu0
      %v740 = vadd.f32 0.0, %v739
      %v741 = vpop.f32.mrb[0].mxu0
      %742 = vmatprep.mubr.bf16.mxu0 0
      %743 = vmatmul.mubr.bf16.gmra.mrb[0].mxu0 %v602
      %v744 = vpop.f32.mrb[0].mxu0
      %v745 = vadd.f32 0.0, %v744
      %v746 = vpop.f32.mrb[0].mxu0
      %v747 = vpop.f32.mrb[0].mxu0
      %v748 = vadd.f32 0.0, %v747
      %v749 = vpop.f32.mrb[0].mxu0
      %750 = vmatprep.mubr.bf16.mxu0 0
      %751 = vmatmul.mubr.bf16.gmra.mrb[0].mxu0 %v603
      %v752 = vpop.f32.mrb[0].mxu0
      %v753 = vadd.f32 0.0, %v752
      %v754 = vpop.f32.mrb[0].mxu0
      %v755 = vpop.f32.mrb[0].mxu0
      %v756 = vadd.f32 0.0, %v755
      %v757 = vpop.f32.mrb[0].mxu0
      %758 = vmatprep.mubr.bf16.mxu0 0
      %759 = vmatmul.mubr.bf16.gmra.mrb[0].mxu0 %v604
      %v760 = vpop.f32.mrb[0].mxu0
      %v761 = vadd.f32 0.0, %v760
      %v762 = vpop.f32.mrb[0].mxu0
      %v763 = vpop.f32.mrb[0].mxu0
      %v764 = vadd.f32 0.0, %v763
      %v765 = vpop.f32.mrb[0].mxu0
      %766 = vmatprep.mubr.bf16.mxu0 0
      %767 = vmatmul.mubr.bf16.gmra.mrb[0].mxu0 %v605
      %v768 = vpop.f32.mrb[0].mxu0
      %v769 = vadd.f32 0.0, %v768
      %v770 = vpop.f32.mrb[0].mxu0
      %v771 = vpop.f32.mrb[0].mxu0
      %v772 = vadd.f32 0.0, %v771
      %v773 = vpop.f32.mrb[0].mxu0
      %774 = vmatprep.mubr.bf16.mxu0 0
      %775 = vmatmul.mubr.bf16.gmra.mrb[0].mxu0 %v606
      %v776 = vpop.f32.mrb[0].mxu0
      %v777 = vadd.f32 0.0, %v776
      %v778 = vpop.f32.mrb[0].mxu0
      %v779 = vpop.f32.mrb[0].mxu0
      %v780 = vadd.f32 0.0, %v779
      %v781 = vpop.f32.mrb[0].mxu0
      %782 = vmatprep.mubr.bf16.mxu0 0
      %783 = vmatmul.mubr.bf16.gmra.mrb[0].mxu0 %v607
      %v784 = vpop.f32.mrb[0].mxu0
      %v785 = vadd.f32 0.0, %v784
      %v786 = vpop.f32.mrb[0].mxu0
      %v787 = vpop.f32.mrb[0].mxu0
      %v788 = vadd.f32 0.0, %v787
      %v789 = vpop.f32.mrb[0].mxu0
      %790 = vmatprep.mubr.bf16.mxu0 0
      %791 = vmatmul.mubr.bf16.gmra.mrb[0].mxu0 %v608
      %v792 = vpop.f32.mrb[0].mxu0
      %v793 = vadd.f32 0.0, %v792
      %v794 = vpop.f32.mrb[0].mxu0
      %v795 = vpop.f32.mrb[0].mxu0
      %v796 = vadd.f32 0.0, %v795
      %v797 = vpop.f32.mrb[0].mxu0
      %798 = vmatprep.mubr.bf16.mxu0 0
      %799 = vmatmul.mubr.bf16.gmra.mrb[0].mxu0 %v609
      %v800 = vpop.f32.mrb[0].mxu0
      %v801 = vadd.f32 0.0, %v800
      %v802 = vpop.f32.mrb[0].mxu0
      %v803 = vpop.f32.mrb[0].mxu0
      %v804 = vadd.f32 0.0, %v803
      %v805 = vpop.f32.mrb[0].mxu0
      %806 = vmatprep.mubr.bf16.mxu0 0
      %807 = vmatmul.mubr.bf16.gmra.mrb[0].mxu0 %v610
      %v808 = vpop.f32.mrb[0].mxu0
      %v809 = vadd.f32 0.0, %v808
      %v810 = vpop.f32.mrb[0].mxu0
      %v811 = vpop.f32.mrb[0].mxu0
      %v812 = vadd.f32 0.0, %v811
      %v813 = vpop.f32.mrb[0].mxu0
      %814 = vmatprep.mubr.bf16.mxu0 0
      %815 = vmatmul.mubr.bf16.gmra.mrb[0].mxu0 %v611
      %v816 = vpop.f32.mrb[0].mxu0
      %v817 = vadd.f32 0.0, %v816
      %v818 = vpop.f32.mrb[0].mxu0
      %v819 = vpop.f32.mrb[0].mxu0
      %v820 = vadd.f32 0.0, %v819
      %v821 = vpop.f32.mrb[0].mxu0
      %822 = vmatprep.mubr.bf16.mxu0 0
      %823 = vmatmul.mubr.bf16.gmra.mrb[0].mxu0 %v612
      %v824 = vpop.f32.mrb[0].mxu0
      %v825 = vadd.f32 0.0, %v824
      %v826 = vpop.f32.mrb[0].mxu0
      %v827 = vpop.f32.mrb[0].mxu0
      %v828 = vadd.f32 0.0, %v827
      %v829 = vpop.f32.mrb[0].mxu0
      %830 = vmatprep.mubr.bf16.mxu0 0
      %831 = vmatmul.mubr.bf16.gmra.mrb[0].mxu0 %v613
      %v832 = vpop.f32.mrb[0].mxu0
      %v833 = vadd.f32 0.0, %v832
      %v834 = vpop.f32.mrb[0].mxu0
      %v835 = vpop.f32.mrb[0].mxu0
      %v836 = vadd.f32 0.0, %v835
      %v837 = vpop.f32.mrb[0].mxu0
      %838 = vdwg.mxu0
      %v839 = vld [vmem:[%s5] sm:$0x1]
      %v841 = vlaneseq
      %v842 = vshrl.u32 %v841, 7
      %v843 = vsub.s32 0, %v842
      %v844 = vrot.slane %v839, %v843
      %v846 = vmul.f32 %v713, %v844
      %v847 = vmul.f32 %v716, %v844
      %v848 = vmul.f32 %v721, %v844
      %v849 = vmul.f32 %v724, %v844
      %v850 = vmul.f32 %v729, %v844
      %v851 = vmul.f32 %v732, %v844
      %v852 = vmul.f32 %v737, %v844
      %v853 = vmul.f32 %v740, %v844
      %v854 = vmul.f32 %v745, %v844
      %v855 = vmul.f32 %v748, %v844
      %v856 = vmul.f32 %v753, %v844
      %v857 = vmul.f32 %v756, %v844
      %v858 = vmul.f32 %v761, %v844
      %v859 = vmul.f32 %v764, %v844
      %v860 = vmul.f32 %v769, %v844
      %v861 = vmul.f32 %v772, %v844
      %v862 = vmul.f32 %v777, %v844
      %v863 = vmul.f32 %v780, %v844
      %v864 = vmul.f32 %v785, %v844
      %v865 = vmul.f32 %v788, %v844
      %v866 = vmul.f32 %v793, %v844
      %v867 = vmul.f32 %v796, %v844
      %v868 = vmul.f32 %v801, %v844
      %v869 = vmul.f32 %v804, %v844
      %v870 = vmul.f32 %v809, %v844
      %v871 = vmul.f32 %v812, %v844
      %v872 = vmul.f32 %v817, %v844
      %v873 = vmul.f32 %v820, %v844
      %v874 = vmul.f32 %v825, %v844
      %v875 = vmul.f32 %v828, %v844
      %v876 = vmul.f32 %v833, %v844
      %v877 = vmul.f32 %v836, %v844
      %v878 = vld [vmem:[%s6] sm:$0x1]
      %v880 = vlaneseq
      %v881 = vshrl.u32 %v880, 7
      %v882 = vsub.s32 0, %v881
      %v883 = vrot.slane %v878, %v882
      %v885 = vadd.f32 %v846, %v883
      %v886 = vadd.f32 %v847, %v883
      %v887 = vadd.f32 %v848, %v883
      %v888 = vadd.f32 %v849, %v883
      %v889 = vadd.f32 %v850, %v883
      %v890 = vadd.f32 %v851, %v883
      %v891 = vadd.f32 %v852, %v883
      %v892 = vadd.f32 %v853, %v883
      %v893 = vadd.f32 %v854, %v883
      %v894 = vadd.f32 %v855, %v883
      %v895 = vadd.f32 %v856, %v883
      %v896 = vadd.f32 %v857, %v883
      %v897 = vadd.f32 %v858, %v883
      %v898 = vadd.f32 %v859, %v883
      %v899 = vadd.f32 %v860, %v883
      %v900 = vadd.f32 %v861, %v883
      %v901 = vadd.f32 %v862, %v883
      %v902 = vadd.f32 %v863, %v883
      %v903 = vadd.f32 %v864, %v883
      %v904 = vadd.f32 %v865, %v883
      %v905 = vadd.f32 %v866, %v883
      %v906 = vadd.f32 %v867, %v883
      %v907 = vadd.f32 %v868, %v883
      %v908 = vadd.f32 %v869, %v883
      %v909 = vadd.f32 %v870, %v883
      %v910 = vadd.f32 %v871, %v883
      %v911 = vadd.f32 %v872, %v883
      %v912 = vadd.f32 %v873, %v883
      %v913 = vadd.f32 %v874, %v883
      %v914 = vadd.f32 %v875, %v883
      %v915 = vadd.f32 %v876, %v883
      %v916 = vadd.f32 %v877, %v883
      %v917 = vmax.f32 %v885, 0.0
      %v918 = vmax.f32 %v886, 0.0
      %v919 = vmax.f32 %v887, 0.0
      %v920 = vmax.f32 %v888, 0.0
      %v921 = vmax.f32 %v889, 0.0
      %v922 = vmax.f32 %v890, 0.0
      %v923 = vmax.f32 %v891, 0.0
      %v924 = vmax.f32 %v892, 0.0
      %v925 = vmax.f32 %v893, 0.0
      %v926 = vmax.f32 %v894, 0.0
      %v927 = vmax.f32 %v895, 0.0
      %v928 = vmax.f32 %v896, 0.0
      %v929 = vmax.f32 %v897, 0.0
      %v930 = vmax.f32 %v898, 0.0
      %v931 = vmax.f32 %v899, 0.0
      %v932 = vmax.f32 %v900, 0.0
      %v933 = vmax.f32 %v901, 0.0
      %v934 = vmax.f32 %v902, 0.0
      %v935 = vmax.f32 %v903, 0.0
      %v936 = vmax.f32 %v904, 0.0
      %v937 = vmax.f32 %v905, 0.0
      %v938 = vmax.f32 %v906, 0.0
      %v939 = vmax.f32 %v907, 0.0
      %v940 = vmax.f32 %v908, 0.0
      %v941 = vmax.f32 %v909, 0.0
      %v942 = vmax.f32 %v910, 0.0
      %v943 = vmax.f32 %v911, 0.0
      %v944 = vmax.f32 %v912, 0.0
      %v945 = vmax.f32 %v913, 0.0
      %v946 = vmax.f32 %v914, 0.0
      %v947 = vmax.f32 %v915, 0.0
      %v948 = vmax.f32 %v916, 0.0
      %v949 = vpack.c.bf16 %v918, %v917
      %v950 = vpack.c.bf16 %v920, %v919
      %v951 = vpack.c.bf16 %v922, %v921
      %v952 = vpack.c.bf16 %v924, %v923
      %v953 = vpack.c.bf16 %v926, %v925
      %v954 = vpack.c.bf16 %v928, %v927
      %v955 = vpack.c.bf16 %v930, %v929
      %v956 = vpack.c.bf16 %v932, %v931
      %v957 = vpack.c.bf16 %v934, %v933
      %v958 = vpack.c.bf16 %v936, %v935
      %v959 = vpack.c.bf16 %v938, %v937
      %v960 = vpack.c.bf16 %v940, %v939
      %v961 = vpack.c.bf16 %v942, %v941
      %v962 = vpack.c.bf16 %v944, %v943
      %v963 = vpack.c.bf16 %v946, %v945
      %v964 = vpack.c.bf16 %v948, %v947
      %965 = vst [vmem:[#allocation2] sm:$0xf] 0
      %966 = vst [vmem:[#allocation2 + $0x4] sm:$0xf] 0
      %967 = vst [vmem:[#allocation2 + $0x8] sm:$0x1] 0
      %968 = vst [vmem:[#allocation2 + $0xc] sm:$0xf] 0
      %969 = vst [vmem:[#allocation2 + $0x10] sm:$0xf] 0
      %970 = vst [vmem:[#allocation2 + $0x14] sm:$0x1] 0
      %971 = vst [vmem:[#allocation2 + $0x18] sm:$0xf] 0
      %972 = vst [vmem:[#allocation2 + $0x1c] sm:$0xf] 0
      %973 = vst [vmem:[#allocation2 + $0x20] sm:$0x1] 0
      %974 = vst [vmem:[#allocation2 + $0x24] sm:$0xf] 0
      %975 = vst [vmem:[#allocation2 + $0x28] sm:$0xf] 0
      %976 = vst [vmem:[#allocation2 + $0x2c] sm:$0x1] 0
      %977 = vst [vmem:[#allocation2 + $0x30] sm:$0xf] 0
      %978 = vst [vmem:[#allocation2 + $0x34] sm:$0xf] 0
      %979 = vst [vmem:[#allocation2 + $0x38] sm:$0x1] 0
      %980 = vst [vmem:[#allocation2 + $0x3c] sm:$0xf] 0
      %981 = vst [vmem:[#allocation2 + $0x40] sm:$0xf] 0
      %982 = vst [vmem:[#allocation2 + $0x44] sm:$0x1] 0
      %983 = vst [vmem:[#allocation2 + $0x48] sm:$0xf] 0
      %984 = vst [vmem:[#allocation2 + $0x4c] sm:$0xf] 0
      %985 = vst [vmem:[#allocation2 + $0x50] sm:$0x1] 0
      %986 = vst [vmem:[#allocation2 + $0x54] sm:$0xf] 0
      %987 = vst [vmem:[#allocation2 + $0x58] sm:$0xf] 0
      %988 = vst [vmem:[#allocation2 + $0x5c] sm:$0x1] 0
      %989 = vst [vmem:[#allocation2 + $0x60] sm:$0xf] 0
      %990 = vst [vmem:[#allocation2 + $0x64] sm:$0xf] 0
      %991 = vst [vmem:[#allocation2 + $0x68] sm:$0x1] 0
      %992 = vst [vmem:[#allocation2 + $0x6c] sm:$0xf] 0
      %993 = vst [vmem:[#allocation2 + $0x70] sm:$0xf] 0
      %994 = vst [vmem:[#allocation2 + $0x74] sm:$0x1] 0
      %995 = vst [vmem:[#allocation2 + $0x78] sm:$0xf] 0
      %996 = vst [vmem:[#allocation2 + $0x7c] sm:$0xf] 0
      %997 = vst [vmem:[#allocation2 + $0x80] sm:$0x1] 0
      %998 = vst [vmem:[#allocation2 + $0x84] sm:$0xf] 0
      %999 = vst [vmem:[#allocation2 + $0x88] sm:$0xf] 0
      %1000 = vst [vmem:[#allocation2 + $0x8c] sm:$0x1] 0
      %1001 = vst [vmem:[#allocation2 + $0x90] sm:$0xf] 0
      %1002 = vst [vmem:[#allocation2 + $0x94] sm:$0xf] 0
      %1003 = vst [vmem:[#allocation2 + $0x98] sm:$0x1] 0
      %1004 = vst [vmem:[#allocation2 + $0x9c] sm:$0xf] 0
      %1005 = vst [vmem:[#allocation2 + $0xa0] sm:$0xf] 0
      %1006 = vst [vmem:[#allocation2 + $0xa4] sm:$0x1] 0
      %1007 = vst [vmem:[#allocation2 + $0xa8] sm:$0xf] 0
      %1008 = vst [vmem:[#allocation2 + $0xac] sm:$0xf] 0
      %1009 = vst [vmem:[#allocation2 + $0xb0] sm:$0x1] 0
      %1010 = vst [vmem:[#allocation2 + $0xb4] sm:$0xf] 0
      %1011 = vst [vmem:[#allocation2 + $0xb8] sm:$0xf] 0
      %1012 = vst [vmem:[#allocation2 + $0xbc] sm:$0x1] 0
      %1013 = vst [vmem:[#allocation2 + $0xc0] sm:$0xf] 0
      %1014 = vst [vmem:[#allocation2 + $0xc4] sm:$0xf] 0
      %1015 = vst [vmem:[#allocation2 + $0xc8] sm:$0x1] 0
      %1016 = vst [vmem:[#allocation2 + $0xcc] sm:$0xf] 0
      %1017 = vst [vmem:[#allocation2 + $0xd0] sm:$0xf] 0
      %1018 = vst [vmem:[#allocation2 + $0xd4] sm:$0x1] 0
      %v1035 = vunpack.c.l.b16 %v949
      %v1036 = vunpack.c.h.b16 %v949
      %v1037 = vunpack.c.l.b16 %v950
      %v1038 = vunpack.c.h.b16 %v950
      %v1039 = vunpack.c.l.b16 %v951
      %v1040 = vunpack.c.h.b16 %v951
      %v1041 = vunpack.c.l.b16 %v952
      %v1042 = vunpack.c.h.b16 %v952
      %v1043 = vunpack.c.l.b16 %v953
      %v1044 = vunpack.c.h.b16 %v953
      %v1045 = vunpack.c.l.b16 %v954
      %v1046 = vunpack.c.h.b16 %v954
      %v1047 = vunpack.c.l.b16 %v955
      %v1048 = vunpack.c.h.b16 %v955
      %v1049 = vunpack.c.l.b16 %v956
      %v1050 = vunpack.c.h.b16 %v956
      %v1051 = vunpack.c.l.b16 %v957
      %v1052 = vunpack.c.h.b16 %v957
      %v1053 = vunpack.c.l.b16 %v958
      %v1054 = vunpack.c.h.b16 %v958
      %v1055 = vunpack.c.l.b16 %v959
      %v1056 = vunpack.c.h.b16 %v959
      %v1057 = vunpack.c.l.b16 %v960
      %v1058 = vunpack.c.h.b16 %v960
      %v1059 = vunpack.c.l.b16 %v961
      %v1060 = vunpack.c.h.b16 %v961
      %v1061 = vunpack.c.l.b16 %v962
      %v1062 = vunpack.c.h.b16 %v962
      %v1063 = vunpack.c.l.b16 %v963
      %v1064 = vunpack.c.h.b16 %v963
      %v1065 = vunpack.c.l.b16 %v964
      %v1066 = vunpack.c.h.b16 %v964
      %v1067 = vpack.c.b16 %v1035, %v1035
      %v1068 = vpack.c.b16 %v1036, %v1036
      %v1069 = vpack.c.b16 %v1037, %v1037
      %v1070 = vpack.c.b16 %v1038, %v1038
      %v1071 = vpack.c.b16 %v1039, %v1039
      %v1072 = vpack.c.b16 %v1040, %v1040
      %v1073 = vpack.c.b16 %v1041, %v1041
      %v1074 = vpack.c.b16 %v1042, %v1042
      %v1075 = vpack.c.b16 %v1043, %v1043
      %v1076 = vpack.c.b16 %v1044, %v1044
      %v1077 = vpack.c.b16 %v1045, %v1045
      %v1078 = vpack.c.b16 %v1046, %v1046
      %v1079 = vpack.c.b16 %v1047, %v1047
      %v1080 = vpack.c.b16 %v1048, %v1048
      %v1081 = vpack.c.b16 %v1049, %v1049
      %v1082 = vpack.c.b16 %v1050, %v1050
      %v1083 = vpack.c.b16 %v1051, %v1051
      %v1084 = vpack.c.b16 %v1052, %v1052
      %v1085 = vpack.c.b16 %v1053, %v1053
      %v1086 = vpack.c.b16 %v1054, %v1054
      %v1087 = vpack.c.b16 %v1055, %v1055
      %v1088 = vpack.c.b16 %v1056, %v1056
      %v1089 = vpack.c.b16 %v1057, %v1057
      %v1090 = vpack.c.b16 %v1058, %v1058
      %v1091 = vpack.c.b16 %v1059, %v1059
      %v1092 = vpack.c.b16 %v1060, %v1060
      %v1093 = vpack.c.b16 %v1061, %v1061
      %v1094 = vpack.c.b16 %v1062, %v1062
      %v1095 = vpack.c.b16 %v1063, %v1063
      %v1096 = vpack.c.b16 %v1064, %v1064
      %v1097 = vpack.c.b16 %v1065, %v1065
      %v1098 = vpack.c.b16 %v1066, %v1066
      %vm1099 = vsmask.f32 256
      %vm1100 = vsmask.f32 4368
      %vm1101 = vmor %vm1099, %vm1100
      %v1103 = vshrl.u32 %v1067, 16
      %v1105 = vrot.slane %v1103, 7
      %v1106 = vshll.u32 %v1067, 16
      %v1108 = vor.u32 %v1105, %v1106
      %v1109 = vrot.slane %v1105, 4
      %v1111 = vshrl.u32 %v1068, 16
      %v1113 = vrot.slane %v1111, 7
      %v1114 = vshll.u32 %v1068, 16
      %v1116 = vor.u32 %v1113, %v1114
      %v1117 = vsel %vm1101, %v1109, %v1116
      %v1118 = vrot.slane %v1113, 4
      %v1120 = vshrl.u32 %v1069, 16
      %v1122 = vrot.slane %v1120, 7
      %v1123 = vshll.u32 %v1069, 16
      %v1125 = vor.u32 %v1122, %v1123
      %v1126 = vrot.slane %v1122, 4
      %v1128 = vshrl.u32 %v1070, 16
      %v1130 = vrot.slane %v1128, 7
      %v1131 = vshll.u32 %v1070, 16
      %v1133 = vor.u32 %v1130, %v1131
      %v1134 = vsel %vm1101, %v1126, %v1133
      %v1135 = vrot.slane %v1130, 4
      %v1137 = vshrl.u32 %v1071, 16
      %v1139 = vrot.slane %v1137, 7
      %v1140 = vshll.u32 %v1071, 16
      %v1142 = vor.u32 %v1139, %v1140
      %v1143 = vrot.slane %v1139, 4
      %v1145 = vshrl.u32 %v1072, 16
      %v1147 = vrot.slane %v1145, 7
      %v1148 = vshll.u32 %v1072, 16
      %v1150 = vor.u32 %v1147, %v1148
      %v1151 = vsel %vm1101, %v1143, %v1150
      %v1152 = vrot.slane %v1147, 4
      %v1154 = vshrl.u32 %v1073, 16
      %v1156 = vrot.slane %v1154, 7
      %v1157 = vshll.u32 %v1073, 16
      %v1159 = vor.u32 %v1156, %v1157
      %v1160 = vrot.slane %v1156, 4
      %v1162 = vshrl.u32 %v1074, 16
      %v1164 = vrot.slane %v1162, 7
      %v1165 = vshll.u32 %v1074, 16
      %v1167 = vor.u32 %v1164, %v1165
      %v1168 = vsel %vm1101, %v1160, %v1167
      %v1169 = vrot.slane %v1164, 4
      %v1171 = vshrl.u32 %v1075, 16
      %v1173 = vrot.slane %v1171, 7
      %v1174 = vshll.u32 %v1075, 16
      %v1176 = vor.u32 %v1173, %v1174
      %v1177 = vrot.slane %v1173, 4
      %v1179 = vshrl.u32 %v1076, 16
      %v1181 = vrot.slane %v1179, 7
      %v1182 = vshll.u32 %v1076, 16
      %v1184 = vor.u32 %v1181, %v1182
      %v1185 = vsel %vm1101, %v1177, %v1184
      %v1186 = vrot.slane %v1181, 4
      %v1188 = vshrl.u32 %v1077, 16
      %v1190 = vrot.slane %v1188, 7
      %v1191 = vshll.u32 %v1077, 16
      %v1193 = vor.u32 %v1190, %v1191
      %v1194 = vrot.slane %v1190, 4
      %v1196 = vshrl.u32 %v1078, 16
      %v1198 = vrot.slane %v1196, 7
      %v1199 = vshll.u32 %v1078, 16
      %v1201 = vor.u32 %v1198, %v1199
      %v1202 = vsel %vm1101, %v1194, %v1201
      %v1203 = vrot.slane %v1198, 4
      %v1205 = vshrl.u32 %v1079, 16
      %v1207 = vrot.slane %v1205, 7
      %v1208 = vshll.u32 %v1079, 16
      %v1210 = vor.u32 %v1207, %v1208
      %v1211 = vrot.slane %v1207, 4
      %v1213 = vshrl.u32 %v1080, 16
      %v1215 = vrot.slane %v1213, 7
      %v1216 = vshll.u32 %v1080, 16
      %v1218 = vor.u32 %v1215, %v1216
      %v1219 = vsel %vm1101, %v1211, %v1218
      %v1220 = vrot.slane %v1215, 4
      %v1222 = vshrl.u32 %v1081, 16
      %v1224 = vrot.slane %v1222, 7
      %v1225 = vshll.u32 %v1081, 16
      %v1227 = vor.u32 %v1224, %v1225
      %v1228 = vrot.slane %v1224, 4
      %v1230 = vshrl.u32 %v1082, 16
      %v1232 = vrot.slane %v1230, 7
      %v1233 = vshll.u32 %v1082, 16
      %v1235 = vor.u32 %v1232, %v1233
      %v1236 = vsel %vm1101, %v1228, %v1235
      %v1237 = vrot.slane %v1232, 4
      %v1239 = vshrl.u32 %v1083, 16
      %v1241 = vrot.slane %v1239, 7
      %v1242 = vshll.u32 %v1083, 16
      %v1244 = vor.u32 %v1241, %v1242
      %v1245 = vrot.slane %v1241, 4
      %v1247 = vshrl.u32 %v1084, 16
      %v1249 = vrot.slane %v1247, 7
      %v1250 = vshll.u32 %v1084, 16
      %v1252 = vor.u32 %v1249, %v1250
      %v1253 = vsel %vm1101, %v1245, %v1252
      %v1254 = vrot.slane %v1249, 4
      %v1256 = vshrl.u32 %v1085, 16
      %v1258 = vrot.slane %v1256, 7
      %v1259 = vshll.u32 %v1085, 16
      %v1261 = vor.u32 %v1258, %v1259
      %v1262 = vrot.slane %v1258, 4
      %v1264 = vshrl.u32 %v1086, 16
      %v1266 = vrot.slane %v1264, 7
      %v1267 = vshll.u32 %v1086, 16
      %v1269 = vor.u32 %v1266, %v1267
      %v1270 = vsel %vm1101, %v1262, %v1269
      %v1271 = vrot.slane %v1266, 4
      %v1273 = vshrl.u32 %v1087, 16
      %v1275 = vrot.slane %v1273, 7
      %v1276 = vshll.u32 %v1087, 16
      %v1278 = vor.u32 %v1275, %v1276
      %v1279 = vrot.slane %v1275, 4
      %v1281 = vshrl.u32 %v1088, 16
      %v1283 = vrot.slane %v1281, 7
      %v1284 = vshll.u32 %v1088, 16
      %v1286 = vor.u32 %v1283, %v1284
      %v1287 = vsel %vm1101, %v1279, %v1286
      %v1288 = vrot.slane %v1283, 4
      %v1290 = vshrl.u32 %v1089, 16
      %v1292 = vrot.slane %v1290, 7
      %v1293 = vshll.u32 %v1089, 16
      %v1295 = vor.u32 %v1292, %v1293
      %v1296 = vrot.slane %v1292, 4
      %v1298 = vshrl.u32 %v1090, 16
      %v1300 = vrot.slane %v1298, 7
      %v1301 = vshll.u32 %v1090, 16
      %v1303 = vor.u32 %v1300, %v1301
      %v1304 = vsel %vm1101, %v1296, %v1303
      %v1305 = vrot.slane %v1300, 4
      %v1307 = vshrl.u32 %v1091, 16
      %v1309 = vrot.slane %v1307, 7
      %v1310 = vshll.u32 %v1091, 16
      %v1312 = vor.u32 %v1309, %v1310
      %v1313 = vrot.slane %v1309, 4
      %v1315 = vshrl.u32 %v1092, 16
      %v1317 = vrot.slane %v1315, 7
      %v1318 = vshll.u32 %v1092, 16
      %v1320 = vor.u32 %v1317, %v1318
      %v1321 = vsel %vm1101, %v1313, %v1320
      %v1322 = vrot.slane %v1317, 4
      %v1324 = vshrl.u32 %v1093, 16
      %v1326 = vrot.slane %v1324, 7
      %v1327 = vshll.u32 %v1093, 16
      %v1329 = vor.u32 %v1326, %v1327
      %v1330 = vrot.slane %v1326, 4
      %v1332 = vshrl.u32 %v1094, 16
      %v1334 = vrot.slane %v1332, 7
      %v1335 = vshll.u32 %v1094, 16
      %v1337 = vor.u32 %v1334, %v1335
      %v1338 = vsel %vm1101, %v1330, %v1337
      %v1339 = vrot.slane %v1334, 4
      %v1341 = vshrl.u32 %v1095, 16
      %v1343 = vrot.slane %v1341, 7
      %v1344 = vshll.u32 %v1095, 16
      %v1346 = vor.u32 %v1343, %v1344
      %v1347 = vrot.slane %v1343, 4
      %v1349 = vshrl.u32 %v1096, 16
      %v1351 = vrot.slane %v1349, 7
      %v1352 = vshll.u32 %v1096, 16
      %v1354 = vor.u32 %v1351, %v1352
      %v1355 = vsel %vm1101, %v1347, %v1354
      %v1356 = vrot.slane %v1351, 4
      %v1358 = vshrl.u32 %v1097, 16
      %v1360 = vrot.slane %v1358, 7
      %v1361 = vshll.u32 %v1097, 16
      %v1363 = vor.u32 %v1360, %v1361
      %v1364 = vrot.slane %v1360, 4
      %v1366 = vshrl.u32 %v1098, 16
      %v1368 = vrot.slane %v1366, 7
      %v1369 = vshll.u32 %v1098, 16
      %v1371 = vor.u32 %v1368, %v1369
      %v1372 = vsel %vm1101, %v1364, %v1371
      %v1373 = vrot.slane %v1368, 4
      %s1422 = scalar_lea.vmem [#allocation2], 12
      %vm1423 = vcmask 1043456
      %vm1424 = vsmask.f32 7938
      %vm1425 = vmand %vm1423, %vm1424
      %v1426 = vld [vmem:[%s1422] sm:$0xf]
      %v1427 = vsel %vm1425, %v1108, %v1426
      %1428 = vst [vmem:[%s1422] sm:$0xf] %v1427
      %1429 = vst [vmem:[%s1422 + $0x4] sm:$0xf] %v1117
      %vm1430 = vcmask 1040384
      %vm1431 = vmand %vm1430, %vm1099
      %v1432 = vld [vmem:[%s1422 + $0x8] sm:$0x1]
      %v1433 = vsel %vm1431, %v1118, %v1432
      %1434 = vst [vmem:[%s1422 + $0x8] sm:$0x1] %v1433
      %v1435 = vld [vmem:[%s1422 + $0xc] sm:$0xf]
      %v1436 = vsel %vm1425, %v1125, %v1435
      %1437 = vst [vmem:[%s1422 + $0xc] sm:$0xf] %v1436
      %1438 = vst [vmem:[%s1422 + $0x10] sm:$0xf] %v1134
      %v1439 = vld [vmem:[%s1422 + $0x14] sm:$0x1]
      %v1440 = vsel %vm1431, %v1135, %v1439
      %1441 = vst [vmem:[%s1422 + $0x14] sm:$0x1] %v1440
      %v1442 = vld [vmem:[%s1422 + $0x18] sm:$0xf]
      %v1443 = vsel %vm1425, %v1142, %v1442
      %1444 = vst [vmem:[%s1422 + $0x18] sm:$0xf] %v1443
      %1445 = vst [vmem:[%s1422 + $0x1c] sm:$0xf] %v1151
      %v1446 = vld [vmem:[%s1422 + $0x20] sm:$0x1]
      %v1447 = vsel %vm1431, %v1152, %v1446
      %1448 = vst [vmem:[%s1422 + $0x20] sm:$0x1] %v1447
      %v1449 = vld [vmem:[%s1422 + $0x24] sm:$0xf]
      %v1450 = vsel %vm1425, %v1159, %v1449
      %1451 = vst [vmem:[%s1422 + $0x24] sm:$0xf] %v1450
      %1452 = vst [vmem:[%s1422 + $0x28] sm:$0xf] %v1168
      %v1453 = vld [vmem:[%s1422 + $0x2c] sm:$0x1]
      %v1454 = vsel %vm1431, %v1169, %v1453
      %1455 = vst [vmem:[%s1422 + $0x2c] sm:$0x1] %v1454
      %v1456 = vld [vmem:[%s1422 + $0x30] sm:$0xf]
      %v1457 = vsel %vm1425, %v1176, %v1456
      %1458 = vst [vmem:[%s1422 + $0x30] sm:$0xf] %v1457
      %1459 = vst [vmem:[%s1422 + $0x34] sm:$0xf] %v1185
      %v1460 = vld [vmem:[%s1422 + $0x38] sm:$0x1]
      %v1461 = vsel %vm1431, %v1186, %v1460
      %1462 = vst [vmem:[%s1422 + $0x38] sm:$0x1] %v1461
      %v1463 = vld [vmem:[%s1422 + $0x3c] sm:$0xf]
      %v1464 = vsel %vm1425, %v1193, %v1463
      %1465 = vst [vmem:[%s1422 + $0x3c] sm:$0xf] %v1464
      %1466 = vst [vmem:[%s1422 + $0x40] sm:$0xf] %v1202
      %v1467 = vld [vmem:[%s1422 + $0x44] sm:$0x1]
      %v1468 = vsel %vm1431, %v1203, %v1467
      %1469 = vst [vmem:[%s1422 + $0x44] sm:$0x1] %v1468
      %v1470 = vld [vmem:[%s1422 + $0x48] sm:$0xf]
      %v1471 = vsel %vm1425, %v1210, %v1470
      %1472 = vst [vmem:[%s1422 + $0x48] sm:$0xf] %v1471
      %1473 = vst [vmem:[%s1422 + $0x4c] sm:$0xf] %v1219
      %v1474 = vld [vmem:[%s1422 + $0x50] sm:$0x1]
      %v1475 = vsel %vm1431, %v1220, %v1474
      %1476 = vst [vmem:[%s1422 + $0x50] sm:$0x1] %v1475
      %v1477 = vld [vmem:[%s1422 + $0x54] sm:$0xf]
      %v1478 = vsel %vm1425, %v1227, %v1477
      %1479 = vst [vmem:[%s1422 + $0x54] sm:$0xf] %v1478
      %1480 = vst [vmem:[%s1422 + $0x58] sm:$0xf] %v1236
      %v1481 = vld [vmem:[%s1422 + $0x5c] sm:$0x1]
      %v1482 = vsel %vm1431, %v1237, %v1481
      %1483 = vst [vmem:[%s1422 + $0x5c] sm:$0x1] %v1482
      %v1484 = vld [vmem:[%s1422 + $0x60] sm:$0xf]
      %v1485 = vsel %vm1425, %v1244, %v1484
      %1486 = vst [vmem:[%s1422 + $0x60] sm:$0xf] %v1485
      %1487 = vst [vmem:[%s1422 + $0x64] sm:$0xf] %v1253
      %v1488 = vld [vmem:[%s1422 + $0x68] sm:$0x1]
      %v1489 = vsel %vm1431, %v1254, %v1488
      %1490 = vst [vmem:[%s1422 + $0x68] sm:$0x1] %v1489
      %v1491 = vld [vmem:[%s1422 + $0x6c] sm:$0xf]
      %v1492 = vsel %vm1425, %v1261, %v1491
      %1493 = vst [vmem:[%s1422 + $0x6c] sm:$0xf] %v1492
      %1494 = vst [vmem:[%s1422 + $0x70] sm:$0xf] %v1270
      %v1495 = vld [vmem:[%s1422 + $0x74] sm:$0x1]
      %v1496 = vsel %vm1431, %v1271, %v1495
      %1497 = vst [vmem:[%s1422 + $0x74] sm:$0x1] %v1496
      %v1498 = vld [vmem:[%s1422 + $0x78] sm:$0xf]
      %v1499 = vsel %vm1425, %v1278, %v1498
      %1500 = vst [vmem:[%s1422 + $0x78] sm:$0xf] %v1499
      %1501 = vst [vmem:[%s1422 + $0x7c] sm:$0xf] %v1287
      %v1502 = vld [vmem:[%s1422 + $0x80] sm:$0x1]
      %v1503 = vsel %vm1431, %v1288, %v1502
      %1504 = vst [vmem:[%s1422 + $0x80] sm:$0x1] %v1503
      %v1505 = vld [vmem:[%s1422 + $0x84] sm:$0xf]
      %v1506 = vsel %vm1425, %v1295, %v1505
      %1507 = vst [vmem:[%s1422 + $0x84] sm:$0xf] %v1506
      %1508 = vst [vmem:[%s1422 + $0x88] sm:$0xf] %v1304
      %v1509 = vld [vmem:[%s1422 + $0x8c] sm:$0x1]
      %v1510 = vsel %vm1431, %v1305, %v1509
      %1511 = vst [vmem:[%s1422 + $0x8c] sm:$0x1] %v1510
      %v1512 = vld [vmem:[%s1422 + $0x90] sm:$0xf]
      %v1513 = vsel %vm1425, %v1312, %v1512
      %1514 = vst [vmem:[%s1422 + $0x90] sm:$0xf] %v1513
      %1515 = vst [vmem:[%s1422 + $0x94] sm:$0xf] %v1321
      %v1516 = vld [vmem:[%s1422 + $0x98] sm:$0x1]
      %v1517 = vsel %vm1431, %v1322, %v1516
      %1518 = vst [vmem:[%s1422 + $0x98] sm:$0x1] %v1517
      %v1519 = vld [vmem:[%s1422 + $0x9c] sm:$0xf]
      %v1520 = vsel %vm1425, %v1329, %v1519
      %1521 = vst [vmem:[%s1422 + $0x9c] sm:$0xf] %v1520
      %1522 = vst [vmem:[%s1422 + $0xa0] sm:$0xf] %v1338
      %v1523 = vld [vmem:[%s1422 + $0xa4] sm:$0x1]
      %v1524 = vsel %vm1431, %v1339, %v1523
      %1525 = vst [vmem:[%s1422 + $0xa4] sm:$0x1] %v1524
      %v1526 = vld [vmem:[%s1422 + $0xa8] sm:$0xf]
      %v1527 = vsel %vm1425, %v1346, %v1526
      %1528 = vst [vmem:[%s1422 + $0xa8] sm:$0xf] %v1527
      %1529 = vst [vmem:[%s1422 + $0xac] sm:$0xf] %v1355
      %v1530 = vld [vmem:[%s1422 + $0xb0] sm:$0x1]
      %v1531 = vsel %vm1431, %v1356, %v1530
      %1532 = vst [vmem:[%s1422 + $0xb0] sm:$0x1] %v1531
      %v1533 = vld [vmem:[%s1422 + $0xb4] sm:$0xf]
      %v1534 = vsel %vm1425, %v1363, %v1533
      %1535 = vst [vmem:[%s1422 + $0xb4] sm:$0xf] %v1534
      %1536 = vst [vmem:[%s1422 + $0xb8] sm:$0xf] %v1372
      %v1537 = vld [vmem:[%s1422 + $0xbc] sm:$0x1]
      %v1538 = vsel %vm1431, %v1373, %v1537
      %1539 = vst [vmem:[%s1422 + $0xbc] sm:$0x1] %v1538
      %v1540 = vld [vmem:[#allocation2] sm:$0xf]
      %v1541 = vld [vmem:[#allocation2 + $0x4] sm:$0xf]
      %v1542 = vld [vmem:[#allocation2 + $0xc] sm:$0xf]
      %v1543 = vld [vmem:[#allocation2 + $0x10] sm:$0xf]
      %v1544 = vld [vmem:[#allocation2 + $0x18] sm:$0xf]
      %v1545 = vld [vmem:[#allocation2 + $0x1c] sm:$0xf]
      %v1546 = vld [vmem:[#allocation2 + $0x24] sm:$0xf]
      %v1547 = vld [vmem:[#allocation2 + $0x28] sm:$0xf]
      %v1548 = vld [vmem:[#allocation2 + $0x30] sm:$0xf]
      %v1549 = vld [vmem:[#allocation2 + $0x34] sm:$0xf]
      %v1550 = vld [vmem:[#allocation2 + $0x3c] sm:$0xf]
      %v1551 = vld [vmem:[#allocation2 + $0x40] sm:$0xf]
      %v1552 = vld [vmem:[#allocation2 + $0x48] sm:$0xf]
      %v1553 = vld [vmem:[#allocation2 + $0x4c] sm:$0xf]
      %v1554 = vld [vmem:[#allocation2 + $0x54] sm:$0xf]
      %v1555 = vld [vmem:[#allocation2 + $0x58] sm:$0xf]
      %v1556 = vld [vmem:[#allocation2 + $0x60] sm:$0xf]
      %v1557 = vld [vmem:[#allocation2 + $0x64] sm:$0xf]
      %v1558 = vld [vmem:[#allocation2 + $0x6c] sm:$0xf]
      %v1559 = vld [vmem:[#allocation2 + $0x70] sm:$0xf]
      %v1560 = vld [vmem:[#allocation2 + $0x78] sm:$0xf]
      %v1561 = vld [vmem:[#allocation2 + $0x7c] sm:$0xf]
      %v1562 = vld [vmem:[#allocation2 + $0x84] sm:$0xf]
      %v1563 = vld [vmem:[#allocation2 + $0x88] sm:$0xf]
      %v1564 = vld [vmem:[#allocation2 + $0x90] sm:$0xf]
      %v1565 = vld [vmem:[#allocation2 + $0x94] sm:$0xf]
      %v1566 = vld [vmem:[#allocation2 + $0x9c] sm:$0xf]
      %v1567 = vld [vmem:[#allocation2 + $0xa0] sm:$0xf]
      %v1568 = vld [vmem:[#allocation2 + $0xa8] sm:$0xf]
      %v1569 = vld [vmem:[#allocation2 + $0xac] sm:$0xf]
      %v1570 = vld [vmem:[#allocation2 + $0xb4] sm:$0xf]
      %v1571 = vld [vmem:[#allocation2 + $0xb8] sm:$0xf]
      %v1572 = vld [vmem:[%s2] sm:$0xf]
      %v1573 = vld [vmem:[%s2 + $0x4] sm:$0xf]
      %v1574 = vld [vmem:[%s2 + $0x8] sm:$0xf]
      %v1575 = vld [vmem:[%s2 + $0xc] sm:$0xf]
      %v1576 = vld [vmem:[%s2 + $0x10] sm:$0xf]
      %v1577 = vld [vmem:[%s2 + $0x14] sm:$0xf]
      %v1578 = vld [vmem:[%s2 + $0x18] sm:$0xf]
      %v1579 = vld [vmem:[%s2 + $0x1c] sm:$0xf]
      %v1580 = vld [vmem:[%s2 + $0x20] sm:$0xf]
      %v1581 = vld [vmem:[%s2 + $0x24] sm:$0xf]
      %v1582 = vld [vmem:[%s2 + $0x28] sm:$0xf]
      %v1583 = vld [vmem:[%s2 + $0x2c] sm:$0xf]
      %v1584 = vld [vmem:[%s2 + $0x30] sm:$0xf]
      %v1585 = vld [vmem:[%s2 + $0x34] sm:$0xf]
      %v1586 = vld [vmem:[%s2 + $0x38] sm:$0xf]
      %v1587 = vld [vmem:[%s2 + $0x3c] sm:$0xf]
      %v1620 = vunpack.c.l.b16 %v1540
      %v1621 = vunpack.c.l.b16 %v1541
      %v1622 = vunpack.c.l.b16 %v1542
      %v1623 = vunpack.c.l.b16 %v1543
      %v1624 = vunpack.c.l.b16 %v1544
      %v1625 = vunpack.c.l.b16 %v1545
      %v1626 = vunpack.c.l.b16 %v1546
      %v1627 = vunpack.c.l.b16 %v1547
      %v1628 = vunpack.c.l.b16 %v1548
      %v1629 = vunpack.c.l.b16 %v1549
      %v1630 = vunpack.c.l.b16 %v1550
      %v1631 = vunpack.c.l.b16 %v1551
      %v1632 = vunpack.c.l.b16 %v1552
      %v1633 = vunpack.c.l.b16 %v1553
      %v1634 = vunpack.c.l.b16 %v1554
      %v1635 = vunpack.c.l.b16 %v1555
      %v1636 = vunpack.c.l.b16 %v1556
      %v1637 = vunpack.c.l.b16 %v1557
      %v1638 = vunpack.c.l.b16 %v1558
      %v1639 = vunpack.c.l.b16 %v1559
      %v1640 = vunpack.c.l.b16 %v1560
      %v1641 = vunpack.c.l.b16 %v1561
      %v1642 = vunpack.c.l.b16 %v1562
      %v1643 = vunpack.c.l.b16 %v1563
      %v1644 = vunpack.c.l.b16 %v1564
      %v1645 = vunpack.c.l.b16 %v1565
      %v1646 = vunpack.c.l.b16 %v1566
      %v1647 = vunpack.c.l.b16 %v1567
      %v1648 = vunpack.c.l.b16 %v1568
      %v1649 = vunpack.c.l.b16 %v1569
      %v1650 = vunpack.c.l.b16 %v1570
      %v1651 = vunpack.c.l.b16 %v1571
      %v1652 = vpack.c.b16 %v1621, %v1620
      %v1653 = vpack.c.b16 %v1623, %v1622
      %v1654 = vpack.c.b16 %v1625, %v1624
      %v1655 = vpack.c.b16 %v1627, %v1626
      %v1656 = vpack.c.b16 %v1629, %v1628
      %v1657 = vpack.c.b16 %v1631, %v1630
      %v1658 = vpack.c.b16 %v1633, %v1632
      %v1659 = vpack.c.b16 %v1635, %v1634
      %v1660 = vpack.c.b16 %v1637, %v1636
      %v1661 = vpack.c.b16 %v1639, %v1638
      %v1662 = vpack.c.b16 %v1641, %v1640
      %v1663 = vpack.c.b16 %v1643, %v1642
      %v1664 = vpack.c.b16 %v1645, %v1644
      %v1665 = vpack.c.b16 %v1647, %v1646
      %v1666 = vpack.c.b16 %v1649, %v1648
      %v1667 = vpack.c.b16 %v1651, %v1650
      %v1700 = vunpack.c.l.b16 %v1572
      %v1701 = vunpack.c.l.b16 %v1573
      %v1702 = vunpack.c.l.b16 %v1574
      %v1703 = vunpack.c.l.b16 %v1575
      %v1704 = vunpack.c.l.b16 %v1576
      %v1705 = vunpack.c.l.b16 %v1577
      %v1706 = vunpack.c.l.b16 %v1578
      %v1707 = vunpack.c.l.b16 %v1579
      %v1708 = vunpack.c.l.b16 %v1580
      %v1709 = vunpack.c.l.b16 %v1581
      %v1710 = vunpack.c.l.b16 %v1582
      %v1711 = vunpack.c.l.b16 %v1583
      %v1712 = vunpack.c.l.b16 %v1584
      %v1713 = vunpack.c.l.b16 %v1585
      %v1714 = vunpack.c.l.b16 %v1586
      %v1715 = vunpack.c.l.b16 %v1587
      %v1716 = vpack.c.b16 %v1701, %v1700
      %v1717 = vpack.c.b16 %v1703, %v1702
      %v1718 = vpack.c.b16 %v1705, %v1704
      %v1719 = vpack.c.b16 %v1707, %v1706
      %v1720 = vpack.c.b16 %v1709, %v1708
      %v1721 = vpack.c.b16 %v1711, %v1710
      %v1722 = vpack.c.b16 %v1713, %v1712
      %v1723 = vpack.c.b16 %v1715, %v1714
      %1732 = vmatprep.subr.bf16.mxu0 0
      %1733 = vmatpush1.bf16.msra.mxu0 %v1716
      %1734 = vmatprep.subr.bf16.mxu0 0
      %1735 = vmatpush1.bf16.msra.mxu0 %v1717
      %1736 = vmatprep.subr.bf16.mxu0 0
      %1737 = vmatpush1.bf16.msra.mxu0 %v1718
      %1738 = vmatprep.subr.bf16.mxu0 0
      %1739 = vmatpush1.bf16.msra.mxu0 %v1719
      %1740 = vmatprep.subr.bf16.mxu0 0
      %1741 = vmatpush1.bf16.msra.mxu0 %v1720
      %1742 = vmatprep.subr.bf16.mxu0 0
      %1743 = vmatpush1.bf16.msra.mxu0 %v1721
      %1744 = vmatprep.subr.bf16.mxu0 0
      %1745 = vmatpush1.bf16.msra.mxu0 %v1722
      %1746 = vmatprep.subr.bf16.mxu0 0
      %1747 = vmatpush1.bf16.msra.mxu0 %v1723
      %1748 = vmatprep.subr.bf16.mxu0 0
      %1749 = vmatpush1.bf16.msra.mxu0 0
      %1750 = vmatprep.subr.bf16.mxu0 0
      %1751 = vmatpush1.bf16.msra.mxu0 0
      %1752 = vmatprep.subr.bf16.mxu0 0
      %1753 = vmatpush1.bf16.msra.mxu0 0
      %1754 = vmatprep.subr.bf16.mxu0 0
      %1755 = vmatpush1.bf16.msra.mxu0 0
      %1756 = vmatprep.subr.bf16.mxu0 0
      %1757 = vmatpush1.bf16.msra.mxu0 0
      %1758 = vmatprep.subr.bf16.mxu0 0
      %1759 = vmatpush1.bf16.msra.mxu0 0
      %1760 = vmatprep.subr.bf16.mxu0 0
      %1761 = vmatpush1.bf16.msra.mxu0 0
      %1762 = vmatprep.subr.bf16.mxu0 0
      %1763 = vmatpush1.bf16.msra.mxu0 0
      %1764 = vmatprep.mubr.bf16.mxu0 0
      %1765 = vmatmul.mubr.bf16.gmra.mrb[0].mxu0 %v1652
      %v1766 = vpop.f32.mrb[0].mxu0
      %v1767 = vadd.f32 0.0, %v1766
      %v1768 = vpop.f32.mrb[0].mxu0
      %v1769 = vpop.f32.mrb[0].mxu0
      %v1770 = vadd.f32 0.0, %v1769
      %v1771 = vpop.f32.mrb[0].mxu0
      %1772 = vmatprep.mubr.bf16.mxu0 0
      %1773 = vmatmul.mubr.bf16.gmra.mrb[0].mxu0 %v1653
      %v1774 = vpop.f32.mrb[0].mxu0
      %v1775 = vadd.f32 0.0, %v1774
      %v1776 = vpop.f32.mrb[0].mxu0
      %v1777 = vpop.f32.mrb[0].mxu0
      %v1778 = vadd.f32 0.0, %v1777
      %v1779 = vpop.f32.mrb[0].mxu0
      %1780 = vmatprep.mubr.bf16.mxu0 0
      %1781 = vmatmul.mubr.bf16.gmra.mrb[0].mxu0 %v1654
      %v1782 = vpop.f32.mrb[0].mxu0
      %v1783 = vadd.f32 0.0, %v1782
      %v1784 = vpop.f32.mrb[0].mxu0
      %v1785 = vpop.f32.mrb[0].mxu0
      %v1786 = vadd.f32 0.0, %v1785
      %v1787 = vpop.f32.mrb[0].mxu0
      %1788 = vmatprep.mubr.bf16.mxu0 0
      %1789 = vmatmul.mubr.bf16.gmra.mrb[0].mxu0 %v1655
      %v1790 = vpop.f32.mrb[0].mxu0
      %v1791 = vadd.f32 0.0, %v1790
      %v1792 = vpop.f32.mrb[0].mxu0
      %v1793 = vpop.f32.mrb[0].mxu0
      %v1794 = vadd.f32 0.0, %v1793
      %v1795 = vpop.f32.mrb[0].mxu0
      %1796 = vmatprep.mubr.bf16.mxu0 0
      %1797 = vmatmul.mubr.bf16.gmra.mrb[0].mxu0 %v1656
      %v1798 = vpop.f32.mrb[0].mxu0
      %v1799 = vadd.f32 0.0, %v1798
      %v1800 = vpop.f32.mrb[0].mxu0
      %v1801 = vpop.f32.mrb[0].mxu0
      %v1802 = vadd.f32 0.0, %v1801
      %v1803 = vpop.f32.mrb[0].mxu0
      %1804 = vmatprep.mubr.bf16.mxu0 0
      %1805 = vmatmul.mubr.bf16.gmra.mrb[0].mxu0 %v1657
      %v1806 = vpop.f32.mrb[0].mxu0
      %v1807 = vadd.f32 0.0, %v1806
      %v1808 = vpop.f32.mrb[0].mxu0
      %v1809 = vpop.f32.mrb[0].mxu0
      %v1810 = vadd.f32 0.0, %v1809
      %v1811 = vpop.f32.mrb[0].mxu0
      %1812 = vmatprep.mubr.bf16.mxu0 0
      %1813 = vmatmul.mubr.bf16.gmra.mrb[0].mxu0 %v1658
      %v1814 = vpop.f32.mrb[0].mxu0
      %v1815 = vadd.f32 0.0, %v1814
      %v1816 = vpop.f32.mrb[0].mxu0
      %v1817 = vpop.f32.mrb[0].mxu0
      %v1818 = vadd.f32 0.0, %v1817
      %v1819 = vpop.f32.mrb[0].mxu0
      %1820 = vmatprep.mubr.bf16.mxu0 0
      %1821 = vmatmul.mubr.bf16.gmra.mrb[0].mxu0 %v1659
      %v1822 = vpop.f32.mrb[0].mxu0
      %v1823 = vadd.f32 0.0, %v1822
      %v1824 = vpop.f32.mrb[0].mxu0
      %v1825 = vpop.f32.mrb[0].mxu0
      %v1826 = vadd.f32 0.0, %v1825
      %v1827 = vpop.f32.mrb[0].mxu0
      %1828 = vmatprep.mubr.bf16.mxu0 0
      %1829 = vmatmul.mubr.bf16.gmra.mrb[0].mxu0 %v1660
      %v1830 = vpop.f32.mrb[0].mxu0
      %v1831 = vadd.f32 0.0, %v1830
      %v1832 = vpop.f32.mrb[0].mxu0
      %v1833 = vpop.f32.mrb[0].mxu0
      %v1834 = vadd.f32 0.0, %v1833
      %v1835 = vpop.f32.mrb[0].mxu0
      %1836 = vmatprep.mubr.bf16.mxu0 0
      %1837 = vmatmul.mubr.bf16.gmra.mrb[0].mxu0 %v1661
      %v1838 = vpop.f32.mrb[0].mxu0
      %v1839 = vadd.f32 0.0, %v1838
      %v1840 = vpop.f32.mrb[0].mxu0
      %v1841 = vpop.f32.mrb[0].mxu0
      %v1842 = vadd.f32 0.0, %v1841
      %v1843 = vpop.f32.mrb[0].mxu0
      %1844 = vmatprep.mubr.bf16.mxu0 0
      %1845 = vmatmul.mubr.bf16.gmra.mrb[0].mxu0 %v1662
      %v1846 = vpop.f32.mrb[0].mxu0
      %v1847 = vadd.f32 0.0, %v1846
      %v1848 = vpop.f32.mrb[0].mxu0
      %v1849 = vpop.f32.mrb[0].mxu0
      %v1850 = vadd.f32 0.0, %v1849
      %v1851 = vpop.f32.mrb[0].mxu0
      %1852 = vmatprep.mubr.bf16.mxu0 0
      %1853 = vmatmul.mubr.bf16.gmra.mrb[0].mxu0 %v1663
      %v1854 = vpop.f32.mrb[0].mxu0
      %v1855 = vadd.f32 0.0, %v1854
      %v1856 = vpop.f32.mrb[0].mxu0
      %v1857 = vpop.f32.mrb[0].mxu0
      %v1858 = vadd.f32 0.0, %v1857
      %v1859 = vpop.f32.mrb[0].mxu0
      %1860 = vmatprep.mubr.bf16.mxu0 0
      %1861 = vmatmul.mubr.bf16.gmra.mrb[0].mxu0 %v1664
      %v1862 = vpop.f32.mrb[0].mxu0
      %v1863 = vadd.f32 0.0, %v1862
      %v1864 = vpop.f32.mrb[0].mxu0
      %v1865 = vpop.f32.mrb[0].mxu0
      %v1866 = vadd.f32 0.0, %v1865
      %v1867 = vpop.f32.mrb[0].mxu0
      %1868 = vmatprep.mubr.bf16.mxu0 0
      %1869 = vmatmul.mubr.bf16.gmra.mrb[0].mxu0 %v1665
      %v1870 = vpop.f32.mrb[0].mxu0
      %v1871 = vadd.f32 0.0, %v1870
      %v1872 = vpop.f32.mrb[0].mxu0
      %v1873 = vpop.f32.mrb[0].mxu0
      %v1874 = vadd.f32 0.0, %v1873
      %v1875 = vpop.f32.mrb[0].mxu0
      %1876 = vmatprep.mubr.bf16.mxu0 0
      %1877 = vmatmul.mubr.bf16.gmra.mrb[0].mxu0 %v1666
      %v1878 = vpop.f32.mrb[0].mxu0
      %v1879 = vadd.f32 0.0, %v1878
      %v1880 = vpop.f32.mrb[0].mxu0
      %v1881 = vpop.f32.mrb[0].mxu0
      %v1882 = vadd.f32 0.0, %v1881
      %v1883 = vpop.f32.mrb[0].mxu0
      %1884 = vmatprep.mubr.bf16.mxu0 0
      %1885 = vmatmul.mubr.bf16.gmra.mrb[0].mxu0 %v1667
      %v1886 = vpop.f32.mrb[0].mxu0
      %v1887 = vadd.f32 0.0, %v1886
      %v1888 = vpop.f32.mrb[0].mxu0
      %v1889 = vpop.f32.mrb[0].mxu0
      %v1890 = vadd.f32 0.0, %v1889
      %v1891 = vpop.f32.mrb[0].mxu0
      %1892 = vdwg.mxu0
      %1893 = vst [vmem:[#allocation3] sm:$0xff] %v1767
      %1894 = vst [vmem:[#allocation3 + $0x8] sm:$0xff] %v1770
      %1895 = vst [vmem:[#allocation3 + $0x10] sm:$0xff] %v1775
      %1896 = vst [vmem:[#allocation3 + $0x18] sm:$0xff] %v1778
      %1897 = vst [vmem:[#allocation3 + $0x20] sm:$0xff] %v1783
      %1898 = vst [vmem:[#allocation3 + $0x28] sm:$0xff] %v1786
      %1899 = vst [vmem:[#allocation3 + $0x30] sm:$0xff] %v1791
      %1900 = vst [vmem:[#allocation3 + $0x38] sm:$0xff] %v1794
      %1901 = vst [vmem:[#allocation3 + $0x40] sm:$0xff] %v1799
      %1902 = vst [vmem:[#allocation3 + $0x48] sm:$0xff] %v1802
      %1903 = vst [vmem:[#allocation3 + $0x50] sm:$0xff] %v1807
      %1904 = vst [vmem:[#allocation3 + $0x58] sm:$0xff] %v1810
      %1905 = vst [vmem:[#allocation3 + $0x60] sm:$0xff] %v1815
      %1906 = vst [vmem:[#allocation3 + $0x68] sm:$0xff] %v1818
      %1907 = vst [vmem:[#allocation3 + $0x70] sm:$0xff] %v1823
      %1908 = vst [vmem:[#allocation3 + $0x78] sm:$0xff] %v1826
      %1909 = vst [vmem:[#allocation3 + $0x80] sm:$0xff] %v1831
      %1910 = vst [vmem:[#allocation3 + $0x88] sm:$0xff] %v1834
      %1911 = vst [vmem:[#allocation3 + $0x90] sm:$0xff] %v1839
      %1912 = vst [vmem:[#allocation3 + $0x98] sm:$0xff] %v1842
      %1913 = vst [vmem:[#allocation3 + $0xa0] sm:$0xff] %v1847
      %1914 = vst [vmem:[#allocation3 + $0xa8] sm:$0xff] %v1850
      %1915 = vst [vmem:[#allocation3 + $0xb0] sm:$0xff] %v1855
      %1916 = vst [vmem:[#allocation3 + $0xb8] sm:$0xff] %v1858
      %1917 = vst [vmem:[#allocation3 + $0xc0] sm:$0xff] %v1863
      %1918 = vst [vmem:[#allocation3 + $0xc8] sm:$0xff] %v1866
      %1919 = vst [vmem:[#allocation3 + $0xd0] sm:$0xff] %v1871
      %1920 = vst [vmem:[#allocation3 + $0xd8] sm:$0xff] %v1874
      %1921 = vst [vmem:[#allocation3 + $0xe0] sm:$0xff] %v1879
      %1922 = vst [vmem:[#allocation3 + $0xe8] sm:$0xff] %v1882
      %1923 = vst [vmem:[#allocation3 + $0xf0] sm:$0xff] %v1887
      %1924 = vst [vmem:[#allocation3 + $0xf8] sm:$0xff] %v1890
      %v1925 = vld [vmem:[#allocation2] sm:$0xf]
      %v1926 = vld [vmem:[#allocation2 + $0x4] sm:$0xf]
      %v1927 = vld [vmem:[#allocation2 + $0x8] sm:$0x1]
      %v1928 = vld [vmem:[#allocation2 + $0xc] sm:$0xf]
      %v1929 = vld [vmem:[#allocation2 + $0x10] sm:$0xf]
      %v1930 = vld [vmem:[#allocation2 + $0x14] sm:$0x1]
      %v1931 = vld [vmem:[#allocation2 + $0x18] sm:$0xf]
      %v1932 = vld [vmem:[#allocation2 + $0x1c] sm:$0xf]
      %v1933 = vld [vmem:[#allocation2 + $0x20] sm:$0x1]
      %v1934 = vld [vmem:[#allocation2 + $0x24] sm:$0xf]
      %v1935 = vld [vmem:[#allocation2 + $0x28] sm:$0xf]
      %v1936 = vld [vmem:[#allocation2 + $0x2c] sm:$0x1]
      %v1937 = vld [vmem:[#allocation2 + $0x30] sm:$0xf]
      %v1938 = vld [vmem:[#allocation2 + $0x34] sm:$0xf]
      %v1939 = vld [vmem:[#allocation2 + $0x38] sm:$0x1]
      %v1940 = vld [vmem:[#allocation2 + $0x3c] sm:$0xf]
      %v1941 = vld [vmem:[#allocation2 + $0x40] sm:$0xf]
      %v1942 = vld [vmem:[#allocation2 + $0x44] sm:$0x1]
      %v1943 = vld [vmem:[#allocation2 + $0x48] sm:$0xf]
      %v1944 = vld [vmem:[#allocation2 + $0x4c] sm:$0xf]
      %v1945 = vld [vmem:[#allocation2 + $0x50] sm:$0x1]
      %v1946 = vld [vmem:[#allocation2 + $0x54] sm:$0xf]
      %v1947 = vld [vmem:[#allocation2 + $0x58] sm:$0xf]
      %v1948 = vld [vmem:[#allocation2 + $0x5c] sm:$0x1]
      %v1949 = vld [vmem:[#allocation2 + $0x60] sm:$0xf]
      %v1950 = vld [vmem:[#allocation2 + $0x64] sm:$0xf]
      %v1951 = vld [vmem:[#allocation2 + $0x68] sm:$0x1]
      %v1952 = vld [vmem:[#allocation2 + $0x6c] sm:$0xf]
      %v1953 = vld [vmem:[#allocation2 + $0x70] sm:$0xf]
      %v1954 = vld [vmem:[#allocation2 + $0x74] sm:$0x1]
      %v1955 = vld [vmem:[#allocation2 + $0x78] sm:$0xf]
      %v1956 = vld [vmem:[#allocation2 + $0x7c] sm:$0xf]
      %v1957 = vld [vmem:[#allocation2 + $0x80] sm:$0x1]
      %v1958 = vld [vmem:[#allocation2 + $0x84] sm:$0xf]
      %v1959 = vld [vmem:[#allocation2 + $0x88] sm:$0xf]
      %v1960 = vld [vmem:[#allocation2 + $0x8c] sm:$0x1]
      %v1961 = vld [vmem:[#allocation2 + $0x90] sm:$0xf]
      %v1962 = vld [vmem:[#allocation2 + $0x94] sm:$0xf]
      %v1963 = vld [vmem:[#allocation2 + $0x98] sm:$0x1]
      %v1964 = vld [vmem:[#allocation2 + $0x9c] sm:$0xf]
      %v1965 = vld [vmem:[#allocation2 + $0xa0] sm:$0xf]
      %v1966 = vld [vmem:[#allocation2 + $0xa4] sm:$0x1]
      %v1967 = vld [vmem:[#allocation2 + $0xa8] sm:$0xf]
      %v1968 = vld [vmem:[#allocation2 + $0xac] sm:$0xf]
      %v1969 = vld [vmem:[#allocation2 + $0xb0] sm:$0x1]
      %v1970 = vld [vmem:[#allocation2 + $0xb4] sm:$0xf]
      %v1971 = vld [vmem:[#allocation2 + $0xb8] sm:$0xf]
      %v1972 = vld [vmem:[#allocation2 + $0xbc] sm:$0x1]
      %vm1973 = vsmask.f32 3328
      %vm1974 = vsmask.f32 7440
      %vm1975 = vmor %vm1973, %vm1974
      %v1977 = vshrl.u32 %v1925, 16
      %v1979 = vrot.slane %v1977, 4
      %v1980 = vshll.u32 %v1925, 16
      %v1982 = vrot.slane %v1980, 5
      %v1983 = vor.u32 %v1979, %v1982
      %v1984 = vrot.slane %v1983, 4
      %v1986 = vshll.u32 %v1926, 16
      %v1988 = vrot.slane %v1986, 5
      %v1989 = vsel %vm1975, %v1984, %v1988
      %v1990 = vshrl.u32 %v1926, 16
      %v1992 = vrot.slane %v1990, 4
      %v1993 = vor.u32 %v1992, %v1988
      %v1994 = vrot.slane %v1993, 4
      %v1996 = vshll.u32 %v1927, 16
      %v1998 = vrot.slane %v1996, 5
      %v1999 = vsel %vm1975, %v1994, %v1998
      %v2001 = vshrl.u32 %v1928, 16
      %v2003 = vrot.slane %v2001, 4
      %v2004 = vshll.u32 %v1928, 16
      %v2006 = vrot.slane %v2004, 5
      %v2007 = vor.u32 %v2003, %v2006
      %v2008 = vrot.slane %v2007, 4
      %v2010 = vshll.u32 %v1929, 16
      %v2012 = vrot.slane %v2010, 5
      %v2013 = vsel %vm1975, %v2008, %v2012
      %v2014 = vshrl.u32 %v1929, 16
      %v2016 = vrot.slane %v2014, 4
      %v2017 = vor.u32 %v2016, %v2012
      %v2018 = vrot.slane %v2017, 4
      %v2020 = vshll.u32 %v1930, 16
      %v2022 = vrot.slane %v2020, 5
      %v2023 = vsel %vm1975, %v2018, %v2022
      %v2025 = vshrl.u32 %v1931, 16
      %v2027 = vrot.slane %v2025, 4
      %v2028 = vshll.u32 %v1931, 16
      %v2030 = vrot.slane %v2028, 5
      %v2031 = vor.u32 %v2027, %v2030
      %v2032 = vrot.slane %v2031, 4
      %v2034 = vshll.u32 %v1932, 16
      %v2036 = vrot.slane %v2034, 5
      %v2037 = vsel %vm1975, %v2032, %v2036
      %v2038 = vshrl.u32 %v1932, 16
      %v2040 = vrot.slane %v2038, 4
      %v2041 = vor.u32 %v2040, %v2036
      %v2042 = vrot.slane %v2041, 4
      %v2044 = vshll.u32 %v1933, 16
      %v2046 = vrot.slane %v2044, 5
      %v2047 = vsel %vm1975, %v2042, %v2046
      %v2049 = vshrl.u32 %v1934, 16
      %v2051 = vrot.slane %v2049, 4
      %v2052 = vshll.u32 %v1934, 16
      %v2054 = vrot.slane %v2052, 5
      %v2055 = vor.u32 %v2051, %v2054
      %v2056 = vrot.slane %v2055, 4
      %v2058 = vshll.u32 %v1935, 16
      %v2060 = vrot.slane %v2058, 5
      %v2061 = vsel %vm1975, %v2056, %v2060
      %v2062 = vshrl.u32 %v1935, 16
      %v2064 = vrot.slane %v2062, 4
      %v2065 = vor.u32 %v2064, %v2060
      %v2066 = vrot.slane %v2065, 4
      %v2068 = vshll.u32 %v1936, 16
      %v2070 = vrot.slane %v2068, 5
      %v2071 = vsel %vm1975, %v2066, %v2070
      %v2073 = vshrl.u32 %v1937, 16
      %v2075 = vrot.slane %v2073, 4
      %v2076 = vshll.u32 %v1937, 16
      %v2078 = vrot.slane %v2076, 5
      %v2079 = vor.u32 %v2075, %v2078
      %v2080 = vrot.slane %v2079, 4
      %v2082 = vshll.u32 %v1938, 16
      %v2084 = vrot.slane %v2082, 5
      %v2085 = vsel %vm1975, %v2080, %v2084
      %v2086 = vshrl.u32 %v1938, 16
      %v2088 = vrot.slane %v2086, 4
      %v2089 = vor.u32 %v2088, %v2084
      %v2090 = vrot.slane %v2089, 4
      %v2092 = vshll.u32 %v1939, 16
      %v2094 = vrot.slane %v2092, 5
      %v2095 = vsel %vm1975, %v2090, %v2094
      %v2097 = vshrl.u32 %v1940, 16
      %v2099 = vrot.slane %v2097, 4
      %v2100 = vshll.u32 %v1940, 16
      %v2102 = vrot.slane %v2100, 5
      %v2103 = vor.u32 %v2099, %v2102
      %v2104 = vrot.slane %v2103, 4
      %v2106 = vshll.u32 %v1941, 16
      %v2108 = vrot.slane %v2106, 5
      %v2109 = vsel %vm1975, %v2104, %v2108
      %v2110 = vshrl.u32 %v1941, 16
      %v2112 = vrot.slane %v2110, 4
      %v2113 = vor.u32 %v2112, %v2108
      %v2114 = vrot.slane %v2113, 4
      %v2116 = vshll.u32 %v1942, 16
      %v2118 = vrot.slane %v2116, 5
      %v2119 = vsel %vm1975, %v2114, %v2118
      %v2121 = vshrl.u32 %v1943, 16
      %v2123 = vrot.slane %v2121, 4
      %v2124 = vshll.u32 %v1943, 16
      %v2126 = vrot.slane %v2124, 5
      %v2127 = vor.u32 %v2123, %v2126
      %v2128 = vrot.slane %v2127, 4
      %v2130 = vshll.u32 %v1944, 16
      %v2132 = vrot.slane %v2130, 5
      %v2133 = vsel %vm1975, %v2128, %v2132
      %v2134 = vshrl.u32 %v1944, 16
      %v2136 = vrot.slane %v2134, 4
      %v2137 = vor.u32 %v2136, %v2132
      %v2138 = vrot.slane %v2137, 4
      %v2140 = vshll.u32 %v1945, 16
      %v2142 = vrot.slane %v2140, 5
      %v2143 = vsel %vm1975, %v2138, %v2142
      %v2145 = vshrl.u32 %v1946, 16
      %v2147 = vrot.slane %v2145, 4
      %v2148 = vshll.u32 %v1946, 16
      %v2150 = vrot.slane %v2148, 5
      %v2151 = vor.u32 %v2147, %v2150
      %v2152 = vrot.slane %v2151, 4
      %v2154 = vshll.u32 %v1947, 16
      %v2156 = vrot.slane %v2154, 5
      %v2157 = vsel %vm1975, %v2152, %v2156
      %v2158 = vshrl.u32 %v1947, 16
      %v2160 = vrot.slane %v2158, 4
      %v2161 = vor.u32 %v2160, %v2156
      %v2162 = vrot.slane %v2161, 4
      %v2164 = vshll.u32 %v1948, 16
      %v2166 = vrot.slane %v2164, 5
      %v2167 = vsel %vm1975, %v2162, %v2166
      %v2169 = vshrl.u32 %v1949, 16
      %v2171 = vrot.slane %v2169, 4
      %v2172 = vshll.u32 %v1949, 16
      %v2174 = vrot.slane %v2172, 5
      %v2175 = vor.u32 %v2171, %v2174
      %v2176 = vrot.slane %v2175, 4
      %v2178 = vshll.u32 %v1950, 16
      %v2180 = vrot.slane %v2178, 5
      %v2181 = vsel %vm1975, %v2176, %v2180
      %v2182 = vshrl.u32 %v1950, 16
      %v2184 = vrot.slane %v2182, 4
      %v2185 = vor.u32 %v2184, %v2180
      %v2186 = vrot.slane %v2185, 4
      %v2188 = vshll.u32 %v1951, 16
      %v2190 = vrot.slane %v2188, 5
      %v2191 = vsel %vm1975, %v2186, %v2190
      %v2193 = vshrl.u32 %v1952, 16
      %v2195 = vrot.slane %v2193, 4
      %v2196 = vshll.u32 %v1952, 16
      %v2198 = vrot.slane %v2196, 5
      %v2199 = vor.u32 %v2195, %v2198
      %v2200 = vrot.slane %v2199, 4
      %v2202 = vshll.u32 %v1953, 16
      %v2204 = vrot.slane %v2202, 5
      %v2205 = vsel %vm1975, %v2200, %v2204
      %v2206 = vshrl.u32 %v1953, 16
      %v2208 = vrot.slane %v2206, 4
      %v2209 = vor.u32 %v2208, %v2204
      %v2210 = vrot.slane %v2209, 4
      %v2212 = vshll.u32 %v1954, 16
      %v2214 = vrot.slane %v2212, 5
      %v2215 = vsel %vm1975, %v2210, %v2214
      %v2217 = vshrl.u32 %v1955, 16
      %v2219 = vrot.slane %v2217, 4
      %v2220 = vshll.u32 %v1955, 16
      %v2222 = vrot.slane %v2220, 5
      %v2223 = vor.u32 %v2219, %v2222
      %v2224 = vrot.slane %v2223, 4
      %v2226 = vshll.u32 %v1956, 16
      %v2228 = vrot.slane %v2226, 5
      %v2229 = vsel %vm1975, %v2224, %v2228
      %v2230 = vshrl.u32 %v1956, 16
      %v2232 = vrot.slane %v2230, 4
      %v2233 = vor.u32 %v2232, %v2228
      %v2234 = vrot.slane %v2233, 4
      %v2236 = vshll.u32 %v1957, 16
      %v2238 = vrot.slane %v2236, 5
      %v2239 = vsel %vm1975, %v2234, %v2238
      %v2241 = vshrl.u32 %v1958, 16
      %v2243 = vrot.slane %v2241, 4
      %v2244 = vshll.u32 %v1958, 16
      %v2246 = vrot.slane %v2244, 5
      %v2247 = vor.u32 %v2243, %v2246
      %v2248 = vrot.slane %v2247, 4
      %v2250 = vshll.u32 %v1959, 16
      %v2252 = vrot.slane %v2250, 5
      %v2253 = vsel %vm1975, %v2248, %v2252
      %v2254 = vshrl.u32 %v1959, 16
      %v2256 = vrot.slane %v2254, 4
      %v2257 = vor.u32 %v2256, %v2252
      %v2258 = vrot.slane %v2257, 4
      %v2260 = vshll.u32 %v1960, 16
      %v2262 = vrot.slane %v2260, 5
      %v2263 = vsel %vm1975, %v2258, %v2262
      %v2265 = vshrl.u32 %v1961, 16
      %v2267 = vrot.slane %v2265, 4
      %v2268 = vshll.u32 %v1961, 16
      %v2270 = vrot.slane %v2268, 5
      %v2271 = vor.u32 %v2267, %v2270
      %v2272 = vrot.slane %v2271, 4
      %v2274 = vshll.u32 %v1962, 16
      %v2276 = vrot.slane %v2274, 5
      %v2277 = vsel %vm1975, %v2272, %v2276
      %v2278 = vshrl.u32 %v1962, 16
      %v2280 = vrot.slane %v2278, 4
      %v2281 = vor.u32 %v2280, %v2276
      %v2282 = vrot.slane %v2281, 4
      %v2284 = vshll.u32 %v1963, 16
      %v2286 = vrot.slane %v2284, 5
      %v2287 = vsel %vm1975, %v2282, %v2286
      %v2289 = vshrl.u32 %v1964, 16
      %v2291 = vrot.slane %v2289, 4
      %v2292 = vshll.u32 %v1964, 16
      %v2294 = vrot.slane %v2292, 5
      %v2295 = vor.u32 %v2291, %v2294
      %v2296 = vrot.slane %v2295, 4
      %v2298 = vshll.u32 %v1965, 16
      %v2300 = vrot.slane %v2298, 5
      %v2301 = vsel %vm1975, %v2296, %v2300
      %v2302 = vshrl.u32 %v1965, 16
      %v2304 = vrot.slane %v2302, 4
      %v2305 = vor.u32 %v2304, %v2300
      %v2306 = vrot.slane %v2305, 4
      %v2308 = vshll.u32 %v1966, 16
      %v2310 = vrot.slane %v2308, 5
      %v2311 = vsel %vm1975, %v2306, %v2310
      %v2313 = vshrl.u32 %v1967, 16
      %v2315 = vrot.slane %v2313, 4
      %v2316 = vshll.u32 %v1967, 16
      %v2318 = vrot.slane %v2316, 5
      %v2319 = vor.u32 %v2315, %v2318
      %v2320 = vrot.slane %v2319, 4
      %v2322 = vshll.u32 %v1968, 16
      %v2324 = vrot.slane %v2322, 5
      %v2325 = vsel %vm1975, %v2320, %v2324
      %v2326 = vshrl.u32 %v1968, 16
      %v2328 = vrot.slane %v2326, 4
      %v2329 = vor.u32 %v2328, %v2324
      %v2330 = vrot.slane %v2329, 4
      %v2332 = vshll.u32 %v1969, 16
      %v2334 = vrot.slane %v2332, 5
      %v2335 = vsel %vm1975, %v2330, %v2334
      %v2337 = vshrl.u32 %v1970, 16
      %v2339 = vrot.slane %v2337, 4
      %v2340 = vshll.u32 %v1970, 16
      %v2342 = vrot.slane %v2340, 5
      %v2343 = vor.u32 %v2339, %v2342
      %v2344 = vrot.slane %v2343, 4
      %v2346 = vshll.u32 %v1971, 16
      %v2348 = vrot.slane %v2346, 5
      %v2349 = vsel %vm1975, %v2344, %v2348
      %v2350 = vshrl.u32 %v1971, 16
      %v2352 = vrot.slane %v2350, 4
      %v2353 = vor.u32 %v2352, %v2348
      %v2354 = vrot.slane %v2353, 4
      %v2356 = vshll.u32 %v1972, 16
      %v2358 = vrot.slane %v2356, 5
      %v2359 = vsel %vm1975, %v2354, %v2358
      %s2360 = scalar_lea.vmem %s2, 64
      %v2361 = vld [vmem:[%s2360] sm:$0xf]
      %v2362 = vld [vmem:[%s2360 + $0x4] sm:$0xf]
      %v2363 = vld [vmem:[%s2360 + $0x8] sm:$0xf]
      %v2364 = vld [vmem:[%s2360 + $0xc] sm:$0xf]
      %v2365 = vld [vmem:[%s2360 + $0x10] sm:$0xf]
      %v2366 = vld [vmem:[%s2360 + $0x14] sm:$0xf]
      %v2367 = vld [vmem:[%s2360 + $0x18] sm:$0xf]
      %v2368 = vld [vmem:[%s2360 + $0x1c] sm:$0xf]
      %v2369 = vld [vmem:[%s2360 + $0x20] sm:$0xf]
      %v2370 = vld [vmem:[%s2360 + $0x24] sm:$0xf]
      %v2371 = vld [vmem:[%s2360 + $0x28] sm:$0xf]
      %v2372 = vld [vmem:[%s2360 + $0x2c] sm:$0xf]
      %v2373 = vld [vmem:[%s2360 + $0x30] sm:$0xf]
      %v2374 = vld [vmem:[%s2360 + $0x34] sm:$0xf]
      %v2375 = vld [vmem:[%s2360 + $0x38] sm:$0xf]
      %v2376 = vld [vmem:[%s2360 + $0x3c] sm:$0xf]
      %v2377 = vunpack.c.l.b16 %v1989
      %v2378 = vunpack.c.l.b16 %v1999
      %v2379 = vunpack.c.l.b16 %v2013
      %v2380 = vunpack.c.l.b16 %v2023
      %v2381 = vunpack.c.l.b16 %v2037
      %v2382 = vunpack.c.l.b16 %v2047
      %v2383 = vunpack.c.l.b16 %v2061
      %v2384 = vunpack.c.l.b16 %v2071
      %v2385 = vunpack.c.l.b16 %v2085
      %v2386 = vunpack.c.l.b16 %v2095
      %v2387 = vunpack.c.l.b16 %v2109
      %v2388 = vunpack.c.l.b16 %v2119
      %v2389 = vunpack.c.l.b16 %v2133
      %v2390 = vunpack.c.l.b16 %v2143
      %v2391 = vunpack.c.l.b16 %v2157
      %v2392 = vunpack.c.l.b16 %v2167
      %v2393 = vunpack.c.l.b16 %v2181
      %v2394 = vunpack.c.l.b16 %v2191
      %v2395 = vunpack.c.l.b16 %v2205
      %v2396 = vunpack.c.l.b16 %v2215
      %v2397 = vunpack.c.l.b16 %v2229
      %v2398 = vunpack.c.l.b16 %v2239
      %v2399 = vunpack.c.l.b16 %v2253
      %v2400 = vunpack.c.l.b16 %v2263
      %v2401 = vunpack.c.l.b16 %v2277
      %v2402 = vunpack.c.l.b16 %v2287
      %v2403 = vunpack.c.l.b16 %v2301
      %v2404 = vunpack.c.l.b16 %v2311
      %v2405 = vunpack.c.l.b16 %v2325
      %v2406 = vunpack.c.l.b16 %v2335
      %v2407 = vunpack.c.l.b16 %v2349
      %v2408 = vunpack.c.l.b16 %v2359
      %v2409 = vpack.c.b16 %v2378, %v2377
      %v2410 = vpack.c.b16 %v2380, %v2379
      %v2411 = vpack.c.b16 %v2382, %v2381
      %v2412 = vpack.c.b16 %v2384, %v2383
      %v2413 = vpack.c.b16 %v2386, %v2385
      %v2414 = vpack.c.b16 %v2388, %v2387
      %v2415 = vpack.c.b16 %v2390, %v2389
      %v2416 = vpack.c.b16 %v2392, %v2391
      %v2417 = vpack.c.b16 %v2394, %v2393
      %v2418 = vpack.c.b16 %v2396, %v2395
      %v2419 = vpack.c.b16 %v2398, %v2397
      %v2420 = vpack.c.b16 %v2400, %v2399
      %v2421 = vpack.c.b16 %v2402, %v2401
      %v2422 = vpack.c.b16 %v2404, %v2403
      %v2423 = vpack.c.b16 %v2406, %v2405
      %v2424 = vpack.c.b16 %v2408, %v2407
      %v2457 = vunpack.c.l.b16 %v2361
      %v2458 = vunpack.c.l.b16 %v2362
      %v2459 = vunpack.c.l.b16 %v2363
      %v2460 = vunpack.c.l.b16 %v2364
      %v2461 = vunpack.c.l.b16 %v2365
      %v2462 = vunpack.c.l.b16 %v2366
      %v2463 = vunpack.c.l.b16 %v2367
      %v2464 = vunpack.c.l.b16 %v2368
      %v2465 = vunpack.c.l.b16 %v2369
      %v2466 = vunpack.c.l.b16 %v2370
      %v2467 = vunpack.c.l.b16 %v2371
      %v2468 = vunpack.c.l.b16 %v2372
      %v2469 = vunpack.c.l.b16 %v2373
      %v2470 = vunpack.c.l.b16 %v2374
      %v2471 = vunpack.c.l.b16 %v2375
      %v2472 = vunpack.c.l.b16 %v2376
      %v2473 = vpack.c.b16 %v2458, %v2457
      %v2474 = vpack.c.b16 %v2460, %v2459
      %v2475 = vpack.c.b16 %v2462, %v2461
      %v2476 = vpack.c.b16 %v2464, %v2463
      %v2477 = vpack.c.b16 %v2466, %v2465
      %v2478 = vpack.c.b16 %v2468, %v2467
      %v2479 = vpack.c.b16 %v2470, %v2469
      %v2480 = vpack.c.b16 %v2472, %v2471
      %2489 = vmatprep.subr.bf16.mxu0 0
      %2490 = vmatpush1.bf16.msra.mxu0 %v2473
      %2491 = vmatprep.subr.bf16.mxu0 0
      %2492 = vmatpush1.bf16.msra.mxu0 %v2474
      %2493 = vmatprep.subr.bf16.mxu0 0
      %2494 = vmatpush1.bf16.msra.mxu0 %v2475
      %2495 = vmatprep.subr.bf16.mxu0 0
      %2496 = vmatpush1.bf16.msra.mxu0 %v2476
      %2497 = vmatprep.subr.bf16.mxu0 0
      %2498 = vmatpush1.bf16.msra.mxu0 %v2477
      %2499 = vmatprep.subr.bf16.mxu0 0
      %2500 = vmatpush1.bf16.msra.mxu0 %v2478
      %2501 = vmatprep.subr.bf16.mxu0 0
      %2502 = vmatpush1.bf16.msra.mxu0 %v2479
      %2503 = vmatprep.subr.bf16.mxu0 0
      %2504 = vmatpush1.bf16.msra.mxu0 %v2480
      %2505 = vmatprep.subr.bf16.mxu0 0
      %2506 = vmatpush1.bf16.msra.mxu0 0
      %2507 = vmatprep.subr.bf16.mxu0 0
      %2508 = vmatpush1.bf16.msra.mxu0 0
      %2509 = vmatprep.subr.bf16.mxu0 0
      %2510 = vmatpush1.bf16.msra.mxu0 0
      %2511 = vmatprep.subr.bf16.mxu0 0
      %2512 = vmatpush1.bf16.msra.mxu0 0
      %2513 = vmatprep.subr.bf16.mxu0 0
      %2514 = vmatpush1.bf16.msra.mxu0 0
      %2515 = vmatprep.subr.bf16.mxu0 0
      %2516 = vmatpush1.bf16.msra.mxu0 0
      %2517 = vmatprep.subr.bf16.mxu0 0
      %2518 = vmatpush1.bf16.msra.mxu0 0
      %2519 = vmatprep.subr.bf16.mxu0 0
      %2520 = vmatpush1.bf16.msra.mxu0 0
      %2521 = vmatprep.mubr.bf16.mxu0 0
      %2522 = vmatmul.mubr.bf16.gmra.mrb[0].mxu0 %v2409
      %v2523 = vpop.f32.mrb[0].mxu0
      %v2524 = vadd.f32 0.0, %v2523
      %v2525 = vpop.f32.mrb[0].mxu0
      %v2526 = vpop.f32.mrb[0].mxu0
      %v2527 = vadd.f32 0.0, %v2526
      %v2528 = vpop.f32.mrb[0].mxu0
      %2529 = vmatprep.mubr.bf16.mxu0 0
      %2530 = vmatmul.mubr.bf16.gmra.mrb[0].mxu0 %v2410
      %v2531 = vpop.f32.mrb[0].mxu0
      %v2532 = vadd.f32 0.0, %v2531
      %v2533 = vpop.f32.mrb[0].mxu0
      %v2534 = vpop.f32.mrb[0].mxu0
      %v2535 = vadd.f32 0.0, %v2534
      %v2536 = vpop.f32.mrb[0].mxu0
      %2537 = vmatprep.mubr.bf16.mxu0 0
      %2538 = vmatmul.mubr.bf16.gmra.mrb[0].mxu0 %v2411
      %v2539 = vpop.f32.mrb[0].mxu0
      %v2540 = vadd.f32 0.0, %v2539
      %v2541 = vpop.f32.mrb[0].mxu0
      %v2542 = vpop.f32.mrb[0].mxu0
      %v2543 = vadd.f32 0.0, %v2542
      %v2544 = vpop.f32.mrb[0].mxu0
      %2545 = vmatprep.mubr.bf16.mxu0 0
      %2546 = vmatmul.mubr.bf16.gmra.mrb[0].mxu0 %v2412
      %v2547 = vpop.f32.mrb[0].mxu0
      %v2548 = vadd.f32 0.0, %v2547
      %v2549 = vpop.f32.mrb[0].mxu0
      %v2550 = vpop.f32.mrb[0].mxu0
      %v2551 = vadd.f32 0.0, %v2550
      %v2552 = vpop.f32.mrb[0].mxu0
      %2553 = vmatprep.mubr.bf16.mxu0 0
      %2554 = vmatmul.mubr.bf16.gmra.mrb[0].mxu0 %v2413
      %v2555 = vpop.f32.mrb[0].mxu0
      %v2556 = vadd.f32 0.0, %v2555
      %v2557 = vpop.f32.mrb[0].mxu0
      %v2558 = vpop.f32.mrb[0].mxu0
      %v2559 = vadd.f32 0.0, %v2558
      %v2560 = vpop.f32.mrb[0].mxu0
      %2561 = vmatprep.mubr.bf16.mxu0 0
      %2562 = vmatmul.mubr.bf16.gmra.mrb[0].mxu0 %v2414
      %v2563 = vpop.f32.mrb[0].mxu0
      %v2564 = vadd.f32 0.0, %v2563
      %v2565 = vpop.f32.mrb[0].mxu0
      %v2566 = vpop.f32.mrb[0].mxu0
      %v2567 = vadd.f32 0.0, %v2566
      %v2568 = vpop.f32.mrb[0].mxu0
      %2569 = vmatprep.mubr.bf16.mxu0 0
      %2570 = vmatmul.mubr.bf16.gmra.mrb[0].mxu0 %v2415
      %v2571 = vpop.f32.mrb[0].mxu0
      %v2572 = vadd.f32 0.0, %v2571
      %v2573 = vpop.f32.mrb[0].mxu0
      %v2574 = vpop.f32.mrb[0].mxu0
      %v2575 = vadd.f32 0.0, %v2574
      %v2576 = vpop.f32.mrb[0].mxu0
      %2577 = vmatprep.mubr.bf16.mxu0 0
      %2578 = vmatmul.mubr.bf16.gmra.mrb[0].mxu0 %v2416
      %v2579 = vpop.f32.mrb[0].mxu0
      %v2580 = vadd.f32 0.0, %v2579
      %v2581 = vpop.f32.mrb[0].mxu0
      %v2582 = vpop.f32.mrb[0].mxu0
      %v2583 = vadd.f32 0.0, %v2582
      %v2584 = vpop.f32.mrb[0].mxu0
      %2585 = vmatprep.mubr.bf16.mxu0 0
      %2586 = vmatmul.mubr.bf16.gmra.mrb[0].mxu0 %v2417
      %v2587 = vpop.f32.mrb[0].mxu0
      %v2588 = vadd.f32 0.0, %v2587
      %v2589 = vpop.f32.mrb[0].mxu0
      %v2590 = vpop.f32.mrb[0].mxu0
      %v2591 = vadd.f32 0.0, %v2590
      %v2592 = vpop.f32.mrb[0].mxu0
      %2593 = vmatprep.mubr.bf16.mxu0 0
      %2594 = vmatmul.mubr.bf16.gmra.mrb[0].mxu0 %v2418
      %v2595 = vpop.f32.mrb[0].mxu0
      %v2596 = vadd.f32 0.0, %v2595
      %v2597 = vpop.f32.mrb[0].mxu0
      %v2598 = vpop.f32.mrb[0].mxu0
      %v2599 = vadd.f32 0.0, %v2598
      %v2600 = vpop.f32.mrb[0].mxu0
      %2601 = vmatprep.mubr.bf16.mxu0 0
      %2602 = vmatmul.mubr.bf16.gmra.mrb[0].mxu0 %v2419
      %v2603 = vpop.f32.mrb[0].mxu0
      %v2604 = vadd.f32 0.0, %v2603
      %v2605 = vpop.f32.mrb[0].mxu0
      %v2606 = vpop.f32.mrb[0].mxu0
      %v2607 = vadd.f32 0.0, %v2606
      %v2608 = vpop.f32.mrb[0].mxu0
      %2609 = vmatprep.mubr.bf16.mxu0 0
      %2610 = vmatmul.mubr.bf16.gmra.mrb[0].mxu0 %v2420
      %v2611 = vpop.f32.mrb[0].mxu0
      %v2612 = vadd.f32 0.0, %v2611
      %v2613 = vpop.f32.mrb[0].mxu0
      %v2614 = vpop.f32.mrb[0].mxu0
      %v2615 = vadd.f32 0.0, %v2614
      %v2616 = vpop.f32.mrb[0].mxu0
      %2617 = vmatprep.mubr.bf16.mxu0 0
      %2618 = vmatmul.mubr.bf16.gmra.mrb[0].mxu0 %v2421
      %v2619 = vpop.f32.mrb[0].mxu0
      %v2620 = vadd.f32 0.0, %v2619
      %v2621 = vpop.f32.mrb[0].mxu0
      %v2622 = vpop.f32.mrb[0].mxu0
      %v2623 = vadd.f32 0.0, %v2622
      %v2624 = vpop.f32.mrb[0].mxu0
      %2625 = vmatprep.mubr.bf16.mxu0 0
      %2626 = vmatmul.mubr.bf16.gmra.mrb[0].mxu0 %v2422
      %v2627 = vpop.f32.mrb[0].mxu0
      %v2628 = vadd.f32 0.0, %v2627
      %v2629 = vpop.f32.mrb[0].mxu0
      %v2630 = vpop.f32.mrb[0].mxu0
      %v2631 = vadd.f32 0.0, %v2630
      %v2632 = vpop.f32.mrb[0].mxu0
      %2633 = vmatprep.mubr.bf16.mxu0 0
      %2634 = vmatmul.mubr.bf16.gmra.mrb[0].mxu0 %v2423
      %v2635 = vpop.f32.mrb[0].mxu0
      %v2636 = vadd.f32 0.0, %v2635
      %v2637 = vpop.f32.mrb[0].mxu0
      %v2638 = vpop.f32.mrb[0].mxu0
      %v2639 = vadd.f32 0.0, %v2638
      %v2640 = vpop.f32.mrb[0].mxu0
      %2641 = vmatprep.mubr.bf16.mxu0 0
      %2642 = vmatmul.mubr.bf16.gmra.mrb[0].mxu0 %v2424
      %v2643 = vpop.f32.mrb[0].mxu0
      %v2644 = vadd.f32 0.0, %v2643
      %v2645 = vpop.f32.mrb[0].mxu0
      %v2646 = vpop.f32.mrb[0].mxu0
      %v2647 = vadd.f32 0.0, %v2646
      %v2648 = vpop.f32.mrb[0].mxu0
      %2649 = vdwg.mxu0
      %v2650 = vld [vmem:[#allocation3] sm:$0xff]
      %v2651 = vld [vmem:[#allocation3 + $0x8] sm:$0xff]
      %v2652 = vld [vmem:[#allocation3 + $0x10] sm:$0xff]
      %v2653 = vld [vmem:[#allocation3 + $0x18] sm:$0xff]
      %v2654 = vld [vmem:[#allocation3 + $0x20] sm:$0xff]
      %v2655 = vld [vmem:[#allocation3 + $0x28] sm:$0xff]
      %v2656 = vld [vmem:[#allocation3 + $0x30] sm:$0xff]
      %v2657 = vld [vmem:[#allocation3 + $0x38] sm:$0xff]
      %v2658 = vld [vmem:[#allocation3 + $0x40] sm:$0xff]
      %v2659 = vld [vmem:[#allocation3 + $0x48] sm:$0xff]
      %v2660 = vld [vmem:[#allocation3 + $0x50] sm:$0xff]
      %v2661 = vld [vmem:[#allocation3 + $0x58] sm:$0xff]
      %v2662 = vld [vmem:[#allocation3 + $0x60] sm:$0xff]
      %v2663 = vld [vmem:[#allocation3 + $0x68] sm:$0xff]
      %v2664 = vld [vmem:[#allocation3 + $0x70] sm:$0xff]
      %v2665 = vld [vmem:[#allocation3 + $0x78] sm:$0xff]
      %v2666 = vld [vmem:[#allocation3 + $0x80] sm:$0xff]
      %v2667 = vld [vmem:[#allocation3 + $0x88] sm:$0xff]
      %v2668 = vld [vmem:[#allocation3 + $0x90] sm:$0xff]
      %v2669 = vld [vmem:[#allocation3 + $0x98] sm:$0xff]
      %v2670 = vld [vmem:[#allocation3 + $0xa0] sm:$0xff]
      %v2671 = vld [vmem:[#allocation3 + $0xa8] sm:$0xff]
      %v2672 = vld [vmem:[#allocation3 + $0xb0] sm:$0xff]
      %v2673 = vld [vmem:[#allocation3 + $0xb8] sm:$0xff]
      %v2674 = vld [vmem:[#allocation3 + $0xc0] sm:$0xff]
      %v2675 = vld [vmem:[#allocation3 + $0xc8] sm:$0xff]
      %v2676 = vld [vmem:[#allocation3 + $0xd0] sm:$0xff]
      %v2677 = vld [vmem:[#allocation3 + $0xd8] sm:$0xff]
      %v2678 = vld [vmem:[#allocation3 + $0xe0] sm:$0xff]
      %v2679 = vld [vmem:[#allocation3 + $0xe8] sm:$0xff]
      %v2680 = vld [vmem:[#allocation3 + $0xf0] sm:$0xff]
      %v2681 = vld [vmem:[#allocation3 + $0xf8] sm:$0xff]
      %v2682 = vadd.f32 %v2650, %v2524
      %v2683 = vadd.f32 %v2651, %v2527
      %v2684 = vadd.f32 %v2652, %v2532
      %v2685 = vadd.f32 %v2653, %v2535
      %v2686 = vadd.f32 %v2654, %v2540
      %v2687 = vadd.f32 %v2655, %v2543
      %v2688 = vadd.f32 %v2656, %v2548
      %v2689 = vadd.f32 %v2657, %v2551
      %v2690 = vadd.f32 %v2658, %v2556
      %v2691 = vadd.f32 %v2659, %v2559
      %v2692 = vadd.f32 %v2660, %v2564
      %v2693 = vadd.f32 %v2661, %v2567
      %v2694 = vadd.f32 %v2662, %v2572
      %v2695 = vadd.f32 %v2663, %v2575
      %v2696 = vadd.f32 %v2664, %v2580
      %v2697 = vadd.f32 %v2665, %v2583
      %v2698 = vadd.f32 %v2666, %v2588
      %v2699 = vadd.f32 %v2667, %v2591
      %v2700 = vadd.f32 %v2668, %v2596
      %v2701 = vadd.f32 %v2669, %v2599
      %v2702 = vadd.f32 %v2670, %v2604
      %v2703 = vadd.f32 %v2671, %v2607
      %v2704 = vadd.f32 %v2672, %v2612
      %v2705 = vadd.f32 %v2673, %v2615
      %v2706 = vadd.f32 %v2674, %v2620
      %v2707 = vadd.f32 %v2675, %v2623
      %v2708 = vadd.f32 %v2676, %v2628
      %v2709 = vadd.f32 %v2677, %v2631
      %v2710 = vadd.f32 %v2678, %v2636
      %v2711 = vadd.f32 %v2679, %v2639
      %v2712 = vadd.f32 %v2680, %v2644
      %v2713 = vadd.f32 %v2681, %v2647
      %2714 = vst [vmem:[#allocation3] sm:$0xff] %v2682
      %2715 = vst [vmem:[#allocation3 + $0x8] sm:$0xff] %v2683
      %2716 = vst [vmem:[#allocation3 + $0x10] sm:$0xff] %v2684
      %2717 = vst [vmem:[#allocation3 + $0x18] sm:$0xff] %v2685
      %2718 = vst [vmem:[#allocation3 + $0x20] sm:$0xff] %v2686
      %2719 = vst [vmem:[#allocation3 + $0x28] sm:$0xff] %v2687
      %2720 = vst [vmem:[#allocation3 + $0x30] sm:$0xff] %v2688
      %2721 = vst [vmem:[#allocation3 + $0x38] sm:$0xff] %v2689
      %2722 = vst [vmem:[#allocation3 + $0x40] sm:$0xff] %v2690
      %2723 = vst [vmem:[#allocation3 + $0x48] sm:$0xff] %v2691
      %2724 = vst [vmem:[#allocation3 + $0x50] sm:$0xff] %v2692
      %2725 = vst [vmem:[#allocation3 + $0x58] sm:$0xff] %v2693
      %2726 = vst [vmem:[#allocation3 + $0x60] sm:$0xff] %v2694
      %2727 = vst [vmem:[#allocation3 + $0x68] sm:$0xff] %v2695
      %2728 = vst [vmem:[#allocation3 + $0x70] sm:$0xff] %v2696
      %2729 = vst [vmem:[#allocation3 + $0x78] sm:$0xff] %v2697
      %2730 = vst [vmem:[#allocation3 + $0x80] sm:$0xff] %v2698
      %2731 = vst [vmem:[#allocation3 + $0x88] sm:$0xff] %v2699
      %2732 = vst [vmem:[#allocation3 + $0x90] sm:$0xff] %v2700
      %2733 = vst [vmem:[#allocation3 + $0x98] sm:$0xff] %v2701
      %2734 = vst [vmem:[#allocation3 + $0xa0] sm:$0xff] %v2702
      %2735 = vst [vmem:[#allocation3 + $0xa8] sm:$0xff] %v2703
      %2736 = vst [vmem:[#allocation3 + $0xb0] sm:$0xff] %v2704
      %2737 = vst [vmem:[#allocation3 + $0xb8] sm:$0xff] %v2705
      %2738 = vst [vmem:[#allocation3 + $0xc0] sm:$0xff] %v2706
      %2739 = vst [vmem:[#allocation3 + $0xc8] sm:$0xff] %v2707
      %2740 = vst [vmem:[#allocation3 + $0xd0] sm:$0xff] %v2708
      %2741 = vst [vmem:[#allocation3 + $0xd8] sm:$0xff] %v2709
      %2742 = vst [vmem:[#allocation3 + $0xe0] sm:$0xff] %v2710
      %2743 = vst [vmem:[#allocation3 + $0xe8] sm:$0xff] %v2711
      %2744 = vst [vmem:[#allocation3 + $0xf0] sm:$0xff] %v2712
      %2745 = vst [vmem:[#allocation3 + $0xf8] sm:$0xff] %v2713
      %v2746 = vld [vmem:[#allocation2] sm:$0xe]
      %v2747 = vld [vmem:[#allocation2 + $0x4] sm:$0xf]
      %v2748 = vld [vmem:[#allocation2 + $0x8] sm:$0x1]
      %v2749 = vld [vmem:[#allocation2 + $0xc] sm:$0xe]
      %v2750 = vld [vmem:[#allocation2 + $0x10] sm:$0xf]
      %v2751 = vld [vmem:[#allocation2 + $0x14] sm:$0x1]
      %v2752 = vld [vmem:[#allocation2 + $0x18] sm:$0xe]
      %v2753 = vld [vmem:[#allocation2 + $0x1c] sm:$0xf]
      %v2754 = vld [vmem:[#allocation2 + $0x20] sm:$0x1]
      %v2755 = vld [vmem:[#allocation2 + $0x24] sm:$0xe]
      %v2756 = vld [vmem:[#allocation2 + $0x28] sm:$0xf]
      %v2757 = vld [vmem:[#allocation2 + $0x2c] sm:$0x1]
      %v2758 = vld [vmem:[#allocation2 + $0x30] sm:$0xe]
      %v2759 = vld [vmem:[#allocation2 + $0x34] sm:$0xf]
      %v2760 = vld [vmem:[#allocation2 + $0x38] sm:$0x1]
      %v2761 = vld [vmem:[#allocation2 + $0x3c] sm:$0xe]
      %v2762 = vld [vmem:[#allocation2 + $0x40] sm:$0xf]
      %v2763 = vld [vmem:[#allocation2 + $0x44] sm:$0x1]
      %v2764 = vld [vmem:[#allocation2 + $0x48] sm:$0xe]
      %v2765 = vld [vmem:[#allocation2 + $0x4c] sm:$0xf]
      %v2766 = vld [vmem:[#allocation2 + $0x50] sm:$0x1]
      %v2767 = vld [vmem:[#allocation2 + $0x54] sm:$0xe]
      %v2768 = vld [vmem:[#allocation2 + $0x58] sm:$0xf]
      %v2769 = vld [vmem:[#allocation2 + $0x5c] sm:$0x1]
      %v2770 = vld [vmem:[#allocation2 + $0x60] sm:$0xe]
      %v2771 = vld [vmem:[#allocation2 + $0x64] sm:$0xf]
      %v2772 = vld [vmem:[#allocation2 + $0x68] sm:$0x1]
      %v2773 = vld [vmem:[#allocation2 + $0x6c] sm:$0xe]
      %v2774 = vld [vmem:[#allocation2 + $0x70] sm:$0xf]
      %v2775 = vld [vmem:[#allocation2 + $0x74] sm:$0x1]
      %v2776 = vld [vmem:[#allocation2 + $0x78] sm:$0xe]
      %v2777 = vld [vmem:[#allocation2 + $0x7c] sm:$0xf]
      %v2778 = vld [vmem:[#allocation2 + $0x80] sm:$0x1]
      %v2779 = vld [vmem:[#allocation2 + $0x84] sm:$0xe]
      %v2780 = vld [vmem:[#allocation2 + $0x88] sm:$0xf]
      %v2781 = vld [vmem:[#allocation2 + $0x8c] sm:$0x1]
      %v2782 = vld [vmem:[#allocation2 + $0x90] sm:$0xe]
      %v2783 = vld [vmem:[#allocation2 + $0x94] sm:$0xf]
      %v2784 = vld [vmem:[#allocation2 + $0x98] sm:$0x1]
      %v2785 = vld [vmem:[#allocation2 + $0x9c] sm:$0xe]
      %v2786 = vld [vmem:[#allocation2 + $0xa0] sm:$0xf]
      %v2787 = vld [vmem:[#allocation2 + $0xa4] sm:$0x1]
      %v2788 = vld [vmem:[#allocation2 + $0xa8] sm:$0xe]
      %v2789 = vld [vmem:[#allocation2 + $0xac] sm:$0xf]
      %v2790 = vld [vmem:[#allocation2 + $0xb0] sm:$0x1]
      %v2791 = vld [vmem:[#allocation2 + $0xb4] sm:$0xe]
      %v2792 = vld [vmem:[#allocation2 + $0xb8] sm:$0xf]
      %v2793 = vld [vmem:[#allocation2 + $0xbc] sm:$0x1]
      %vm2842 = vcmask 1042432
      %vm2843 = vcmask 1046532
      %vm2844 = vmor %vm2842, %vm2843
      %v2845 = vrot.slane %v2746, 5
      %v2846 = vrot.slane %v2845, 4
      %v2847 = vrot.slane %v2747, 5
      %v2848 = vsel %vm2844, %v2846, %v2847
      %v2849 = vrot.slane %v2847, 4
      %v2850 = vrot.slane %v2748, 5
      %v2851 = vsel %vm2844, %v2849, %v2850
      %v2852 = vrot.slane %v2749, 5
      %v2853 = vrot.slane %v2852, 4
      %v2854 = vrot.slane %v2750, 5
      %v2855 = vsel %vm2844, %v2853, %v2854
      %v2856 = vrot.slane %v2854, 4
      %v2857 = vrot.slane %v2751, 5
      %v2858 = vsel %vm2844, %v2856, %v2857
      %v2859 = vrot.slane %v2752, 5
      %v2860 = vrot.slane %v2859, 4
      %v2861 = vrot.slane %v2753, 5
      %v2862 = vsel %vm2844, %v2860, %v2861
      %v2863 = vrot.slane %v2861, 4
      %v2864 = vrot.slane %v2754, 5
      %v2865 = vsel %vm2844, %v2863, %v2864
      %v2866 = vrot.slane %v2755, 5
      %v2867 = vrot.slane %v2866, 4
      %v2868 = vrot.slane %v2756, 5
      %v2869 = vsel %vm2844, %v2867, %v2868
      %v2870 = vrot.slane %v2868, 4
      %v2871 = vrot.slane %v2757, 5
      %v2872 = vsel %vm2844, %v2870, %v2871
      %v2873 = vrot.slane %v2758, 5
      %v2874 = vrot.slane %v2873, 4
      %v2875 = vrot.slane %v2759, 5
      %v2876 = vsel %vm2844, %v2874, %v2875
      %v2877 = vrot.slane %v2875, 4
      %v2878 = vrot.slane %v2760, 5
      %v2879 = vsel %vm2844, %v2877, %v2878
      %v2880 = vrot.slane %v2761, 5
      %v2881 = vrot.slane %v2880, 4
      %v2882 = vrot.slane %v2762, 5
      %v2883 = vsel %vm2844, %v2881, %v2882
      %v2884 = vrot.slane %v2882, 4
      %v2885 = vrot.slane %v2763, 5
      %v2886 = vsel %vm2844, %v2884, %v2885
      %v2887 = vrot.slane %v2764, 5
      %v2888 = vrot.slane %v2887, 4
      %v2889 = vrot.slane %v2765, 5
      %v2890 = vsel %vm2844, %v2888, %v2889
      %v2891 = vrot.slane %v2889, 4
      %v2892 = vrot.slane %v2766, 5
      %v2893 = vsel %vm2844, %v2891, %v2892
      %v2894 = vrot.slane %v2767, 5
      %v2895 = vrot.slane %v2894, 4
      %v2896 = vrot.slane %v2768, 5
      %v2897 = vsel %vm2844, %v2895, %v2896
      %v2898 = vrot.slane %v2896, 4
      %v2899 = vrot.slane %v2769, 5
      %v2900 = vsel %vm2844, %v2898, %v2899
      %v2901 = vrot.slane %v2770, 5
      %v2902 = vrot.slane %v2901, 4
      %v2903 = vrot.slane %v2771, 5
      %v2904 = vsel %vm2844, %v2902, %v2903
      %v2905 = vrot.slane %v2903, 4
      %v2906 = vrot.slane %v2772, 5
      %v2907 = vsel %vm2844, %v2905, %v2906
      %v2908 = vrot.slane %v2773, 5
      %v2909 = vrot.slane %v2908, 4
      %v2910 = vrot.slane %v2774, 5
      %v2911 = vsel %vm2844, %v2909, %v2910
      %v2912 = vrot.slane %v2910, 4
      %v2913 = vrot.slane %v2775, 5
      %v2914 = vsel %vm2844, %v2912, %v2913
      %v2915 = vrot.slane %v2776, 5
      %v2916 = vrot.slane %v2915, 4
      %v2917 = vrot.slane %v2777, 5
      %v2918 = vsel %vm2844, %v2916, %v2917
      %v2919 = vrot.slane %v2917, 4
      %v2920 = vrot.slane %v2778, 5
      %v2921 = vsel %vm2844, %v2919, %v2920
      %v2922 = vrot.slane %v2779, 5
      %v2923 = vrot.slane %v2922, 4
      %v2924 = vrot.slane %v2780, 5
      %v2925 = vsel %vm2844, %v2923, %v2924
      %v2926 = vrot.slane %v2924, 4
      %v2927 = vrot.slane %v2781, 5
      %v2928 = vsel %vm2844, %v2926, %v2927
      %v2929 = vrot.slane %v2782, 5
      %v2930 = vrot.slane %v2929, 4
      %v2931 = vrot.slane %v2783, 5
      %v2932 = vsel %vm2844, %v2930, %v2931
      %v2933 = vrot.slane %v2931, 4
      %v2934 = vrot.slane %v2784, 5
      %v2935 = vsel %vm2844, %v2933, %v2934
      %v2936 = vrot.slane %v2785, 5
      %v2937 = vrot.slane %v2936, 4
      %v2938 = vrot.slane %v2786, 5
      %v2939 = vsel %vm2844, %v2937, %v2938
      %v2940 = vrot.slane %v2938, 4
      %v2941 = vrot.slane %v2787, 5
      %v2942 = vsel %vm2844, %v2940, %v2941
      %v2943 = vrot.slane %v2788, 5
      %v2944 = vrot.slane %v2943, 4
      %v2945 = vrot.slane %v2789, 5
      %v2946 = vsel %vm2844, %v2944, %v2945
      %v2947 = vrot.slane %v2945, 4
      %v2948 = vrot.slane %v2790, 5
      %v2949 = vsel %vm2844, %v2947, %v2948
      %v2950 = vrot.slane %v2791, 5
      %v2951 = vrot.slane %v2950, 4
      %v2952 = vrot.slane %v2792, 5
      %v2953 = vsel %vm2844, %v2951, %v2952
      %v2954 = vrot.slane %v2952, 4
      %v2955 = vrot.slane %v2793, 5
      %v2956 = vsel %vm2844, %v2954, %v2955
      %s2957 = scalar_lea.vmem %s2, 128
      %v2958 = vld [vmem:[%s2957] sm:$0xf]
      %v2959 = vld [vmem:[%s2957 + $0x4] sm:$0xf]
      %v2960 = vld [vmem:[%s2957 + $0x8] sm:$0xf]
      %v2961 = vld [vmem:[%s2957 + $0xc] sm:$0xf]
      %v2962 = vld [vmem:[%s2957 + $0x10] sm:$0xf]
      %v2963 = vld [vmem:[%s2957 + $0x14] sm:$0xf]
      %v2964 = vld [vmem:[%s2957 + $0x18] sm:$0xf]
      %v2965 = vld [vmem:[%s2957 + $0x1c] sm:$0xf]
      %v2966 = vld [vmem:[%s2957 + $0x20] sm:$0xf]
      %v2967 = vld [vmem:[%s2957 + $0x24] sm:$0xf]
      %v2968 = vld [vmem:[%s2957 + $0x28] sm:$0xf]
      %v2969 = vld [vmem:[%s2957 + $0x2c] sm:$0xf]
      %v2970 = vld [vmem:[%s2957 + $0x30] sm:$0xf]
      %v2971 = vld [vmem:[%s2957 + $0x34] sm:$0xf]
      %v2972 = vld [vmem:[%s2957 + $0x38] sm:$0xf]
      %v2973 = vld [vmem:[%s2957 + $0x3c] sm:$0xf]
      %v2974 = vunpack.c.l.b16 %v2848
      %v2975 = vunpack.c.l.b16 %v2851
      %v2976 = vunpack.c.l.b16 %v2855
      %v2977 = vunpack.c.l.b16 %v2858
      %v2978 = vunpack.c.l.b16 %v2862
      %v2979 = vunpack.c.l.b16 %v2865
      %v2980 = vunpack.c.l.b16 %v2869
      %v2981 = vunpack.c.l.b16 %v2872
      %v2982 = vunpack.c.l.b16 %v2876
      %v2983 = vunpack.c.l.b16 %v2879
      %v2984 = vunpack.c.l.b16 %v2883
      %v2985 = vunpack.c.l.b16 %v2886
      %v2986 = vunpack.c.l.b16 %v2890
      %v2987 = vunpack.c.l.b16 %v2893
      %v2988 = vunpack.c.l.b16 %v2897
      %v2989 = vunpack.c.l.b16 %v2900
      %v2990 = vunpack.c.l.b16 %v2904
      %v2991 = vunpack.c.l.b16 %v2907
      %v2992 = vunpack.c.l.b16 %v2911
      %v2993 = vunpack.c.l.b16 %v2914
      %v2994 = vunpack.c.l.b16 %v2918
      %v2995 = vunpack.c.l.b16 %v2921
      %v2996 = vunpack.c.l.b16 %v2925
      %v2997 = vunpack.c.l.b16 %v2928
      %v2998 = vunpack.c.l.b16 %v2932
      %v2999 = vunpack.c.l.b16 %v2935
      %v3000 = vunpack.c.l.b16 %v2939
      %v3001 = vunpack.c.l.b16 %v2942
      %v3002 = vunpack.c.l.b16 %v2946
      %v3003 = vunpack.c.l.b16 %v2949
      %v3004 = vunpack.c.l.b16 %v2953
      %v3005 = vunpack.c.l.b16 %v2956
      %v3006 = vpack.c.b16 %v2975, %v2974
      %v3007 = vpack.c.b16 %v2977, %v2976
      %v3008 = vpack.c.b16 %v2979, %v2978
      %v3009 = vpack.c.b16 %v2981, %v2980
      %v3010 = vpack.c.b16 %v2983, %v2982
      %v3011 = vpack.c.b16 %v2985, %v2984
      %v3012 = vpack.c.b16 %v2987, %v2986
      %v3013 = vpack.c.b16 %v2989, %v2988
      %v3014 = vpack.c.b16 %v2991, %v2990
      %v3015 = vpack.c.b16 %v2993, %v2992
      %v3016 = vpack.c.b16 %v2995, %v2994
      %v3017 = vpack.c.b16 %v2997, %v2996
      %v3018 = vpack.c.b16 %v2999, %v2998
      %v3019 = vpack.c.b16 %v3001, %v3000
      %v3020 = vpack.c.b16 %v3003, %v3002
      %v3021 = vpack.c.b16 %v3005, %v3004
      %v3054 = vunpack.c.l.b16 %v2958
      %v3055 = vunpack.c.l.b16 %v2959
      %v3056 = vunpack.c.l.b16 %v2960
      %v3057 = vunpack.c.l.b16 %v2961
      %v3058 = vunpack.c.l.b16 %v2962
      %v3059 = vunpack.c.l.b16 %v2963
      %v3060 = vunpack.c.l.b16 %v2964
      %v3061 = vunpack.c.l.b16 %v2965
      %v3062 = vunpack.c.l.b16 %v2966
      %v3063 = vunpack.c.l.b16 %v2967
      %v3064 = vunpack.c.l.b16 %v2968
      %v3065 = vunpack.c.l.b16 %v2969
      %v3066 = vunpack.c.l.b16 %v2970
      %v3067 = vunpack.c.l.b16 %v2971
      %v3068 = vunpack.c.l.b16 %v2972
      %v3069 = vunpack.c.l.b16 %v2973
      %v3070 = vpack.c.b16 %v3055, %v3054
      %v3071 = vpack.c.b16 %v3057, %v3056
      %v3072 = vpack.c.b16 %v3059, %v3058
      %v3073 = vpack.c.b16 %v3061, %v3060
      %v3074 = vpack.c.b16 %v3063, %v3062
      %v3075 = vpack.c.b16 %v3065, %v3064
      %v3076 = vpack.c.b16 %v3067, %v3066
      %v3077 = vpack.c.b16 %v3069, %v3068
      %3086 = vmatprep.subr.bf16.mxu0 0
      %3087 = vmatpush1.bf16.msra.mxu0 %v3070
      %3088 = vmatprep.subr.bf16.mxu0 0
      %3089 = vmatpush1.bf16.msra.mxu0 %v3071
      %3090 = vmatprep.subr.bf16.mxu0 0
      %3091 = vmatpush1.bf16.msra.mxu0 %v3072
      %3092 = vmatprep.subr.bf16.mxu0 0
      %3093 = vmatpush1.bf16.msra.mxu0 %v3073
      %3094 = vmatprep.subr.bf16.mxu0 0
      %3095 = vmatpush1.bf16.msra.mxu0 %v3074
      %3096 = vmatprep.subr.bf16.mxu0 0
      %3097 = vmatpush1.bf16.msra.mxu0 %v3075
      %3098 = vmatprep.subr.bf16.mxu0 0
      %3099 = vmatpush1.bf16.msra.mxu0 %v3076
      %3100 = vmatprep.subr.bf16.mxu0 0
      %3101 = vmatpush1.bf16.msra.mxu0 %v3077
      %3102 = vmatprep.subr.bf16.mxu0 0
      %3103 = vmatpush1.bf16.msra.mxu0 0
      %3104 = vmatprep.subr.bf16.mxu0 0
      %3105 = vmatpush1.bf16.msra.mxu0 0
      %3106 = vmatprep.subr.bf16.mxu0 0
      %3107 = vmatpush1.bf16.msra.mxu0 0
      %3108 = vmatprep.subr.bf16.mxu0 0
      %3109 = vmatpush1.bf16.msra.mxu0 0
      %3110 = vmatprep.subr.bf16.mxu0 0
      %3111 = vmatpush1.bf16.msra.mxu0 0
      %3112 = vmatprep.subr.bf16.mxu0 0
      %3113 = vmatpush1.bf16.msra.mxu0 0
      %3114 = vmatprep.subr.bf16.mxu0 0
      %3115 = vmatpush1.bf16.msra.mxu0 0
      %3116 = vmatprep.subr.bf16.mxu0 0
      %3117 = vmatpush1.bf16.msra.mxu0 0
      %3118 = vmatprep.mubr.bf16.mxu0 0
      %3119 = vmatmul.mubr.bf16.gmra.mrb[0].mxu0 %v3006
      %v3120 = vpop.f32.mrb[0].mxu0
      %v3121 = vadd.f32 0.0, %v3120
      %v3122 = vpop.f32.mrb[0].mxu0
      %v3123 = vpop.f32.mrb[0].mxu0
      %v3124 = vadd.f32 0.0, %v3123
      %v3125 = vpop.f32.mrb[0].mxu0
      %3126 = vmatprep.mubr.bf16.mxu0 0
      %3127 = vmatmul.mubr.bf16.gmra.mrb[0].mxu0 %v3007
      %v3128 = vpop.f32.mrb[0].mxu0
      %v3129 = vadd.f32 0.0, %v3128
      %v3130 = vpop.f32.mrb[0].mxu0
      %v3131 = vpop.f32.mrb[0].mxu0
      %v3132 = vadd.f32 0.0, %v3131
      %v3133 = vpop.f32.mrb[0].mxu0
      %3134 = vmatprep.mubr.bf16.mxu0 0
      %3135 = vmatmul.mubr.bf16.gmra.mrb[0].mxu0 %v3008
      %v3136 = vpop.f32.mrb[0].mxu0
      %v3137 = vadd.f32 0.0, %v3136
      %v3138 = vpop.f32.mrb[0].mxu0
      %v3139 = vpop.f32.mrb[0].mxu0
      %v3140 = vadd.f32 0.0, %v3139
      %v3141 = vpop.f32.mrb[0].mxu0
      %3142 = vmatprep.mubr.bf16.mxu0 0
      %3143 = vmatmul.mubr.bf16.gmra.mrb[0].mxu0 %v3009
      %v3144 = vpop.f32.mrb[0].mxu0
      %v3145 = vadd.f32 0.0, %v3144
      %v3146 = vpop.f32.mrb[0].mxu0
      %v3147 = vpop.f32.mrb[0].mxu0
      %v3148 = vadd.f32 0.0, %v3147
      %v3149 = vpop.f32.mrb[0].mxu0
      %3150 = vmatprep.mubr.bf16.mxu0 0
      %3151 = vmatmul.mubr.bf16.gmra.mrb[0].mxu0 %v3010
      %v3152 = vpop.f32.mrb[0].mxu0
      %v3153 = vadd.f32 0.0, %v3152
      %v3154 = vpop.f32.mrb[0].mxu0
      %v3155 = vpop.f32.mrb[0].mxu0
      %v3156 = vadd.f32 0.0, %v3155
      %v3157 = vpop.f32.mrb[0].mxu0
      %3158 = vmatprep.mubr.bf16.mxu0 0
      %3159 = vmatmul.mubr.bf16.gmra.mrb[0].mxu0 %v3011
      %v3160 = vpop.f32.mrb[0].mxu0
      %v3161 = vadd.f32 0.0, %v3160
      %v3162 = vpop.f32.mrb[0].mxu0
      %v3163 = vpop.f32.mrb[0].mxu0
      %v3164 = vadd.f32 0.0, %v3163
      %v3165 = vpop.f32.mrb[0].mxu0
      %3166 = vmatprep.mubr.bf16.mxu0 0
      %3167 = vmatmul.mubr.bf16.gmra.mrb[0].mxu0 %v3012
      %v3168 = vpop.f32.mrb[0].mxu0
      %v3169 = vadd.f32 0.0, %v3168
      %v3170 = vpop.f32.mrb[0].mxu0
      %v3171 = vpop.f32.mrb[0].mxu0
      %v3172 = vadd.f32 0.0, %v3171
      %v3173 = vpop.f32.mrb[0].mxu0
      %3174 = vmatprep.mubr.bf16.mxu0 0
      %3175 = vmatmul.mubr.bf16.gmra.mrb[0].mxu0 %v3013
      %v3176 = vpop.f32.mrb[0].mxu0
      %v3177 = vadd.f32 0.0, %v3176
      %v3178 = vpop.f32.mrb[0].mxu0
      %v3179 = vpop.f32.mrb[0].mxu0
      %v3180 = vadd.f32 0.0, %v3179
      %v3181 = vpop.f32.mrb[0].mxu0
      %3182 = vmatprep.mubr.bf16.mxu0 0
      %3183 = vmatmul.mubr.bf16.gmra.mrb[0].mxu0 %v3014
      %v3184 = vpop.f32.mrb[0].mxu0
      %v3185 = vadd.f32 0.0, %v3184
      %v3186 = vpop.f32.mrb[0].mxu0
      %v3187 = vpop.f32.mrb[0].mxu0
      %v3188 = vadd.f32 0.0, %v3187
      %v3189 = vpop.f32.mrb[0].mxu0
      %3190 = vmatprep.mubr.bf16.mxu0 0
      %3191 = vmatmul.mubr.bf16.gmra.mrb[0].mxu0 %v3015
      %v3192 = vpop.f32.mrb[0].mxu0
      %v3193 = vadd.f32 0.0, %v3192
      %v3194 = vpop.f32.mrb[0].mxu0
      %v3195 = vpop.f32.mrb[0].mxu0
      %v3196 = vadd.f32 0.0, %v3195
      %v3197 = vpop.f32.mrb[0].mxu0
      %3198 = vmatprep.mubr.bf16.mxu0 0
      %3199 = vmatmul.mubr.bf16.gmra.mrb[0].mxu0 %v3016
      %v3200 = vpop.f32.mrb[0].mxu0
      %v3201 = vadd.f32 0.0, %v3200
      %v3202 = vpop.f32.mrb[0].mxu0
      %v3203 = vpop.f32.mrb[0].mxu0
      %v3204 = vadd.f32 0.0, %v3203
      %v3205 = vpop.f32.mrb[0].mxu0
      %3206 = vmatprep.mubr.bf16.mxu0 0
      %3207 = vmatmul.mubr.bf16.gmra.mrb[0].mxu0 %v3017
      %v3208 = vpop.f32.mrb[0].mxu0
      %v3209 = vadd.f32 0.0, %v3208
      %v3210 = vpop.f32.mrb[0].mxu0
      %v3211 = vpop.f32.mrb[0].mxu0
      %v3212 = vadd.f32 0.0, %v3211
      %v3213 = vpop.f32.mrb[0].mxu0
      %3214 = vmatprep.mubr.bf16.mxu0 0
      %3215 = vmatmul.mubr.bf16.gmra.mrb[0].mxu0 %v3018
      %v3216 = vpop.f32.mrb[0].mxu0
      %v3217 = vadd.f32 0.0, %v3216
      %v3218 = vpop.f32.mrb[0].mxu0
      %v3219 = vpop.f32.mrb[0].mxu0
      %v3220 = vadd.f32 0.0, %v3219
      %v3221 = vpop.f32.mrb[0].mxu0
      %3222 = vmatprep.mubr.bf16.mxu0 0
      %3223 = vmatmul.mubr.bf16.gmra.mrb[0].mxu0 %v3019
      %v3224 = vpop.f32.mrb[0].mxu0
      %v3225 = vadd.f32 0.0, %v3224
      %v3226 = vpop.f32.mrb[0].mxu0
      %v3227 = vpop.f32.mrb[0].mxu0
      %v3228 = vadd.f32 0.0, %v3227
      %v3229 = vpop.f32.mrb[0].mxu0
      %3230 = vmatprep.mubr.bf16.mxu0 0
      %3231 = vmatmul.mubr.bf16.gmra.mrb[0].mxu0 %v3020
      %v3232 = vpop.f32.mrb[0].mxu0
      %v3233 = vadd.f32 0.0, %v3232
      %v3234 = vpop.f32.mrb[0].mxu0
      %v3235 = vpop.f32.mrb[0].mxu0
      %v3236 = vadd.f32 0.0, %v3235
      %v3237 = vpop.f32.mrb[0].mxu0
      %3238 = vmatprep.mubr.bf16.mxu0 0
      %3239 = vmatmul.mubr.bf16.gmra.mrb[0].mxu0 %v3021
      %v3240 = vpop.f32.mrb[0].mxu0
      %v3241 = vadd.f32 0.0, %v3240
      %v3242 = vpop.f32.mrb[0].mxu0
      %v3243 = vpop.f32.mrb[0].mxu0
      %v3244 = vadd.f32 0.0, %v3243
      %v3245 = vpop.f32.mrb[0].mxu0
      %3246 = vdwg.mxu0
      %v3247 = vld [vmem:[#allocation3] sm:$0xff]
      %v3248 = vld [vmem:[#allocation3 + $0x8] sm:$0xff]
      %v3249 = vld [vmem:[#allocation3 + $0x10] sm:$0xff]
      %v3250 = vld [vmem:[#allocation3 + $0x18] sm:$0xff]
      %v3251 = vld [vmem:[#allocation3 + $0x20] sm:$0xff]
      %v3252 = vld [vmem:[#allocation3 + $0x28] sm:$0xff]
      %v3253 = vld [vmem:[#allocation3 + $0x30] sm:$0xff]
      %v3254 = vld [vmem:[#allocation3 + $0x38] sm:$0xff]
      %v3255 = vld [vmem:[#allocation3 + $0x40] sm:$0xff]
      %v3256 = vld [vmem:[#allocation3 + $0x48] sm:$0xff]
      %v3257 = vld [vmem:[#allocation3 + $0x50] sm:$0xff]
      %v3258 = vld [vmem:[#allocation3 + $0x58] sm:$0xff]
      %v3259 = vld [vmem:[#allocation3 + $0x60] sm:$0xff]
      %v3260 = vld [vmem:[#allocation3 + $0x68] sm:$0xff]
      %v3261 = vld [vmem:[#allocation3 + $0x70] sm:$0xff]
      %v3262 = vld [vmem:[#allocation3 + $0x78] sm:$0xff]
      %v3263 = vld [vmem:[#allocation3 + $0x80] sm:$0xff]
      %v3264 = vld [vmem:[#allocation3 + $0x88] sm:$0xff]
      %v3265 = vld [vmem:[#allocation3 + $0x90] sm:$0xff]
      %v3266 = vld [vmem:[#allocation3 + $0x98] sm:$0xff]
      %v3267 = vld [vmem:[#allocation3 + $0xa0] sm:$0xff]
      %v3268 = vld [vmem:[#allocation3 + $0xa8] sm:$0xff]
      %v3269 = vld [vmem:[#allocation3 + $0xb0] sm:$0xff]
      %v3270 = vld [vmem:[#allocation3 + $0xb8] sm:$0xff]
      %v3271 = vld [vmem:[#allocation3 + $0xc0] sm:$0xff]
      %v3272 = vld [vmem:[#allocation3 + $0xc8] sm:$0xff]
      %v3273 = vld [vmem:[#allocation3 + $0xd0] sm:$0xff]
      %v3274 = vld [vmem:[#allocation3 + $0xd8] sm:$0xff]
      %v3275 = vld [vmem:[#allocation3 + $0xe0] sm:$0xff]
      %v3276 = vld [vmem:[#allocation3 + $0xe8] sm:$0xff]
      %v3277 = vld [vmem:[#allocation3 + $0xf0] sm:$0xff]
      %v3278 = vld [vmem:[#allocation3 + $0xf8] sm:$0xff]
      %v3279 = vadd.f32 %v3247, %v3121
      %v3280 = vadd.f32 %v3248, %v3124
      %v3281 = vadd.f32 %v3249, %v3129
      %v3282 = vadd.f32 %v3250, %v3132
      %v3283 = vadd.f32 %v3251, %v3137
      %v3284 = vadd.f32 %v3252, %v3140
      %v3285 = vadd.f32 %v3253, %v3145
      %v3286 = vadd.f32 %v3254, %v3148
      %v3287 = vadd.f32 %v3255, %v3153
      %v3288 = vadd.f32 %v3256, %v3156
      %v3289 = vadd.f32 %v3257, %v3161
      %v3290 = vadd.f32 %v3258, %v3164
      %v3291 = vadd.f32 %v3259, %v3169
      %v3292 = vadd.f32 %v3260, %v3172
      %v3293 = vadd.f32 %v3261, %v3177
      %v3294 = vadd.f32 %v3262, %v3180
      %v3295 = vadd.f32 %v3263, %v3185
      %v3296 = vadd.f32 %v3264, %v3188
      %v3297 = vadd.f32 %v3265, %v3193
      %v3298 = vadd.f32 %v3266, %v3196
      %v3299 = vadd.f32 %v3267, %v3201
      %v3300 = vadd.f32 %v3268, %v3204
      %v3301 = vadd.f32 %v3269, %v3209
      %v3302 = vadd.f32 %v3270, %v3212
      %v3303 = vadd.f32 %v3271, %v3217
      %v3304 = vadd.f32 %v3272, %v3220
      %v3305 = vadd.f32 %v3273, %v3225
      %v3306 = vadd.f32 %v3274, %v3228
      %v3307 = vadd.f32 %v3275, %v3233
      %v3308 = vadd.f32 %v3276, %v3236
      %v3309 = vadd.f32 %v3277, %v3241
      %v3310 = vadd.f32 %v3278, %v3244
      %3311 = vst [vmem:[#allocation3] sm:$0xff] %v3279
      %3312 = vst [vmem:[#allocation3 + $0x8] sm:$0xff] %v3280
      %3313 = vst [vmem:[#allocation3 + $0x10] sm:$0xff] %v3281
      %3314 = vst [vmem:[#allocation3 + $0x18] sm:$0xff] %v3282
      %3315 = vst [vmem:[#allocation3 + $0x20] sm:$0xff] %v3283
      %3316 = vst [vmem:[#allocation3 + $0x28] sm:$0xff] %v3284
      %3317 = vst [vmem:[#allocation3 + $0x30] sm:$0xff] %v3285
      %3318 = vst [vmem:[#allocation3 + $0x38] sm:$0xff] %v3286
      %3319 = vst [vmem:[#allocation3 + $0x40] sm:$0xff] %v3287
      %3320 = vst [vmem:[#allocation3 + $0x48] sm:$0xff] %v3288
      %3321 = vst [vmem:[#allocation3 + $0x50] sm:$0xff] %v3289
      %3322 = vst [vmem:[#allocation3 + $0x58] sm:$0xff] %v3290
      %3323 = vst [vmem:[#allocation3 + $0x60] sm:$0xff] %v3291
      %3324 = vst [vmem:[#allocation3 + $0x68] sm:$0xff] %v3292
      %3325 = vst [vmem:[#allocation3 + $0x70] sm:$0xff] %v3293
      %3326 = vst [vmem:[#allocation3 + $0x78] sm:$0xff] %v3294
      %3327 = vst [vmem:[#allocation3 + $0x80] sm:$0xff] %v3295
      %3328 = vst [vmem:[#allocation3 + $0x88] sm:$0xff] %v3296
      %3329 = vst [vmem:[#allocation3 + $0x90] sm:$0xff] %v3297
      %3330 = vst [vmem:[#allocation3 + $0x98] sm:$0xff] %v3298
      %3331 = vst [vmem:[#allocation3 + $0xa0] sm:$0xff] %v3299
      %3332 = vst [vmem:[#allocation3 + $0xa8] sm:$0xff] %v3300
      %3333 = vst [vmem:[#allocation3 + $0xb0] sm:$0xff] %v3301
      %3334 = vst [vmem:[#allocation3 + $0xb8] sm:$0xff] %v3302
      %3335 = vst [vmem:[#allocation3 + $0xc0] sm:$0xff] %v3303
      %3336 = vst [vmem:[#allocation3 + $0xc8] sm:$0xff] %v3304
      %3337 = vst [vmem:[#allocation3 + $0xd0] sm:$0xff] %v3305
      %3338 = vst [vmem:[#allocation3 + $0xd8] sm:$0xff] %v3306
      %3339 = vst [vmem:[#allocation3 + $0xe0] sm:$0xff] %v3307
      %3340 = vst [vmem:[#allocation3 + $0xe8] sm:$0xff] %v3308
      %3341 = vst [vmem:[#allocation3 + $0xf0] sm:$0xff] %v3309
      %3342 = vst [vmem:[#allocation3 + $0xf8] sm:$0xff] %v3310
      %v3343 = vld [vmem:[%s1422] sm:$0xf]
      %v3344 = vld [vmem:[%s1422 + $0x4] sm:$0xf]
      %v3345 = vld [vmem:[%s1422 + $0xc] sm:$0xf]
      %v3346 = vld [vmem:[%s1422 + $0x10] sm:$0xf]
      %v3347 = vld [vmem:[%s1422 + $0x18] sm:$0xf]
      %v3348 = vld [vmem:[%s1422 + $0x1c] sm:$0xf]
      %v3349 = vld [vmem:[%s1422 + $0x24] sm:$0xf]
      %v3350 = vld [vmem:[%s1422 + $0x28] sm:$0xf]
      %v3351 = vld [vmem:[%s1422 + $0x30] sm:$0xf]
      %v3352 = vld [vmem:[%s1422 + $0x34] sm:$0xf]
      %v3353 = vld [vmem:[%s1422 + $0x3c] sm:$0xf]
      %v3354 = vld [vmem:[%s1422 + $0x40] sm:$0xf]
      %v3355 = vld [vmem:[%s1422 + $0x48] sm:$0xf]
      %v3356 = vld [vmem:[%s1422 + $0x4c] sm:$0xf]
      %v3357 = vld [vmem:[%s1422 + $0x54] sm:$0xf]
      %v3358 = vld [vmem:[%s1422 + $0x58] sm:$0xf]
      %v3359 = vld [vmem:[%s1422 + $0x60] sm:$0xf]
      %v3360 = vld [vmem:[%s1422 + $0x64] sm:$0xf]
      %v3361 = vld [vmem:[%s1422 + $0x6c] sm:$0xf]
      %v3362 = vld [vmem:[%s1422 + $0x70] sm:$0xf]
      %v3363 = vld [vmem:[%s1422 + $0x78] sm:$0xf]
      %v3364 = vld [vmem:[%s1422 + $0x7c] sm:$0xf]
      %v3365 = vld [vmem:[%s1422 + $0x84] sm:$0xf]
      %v3366 = vld [vmem:[%s1422 + $0x88] sm:$0xf]
      %v3367 = vld [vmem:[%s1422 + $0x90] sm:$0xf]
      %v3368 = vld [vmem:[%s1422 + $0x94] sm:$0xf]
      %v3369 = vld [vmem:[%s1422 + $0x9c] sm:$0xf]
      %v3370 = vld [vmem:[%s1422 + $0xa0] sm:$0xf]
      %v3371 = vld [vmem:[%s1422 + $0xa8] sm:$0xf]
      %v3372 = vld [vmem:[%s1422 + $0xac] sm:$0xf]
      %v3373 = vld [vmem:[%s1422 + $0xb4] sm:$0xf]
      %v3374 = vld [vmem:[%s1422 + $0xb8] sm:$0xf]
      %s3375 = scalar_lea.vmem %s2, 192
      %v3376 = vld [vmem:[%s3375] sm:$0xf]
      %v3377 = vld [vmem:[%s3375 + $0x4] sm:$0xf]
      %v3378 = vld [vmem:[%s3375 + $0x8] sm:$0xf]
      %v3379 = vld [vmem:[%s3375 + $0xc] sm:$0xf]
      %v3380 = vld [vmem:[%s3375 + $0x10] sm:$0xf]
      %v3381 = vld [vmem:[%s3375 + $0x14] sm:$0xf]
      %v3382 = vld [vmem:[%s3375 + $0x18] sm:$0xf]
      %v3383 = vld [vmem:[%s3375 + $0x1c] sm:$0xf]
      %v3384 = vld [vmem:[%s3375 + $0x20] sm:$0xf]
      %v3385 = vld [vmem:[%s3375 + $0x24] sm:$0xf]
      %v3386 = vld [vmem:[%s3375 + $0x28] sm:$0xf]
      %v3387 = vld [vmem:[%s3375 + $0x2c] sm:$0xf]
      %v3388 = vld [vmem:[%s3375 + $0x30] sm:$0xf]
      %v3389 = vld [vmem:[%s3375 + $0x34] sm:$0xf]
      %v3390 = vld [vmem:[%s3375 + $0x38] sm:$0xf]
      %v3391 = vld [vmem:[%s3375 + $0x3c] sm:$0xf]
      %v3424 = vunpack.c.l.b16 %v3343
      %v3425 = vunpack.c.l.b16 %v3344
      %v3426 = vunpack.c.l.b16 %v3345
      %v3427 = vunpack.c.l.b16 %v3346
      %v3428 = vunpack.c.l.b16 %v3347
      %v3429 = vunpack.c.l.b16 %v3348
      %v3430 = vunpack.c.l.b16 %v3349
      %v3431 = vunpack.c.l.b16 %v3350
      %v3432 = vunpack.c.l.b16 %v3351
      %v3433 = vunpack.c.l.b16 %v3352
      %v3434 = vunpack.c.l.b16 %v3353
      %v3435 = vunpack.c.l.b16 %v3354
      %v3436 = vunpack.c.l.b16 %v3355
      %v3437 = vunpack.c.l.b16 %v3356
      %v3438 = vunpack.c.l.b16 %v3357
      %v3439 = vunpack.c.l.b16 %v3358
      %v3440 = vunpack.c.l.b16 %v3359
      %v3441 = vunpack.c.l.b16 %v3360
      %v3442 = vunpack.c.l.b16 %v3361
      %v3443 = vunpack.c.l.b16 %v3362
      %v3444 = vunpack.c.l.b16 %v3363
      %v3445 = vunpack.c.l.b16 %v3364
      %v3446 = vunpack.c.l.b16 %v3365
      %v3447 = vunpack.c.l.b16 %v3366
      %v3448 = vunpack.c.l.b16 %v3367
      %v3449 = vunpack.c.l.b16 %v3368
      %v3450 = vunpack.c.l.b16 %v3369
      %v3451 = vunpack.c.l.b16 %v3370
      %v3452 = vunpack.c.l.b16 %v3371
      %v3453 = vunpack.c.l.b16 %v3372
      %v3454 = vunpack.c.l.b16 %v3373
      %v3455 = vunpack.c.l.b16 %v3374
      %v3456 = vpack.c.b16 %v3425, %v3424
      %v3457 = vpack.c.b16 %v3427, %v3426
      %v3458 = vpack.c.b16 %v3429, %v3428
      %v3459 = vpack.c.b16 %v3431, %v3430
      %v3460 = vpack.c.b16 %v3433, %v3432
      %v3461 = vpack.c.b16 %v3435, %v3434
      %v3462 = vpack.c.b16 %v3437, %v3436
      %v3463 = vpack.c.b16 %v3439, %v3438
      %v3464 = vpack.c.b16 %v3441, %v3440
      %v3465 = vpack.c.b16 %v3443, %v3442
      %v3466 = vpack.c.b16 %v3445, %v3444
      %v3467 = vpack.c.b16 %v3447, %v3446
      %v3468 = vpack.c.b16 %v3449, %v3448
      %v3469 = vpack.c.b16 %v3451, %v3450
      %v3470 = vpack.c.b16 %v3453, %v3452
      %v3471 = vpack.c.b16 %v3455, %v3454
      %v3504 = vunpack.c.l.b16 %v3376
      %v3505 = vunpack.c.l.b16 %v3377
      %v3506 = vunpack.c.l.b16 %v3378
      %v3507 = vunpack.c.l.b16 %v3379
      %v3508 = vunpack.c.l.b16 %v3380
      %v3509 = vunpack.c.l.b16 %v3381
      %v3510 = vunpack.c.l.b16 %v3382
      %v3511 = vunpack.c.l.b16 %v3383
      %v3512 = vunpack.c.l.b16 %v3384
      %v3513 = vunpack.c.l.b16 %v3385
      %v3514 = vunpack.c.l.b16 %v3386
      %v3515 = vunpack.c.l.b16 %v3387
      %v3516 = vunpack.c.l.b16 %v3388
      %v3517 = vunpack.c.l.b16 %v3389
      %v3518 = vunpack.c.l.b16 %v3390
      %v3519 = vunpack.c.l.b16 %v3391
      %v3520 = vpack.c.b16 %v3505, %v3504
      %v3521 = vpack.c.b16 %v3507, %v3506
      %v3522 = vpack.c.b16 %v3509, %v3508
      %v3523 = vpack.c.b16 %v3511, %v3510
      %v3524 = vpack.c.b16 %v3513, %v3512
      %v3525 = vpack.c.b16 %v3515, %v3514
      %v3526 = vpack.c.b16 %v3517, %v3516
      %v3527 = vpack.c.b16 %v3519, %v3518
      %3536 = vmatprep.subr.bf16.mxu0 0
      %3537 = vmatpush1.bf16.msra.mxu0 %v3520
      %3538 = vmatprep.subr.bf16.mxu0 0
      %3539 = vmatpush1.bf16.msra.mxu0 %v3521
      %3540 = vmatprep.subr.bf16.mxu0 0
      %3541 = vmatpush1.bf16.msra.mxu0 %v3522
      %3542 = vmatprep.subr.bf16.mxu0 0
      %3543 = vmatpush1.bf16.msra.mxu0 %v3523
      %3544 = vmatprep.subr.bf16.mxu0 0
      %3545 = vmatpush1.bf16.msra.mxu0 %v3524
      %3546 = vmatprep.subr.bf16.mxu0 0
      %3547 = vmatpush1.bf16.msra.mxu0 %v3525
      %3548 = vmatprep.subr.bf16.mxu0 0
      %3549 = vmatpush1.bf16.msra.mxu0 %v3526
      %3550 = vmatprep.subr.bf16.mxu0 0
      %3551 = vmatpush1.bf16.msra.mxu0 %v3527
      %3552 = vmatprep.subr.bf16.mxu0 0
      %3553 = vmatpush1.bf16.msra.mxu0 0
      %3554 = vmatprep.subr.bf16.mxu0 0
      %3555 = vmatpush1.bf16.msra.mxu0 0
      %3556 = vmatprep.subr.bf16.mxu0 0
      %3557 = vmatpush1.bf16.msra.mxu0 0
      %3558 = vmatprep.subr.bf16.mxu0 0
      %3559 = vmatpush1.bf16.msra.mxu0 0
      %3560 = vmatprep.subr.bf16.mxu0 0
      %3561 = vmatpush1.bf16.msra.mxu0 0
      %3562 = vmatprep.subr.bf16.mxu0 0
      %3563 = vmatpush1.bf16.msra.mxu0 0
      %3564 = vmatprep.subr.bf16.mxu0 0
      %3565 = vmatpush1.bf16.msra.mxu0 0
      %3566 = vmatprep.subr.bf16.mxu0 0
      %3567 = vmatpush1.bf16.msra.mxu0 0
      %3568 = vmatprep.mubr.bf16.mxu0 0
      %3569 = vmatmul.mubr.bf16.gmra.mrb[0].mxu0 %v3456
      %v3570 = vpop.f32.mrb[0].mxu0
      %v3571 = vadd.f32 0.0, %v3570
      %v3572 = vpop.f32.mrb[0].mxu0
      %v3573 = vpop.f32.mrb[0].mxu0
      %v3574 = vadd.f32 0.0, %v3573
      %v3575 = vpop.f32.mrb[0].mxu0
      %3576 = vmatprep.mubr.bf16.mxu0 0
      %3577 = vmatmul.mubr.bf16.gmra.mrb[0].mxu0 %v3457
      %v3578 = vpop.f32.mrb[0].mxu0
      %v3579 = vadd.f32 0.0, %v3578
      %v3580 = vpop.f32.mrb[0].mxu0
      %v3581 = vpop.f32.mrb[0].mxu0
      %v3582 = vadd.f32 0.0, %v3581
      %v3583 = vpop.f32.mrb[0].mxu0
      %3584 = vmatprep.mubr.bf16.mxu0 0
      %3585 = vmatmul.mubr.bf16.gmra.mrb[0].mxu0 %v3458
      %v3586 = vpop.f32.mrb[0].mxu0
      %v3587 = vadd.f32 0.0, %v3586
      %v3588 = vpop.f32.mrb[0].mxu0
      %v3589 = vpop.f32.mrb[0].mxu0
      %v3590 = vadd.f32 0.0, %v3589
      %v3591 = vpop.f32.mrb[0].mxu0
      %3592 = vmatprep.mubr.bf16.mxu0 0
      %3593 = vmatmul.mubr.bf16.gmra.mrb[0].mxu0 %v3459
      %v3594 = vpop.f32.mrb[0].mxu0
      %v3595 = vadd.f32 0.0, %v3594
      %v3596 = vpop.f32.mrb[0].mxu0
      %v3597 = vpop.f32.mrb[0].mxu0
      %v3598 = vadd.f32 0.0, %v3597
      %v3599 = vpop.f32.mrb[0].mxu0
      %3600 = vmatprep.mubr.bf16.mxu0 0
      %3601 = vmatmul.mubr.bf16.gmra.mrb[0].mxu0 %v3460
      %v3602 = vpop.f32.mrb[0].mxu0
      %v3603 = vadd.f32 0.0, %v3602
      %v3604 = vpop.f32.mrb[0].mxu0
      %v3605 = vpop.f32.mrb[0].mxu0
      %v3606 = vadd.f32 0.0, %v3605
      %v3607 = vpop.f32.mrb[0].mxu0
      %3608 = vmatprep.mubr.bf16.mxu0 0
      %3609 = vmatmul.mubr.bf16.gmra.mrb[0].mxu0 %v3461
      %v3610 = vpop.f32.mrb[0].mxu0
      %v3611 = vadd.f32 0.0, %v3610
      %v3612 = vpop.f32.mrb[0].mxu0
      %v3613 = vpop.f32.mrb[0].mxu0
      %v3614 = vadd.f32 0.0, %v3613
      %v3615 = vpop.f32.mrb[0].mxu0
      %3616 = vmatprep.mubr.bf16.mxu0 0
      %3617 = vmatmul.mubr.bf16.gmra.mrb[0].mxu0 %v3462
      %v3618 = vpop.f32.mrb[0].mxu0
      %v3619 = vadd.f32 0.0, %v3618
      %v3620 = vpop.f32.mrb[0].mxu0
      %v3621 = vpop.f32.mrb[0].mxu0
      %v3622 = vadd.f32 0.0, %v3621
      %v3623 = vpop.f32.mrb[0].mxu0
      %3624 = vmatprep.mubr.bf16.mxu0 0
      %3625 = vmatmul.mubr.bf16.gmra.mrb[0].mxu0 %v3463
      %v3626 = vpop.f32.mrb[0].mxu0
      %v3627 = vadd.f32 0.0, %v3626
      %v3628 = vpop.f32.mrb[0].mxu0
      %v3629 = vpop.f32.mrb[0].mxu0
      %v3630 = vadd.f32 0.0, %v3629
      %v3631 = vpop.f32.mrb[0].mxu0
      %3632 = vmatprep.mubr.bf16.mxu0 0
      %3633 = vmatmul.mubr.bf16.gmra.mrb[0].mxu0 %v3464
      %v3634 = vpop.f32.mrb[0].mxu0
      %v3635 = vadd.f32 0.0, %v3634
      %v3636 = vpop.f32.mrb[0].mxu0
      %v3637 = vpop.f32.mrb[0].mxu0
      %v3638 = vadd.f32 0.0, %v3637
      %v3639 = vpop.f32.mrb[0].mxu0
      %3640 = vmatprep.mubr.bf16.mxu0 0
      %3641 = vmatmul.mubr.bf16.gmra.mrb[0].mxu0 %v3465
      %v3642 = vpop.f32.mrb[0].mxu0
      %v3643 = vadd.f32 0.0, %v3642
      %v3644 = vpop.f32.mrb[0].mxu0
      %v3645 = vpop.f32.mrb[0].mxu0
      %v3646 = vadd.f32 0.0, %v3645
      %v3647 = vpop.f32.mrb[0].mxu0
      %3648 = vmatprep.mubr.bf16.mxu0 0
      %3649 = vmatmul.mubr.bf16.gmra.mrb[0].mxu0 %v3466
      %v3650 = vpop.f32.mrb[0].mxu0
      %v3651 = vadd.f32 0.0, %v3650
      %v3652 = vpop.f32.mrb[0].mxu0
      %v3653 = vpop.f32.mrb[0].mxu0
      %v3654 = vadd.f32 0.0, %v3653
      %v3655 = vpop.f32.mrb[0].mxu0
      %3656 = vmatprep.mubr.bf16.mxu0 0
      %3657 = vmatmul.mubr.bf16.gmra.mrb[0].mxu0 %v3467
      %v3658 = vpop.f32.mrb[0].mxu0
      %v3659 = vadd.f32 0.0, %v3658
      %v3660 = vpop.f32.mrb[0].mxu0
      %v3661 = vpop.f32.mrb[0].mxu0
      %v3662 = vadd.f32 0.0, %v3661
      %v3663 = vpop.f32.mrb[0].mxu0
      %3664 = vmatprep.mubr.bf16.mxu0 0
      %3665 = vmatmul.mubr.bf16.gmra.mrb[0].mxu0 %v3468
      %v3666 = vpop.f32.mrb[0].mxu0
      %v3667 = vadd.f32 0.0, %v3666
      %v3668 = vpop.f32.mrb[0].mxu0
      %v3669 = vpop.f32.mrb[0].mxu0
      %v3670 = vadd.f32 0.0, %v3669
      %v3671 = vpop.f32.mrb[0].mxu0
      %3672 = vmatprep.mubr.bf16.mxu0 0
      %3673 = vmatmul.mubr.bf16.gmra.mrb[0].mxu0 %v3469
      %v3674 = vpop.f32.mrb[0].mxu0
      %v3675 = vadd.f32 0.0, %v3674
      %v3676 = vpop.f32.mrb[0].mxu0
      %v3677 = vpop.f32.mrb[0].mxu0
      %v3678 = vadd.f32 0.0, %v3677
      %v3679 = vpop.f32.mrb[0].mxu0
      %3680 = vmatprep.mubr.bf16.mxu0 0
      %3681 = vmatmul.mubr.bf16.gmra.mrb[0].mxu0 %v3470
      %v3682 = vpop.f32.mrb[0].mxu0
      %v3683 = vadd.f32 0.0, %v3682
      %v3684 = vpop.f32.mrb[0].mxu0
      %v3685 = vpop.f32.mrb[0].mxu0
      %v3686 = vadd.f32 0.0, %v3685
      %v3687 = vpop.f32.mrb[0].mxu0
      %3688 = vmatprep.mubr.bf16.mxu0 0
      %3689 = vmatmul.mubr.bf16.gmra.mrb[0].mxu0 %v3471
      %v3690 = vpop.f32.mrb[0].mxu0
      %v3691 = vadd.f32 0.0, %v3690
      %v3692 = vpop.f32.mrb[0].mxu0
      %v3693 = vpop.f32.mrb[0].mxu0
      %v3694 = vadd.f32 0.0, %v3693
      %v3695 = vpop.f32.mrb[0].mxu0
      %3696 = vdwg.mxu0
      %v3697 = vld [vmem:[#allocation3] sm:$0xff]
      %v3698 = vld [vmem:[#allocation3 + $0x8] sm:$0xff]
      %v3699 = vld [vmem:[#allocation3 + $0x10] sm:$0xff]
      %v3700 = vld [vmem:[#allocation3 + $0x18] sm:$0xff]
      %v3701 = vld [vmem:[#allocation3 + $0x20] sm:$0xff]
      %v3702 = vld [vmem:[#allocation3 + $0x28] sm:$0xff]
      %v3703 = vld [vmem:[#allocation3 + $0x30] sm:$0xff]
      %v3704 = vld [vmem:[#allocation3 + $0x38] sm:$0xff]
      %v3705 = vld [vmem:[#allocation3 + $0x40] sm:$0xff]
      %v3706 = vld [vmem:[#allocation3 + $0x48] sm:$0xff]
      %v3707 = vld [vmem:[#allocation3 + $0x50] sm:$0xff]
      %v3708 = vld [vmem:[#allocation3 + $0x58] sm:$0xff]
      %v3709 = vld [vmem:[#allocation3 + $0x60] sm:$0xff]
      %v3710 = vld [vmem:[#allocation3 + $0x68] sm:$0xff]
      %v3711 = vld [vmem:[#allocation3 + $0x70] sm:$0xff]
      %v3712 = vld [vmem:[#allocation3 + $0x78] sm:$0xff]
      %v3713 = vld [vmem:[#allocation3 + $0x80] sm:$0xff]
      %v3714 = vld [vmem:[#allocation3 + $0x88] sm:$0xff]
      %v3715 = vld [vmem:[#allocation3 + $0x90] sm:$0xff]
      %v3716 = vld [vmem:[#allocation3 + $0x98] sm:$0xff]
      %v3717 = vld [vmem:[#allocation3 + $0xa0] sm:$0xff]
      %v3718 = vld [vmem:[#allocation3 + $0xa8] sm:$0xff]
      %v3719 = vld [vmem:[#allocation3 + $0xb0] sm:$0xff]
      %v3720 = vld [vmem:[#allocation3 + $0xb8] sm:$0xff]
      %v3721 = vld [vmem:[#allocation3 + $0xc0] sm:$0xff]
      %v3722 = vld [vmem:[#allocation3 + $0xc8] sm:$0xff]
      %v3723 = vld [vmem:[#allocation3 + $0xd0] sm:$0xff]
      %v3724 = vld [vmem:[#allocation3 + $0xd8] sm:$0xff]
      %v3725 = vld [vmem:[#allocation3 + $0xe0] sm:$0xff]
      %v3726 = vld [vmem:[#allocation3 + $0xe8] sm:$0xff]
      %v3727 = vld [vmem:[#allocation3 + $0xf0] sm:$0xff]
      %v3728 = vld [vmem:[#allocation3 + $0xf8] sm:$0xff]
      %v3729 = vadd.f32 %v3697, %v3571
      %v3730 = vadd.f32 %v3698, %v3574
      %v3731 = vadd.f32 %v3699, %v3579
      %v3732 = vadd.f32 %v3700, %v3582
      %v3733 = vadd.f32 %v3701, %v3587
      %v3734 = vadd.f32 %v3702, %v3590
      %v3735 = vadd.f32 %v3703, %v3595
      %v3736 = vadd.f32 %v3704, %v3598
      %v3737 = vadd.f32 %v3705, %v3603
      %v3738 = vadd.f32 %v3706, %v3606
      %v3739 = vadd.f32 %v3707, %v3611
      %v3740 = vadd.f32 %v3708, %v3614
      %v3741 = vadd.f32 %v3709, %v3619
      %v3742 = vadd.f32 %v3710, %v3622
      %v3743 = vadd.f32 %v3711, %v3627
      %v3744 = vadd.f32 %v3712, %v3630
      %v3745 = vadd.f32 %v3713, %v3635
      %v3746 = vadd.f32 %v3714, %v3638
      %v3747 = vadd.f32 %v3715, %v3643
      %v3748 = vadd.f32 %v3716, %v3646
      %v3749 = vadd.f32 %v3717, %v3651
      %v3750 = vadd.f32 %v3718, %v3654
      %v3751 = vadd.f32 %v3719, %v3659
      %v3752 = vadd.f32 %v3720, %v3662
      %v3753 = vadd.f32 %v3721, %v3667
      %v3754 = vadd.f32 %v3722, %v3670
      %v3755 = vadd.f32 %v3723, %v3675
      %v3756 = vadd.f32 %v3724, %v3678
      %v3757 = vadd.f32 %v3725, %v3683
      %v3758 = vadd.f32 %v3726, %v3686
      %v3759 = vadd.f32 %v3727, %v3691
      %v3760 = vadd.f32 %v3728, %v3694
      %3761 = vst [vmem:[#allocation3] sm:$0xff] %v3729
      %3762 = vst [vmem:[#allocation3 + $0x8] sm:$0xff] %v3730
      %3763 = vst [vmem:[#allocation3 + $0x10] sm:$0xff] %v3731
      %3764 = vst [vmem:[#allocation3 + $0x18] sm:$0xff] %v3732
      %3765 = vst [vmem:[#allocation3 + $0x20] sm:$0xff] %v3733
      %3766 = vst [vmem:[#allocation3 + $0x28] sm:$0xff] %v3734
      %3767 = vst [vmem:[#allocation3 + $0x30] sm:$0xff] %v3735
      %3768 = vst [vmem:[#allocation3 + $0x38] sm:$0xff] %v3736
      %3769 = vst [vmem:[#allocation3 + $0x40] sm:$0xff] %v3737
      %3770 = vst [vmem:[#allocation3 + $0x48] sm:$0xff] %v3738
      %3771 = vst [vmem:[#allocation3 + $0x50] sm:$0xff] %v3739
      %3772 = vst [vmem:[#allocation3 + $0x58] sm:$0xff] %v3740
      %3773 = vst [vmem:[#allocation3 + $0x60] sm:$0xff] %v3741
      %3774 = vst [vmem:[#allocation3 + $0x68] sm:$0xff] %v3742
      %3775 = vst [vmem:[#allocation3 + $0x70] sm:$0xff] %v3743
      %3776 = vst [vmem:[#allocation3 + $0x78] sm:$0xff] %v3744
      %3777 = vst [vmem:[#allocation3 + $0x80] sm:$0xff] %v3745
      %3778 = vst [vmem:[#allocation3 + $0x88] sm:$0xff] %v3746
      %3779 = vst [vmem:[#allocation3 + $0x90] sm:$0xff] %v3747
      %3780 = vst [vmem:[#allocation3 + $0x98] sm:$0xff] %v3748
      %3781 = vst [vmem:[#allocation3 + $0xa0] sm:$0xff] %v3749
      %3782 = vst [vmem:[#allocation3 + $0xa8] sm:$0xff] %v3750
      %3783 = vst [vmem:[#allocation3 + $0xb0] sm:$0xff] %v3751
      %3784 = vst [vmem:[#allocation3 + $0xb8] sm:$0xff] %v3752
      %3785 = vst [vmem:[#allocation3 + $0xc0] sm:$0xff] %v3753
      %3786 = vst [vmem:[#allocation3 + $0xc8] sm:$0xff] %v3754
      %3787 = vst [vmem:[#allocation3 + $0xd0] sm:$0xff] %v3755
      %3788 = vst [vmem:[#allocation3 + $0xd8] sm:$0xff] %v3756
      %3789 = vst [vmem:[#allocation3 + $0xe0] sm:$0xff] %v3757
      %3790 = vst [vmem:[#allocation3 + $0xe8] sm:$0xff] %v3758
      %3791 = vst [vmem:[#allocation3 + $0xf0] sm:$0xff] %v3759
      %3792 = vst [vmem:[#allocation3 + $0xf8] sm:$0xff] %v3760
      %v3793 = vld [vmem:[%s1422] sm:$0xf]
      %v3794 = vld [vmem:[%s1422 + $0x4] sm:$0xf]
      %v3795 = vld [vmem:[%s1422 + $0x8] sm:$0x1]
      %v3796 = vld [vmem:[%s1422 + $0xc] sm:$0xf]
      %v3797 = vld [vmem:[%s1422 + $0x10] sm:$0xf]
      %v3798 = vld [vmem:[%s1422 + $0x14] sm:$0x1]
      %v3799 = vld [vmem:[%s1422 + $0x18] sm:$0xf]
      %v3800 = vld [vmem:[%s1422 + $0x1c] sm:$0xf]
      %v3801 = vld [vmem:[%s1422 + $0x20] sm:$0x1]
      %v3802 = vld [vmem:[%s1422 + $0x24] sm:$0xf]
      %v3803 = vld [vmem:[%s1422 + $0x28] sm:$0xf]
      %v3804 = vld [vmem:[%s1422 + $0x2c] sm:$0x1]
      %v3805 = vld [vmem:[%s1422 + $0x30] sm:$0xf]
      %v3806 = vld [vmem:[%s1422 + $0x34] sm:$0xf]
      %v3807 = vld [vmem:[%s1422 + $0x38] sm:$0x1]
      %v3808 = vld [vmem:[%s1422 + $0x3c] sm:$0xf]
      %v3809 = vld [vmem:[%s1422 + $0x40] sm:$0xf]
      %v3810 = vld [vmem:[%s1422 + $0x44] sm:$0x1]
      %v3811 = vld [vmem:[%s1422 + $0x48] sm:$0xf]
      %v3812 = vld [vmem:[%s1422 + $0x4c] sm:$0xf]
      %v3813 = vld [vmem:[%s1422 + $0x50] sm:$0x1]
      %v3814 = vld [vmem:[%s1422 + $0x54] sm:$0xf]
      %v3815 = vld [vmem:[%s1422 + $0x58] sm:$0xf]
      %v3816 = vld [vmem:[%s1422 + $0x5c] sm:$0x1]
      %v3817 = vld [vmem:[%s1422 + $0x60] sm:$0xf]
      %v3818 = vld [vmem:[%s1422 + $0x64] sm:$0xf]
      %v3819 = vld [vmem:[%s1422 + $0x68] sm:$0x1]
      %v3820 = vld [vmem:[%s1422 + $0x6c] sm:$0xf]
      %v3821 = vld [vmem:[%s1422 + $0x70] sm:$0xf]
      %v3822 = vld [vmem:[%s1422 + $0x74] sm:$0x1]
      %v3823 = vld [vmem:[%s1422 + $0x78] sm:$0xf]
      %v3824 = vld [vmem:[%s1422 + $0x7c] sm:$0xf]
      %v3825 = vld [vmem:[%s1422 + $0x80] sm:$0x1]
      %v3826 = vld [vmem:[%s1422 + $0x84] sm:$0xf]
      %v3827 = vld [vmem:[%s1422 + $0x88] sm:$0xf]
      %v3828 = vld [vmem:[%s1422 + $0x8c] sm:$0x1]
      %v3829 = vld [vmem:[%s1422 + $0x90] sm:$0xf]
      %v3830 = vld [vmem:[%s1422 + $0x94] sm:$0xf]
      %v3831 = vld [vmem:[%s1422 + $0x98] sm:$0x1]
      %v3832 = vld [vmem:[%s1422 + $0x9c] sm:$0xf]
      %v3833 = vld [vmem:[%s1422 + $0xa0] sm:$0xf]
      %v3834 = vld [vmem:[%s1422 + $0xa4] sm:$0x1]
      %v3835 = vld [vmem:[%s1422 + $0xa8] sm:$0xf]
      %v3836 = vld [vmem:[%s1422 + $0xac] sm:$0xf]
      %v3837 = vld [vmem:[%s1422 + $0xb0] sm:$0x1]
      %v3838 = vld [vmem:[%s1422 + $0xb4] sm:$0xf]
      %v3839 = vld [vmem:[%s1422 + $0xb8] sm:$0xf]
      %v3840 = vld [vmem:[%s1422 + $0xbc] sm:$0x1]
      %v3842 = vshrl.u32 %v3793, 16
      %v3844 = vrot.slane %v3842, 4
      %v3845 = vshll.u32 %v3793, 16
      %v3847 = vrot.slane %v3845, 5
      %v3848 = vor.u32 %v3844, %v3847
      %v3849 = vrot.slane %v3848, 4
      %v3851 = vshll.u32 %v3794, 16
      %v3853 = vrot.slane %v3851, 5
      %v3854 = vsel %vm1975, %v3849, %v3853
      %v3855 = vshrl.u32 %v3794, 16
      %v3857 = vrot.slane %v3855, 4
      %v3858 = vor.u32 %v3857, %v3853
      %v3859 = vrot.slane %v3858, 4
      %v3861 = vshll.u32 %v3795, 16
      %v3863 = vrot.slane %v3861, 5
      %v3864 = vsel %vm1975, %v3859, %v3863
      %v3866 = vshrl.u32 %v3796, 16
      %v3868 = vrot.slane %v3866, 4
      %v3869 = vshll.u32 %v3796, 16
      %v3871 = vrot.slane %v3869, 5
      %v3872 = vor.u32 %v3868, %v3871
      %v3873 = vrot.slane %v3872, 4
      %v3875 = vshll.u32 %v3797, 16
      %v3877 = vrot.slane %v3875, 5
      %v3878 = vsel %vm1975, %v3873, %v3877
      %v3879 = vshrl.u32 %v3797, 16
      %v3881 = vrot.slane %v3879, 4
      %v3882 = vor.u32 %v3881, %v3877
      %v3883 = vrot.slane %v3882, 4
      %v3885 = vshll.u32 %v3798, 16
      %v3887 = vrot.slane %v3885, 5
      %v3888 = vsel %vm1975, %v3883, %v3887
      %v3890 = vshrl.u32 %v3799, 16
      %v3892 = vrot.slane %v3890, 4
      %v3893 = vshll.u32 %v3799, 16
      %v3895 = vrot.slane %v3893, 5
      %v3896 = vor.u32 %v3892, %v3895
      %v3897 = vrot.slane %v3896, 4
      %v3899 = vshll.u32 %v3800, 16
      %v3901 = vrot.slane %v3899, 5
      %v3902 = vsel %vm1975, %v3897, %v3901
      %v3903 = vshrl.u32 %v3800, 16
      %v3905 = vrot.slane %v3903, 4
      %v3906 = vor.u32 %v3905, %v3901
      %v3907 = vrot.slane %v3906, 4
      %v3909 = vshll.u32 %v3801, 16
      %v3911 = vrot.slane %v3909, 5
      %v3912 = vsel %vm1975, %v3907, %v3911
      %v3914 = vshrl.u32 %v3802, 16
      %v3916 = vrot.slane %v3914, 4
      %v3917 = vshll.u32 %v3802, 16
      %v3919 = vrot.slane %v3917, 5
      %v3920 = vor.u32 %v3916, %v3919
      %v3921 = vrot.slane %v3920, 4
      %v3923 = vshll.u32 %v3803, 16
      %v3925 = vrot.slane %v3923, 5
      %v3926 = vsel %vm1975, %v3921, %v3925
      %v3927 = vshrl.u32 %v3803, 16
      %v3929 = vrot.slane %v3927, 4
      %v3930 = vor.u32 %v3929, %v3925
      %v3931 = vrot.slane %v3930, 4
      %v3933 = vshll.u32 %v3804, 16
      %v3935 = vrot.slane %v3933, 5
      %v3936 = vsel %vm1975, %v3931, %v3935
      %v3938 = vshrl.u32 %v3805, 16
      %v3940 = vrot.slane %v3938, 4
      %v3941 = vshll.u32 %v3805, 16
      %v3943 = vrot.slane %v3941, 5
      %v3944 = vor.u32 %v3940, %v3943
      %v3945 = vrot.slane %v3944, 4
      %v3947 = vshll.u32 %v3806, 16
      %v3949 = vrot.slane %v3947, 5
      %v3950 = vsel %vm1975, %v3945, %v3949
      %v3951 = vshrl.u32 %v3806, 16
      %v3953 = vrot.slane %v3951, 4
      %v3954 = vor.u32 %v3953, %v3949
      %v3955 = vrot.slane %v3954, 4
      %v3957 = vshll.u32 %v3807, 16
      %v3959 = vrot.slane %v3957, 5
      %v3960 = vsel %vm1975, %v3955, %v3959
      %v3962 = vshrl.u32 %v3808, 16
      %v3964 = vrot.slane %v3962, 4
      %v3965 = vshll.u32 %v3808, 16
      %v3967 = vrot.slane %v3965, 5
      %v3968 = vor.u32 %v3964, %v3967
      %v3969 = vrot.slane %v3968, 4
      %v3971 = vshll.u32 %v3809, 16
      %v3973 = vrot.slane %v3971, 5
      %v3974 = vsel %vm1975, %v3969, %v3973
      %v3975 = vshrl.u32 %v3809, 16
      %v3977 = vrot.slane %v3975, 4
      %v3978 = vor.u32 %v3977, %v3973
      %v3979 = vrot.slane %v3978, 4
      %v3981 = vshll.u32 %v3810, 16
      %v3983 = vrot.slane %v3981, 5
      %v3984 = vsel %vm1975, %v3979, %v3983
      %v3986 = vshrl.u32 %v3811, 16
      %v3988 = vrot.slane %v3986, 4
      %v3989 = vshll.u32 %v3811, 16
      %v3991 = vrot.slane %v3989, 5
      %v3992 = vor.u32 %v3988, %v3991
      %v3993 = vrot.slane %v3992, 4
      %v3995 = vshll.u32 %v3812, 16
      %v3997 = vrot.slane %v3995, 5
      %v3998 = vsel %vm1975, %v3993, %v3997
      %v3999 = vshrl.u32 %v3812, 16
      %v4001 = vrot.slane %v3999, 4
      %v4002 = vor.u32 %v4001, %v3997
      %v4003 = vrot.slane %v4002, 4
      %v4005 = vshll.u32 %v3813, 16
      %v4007 = vrot.slane %v4005, 5
      %v4008 = vsel %vm1975, %v4003, %v4007
      %v4010 = vshrl.u32 %v3814, 16
      %v4012 = vrot.slane %v4010, 4
      %v4013 = vshll.u32 %v3814, 16
      %v4015 = vrot.slane %v4013, 5
      %v4016 = vor.u32 %v4012, %v4015
      %v4017 = vrot.slane %v4016, 4
      %v4019 = vshll.u32 %v3815, 16
      %v4021 = vrot.slane %v4019, 5
      %v4022 = vsel %vm1975, %v4017, %v4021
      %v4023 = vshrl.u32 %v3815, 16
      %v4025 = vrot.slane %v4023, 4
      %v4026 = vor.u32 %v4025, %v4021
      %v4027 = vrot.slane %v4026, 4
      %v4029 = vshll.u32 %v3816, 16
      %v4031 = vrot.slane %v4029, 5
      %v4032 = vsel %vm1975, %v4027, %v4031
      %v4034 = vshrl.u32 %v3817, 16
      %v4036 = vrot.slane %v4034, 4
      %v4037 = vshll.u32 %v3817, 16
      %v4039 = vrot.slane %v4037, 5
      %v4040 = vor.u32 %v4036, %v4039
      %v4041 = vrot.slane %v4040, 4
      %v4043 = vshll.u32 %v3818, 16
      %v4045 = vrot.slane %v4043, 5
      %v4046 = vsel %vm1975, %v4041, %v4045
      %v4047 = vshrl.u32 %v3818, 16
      %v4049 = vrot.slane %v4047, 4
      %v4050 = vor.u32 %v4049, %v4045
      %v4051 = vrot.slane %v4050, 4
      %v4053 = vshll.u32 %v3819, 16
      %v4055 = vrot.slane %v4053, 5
      %v4056 = vsel %vm1975, %v4051, %v4055
      %v4058 = vshrl.u32 %v3820, 16
      %v4060 = vrot.slane %v4058, 4
      %v4061 = vshll.u32 %v3820, 16
      %v4063 = vrot.slane %v4061, 5
      %v4064 = vor.u32 %v4060, %v4063
      %v4065 = vrot.slane %v4064, 4
      %v4067 = vshll.u32 %v3821, 16
      %v4069 = vrot.slane %v4067, 5
      %v4070 = vsel %vm1975, %v4065, %v4069
      %v4071 = vshrl.u32 %v3821, 16
      %v4073 = vrot.slane %v4071, 4
      %v4074 = vor.u32 %v4073, %v4069
      %v4075 = vrot.slane %v4074, 4
      %v4077 = vshll.u32 %v3822, 16
      %v4079 = vrot.slane %v4077, 5
      %v4080 = vsel %vm1975, %v4075, %v4079
      %v4082 = vshrl.u32 %v3823, 16
      %v4084 = vrot.slane %v4082, 4
      %v4085 = vshll.u32 %v3823, 16
      %v4087 = vrot.slane %v4085, 5
      %v4088 = vor.u32 %v4084, %v4087
      %v4089 = vrot.slane %v4088, 4
      %v4091 = vshll.u32 %v3824, 16
      %v4093 = vrot.slane %v4091, 5
      %v4094 = vsel %vm1975, %v4089, %v4093
      %v4095 = vshrl.u32 %v3824, 16
      %v4097 = vrot.slane %v4095, 4
      %v4098 = vor.u32 %v4097, %v4093
      %v4099 = vrot.slane %v4098, 4
      %v4101 = vshll.u32 %v3825, 16
      %v4103 = vrot.slane %v4101, 5
      %v4104 = vsel %vm1975, %v4099, %v4103
      %v4106 = vshrl.u32 %v3826, 16
      %v4108 = vrot.slane %v4106, 4
      %v4109 = vshll.u32 %v3826, 16
      %v4111 = vrot.slane %v4109, 5
      %v4112 = vor.u32 %v4108, %v4111
      %v4113 = vrot.slane %v4112, 4
      %v4115 = vshll.u32 %v3827, 16
      %v4117 = vrot.slane %v4115, 5
      %v4118 = vsel %vm1975, %v4113, %v4117
      %v4119 = vshrl.u32 %v3827, 16
      %v4121 = vrot.slane %v4119, 4
      %v4122 = vor.u32 %v4121, %v4117
      %v4123 = vrot.slane %v4122, 4
      %v4125 = vshll.u32 %v3828, 16
      %v4127 = vrot.slane %v4125, 5
      %v4128 = vsel %vm1975, %v4123, %v4127
      %v4130 = vshrl.u32 %v3829, 16
      %v4132 = vrot.slane %v4130, 4
      %v4133 = vshll.u32 %v3829, 16
      %v4135 = vrot.slane %v4133, 5
      %v4136 = vor.u32 %v4132, %v4135
      %v4137 = vrot.slane %v4136, 4
      %v4139 = vshll.u32 %v3830, 16
      %v4141 = vrot.slane %v4139, 5
      %v4142 = vsel %vm1975, %v4137, %v4141
      %v4143 = vshrl.u32 %v3830, 16
      %v4145 = vrot.slane %v4143, 4
      %v4146 = vor.u32 %v4145, %v4141
      %v4147 = vrot.slane %v4146, 4
      %v4149 = vshll.u32 %v3831, 16
      %v4151 = vrot.slane %v4149, 5
      %v4152 = vsel %vm1975, %v4147, %v4151
      %v4154 = vshrl.u32 %v3832, 16
      %v4156 = vrot.slane %v4154, 4
      %v4157 = vshll.u32 %v3832, 16
      %v4159 = vrot.slane %v4157, 5
      %v4160 = vor.u32 %v4156, %v4159
      %v4161 = vrot.slane %v4160, 4
      %v4163 = vshll.u32 %v3833, 16
      %v4165 = vrot.slane %v4163, 5
      %v4166 = vsel %vm1975, %v4161, %v4165
      %v4167 = vshrl.u32 %v3833, 16
      %v4169 = vrot.slane %v4167, 4
      %v4170 = vor.u32 %v4169, %v4165
      %v4171 = vrot.slane %v4170, 4
      %v4173 = vshll.u32 %v3834, 16
      %v4175 = vrot.slane %v4173, 5
      %v4176 = vsel %vm1975, %v4171, %v4175
      %v4178 = vshrl.u32 %v3835, 16
      %v4180 = vrot.slane %v4178, 4
      %v4181 = vshll.u32 %v3835, 16
      %v4183 = vrot.slane %v4181, 5
      %v4184 = vor.u32 %v4180, %v4183
      %v4185 = vrot.slane %v4184, 4
      %v4187 = vshll.u32 %v3836, 16
      %v4189 = vrot.slane %v4187, 5
      %v4190 = vsel %vm1975, %v4185, %v4189
      %v4191 = vshrl.u32 %v3836, 16
      %v4193 = vrot.slane %v4191, 4
      %v4194 = vor.u32 %v4193, %v4189
      %v4195 = vrot.slane %v4194, 4
      %v4197 = vshll.u32 %v3837, 16
      %v4199 = vrot.slane %v4197, 5
      %v4200 = vsel %vm1975, %v4195, %v4199
      %v4202 = vshrl.u32 %v3838, 16
      %v4204 = vrot.slane %v4202, 4
      %v4205 = vshll.u32 %v3838, 16
      %v4207 = vrot.slane %v4205, 5
      %v4208 = vor.u32 %v4204, %v4207
      %v4209 = vrot.slane %v4208, 4
      %v4211 = vshll.u32 %v3839, 16
      %v4213 = vrot.slane %v4211, 5
      %v4214 = vsel %vm1975, %v4209, %v4213
      %v4215 = vshrl.u32 %v3839, 16
      %v4217 = vrot.slane %v4215, 4
      %v4218 = vor.u32 %v4217, %v4213
      %v4219 = vrot.slane %v4218, 4
      %v4221 = vshll.u32 %v3840, 16
      %v4223 = vrot.slane %v4221, 5
      %v4224 = vsel %vm1975, %v4219, %v4223
      %s4225 = scalar_lea.vmem %s2, 256
      %v4226 = vld [vmem:[%s4225] sm:$0xf]
      %v4227 = vld [vmem:[%s4225 + $0x4] sm:$0xf]
      %v4228 = vld [vmem:[%s4225 + $0x8] sm:$0xf]
      %v4229 = vld [vmem:[%s4225 + $0xc] sm:$0xf]
      %v4230 = vld [vmem:[%s4225 + $0x10] sm:$0xf]
      %v4231 = vld [vmem:[%s4225 + $0x14] sm:$0xf]
      %v4232 = vld [vmem:[%s4225 + $0x18] sm:$0xf]
      %v4233 = vld [vmem:[%s4225 + $0x1c] sm:$0xf]
      %v4234 = vld [vmem:[%s4225 + $0x20] sm:$0xf]
      %v4235 = vld [vmem:[%s4225 + $0x24] sm:$0xf]
      %v4236 = vld [vmem:[%s4225 + $0x28] sm:$0xf]
      %v4237 = vld [vmem:[%s4225 + $0x2c] sm:$0xf]
      %v4238 = vld [vmem:[%s4225 + $0x30] sm:$0xf]
      %v4239 = vld [vmem:[%s4225 + $0x34] sm:$0xf]
      %v4240 = vld [vmem:[%s4225 + $0x38] sm:$0xf]
      %v4241 = vld [vmem:[%s4225 + $0x3c] sm:$0xf]
      %v4242 = vunpack.c.l.b16 %v3854
      %v4243 = vunpack.c.l.b16 %v3864
      %v4244 = vunpack.c.l.b16 %v3878
      %v4245 = vunpack.c.l.b16 %v3888
      %v4246 = vunpack.c.l.b16 %v3902
      %v4247 = vunpack.c.l.b16 %v3912
      %v4248 = vunpack.c.l.b16 %v3926
      %v4249 = vunpack.c.l.b16 %v3936
      %v4250 = vunpack.c.l.b16 %v3950
      %v4251 = vunpack.c.l.b16 %v3960
      %v4252 = vunpack.c.l.b16 %v3974
      %v4253 = vunpack.c.l.b16 %v3984
      %v4254 = vunpack.c.l.b16 %v3998
      %v4255 = vunpack.c.l.b16 %v4008
      %v4256 = vunpack.c.l.b16 %v4022
      %v4257 = vunpack.c.l.b16 %v4032
      %v4258 = vunpack.c.l.b16 %v4046
      %v4259 = vunpack.c.l.b16 %v4056
      %v4260 = vunpack.c.l.b16 %v4070
      %v4261 = vunpack.c.l.b16 %v4080
      %v4262 = vunpack.c.l.b16 %v4094
      %v4263 = vunpack.c.l.b16 %v4104
      %v4264 = vunpack.c.l.b16 %v4118
      %v4265 = vunpack.c.l.b16 %v4128
      %v4266 = vunpack.c.l.b16 %v4142
      %v4267 = vunpack.c.l.b16 %v4152
      %v4268 = vunpack.c.l.b16 %v4166
      %v4269 = vunpack.c.l.b16 %v4176
      %v4270 = vunpack.c.l.b16 %v4190
      %v4271 = vunpack.c.l.b16 %v4200
      %v4272 = vunpack.c.l.b16 %v4214
      %v4273 = vunpack.c.l.b16 %v4224
      %v4274 = vpack.c.b16 %v4243, %v4242
      %v4275 = vpack.c.b16 %v4245, %v4244
      %v4276 = vpack.c.b16 %v4247, %v4246
      %v4277 = vpack.c.b16 %v4249, %v4248
      %v4278 = vpack.c.b16 %v4251, %v4250
      %v4279 = vpack.c.b16 %v4253, %v4252
      %v4280 = vpack.c.b16 %v4255, %v4254
      %v4281 = vpack.c.b16 %v4257, %v4256
      %v4282 = vpack.c.b16 %v4259, %v4258
      %v4283 = vpack.c.b16 %v4261, %v4260
      %v4284 = vpack.c.b16 %v4263, %v4262
      %v4285 = vpack.c.b16 %v4265, %v4264
      %v4286 = vpack.c.b16 %v4267, %v4266
      %v4287 = vpack.c.b16 %v4269, %v4268
      %v4288 = vpack.c.b16 %v4271, %v4270
      %v4289 = vpack.c.b16 %v4273, %v4272
      %v4322 = vunpack.c.l.b16 %v4226
      %v4323 = vunpack.c.l.b16 %v4227
      %v4324 = vunpack.c.l.b16 %v4228
      %v4325 = vunpack.c.l.b16 %v4229
      %v4326 = vunpack.c.l.b16 %v4230
      %v4327 = vunpack.c.l.b16 %v4231
      %v4328 = vunpack.c.l.b16 %v4232
      %v4329 = vunpack.c.l.b16 %v4233
      %v4330 = vunpack.c.l.b16 %v4234
      %v4331 = vunpack.c.l.b16 %v4235
      %v4332 = vunpack.c.l.b16 %v4236
      %v4333 = vunpack.c.l.b16 %v4237
      %v4334 = vunpack.c.l.b16 %v4238
      %v4335 = vunpack.c.l.b16 %v4239
      %v4336 = vunpack.c.l.b16 %v4240
      %v4337 = vunpack.c.l.b16 %v4241
      %v4338 = vpack.c.b16 %v4323, %v4322
      %v4339 = vpack.c.b16 %v4325, %v4324
      %v4340 = vpack.c.b16 %v4327, %v4326
      %v4341 = vpack.c.b16 %v4329, %v4328
      %v4342 = vpack.c.b16 %v4331, %v4330
      %v4343 = vpack.c.b16 %v4333, %v4332
      %v4344 = vpack.c.b16 %v4335, %v4334
      %v4345 = vpack.c.b16 %v4337, %v4336
      %4354 = vmatprep.subr.bf16.mxu0 0
      %4355 = vmatpush1.bf16.msra.mxu0 %v4338
      %4356 = vmatprep.subr.bf16.mxu0 0
      %4357 = vmatpush1.bf16.msra.mxu0 %v4339
      %4358 = vmatprep.subr.bf16.mxu0 0
      %4359 = vmatpush1.bf16.msra.mxu0 %v4340
      %4360 = vmatprep.subr.bf16.mxu0 0
      %4361 = vmatpush1.bf16.msra.mxu0 %v4341
      %4362 = vmatprep.subr.bf16.mxu0 0
      %4363 = vmatpush1.bf16.msra.mxu0 %v4342
      %4364 = vmatprep.subr.bf16.mxu0 0
      %4365 = vmatpush1.bf16.msra.mxu0 %v4343
      %4366 = vmatprep.subr.bf16.mxu0 0
      %4367 = vmatpush1.bf16.msra.mxu0 %v4344
      %4368 = vmatprep.subr.bf16.mxu0 0
      %4369 = vmatpush1.bf16.msra.mxu0 %v4345
      %4370 = vmatprep.subr.bf16.mxu0 0
      %4371 = vmatpush1.bf16.msra.mxu0 0
      %4372 = vmatprep.subr.bf16.mxu0 0
      %4373 = vmatpush1.bf16.msra.mxu0 0
      %4374 = vmatprep.subr.bf16.mxu0 0
      %4375 = vmatpush1.bf16.msra.mxu0 0
      %4376 = vmatprep.subr.bf16.mxu0 0
      %4377 = vmatpush1.bf16.msra.mxu0 0
      %4378 = vmatprep.subr.bf16.mxu0 0
      %4379 = vmatpush1.bf16.msra.mxu0 0
      %4380 = vmatprep.subr.bf16.mxu0 0
      %4381 = vmatpush1.bf16.msra.mxu0 0
      %4382 = vmatprep.subr.bf16.mxu0 0
      %4383 = vmatpush1.bf16.msra.mxu0 0
      %4384 = vmatprep.subr.bf16.mxu0 0
      %4385 = vmatpush1.bf16.msra.mxu0 0
      %4386 = vmatprep.mubr.bf16.mxu0 0
      %4387 = vmatmul.mubr.bf16.gmra.mrb[0].mxu0 %v4274
      %v4388 = vpop.f32.mrb[0].mxu0
      %v4389 = vadd.f32 0.0, %v4388
      %v4390 = vpop.f32.mrb[0].mxu0
      %v4391 = vpop.f32.mrb[0].mxu0
      %v4392 = vadd.f32 0.0, %v4391
      %v4393 = vpop.f32.mrb[0].mxu0
      %4394 = vmatprep.mubr.bf16.mxu0 0
      %4395 = vmatmul.mubr.bf16.gmra.mrb[0].mxu0 %v4275
      %v4396 = vpop.f32.mrb[0].mxu0
      %v4397 = vadd.f32 0.0, %v4396
      %v4398 = vpop.f32.mrb[0].mxu0
      %v4399 = vpop.f32.mrb[0].mxu0
      %v4400 = vadd.f32 0.0, %v4399
      %v4401 = vpop.f32.mrb[0].mxu0
      %4402 = vmatprep.mubr.bf16.mxu0 0
      %4403 = vmatmul.mubr.bf16.gmra.mrb[0].mxu0 %v4276
      %v4404 = vpop.f32.mrb[0].mxu0
      %v4405 = vadd.f32 0.0, %v4404
      %v4406 = vpop.f32.mrb[0].mxu0
      %v4407 = vpop.f32.mrb[0].mxu0
      %v4408 = vadd.f32 0.0, %v4407
      %v4409 = vpop.f32.mrb[0].mxu0
      %4410 = vmatprep.mubr.bf16.mxu0 0
      %4411 = vmatmul.mubr.bf16.gmra.mrb[0].mxu0 %v4277
      %v4412 = vpop.f32.mrb[0].mxu0
      %v4413 = vadd.f32 0.0, %v4412
      %v4414 = vpop.f32.mrb[0].mxu0
      %v4415 = vpop.f32.mrb[0].mxu0
      %v4416 = vadd.f32 0.0, %v4415
      %v4417 = vpop.f32.mrb[0].mxu0
      %4418 = vmatprep.mubr.bf16.mxu0 0
      %4419 = vmatmul.mubr.bf16.gmra.mrb[0].mxu0 %v4278
      %v4420 = vpop.f32.mrb[0].mxu0
      %v4421 = vadd.f32 0.0, %v4420
      %v4422 = vpop.f32.mrb[0].mxu0
      %v4423 = vpop.f32.mrb[0].mxu0
      %v4424 = vadd.f32 0.0, %v4423
      %v4425 = vpop.f32.mrb[0].mxu0
      %4426 = vmatprep.mubr.bf16.mxu0 0
      %4427 = vmatmul.mubr.bf16.gmra.mrb[0].mxu0 %v4279
      %v4428 = vpop.f32.mrb[0].mxu0
      %v4429 = vadd.f32 0.0, %v4428
      %v4430 = vpop.f32.mrb[0].mxu0
      %v4431 = vpop.f32.mrb[0].mxu0
      %v4432 = vadd.f32 0.0, %v4431
      %v4433 = vpop.f32.mrb[0].mxu0
      %4434 = vmatprep.mubr.bf16.mxu0 0
      %4435 = vmatmul.mubr.bf16.gmra.mrb[0].mxu0 %v4280
      %v4436 = vpop.f32.mrb[0].mxu0
      %v4437 = vadd.f32 0.0, %v4436
      %v4438 = vpop.f32.mrb[0].mxu0
      %v4439 = vpop.f32.mrb[0].mxu0
      %v4440 = vadd.f32 0.0, %v4439
      %v4441 = vpop.f32.mrb[0].mxu0
      %4442 = vmatprep.mubr.bf16.mxu0 0
      %4443 = vmatmul.mubr.bf16.gmra.mrb[0].mxu0 %v4281
      %v4444 = vpop.f32.mrb[0].mxu0
      %v4445 = vadd.f32 0.0, %v4444
      %v4446 = vpop.f32.mrb[0].mxu0
      %v4447 = vpop.f32.mrb[0].mxu0
      %v4448 = vadd.f32 0.0, %v4447
      %v4449 = vpop.f32.mrb[0].mxu0
      %4450 = vmatprep.mubr.bf16.mxu0 0
      %4451 = vmatmul.mubr.bf16.gmra.mrb[0].mxu0 %v4282
      %v4452 = vpop.f32.mrb[0].mxu0
      %v4453 = vadd.f32 0.0, %v4452
      %v4454 = vpop.f32.mrb[0].mxu0
      %v4455 = vpop.f32.mrb[0].mxu0
      %v4456 = vadd.f32 0.0, %v4455
      %v4457 = vpop.f32.mrb[0].mxu0
      %4458 = vmatprep.mubr.bf16.mxu0 0
      %4459 = vmatmul.mubr.bf16.gmra.mrb[0].mxu0 %v4283
      %v4460 = vpop.f32.mrb[0].mxu0
      %v4461 = vadd.f32 0.0, %v4460
      %v4462 = vpop.f32.mrb[0].mxu0
      %v4463 = vpop.f32.mrb[0].mxu0
      %v4464 = vadd.f32 0.0, %v4463
      %v4465 = vpop.f32.mrb[0].mxu0
      %4466 = vmatprep.mubr.bf16.mxu0 0
      %4467 = vmatmul.mubr.bf16.gmra.mrb[0].mxu0 %v4284
      %v4468 = vpop.f32.mrb[0].mxu0
      %v4469 = vadd.f32 0.0, %v4468
      %v4470 = vpop.f32.mrb[0].mxu0
      %v4471 = vpop.f32.mrb[0].mxu0
      %v4472 = vadd.f32 0.0, %v4471
      %v4473 = vpop.f32.mrb[0].mxu0
      %4474 = vmatprep.mubr.bf16.mxu0 0
      %4475 = vmatmul.mubr.bf16.gmra.mrb[0].mxu0 %v4285
      %v4476 = vpop.f32.mrb[0].mxu0
      %v4477 = vadd.f32 0.0, %v4476
      %v4478 = vpop.f32.mrb[0].mxu0
      %v4479 = vpop.f32.mrb[0].mxu0
      %v4480 = vadd.f32 0.0, %v4479
      %v4481 = vpop.f32.mrb[0].mxu0
      %4482 = vmatprep.mubr.bf16.mxu0 0
      %4483 = vmatmul.mubr.bf16.gmra.mrb[0].mxu0 %v4286
      %v4484 = vpop.f32.mrb[0].mxu0
      %v4485 = vadd.f32 0.0, %v4484
      %v4486 = vpop.f32.mrb[0].mxu0
      %v4487 = vpop.f32.mrb[0].mxu0
      %v4488 = vadd.f32 0.0, %v4487
      %v4489 = vpop.f32.mrb[0].mxu0
      %4490 = vmatprep.mubr.bf16.mxu0 0
      %4491 = vmatmul.mubr.bf16.gmra.mrb[0].mxu0 %v4287
      %v4492 = vpop.f32.mrb[0].mxu0
      %v4493 = vadd.f32 0.0, %v4492
      %v4494 = vpop.f32.mrb[0].mxu0
      %v4495 = vpop.f32.mrb[0].mxu0
      %v4496 = vadd.f32 0.0, %v4495
      %v4497 = vpop.f32.mrb[0].mxu0
      %4498 = vmatprep.mubr.bf16.mxu0 0
      %4499 = vmatmul.mubr.bf16.gmra.mrb[0].mxu0 %v4288
      %v4500 = vpop.f32.mrb[0].mxu0
      %v4501 = vadd.f32 0.0, %v4500
      %v4502 = vpop.f32.mrb[0].mxu0
      %v4503 = vpop.f32.mrb[0].mxu0
      %v4504 = vadd.f32 0.0, %v4503
      %v4505 = vpop.f32.mrb[0].mxu0
      %4506 = vmatprep.mubr.bf16.mxu0 0
      %4507 = vmatmul.mubr.bf16.gmra.mrb[0].mxu0 %v4289
      %v4508 = vpop.f32.mrb[0].mxu0
      %v4509 = vadd.f32 0.0, %v4508
      %v4510 = vpop.f32.mrb[0].mxu0
      %v4511 = vpop.f32.mrb[0].mxu0
      %v4512 = vadd.f32 0.0, %v4511
      %v4513 = vpop.f32.mrb[0].mxu0
      %4514 = vdwg.mxu0
      %v4515 = vld [vmem:[#allocation3] sm:$0xff]
      %v4516 = vld [vmem:[#allocation3 + $0x8] sm:$0xff]
      %v4517 = vld [vmem:[#allocation3 + $0x10] sm:$0xff]
      %v4518 = vld [vmem:[#allocation3 + $0x18] sm:$0xff]
      %v4519 = vld [vmem:[#allocation3 + $0x20] sm:$0xff]
      %v4520 = vld [vmem:[#allocation3 + $0x28] sm:$0xff]
      %v4521 = vld [vmem:[#allocation3 + $0x30] sm:$0xff]
      %v4522 = vld [vmem:[#allocation3 + $0x38] sm:$0xff]
      %v4523 = vld [vmem:[#allocation3 + $0x40] sm:$0xff]
      %v4524 = vld [vmem:[#allocation3 + $0x48] sm:$0xff]
      %v4525 = vld [vmem:[#allocation3 + $0x50] sm:$0xff]
      %v4526 = vld [vmem:[#allocation3 + $0x58] sm:$0xff]
      %v4527 = vld [vmem:[#allocation3 + $0x60] sm:$0xff]
      %v4528 = vld [vmem:[#allocation3 + $0x68] sm:$0xff]
      %v4529 = vld [vmem:[#allocation3 + $0x70] sm:$0xff]
      %v4530 = vld [vmem:[#allocation3 + $0x78] sm:$0xff]
      %v4531 = vld [vmem:[#allocation3 + $0x80] sm:$0xff]
      %v4532 = vld [vmem:[#allocation3 + $0x88] sm:$0xff]
      %v4533 = vld [vmem:[#allocation3 + $0x90] sm:$0xff]
      %v4534 = vld [vmem:[#allocation3 + $0x98] sm:$0xff]
      %v4535 = vld [vmem:[#allocation3 + $0xa0] sm:$0xff]
      %v4536 = vld [vmem:[#allocation3 + $0xa8] sm:$0xff]
      %v4537 = vld [vmem:[#allocation3 + $0xb0] sm:$0xff]
      %v4538 = vld [vmem:[#allocation3 + $0xb8] sm:$0xff]
      %v4539 = vld [vmem:[#allocation3 + $0xc0] sm:$0xff]
      %v4540 = vld [vmem:[#allocation3 + $0xc8] sm:$0xff]
      %v4541 = vld [vmem:[#allocation3 + $0xd0] sm:$0xff]
      %v4542 = vld [vmem:[#allocation3 + $0xd8] sm:$0xff]
      %v4543 = vld [vmem:[#allocation3 + $0xe0] sm:$0xff]
      %v4544 = vld [vmem:[#allocation3 + $0xe8] sm:$0xff]
      %v4545 = vld [vmem:[#allocation3 + $0xf0] sm:$0xff]
      %v4546 = vld [vmem:[#allocation3 + $0xf8] sm:$0xff]
      %v4547 = vadd.f32 %v4515, %v4389
      %v4548 = vadd.f32 %v4516, %v4392
      %v4549 = vadd.f32 %v4517, %v4397
      %v4550 = vadd.f32 %v4518, %v4400
      %v4551 = vadd.f32 %v4519, %v4405
      %v4552 = vadd.f32 %v4520, %v4408
      %v4553 = vadd.f32 %v4521, %v4413
      %v4554 = vadd.f32 %v4522, %v4416
      %v4555 = vadd.f32 %v4523, %v4421
      %v4556 = vadd.f32 %v4524, %v4424
      %v4557 = vadd.f32 %v4525, %v4429
      %v4558 = vadd.f32 %v4526, %v4432
      %v4559 = vadd.f32 %v4527, %v4437
      %v4560 = vadd.f32 %v4528, %v4440
      %v4561 = vadd.f32 %v4529, %v4445
      %v4562 = vadd.f32 %v4530, %v4448
      %v4563 = vadd.f32 %v4531, %v4453
      %v4564 = vadd.f32 %v4532, %v4456
      %v4565 = vadd.f32 %v4533, %v4461
      %v4566 = vadd.f32 %v4534, %v4464
      %v4567 = vadd.f32 %v4535, %v4469
      %v4568 = vadd.f32 %v4536, %v4472
      %v4569 = vadd.f32 %v4537, %v4477
      %v4570 = vadd.f32 %v4538, %v4480
      %v4571 = vadd.f32 %v4539, %v4485
      %v4572 = vadd.f32 %v4540, %v4488
      %v4573 = vadd.f32 %v4541, %v4493
      %v4574 = vadd.f32 %v4542, %v4496
      %v4575 = vadd.f32 %v4543, %v4501
      %v4576 = vadd.f32 %v4544, %v4504
      %v4577 = vadd.f32 %v4545, %v4509
      %v4578 = vadd.f32 %v4546, %v4512
      %4579 = vst [vmem:[#allocation3] sm:$0xff] %v4547
      %4580 = vst [vmem:[#allocation3 + $0x8] sm:$0xff] %v4548
      %4581 = vst [vmem:[#allocation3 + $0x10] sm:$0xff] %v4549
      %4582 = vst [vmem:[#allocation3 + $0x18] sm:$0xff] %v4550
      %4583 = vst [vmem:[#allocation3 + $0x20] sm:$0xff] %v4551
      %4584 = vst [vmem:[#allocation3 + $0x28] sm:$0xff] %v4552
      %4585 = vst [vmem:[#allocation3 + $0x30] sm:$0xff] %v4553
      %4586 = vst [vmem:[#allocation3 + $0x38] sm:$0xff] %v4554
      %4587 = vst [vmem:[#allocation3 + $0x40] sm:$0xff] %v4555
      %4588 = vst [vmem:[#allocation3 + $0x48] sm:$0xff] %v4556
      %4589 = vst [vmem:[#allocation3 + $0x50] sm:$0xff] %v4557
      %4590 = vst [vmem:[#allocation3 + $0x58] sm:$0xff] %v4558
      %4591 = vst [vmem:[#allocation3 + $0x60] sm:$0xff] %v4559
      %4592 = vst [vmem:[#allocation3 + $0x68] sm:$0xff] %v4560
      %4593 = vst [vmem:[#allocation3 + $0x70] sm:$0xff] %v4561
      %4594 = vst [vmem:[#allocation3 + $0x78] sm:$0xff] %v4562
      %4595 = vst [vmem:[#allocation3 + $0x80] sm:$0xff] %v4563
      %4596 = vst [vmem:[#allocation3 + $0x88] sm:$0xff] %v4564
      %4597 = vst [vmem:[#allocation3 + $0x90] sm:$0xff] %v4565
      %4598 = vst [vmem:[#allocation3 + $0x98] sm:$0xff] %v4566
      %4599 = vst [vmem:[#allocation3 + $0xa0] sm:$0xff] %v4567
      %4600 = vst [vmem:[#allocation3 + $0xa8] sm:$0xff] %v4568
      %4601 = vst [vmem:[#allocation3 + $0xb0] sm:$0xff] %v4569
      %4602 = vst [vmem:[#allocation3 + $0xb8] sm:$0xff] %v4570
      %4603 = vst [vmem:[#allocation3 + $0xc0] sm:$0xff] %v4571
      %4604 = vst [vmem:[#allocation3 + $0xc8] sm:$0xff] %v4572
      %4605 = vst [vmem:[#allocation3 + $0xd0] sm:$0xff] %v4573
      %4606 = vst [vmem:[#allocation3 + $0xd8] sm:$0xff] %v4574
      %4607 = vst [vmem:[#allocation3 + $0xe0] sm:$0xff] %v4575
      %4608 = vst [vmem:[#allocation3 + $0xe8] sm:$0xff] %v4576
      %4609 = vst [vmem:[#allocation3 + $0xf0] sm:$0xff] %v4577
      %4610 = vst [vmem:[#allocation3 + $0xf8] sm:$0xff] %v4578
      %v4611 = vld [vmem:[%s1422] sm:$0xe]
      %v4612 = vld [vmem:[%s1422 + $0x4] sm:$0xf]
      %v4613 = vld [vmem:[%s1422 + $0x8] sm:$0x1]
      %v4614 = vld [vmem:[%s1422 + $0xc] sm:$0xe]
      %v4615 = vld [vmem:[%s1422 + $0x10] sm:$0xf]
      %v4616 = vld [vmem:[%s1422 + $0x14] sm:$0x1]
      %v4617 = vld [vmem:[%s1422 + $0x18] sm:$0xe]
      %v4618 = vld [vmem:[%s1422 + $0x1c] sm:$0xf]
      %v4619 = vld [vmem:[%s1422 + $0x20] sm:$0x1]
      %v4620 = vld [vmem:[%s1422 + $0x24] sm:$0xe]
      %v4621 = vld [vmem:[%s1422 + $0x28] sm:$0xf]
      %v4622 = vld [vmem:[%s1422 + $0x2c] sm:$0x1]
      %v4623 = vld [vmem:[%s1422 + $0x30] sm:$0xe]
      %v4624 = vld [vmem:[%s1422 + $0x34] sm:$0xf]
      %v4625 = vld [vmem:[%s1422 + $0x38] sm:$0x1]
      %v4626 = vld [vmem:[%s1422 + $0x3c] sm:$0xe]
      %v4627 = vld [vmem:[%s1422 + $0x40] sm:$0xf]
      %v4628 = vld [vmem:[%s1422 + $0x44] sm:$0x1]
      %v4629 = vld [vmem:[%s1422 + $0x48] sm:$0xe]
      %v4630 = vld [vmem:[%s1422 + $0x4c] sm:$0xf]
      %v4631 = vld [vmem:[%s1422 + $0x50] sm:$0x1]
      %v4632 = vld [vmem:[%s1422 + $0x54] sm:$0xe]
      %v4633 = vld [vmem:[%s1422 + $0x58] sm:$0xf]
      %v4634 = vld [vmem:[%s1422 + $0x5c] sm:$0x1]
      %v4635 = vld [vmem:[%s1422 + $0x60] sm:$0xe]
      %v4636 = vld [vmem:[%s1422 + $0x64] sm:$0xf]
      %v4637 = vld [vmem:[%s1422 + $0x68] sm:$0x1]
      %v4638 = vld [vmem:[%s1422 + $0x6c] sm:$0xe]
      %v4639 = vld [vmem:[%s1422 + $0x70] sm:$0xf]
      %v4640 = vld [vmem:[%s1422 + $0x74] sm:$0x1]
      %v4641 = vld [vmem:[%s1422 + $0x78] sm:$0xe]
      %v4642 = vld [vmem:[%s1422 + $0x7c] sm:$0xf]
      %v4643 = vld [vmem:[%s1422 + $0x80] sm:$0x1]
      %v4644 = vld [vmem:[%s1422 + $0x84] sm:$0xe]
      %v4645 = vld [vmem:[%s1422 + $0x88] sm:$0xf]
      %v4646 = vld [vmem:[%s1422 + $0x8c] sm:$0x1]
      %v4647 = vld [vmem:[%s1422 + $0x90] sm:$0xe]
      %v4648 = vld [vmem:[%s1422 + $0x94] sm:$0xf]
      %v4649 = vld [vmem:[%s1422 + $0x98] sm:$0x1]
      %v4650 = vld [vmem:[%s1422 + $0x9c] sm:$0xe]
      %v4651 = vld [vmem:[%s1422 + $0xa0] sm:$0xf]
      %v4652 = vld [vmem:[%s1422 + $0xa4] sm:$0x1]
      %v4653 = vld [vmem:[%s1422 + $0xa8] sm:$0xe]
      %v4654 = vld [vmem:[%s1422 + $0xac] sm:$0xf]
      %v4655 = vld [vmem:[%s1422 + $0xb0] sm:$0x1]
      %v4656 = vld [vmem:[%s1422 + $0xb4] sm:$0xe]
      %v4657 = vld [vmem:[%s1422 + $0xb8] sm:$0xf]
      %v4658 = vld [vmem:[%s1422 + $0xbc] sm:$0x1]
      %v4707 = vrot.slane %v4611, 5
      %v4708 = vrot.slane %v4707, 4
      %v4709 = vrot.slane %v4612, 5
      %v4710 = vsel %vm2844, %v4708, %v4709
      %v4711 = vrot.slane %v4709, 4
      %v4712 = vrot.slane %v4613, 5
      %v4713 = vsel %vm2844, %v4711, %v4712
      %v4714 = vrot.slane %v4614, 5
      %v4715 = vrot.slane %v4714, 4
      %v4716 = vrot.slane %v4615, 5
      %v4717 = vsel %vm2844, %v4715, %v4716
      %v4718 = vrot.slane %v4716, 4
      %v4719 = vrot.slane %v4616, 5
      %v4720 = vsel %vm2844, %v4718, %v4719
      %v4721 = vrot.slane %v4617, 5
      %v4722 = vrot.slane %v4721, 4
      %v4723 = vrot.slane %v4618, 5
      %v4724 = vsel %vm2844, %v4722, %v4723
      %v4725 = vrot.slane %v4723, 4
      %v4726 = vrot.slane %v4619, 5
      %v4727 = vsel %vm2844, %v4725, %v4726
      %v4728 = vrot.slane %v4620, 5
      %v4729 = vrot.slane %v4728, 4
      %v4730 = vrot.slane %v4621, 5
      %v4731 = vsel %vm2844, %v4729, %v4730
      %v4732 = vrot.slane %v4730, 4
      %v4733 = vrot.slane %v4622, 5
      %v4734 = vsel %vm2844, %v4732, %v4733
      %v4735 = vrot.slane %v4623, 5
      %v4736 = vrot.slane %v4735, 4
      %v4737 = vrot.slane %v4624, 5
      %v4738 = vsel %vm2844, %v4736, %v4737
      %v4739 = vrot.slane %v4737, 4
      %v4740 = vrot.slane %v4625, 5
      %v4741 = vsel %vm2844, %v4739, %v4740
      %v4742 = vrot.slane %v4626, 5
      %v4743 = vrot.slane %v4742, 4
      %v4744 = vrot.slane %v4627, 5
      %v4745 = vsel %vm2844, %v4743, %v4744
      %v4746 = vrot.slane %v4744, 4
      %v4747 = vrot.slane %v4628, 5
      %v4748 = vsel %vm2844, %v4746, %v4747
      %v4749 = vrot.slane %v4629, 5
      %v4750 = vrot.slane %v4749, 4
      %v4751 = vrot.slane %v4630, 5
      %v4752 = vsel %vm2844, %v4750, %v4751
      %v4753 = vrot.slane %v4751, 4
      %v4754 = vrot.slane %v4631, 5
      %v4755 = vsel %vm2844, %v4753, %v4754
      %v4756 = vrot.slane %v4632, 5
      %v4757 = vrot.slane %v4756, 4
      %v4758 = vrot.slane %v4633, 5
      %v4759 = vsel %vm2844, %v4757, %v4758
      %v4760 = vrot.slane %v4758, 4
      %v4761 = vrot.slane %v4634, 5
      %v4762 = vsel %vm2844, %v4760, %v4761
      %v4763 = vrot.slane %v4635, 5
      %v4764 = vrot.slane %v4763, 4
      %v4765 = vrot.slane %v4636, 5
      %v4766 = vsel %vm2844, %v4764, %v4765
      %v4767 = vrot.slane %v4765, 4
      %v4768 = vrot.slane %v4637, 5
      %v4769 = vsel %vm2844, %v4767, %v4768
      %v4770 = vrot.slane %v4638, 5
      %v4771 = vrot.slane %v4770, 4
      %v4772 = vrot.slane %v4639, 5
      %v4773 = vsel %vm2844, %v4771, %v4772
      %v4774 = vrot.slane %v4772, 4
      %v4775 = vrot.slane %v4640, 5
      %v4776 = vsel %vm2844, %v4774, %v4775
      %v4777 = vrot.slane %v4641, 5
      %v4778 = vrot.slane %v4777, 4
      %v4779 = vrot.slane %v4642, 5
      %v4780 = vsel %vm2844, %v4778, %v4779
      %v4781 = vrot.slane %v4779, 4
      %v4782 = vrot.slane %v4643, 5
      %v4783 = vsel %vm2844, %v4781, %v4782
      %v4784 = vrot.slane %v4644, 5
      %v4785 = vrot.slane %v4784, 4
      %v4786 = vrot.slane %v4645, 5
      %v4787 = vsel %vm2844, %v4785, %v4786
      %v4788 = vrot.slane %v4786, 4
      %v4789 = vrot.slane %v4646, 5
      %v4790 = vsel %vm2844, %v4788, %v4789
      %v4791 = vrot.slane %v4647, 5
      %v4792 = vrot.slane %v4791, 4
      %v4793 = vrot.slane %v4648, 5
      %v4794 = vsel %vm2844, %v4792, %v4793
      %v4795 = vrot.slane %v4793, 4
      %v4796 = vrot.slane %v4649, 5
      %v4797 = vsel %vm2844, %v4795, %v4796
      %v4798 = vrot.slane %v4650, 5
      %v4799 = vrot.slane %v4798, 4
      %v4800 = vrot.slane %v4651, 5
      %v4801 = vsel %vm2844, %v4799, %v4800
      %v4802 = vrot.slane %v4800, 4
      %v4803 = vrot.slane %v4652, 5
      %v4804 = vsel %vm2844, %v4802, %v4803
      %v4805 = vrot.slane %v4653, 5
      %v4806 = vrot.slane %v4805, 4
      %v4807 = vrot.slane %v4654, 5
      %v4808 = vsel %vm2844, %v4806, %v4807
      %v4809 = vrot.slane %v4807, 4
      %v4810 = vrot.slane %v4655, 5
      %v4811 = vsel %vm2844, %v4809, %v4810
      %v4812 = vrot.slane %v4656, 5
      %v4813 = vrot.slane %v4812, 4
      %v4814 = vrot.slane %v4657, 5
      %v4815 = vsel %vm2844, %v4813, %v4814
      %v4816 = vrot.slane %v4814, 4
      %v4817 = vrot.slane %v4658, 5
      %v4818 = vsel %vm2844, %v4816, %v4817
      %s4819 = scalar_lea.vmem %s2, 320
      %v4820 = vld [vmem:[%s4819] sm:$0xf]
      %v4821 = vld [vmem:[%s4819 + $0x4] sm:$0xf]
      %v4822 = vld [vmem:[%s4819 + $0x8] sm:$0xf]
      %v4823 = vld [vmem:[%s4819 + $0xc] sm:$0xf]
      %v4824 = vld [vmem:[%s4819 + $0x10] sm:$0xf]
      %v4825 = vld [vmem:[%s4819 + $0x14] sm:$0xf]
      %v4826 = vld [vmem:[%s4819 + $0x18] sm:$0xf]
      %v4827 = vld [vmem:[%s4819 + $0x1c] sm:$0xf]
      %v4828 = vld [vmem:[%s4819 + $0x20] sm:$0xf]
      %v4829 = vld [vmem:[%s4819 + $0x24] sm:$0xf]
      %v4830 = vld [vmem:[%s4819 + $0x28] sm:$0xf]
      %v4831 = vld [vmem:[%s4819 + $0x2c] sm:$0xf]
      %v4832 = vld [vmem:[%s4819 + $0x30] sm:$0xf]
      %v4833 = vld [vmem:[%s4819 + $0x34] sm:$0xf]
      %v4834 = vld [vmem:[%s4819 + $0x38] sm:$0xf]
      %v4835 = vld [vmem:[%s4819 + $0x3c] sm:$0xf]
      %v4836 = vunpack.c.l.b16 %v4710
      %v4837 = vunpack.c.l.b16 %v4713
      %v4838 = vunpack.c.l.b16 %v4717
      %v4839 = vunpack.c.l.b16 %v4720
      %v4840 = vunpack.c.l.b16 %v4724
      %v4841 = vunpack.c.l.b16 %v4727
      %v4842 = vunpack.c.l.b16 %v4731
      %v4843 = vunpack.c.l.b16 %v4734
      %v4844 = vunpack.c.l.b16 %v4738
      %v4845 = vunpack.c.l.b16 %v4741
      %v4846 = vunpack.c.l.b16 %v4745
      %v4847 = vunpack.c.l.b16 %v4748
      %v4848 = vunpack.c.l.b16 %v4752
      %v4849 = vunpack.c.l.b16 %v4755
      %v4850 = vunpack.c.l.b16 %v4759
      %v4851 = vunpack.c.l.b16 %v4762
      %v4852 = vunpack.c.l.b16 %v4766
      %v4853 = vunpack.c.l.b16 %v4769
      %v4854 = vunpack.c.l.b16 %v4773
      %v4855 = vunpack.c.l.b16 %v4776
      %v4856 = vunpack.c.l.b16 %v4780
      %v4857 = vunpack.c.l.b16 %v4783
      %v4858 = vunpack.c.l.b16 %v4787
      %v4859 = vunpack.c.l.b16 %v4790
      %v4860 = vunpack.c.l.b16 %v4794
      %v4861 = vunpack.c.l.b16 %v4797
      %v4862 = vunpack.c.l.b16 %v4801
      %v4863 = vunpack.c.l.b16 %v4804
      %v4864 = vunpack.c.l.b16 %v4808
      %v4865 = vunpack.c.l.b16 %v4811
      %v4866 = vunpack.c.l.b16 %v4815
      %v4867 = vunpack.c.l.b16 %v4818
      %v4868 = vpack.c.b16 %v4837, %v4836
      %v4869 = vpack.c.b16 %v4839, %v4838
      %v4870 = vpack.c.b16 %v4841, %v4840
      %v4871 = vpack.c.b16 %v4843, %v4842
      %v4872 = vpack.c.b16 %v4845, %v4844
      %v4873 = vpack.c.b16 %v4847, %v4846
      %v4874 = vpack.c.b16 %v4849, %v4848
      %v4875 = vpack.c.b16 %v4851, %v4850
      %v4876 = vpack.c.b16 %v4853, %v4852
      %v4877 = vpack.c.b16 %v4855, %v4854
      %v4878 = vpack.c.b16 %v4857, %v4856
      %v4879 = vpack.c.b16 %v4859, %v4858
      %v4880 = vpack.c.b16 %v4861, %v4860
      %v4881 = vpack.c.b16 %v4863, %v4862
      %v4882 = vpack.c.b16 %v4865, %v4864
      %v4883 = vpack.c.b16 %v4867, %v4866
      %v4916 = vunpack.c.l.b16 %v4820
      %v4917 = vunpack.c.l.b16 %v4821
      %v4918 = vunpack.c.l.b16 %v4822
      %v4919 = vunpack.c.l.b16 %v4823
      %v4920 = vunpack.c.l.b16 %v4824
      %v4921 = vunpack.c.l.b16 %v4825
      %v4922 = vunpack.c.l.b16 %v4826
      %v4923 = vunpack.c.l.b16 %v4827
      %v4924 = vunpack.c.l.b16 %v4828
      %v4925 = vunpack.c.l.b16 %v4829
      %v4926 = vunpack.c.l.b16 %v4830
      %v4927 = vunpack.c.l.b16 %v4831
      %v4928 = vunpack.c.l.b16 %v4832
      %v4929 = vunpack.c.l.b16 %v4833
      %v4930 = vunpack.c.l.b16 %v4834
      %v4931 = vunpack.c.l.b16 %v4835
      %v4932 = vpack.c.b16 %v4917, %v4916
      %v4933 = vpack.c.b16 %v4919, %v4918
      %v4934 = vpack.c.b16 %v4921, %v4920
      %v4935 = vpack.c.b16 %v4923, %v4922
      %v4936 = vpack.c.b16 %v4925, %v4924
      %v4937 = vpack.c.b16 %v4927, %v4926
      %v4938 = vpack.c.b16 %v4929, %v4928
      %v4939 = vpack.c.b16 %v4931, %v4930
      %4948 = vmatprep.subr.bf16.mxu0 0
      %4949 = vmatpush1.bf16.msra.mxu0 %v4932
      %4950 = vmatprep.subr.bf16.mxu0 0
      %4951 = vmatpush1.bf16.msra.mxu0 %v4933
      %4952 = vmatprep.subr.bf16.mxu0 0
      %4953 = vmatpush1.bf16.msra.mxu0 %v4934
      %4954 = vmatprep.subr.bf16.mxu0 0
      %4955 = vmatpush1.bf16.msra.mxu0 %v4935
      %4956 = vmatprep.subr.bf16.mxu0 0
      %4957 = vmatpush1.bf16.msra.mxu0 %v4936
      %4958 = vmatprep.subr.bf16.mxu0 0
      %4959 = vmatpush1.bf16.msra.mxu0 %v4937
      %4960 = vmatprep.subr.bf16.mxu0 0
      %4961 = vmatpush1.bf16.msra.mxu0 %v4938
      %4962 = vmatprep.subr.bf16.mxu0 0
      %4963 = vmatpush1.bf16.msra.mxu0 %v4939
      %4964 = vmatprep.subr.bf16.mxu0 0
      %4965 = vmatpush1.bf16.msra.mxu0 0
      %4966 = vmatprep.subr.bf16.mxu0 0
      %4967 = vmatpush1.bf16.msra.mxu0 0
      %4968 = vmatprep.subr.bf16.mxu0 0
      %4969 = vmatpush1.bf16.msra.mxu0 0
      %4970 = vmatprep.subr.bf16.mxu0 0
      %4971 = vmatpush1.bf16.msra.mxu0 0
      %4972 = vmatprep.subr.bf16.mxu0 0
      %4973 = vmatpush1.bf16.msra.mxu0 0
      %4974 = vmatprep.subr.bf16.mxu0 0
      %4975 = vmatpush1.bf16.msra.mxu0 0
      %4976 = vmatprep.subr.bf16.mxu0 0
      %4977 = vmatpush1.bf16.msra.mxu0 0
      %4978 = vmatprep.subr.bf16.mxu0 0
      %4979 = vmatpush1.bf16.msra.mxu0 0
      %4980 = vmatprep.mubr.bf16.mxu0 0
      %4981 = vmatmul.mubr.bf16.gmra.mrb[0].mxu0 %v4868
      %v4982 = vpop.f32.mrb[0].mxu0
      %v4983 = vadd.f32 0.0, %v4982
      %v4984 = vpop.f32.mrb[0].mxu0
      %v4985 = vpop.f32.mrb[0].mxu0
      %v4986 = vadd.f32 0.0, %v4985
      %v4987 = vpop.f32.mrb[0].mxu0
      %4988 = vmatprep.mubr.bf16.mxu0 0
      %4989 = vmatmul.mubr.bf16.gmra.mrb[0].mxu0 %v4869
      %v4990 = vpop.f32.mrb[0].mxu0
      %v4991 = vadd.f32 0.0, %v4990
      %v4992 = vpop.f32.mrb[0].mxu0
      %v4993 = vpop.f32.mrb[0].mxu0
      %v4994 = vadd.f32 0.0, %v4993
      %v4995 = vpop.f32.mrb[0].mxu0
      %4996 = vmatprep.mubr.bf16.mxu0 0
      %4997 = vmatmul.mubr.bf16.gmra.mrb[0].mxu0 %v4870
      %v4998 = vpop.f32.mrb[0].mxu0
      %v4999 = vadd.f32 0.0, %v4998
      %v5000 = vpop.f32.mrb[0].mxu0
      %v5001 = vpop.f32.mrb[0].mxu0
      %v5002 = vadd.f32 0.0, %v5001
      %v5003 = vpop.f32.mrb[0].mxu0
      %5004 = vmatprep.mubr.bf16.mxu0 0
      %5005 = vmatmul.mubr.bf16.gmra.mrb[0].mxu0 %v4871
      %v5006 = vpop.f32.mrb[0].mxu0
      %v5007 = vadd.f32 0.0, %v5006
      %v5008 = vpop.f32.mrb[0].mxu0
      %v5009 = vpop.f32.mrb[0].mxu0
      %v5010 = vadd.f32 0.0, %v5009
      %v5011 = vpop.f32.mrb[0].mxu0
      %5012 = vmatprep.mubr.bf16.mxu0 0
      %5013 = vmatmul.mubr.bf16.gmra.mrb[0].mxu0 %v4872
      %v5014 = vpop.f32.mrb[0].mxu0
      %v5015 = vadd.f32 0.0, %v5014
      %v5016 = vpop.f32.mrb[0].mxu0
      %v5017 = vpop.f32.mrb[0].mxu0
      %v5018 = vadd.f32 0.0, %v5017
      %v5019 = vpop.f32.mrb[0].mxu0
      %5020 = vmatprep.mubr.bf16.mxu0 0
      %5021 = vmatmul.mubr.bf16.gmra.mrb[0].mxu0 %v4873
      %v5022 = vpop.f32.mrb[0].mxu0
      %v5023 = vadd.f32 0.0, %v5022
      %v5024 = vpop.f32.mrb[0].mxu0
      %v5025 = vpop.f32.mrb[0].mxu0
      %v5026 = vadd.f32 0.0, %v5025
      %v5027 = vpop.f32.mrb[0].mxu0
      %5028 = vmatprep.mubr.bf16.mxu0 0
      %5029 = vmatmul.mubr.bf16.gmra.mrb[0].mxu0 %v4874
      %v5030 = vpop.f32.mrb[0].mxu0
      %v5031 = vadd.f32 0.0, %v5030
      %v5032 = vpop.f32.mrb[0].mxu0
      %v5033 = vpop.f32.mrb[0].mxu0
      %v5034 = vadd.f32 0.0, %v5033
      %v5035 = vpop.f32.mrb[0].mxu0
      %5036 = vmatprep.mubr.bf16.mxu0 0
      %5037 = vmatmul.mubr.bf16.gmra.mrb[0].mxu0 %v4875
      %v5038 = vpop.f32.mrb[0].mxu0
      %v5039 = vadd.f32 0.0, %v5038
      %v5040 = vpop.f32.mrb[0].mxu0
      %v5041 = vpop.f32.mrb[0].mxu0
      %v5042 = vadd.f32 0.0, %v5041
      %v5043 = vpop.f32.mrb[0].mxu0
      %5044 = vmatprep.mubr.bf16.mxu0 0
      %5045 = vmatmul.mubr.bf16.gmra.mrb[0].mxu0 %v4876
      %v5046 = vpop.f32.mrb[0].mxu0
      %v5047 = vadd.f32 0.0, %v5046
      %v5048 = vpop.f32.mrb[0].mxu0
      %v5049 = vpop.f32.mrb[0].mxu0
      %v5050 = vadd.f32 0.0, %v5049
      %v5051 = vpop.f32.mrb[0].mxu0
      %5052 = vmatprep.mubr.bf16.mxu0 0
      %5053 = vmatmul.mubr.bf16.gmra.mrb[0].mxu0 %v4877
      %v5054 = vpop.f32.mrb[0].mxu0
      %v5055 = vadd.f32 0.0, %v5054
      %v5056 = vpop.f32.mrb[0].mxu0
      %v5057 = vpop.f32.mrb[0].mxu0
      %v5058 = vadd.f32 0.0, %v5057
      %v5059 = vpop.f32.mrb[0].mxu0
      %5060 = vmatprep.mubr.bf16.mxu0 0
      %5061 = vmatmul.mubr.bf16.gmra.mrb[0].mxu0 %v4878
      %v5062 = vpop.f32.mrb[0].mxu0
      %v5063 = vadd.f32 0.0, %v5062
      %v5064 = vpop.f32.mrb[0].mxu0
      %v5065 = vpop.f32.mrb[0].mxu0
      %v5066 = vadd.f32 0.0, %v5065
      %v5067 = vpop.f32.mrb[0].mxu0
      %5068 = vmatprep.mubr.bf16.mxu0 0
      %5069 = vmatmul.mubr.bf16.gmra.mrb[0].mxu0 %v4879
      %v5070 = vpop.f32.mrb[0].mxu0
      %v5071 = vadd.f32 0.0, %v5070
      %v5072 = vpop.f32.mrb[0].mxu0
      %v5073 = vpop.f32.mrb[0].mxu0
      %v5074 = vadd.f32 0.0, %v5073
      %v5075 = vpop.f32.mrb[0].mxu0
      %5076 = vmatprep.mubr.bf16.mxu0 0
      %5077 = vmatmul.mubr.bf16.gmra.mrb[0].mxu0 %v4880
      %v5078 = vpop.f32.mrb[0].mxu0
      %v5079 = vadd.f32 0.0, %v5078
      %v5080 = vpop.f32.mrb[0].mxu0
      %v5081 = vpop.f32.mrb[0].mxu0
      %v5082 = vadd.f32 0.0, %v5081
      %v5083 = vpop.f32.mrb[0].mxu0
      %5084 = vmatprep.mubr.bf16.mxu0 0
      %5085 = vmatmul.mubr.bf16.gmra.mrb[0].mxu0 %v4881
      %v5086 = vpop.f32.mrb[0].mxu0
      %v5087 = vadd.f32 0.0, %v5086
      %v5088 = vpop.f32.mrb[0].mxu0
      %v5089 = vpop.f32.mrb[0].mxu0
      %v5090 = vadd.f32 0.0, %v5089
      %v5091 = vpop.f32.mrb[0].mxu0
      %5092 = vmatprep.mubr.bf16.mxu0 0
      %5093 = vmatmul.mubr.bf16.gmra.mrb[0].mxu0 %v4882
      %v5094 = vpop.f32.mrb[0].mxu0
      %v5095 = vadd.f32 0.0, %v5094
      %v5096 = vpop.f32.mrb[0].mxu0
      %v5097 = vpop.f32.mrb[0].mxu0
      %v5098 = vadd.f32 0.0, %v5097
      %v5099 = vpop.f32.mrb[0].mxu0
      %5100 = vmatprep.mubr.bf16.mxu0 0
      %5101 = vmatmul.mubr.bf16.gmra.mrb[0].mxu0 %v4883
      %v5102 = vpop.f32.mrb[0].mxu0
      %v5103 = vadd.f32 0.0, %v5102
      %v5104 = vpop.f32.mrb[0].mxu0
      %v5105 = vpop.f32.mrb[0].mxu0
      %v5106 = vadd.f32 0.0, %v5105
      %v5107 = vpop.f32.mrb[0].mxu0
      %5108 = vdwg.mxu0
      %v5109 = vld [vmem:[#allocation3] sm:$0xff]
      %v5110 = vld [vmem:[#allocation3 + $0x8] sm:$0xff]
      %v5111 = vld [vmem:[#allocation3 + $0x10] sm:$0xff]
      %v5112 = vld [vmem:[#allocation3 + $0x18] sm:$0xff]
      %v5113 = vld [vmem:[#allocation3 + $0x20] sm:$0xff]
      %v5114 = vld [vmem:[#allocation3 + $0x28] sm:$0xff]
      %v5115 = vld [vmem:[#allocation3 + $0x30] sm:$0xff]
      %v5116 = vld [vmem:[#allocation3 + $0x38] sm:$0xff]
      %v5117 = vld [vmem:[#allocation3 + $0x40] sm:$0xff]
      %v5118 = vld [vmem:[#allocation3 + $0x48] sm:$0xff]
      %v5119 = vld [vmem:[#allocation3 + $0x50] sm:$0xff]
      %v5120 = vld [vmem:[#allocation3 + $0x58] sm:$0xff]
      %v5121 = vld [vmem:[#allocation3 + $0x60] sm:$0xff]
      %v5122 = vld [vmem:[#allocation3 + $0x68] sm:$0xff]
      %v5123 = vld [vmem:[#allocation3 + $0x70] sm:$0xff]
      %v5124 = vld [vmem:[#allocation3 + $0x78] sm:$0xff]
      %v5125 = vld [vmem:[#allocation3 + $0x80] sm:$0xff]
      %v5126 = vld [vmem:[#allocation3 + $0x88] sm:$0xff]
      %v5127 = vld [vmem:[#allocation3 + $0x90] sm:$0xff]
      %v5128 = vld [vmem:[#allocation3 + $0x98] sm:$0xff]
      %v5129 = vld [vmem:[#allocation3 + $0xa0] sm:$0xff]
      %v5130 = vld [vmem:[#allocation3 + $0xa8] sm:$0xff]
      %v5131 = vld [vmem:[#allocation3 + $0xb0] sm:$0xff]
      %v5132 = vld [vmem:[#allocation3 + $0xb8] sm:$0xff]
      %v5133 = vld [vmem:[#allocation3 + $0xc0] sm:$0xff]
      %v5134 = vld [vmem:[#allocation3 + $0xc8] sm:$0xff]
      %v5135 = vld [vmem:[#allocation3 + $0xd0] sm:$0xff]
      %v5136 = vld [vmem:[#allocation3 + $0xd8] sm:$0xff]
      %v5137 = vld [vmem:[#allocation3 + $0xe0] sm:$0xff]
      %v5138 = vld [vmem:[#allocation3 + $0xe8] sm:$0xff]
      %v5139 = vld [vmem:[#allocation3 + $0xf0] sm:$0xff]
      %v5140 = vld [vmem:[#allocation3 + $0xf8] sm:$0xff]
      %v5141 = vadd.f32 %v5109, %v4983
      %v5142 = vadd.f32 %v5110, %v4986
      %v5143 = vadd.f32 %v5111, %v4991
      %v5144 = vadd.f32 %v5112, %v4994
      %v5145 = vadd.f32 %v5113, %v4999
      %v5146 = vadd.f32 %v5114, %v5002
      %v5147 = vadd.f32 %v5115, %v5007
      %v5148 = vadd.f32 %v5116, %v5010
      %v5149 = vadd.f32 %v5117, %v5015
      %v5150 = vadd.f32 %v5118, %v5018
      %v5151 = vadd.f32 %v5119, %v5023
      %v5152 = vadd.f32 %v5120, %v5026
      %v5153 = vadd.f32 %v5121, %v5031
      %v5154 = vadd.f32 %v5122, %v5034
      %v5155 = vadd.f32 %v5123, %v5039
      %v5156 = vadd.f32 %v5124, %v5042
      %v5157 = vadd.f32 %v5125, %v5047
      %v5158 = vadd.f32 %v5126, %v5050
      %v5159 = vadd.f32 %v5127, %v5055
      %v5160 = vadd.f32 %v5128, %v5058
      %v5161 = vadd.f32 %v5129, %v5063
      %v5162 = vadd.f32 %v5130, %v5066
      %v5163 = vadd.f32 %v5131, %v5071
      %v5164 = vadd.f32 %v5132, %v5074
      %v5165 = vadd.f32 %v5133, %v5079
      %v5166 = vadd.f32 %v5134, %v5082
      %v5167 = vadd.f32 %v5135, %v5087
      %v5168 = vadd.f32 %v5136, %v5090
      %v5169 = vadd.f32 %v5137, %v5095
      %v5170 = vadd.f32 %v5138, %v5098
      %v5171 = vadd.f32 %v5139, %v5103
      %v5172 = vadd.f32 %v5140, %v5106
      %5173 = vst [vmem:[#allocation3] sm:$0xff] %v5141
      %5174 = vst [vmem:[#allocation3 + $0x8] sm:$0xff] %v5142
      %5175 = vst [vmem:[#allocation3 + $0x10] sm:$0xff] %v5143
      %5176 = vst [vmem:[#allocation3 + $0x18] sm:$0xff] %v5144
      %5177 = vst [vmem:[#allocation3 + $0x20] sm:$0xff] %v5145
      %5178 = vst [vmem:[#allocation3 + $0x28] sm:$0xff] %v5146
      %5179 = vst [vmem:[#allocation3 + $0x30] sm:$0xff] %v5147
      %5180 = vst [vmem:[#allocation3 + $0x38] sm:$0xff] %v5148
      %5181 = vst [vmem:[#allocation3 + $0x40] sm:$0xff] %v5149
      %5182 = vst [vmem:[#allocation3 + $0x48] sm:$0xff] %v5150
      %5183 = vst [vmem:[#allocation3 + $0x50] sm:$0xff] %v5151
      %5184 = vst [vmem:[#allocation3 + $0x58] sm:$0xff] %v5152
      %5185 = vst [vmem:[#allocation3 + $0x60] sm:$0xff] %v5153
      %5186 = vst [vmem:[#allocation3 + $0x68] sm:$0xff] %v5154
      %5187 = vst [vmem:[#allocation3 + $0x70] sm:$0xff] %v5155
      %5188 = vst [vmem:[#allocation3 + $0x78] sm:$0xff] %v5156
      %5189 = vst [vmem:[#allocation3 + $0x80] sm:$0xff] %v5157
      %5190 = vst [vmem:[#allocation3 + $0x88] sm:$0xff] %v5158
      %5191 = vst [vmem:[#allocation3 + $0x90] sm:$0xff] %v5159
      %5192 = vst [vmem:[#allocation3 + $0x98] sm:$0xff] %v5160
      %5193 = vst [vmem:[#allocation3 + $0xa0] sm:$0xff] %v5161
      %5194 = vst [vmem:[#allocation3 + $0xa8] sm:$0xff] %v5162
      %5195 = vst [vmem:[#allocation3 + $0xb0] sm:$0xff] %v5163
      %5196 = vst [vmem:[#allocation3 + $0xb8] sm:$0xff] %v5164
      %5197 = vst [vmem:[#allocation3 + $0xc0] sm:$0xff] %v5165
      %5198 = vst [vmem:[#allocation3 + $0xc8] sm:$0xff] %v5166
      %5199 = vst [vmem:[#allocation3 + $0xd0] sm:$0xff] %v5167
      %5200 = vst [vmem:[#allocation3 + $0xd8] sm:$0xff] %v5168
      %5201 = vst [vmem:[#allocation3 + $0xe0] sm:$0xff] %v5169
      %5202 = vst [vmem:[#allocation3 + $0xe8] sm:$0xff] %v5170
      %5203 = vst [vmem:[#allocation3 + $0xf0] sm:$0xff] %v5171
      %5204 = vst [vmem:[#allocation3 + $0xf8] sm:$0xff] %v5172
      %s5205 = scalar_lea.vmem [#allocation2], 24
      %v5206 = vld [vmem:[%s5205] sm:$0xf]
      %v5207 = vld [vmem:[%s5205 + $0x4] sm:$0xf]
      %v5208 = vld [vmem:[%s5205 + $0xc] sm:$0xf]
      %v5209 = vld [vmem:[%s5205 + $0x10] sm:$0xf]
      %v5210 = vld [vmem:[%s5205 + $0x18] sm:$0xf]
      %v5211 = vld [vmem:[%s5205 + $0x1c] sm:$0xf]
      %v5212 = vld [vmem:[%s5205 + $0x24] sm:$0xf]
      %v5213 = vld [vmem:[%s5205 + $0x28] sm:$0xf]
      %v5214 = vld [vmem:[%s5205 + $0x30] sm:$0xf]
      %v5215 = vld [vmem:[%s5205 + $0x34] sm:$0xf]
      %v5216 = vld [vmem:[%s5205 + $0x3c] sm:$0xf]
      %v5217 = vld [vmem:[%s5205 + $0x40] sm:$0xf]
      %v5218 = vld [vmem:[%s5205 + $0x48] sm:$0xf]
      %v5219 = vld [vmem:[%s5205 + $0x4c] sm:$0xf]
      %v5220 = vld [vmem:[%s5205 + $0x54] sm:$0xf]
      %v5221 = vld [vmem:[%s5205 + $0x58] sm:$0xf]
      %v5222 = vld [vmem:[%s5205 + $0x60] sm:$0xf]
      %v5223 = vld [vmem:[%s5205 + $0x64] sm:$0xf]
      %v5224 = vld [vmem:[%s5205 + $0x6c] sm:$0xf]
      %v5225 = vld [vmem:[%s5205 + $0x70] sm:$0xf]
      %v5226 = vld [vmem:[%s5205 + $0x78] sm:$0xf]
      %v5227 = vld [vmem:[%s5205 + $0x7c] sm:$0xf]
      %v5228 = vld [vmem:[%s5205 + $0x84] sm:$0xf]
      %v5229 = vld [vmem:[%s5205 + $0x88] sm:$0xf]
      %v5230 = vld [vmem:[%s5205 + $0x90] sm:$0xf]
      %v5231 = vld [vmem:[%s5205 + $0x94] sm:$0xf]
      %v5232 = vld [vmem:[%s5205 + $0x9c] sm:$0xf]
      %v5233 = vld [vmem:[%s5205 + $0xa0] sm:$0xf]
      %v5234 = vld [vmem:[%s5205 + $0xa8] sm:$0xf]
      %v5235 = vld [vmem:[%s5205 + $0xac] sm:$0xf]
      %v5236 = vld [vmem:[%s5205 + $0xb4] sm:$0xf]
      %v5237 = vld [vmem:[%s5205 + $0xb8] sm:$0xf]
      %s5238 = scalar_lea.vmem %s2, 384
      %v5239 = vld [vmem:[%s5238] sm:$0xf]
      %v5240 = vld [vmem:[%s5238 + $0x4] sm:$0xf]
      %v5241 = vld [vmem:[%s5238 + $0x8] sm:$0xf]
      %v5242 = vld [vmem:[%s5238 + $0xc] sm:$0xf]
      %v5243 = vld [vmem:[%s5238 + $0x10] sm:$0xf]
      %v5244 = vld [vmem:[%s5238 + $0x14] sm:$0xf]
      %v5245 = vld [vmem:[%s5238 + $0x18] sm:$0xf]
      %v5246 = vld [vmem:[%s5238 + $0x1c] sm:$0xf]
      %v5247 = vld [vmem:[%s5238 + $0x20] sm:$0xf]
      %v5248 = vld [vmem:[%s5238 + $0x24] sm:$0xf]
      %v5249 = vld [vmem:[%s5238 + $0x28] sm:$0xf]
      %v5250 = vld [vmem:[%s5238 + $0x2c] sm:$0xf]
      %v5251 = vld [vmem:[%s5238 + $0x30] sm:$0xf]
      %v5252 = vld [vmem:[%s5238 + $0x34] sm:$0xf]
      %v5253 = vld [vmem:[%s5238 + $0x38] sm:$0xf]
      %v5254 = vld [vmem:[%s5238 + $0x3c] sm:$0xf]
      %v5287 = vunpack.c.l.b16 %v5206
      %v5288 = vunpack.c.l.b16 %v5207
      %v5289 = vunpack.c.l.b16 %v5208
      %v5290 = vunpack.c.l.b16 %v5209
      %v5291 = vunpack.c.l.b16 %v5210
      %v5292 = vunpack.c.l.b16 %v5211
      %v5293 = vunpack.c.l.b16 %v5212
      %v5294 = vunpack.c.l.b16 %v5213
      %v5295 = vunpack.c.l.b16 %v5214
      %v5296 = vunpack.c.l.b16 %v5215
      %v5297 = vunpack.c.l.b16 %v5216
      %v5298 = vunpack.c.l.b16 %v5217
      %v5299 = vunpack.c.l.b16 %v5218
      %v5300 = vunpack.c.l.b16 %v5219
      %v5301 = vunpack.c.l.b16 %v5220
      %v5302 = vunpack.c.l.b16 %v5221
      %v5303 = vunpack.c.l.b16 %v5222
      %v5304 = vunpack.c.l.b16 %v5223
      %v5305 = vunpack.c.l.b16 %v5224
      %v5306 = vunpack.c.l.b16 %v5225
      %v5307 = vunpack.c.l.b16 %v5226
      %v5308 = vunpack.c.l.b16 %v5227
      %v5309 = vunpack.c.l.b16 %v5228
      %v5310 = vunpack.c.l.b16 %v5229
      %v5311 = vunpack.c.l.b16 %v5230
      %v5312 = vunpack.c.l.b16 %v5231
      %v5313 = vunpack.c.l.b16 %v5232
      %v5314 = vunpack.c.l.b16 %v5233
      %v5315 = vunpack.c.l.b16 %v5234
      %v5316 = vunpack.c.l.b16 %v5235
      %v5317 = vunpack.c.l.b16 %v5236
      %v5318 = vunpack.c.l.b16 %v5237
      %v5319 = vpack.c.b16 %v5288, %v5287
      %v5320 = vpack.c.b16 %v5290, %v5289
      %v5321 = vpack.c.b16 %v5292, %v5291
      %v5322 = vpack.c.b16 %v5294, %v5293
      %v5323 = vpack.c.b16 %v5296, %v5295
      %v5324 = vpack.c.b16 %v5298, %v5297
      %v5325 = vpack.c.b16 %v5300, %v5299
      %v5326 = vpack.c.b16 %v5302, %v5301
      %v5327 = vpack.c.b16 %v5304, %v5303
      %v5328 = vpack.c.b16 %v5306, %v5305
      %v5329 = vpack.c.b16 %v5308, %v5307
      %v5330 = vpack.c.b16 %v5310, %v5309
      %v5331 = vpack.c.b16 %v5312, %v5311
      %v5332 = vpack.c.b16 %v5314, %v5313
      %v5333 = vpack.c.b16 %v5316, %v5315
      %v5334 = vpack.c.b16 %v5318, %v5317
      %v5367 = vunpack.c.l.b16 %v5239
      %v5368 = vunpack.c.l.b16 %v5240
      %v5369 = vunpack.c.l.b16 %v5241
      %v5370 = vunpack.c.l.b16 %v5242
      %v5371 = vunpack.c.l.b16 %v5243
      %v5372 = vunpack.c.l.b16 %v5244
      %v5373 = vunpack.c.l.b16 %v5245
      %v5374 = vunpack.c.l.b16 %v5246
      %v5375 = vunpack.c.l.b16 %v5247
      %v5376 = vunpack.c.l.b16 %v5248
      %v5377 = vunpack.c.l.b16 %v5249
      %v5378 = vunpack.c.l.b16 %v5250
      %v5379 = vunpack.c.l.b16 %v5251
      %v5380 = vunpack.c.l.b16 %v5252
      %v5381 = vunpack.c.l.b16 %v5253
      %v5382 = vunpack.c.l.b16 %v5254
      %v5383 = vpack.c.b16 %v5368, %v5367
      %v5384 = vpack.c.b16 %v5370, %v5369
      %v5385 = vpack.c.b16 %v5372, %v5371
      %v5386 = vpack.c.b16 %v5374, %v5373
      %v5387 = vpack.c.b16 %v5376, %v5375
      %v5388 = vpack.c.b16 %v5378, %v5377
      %v5389 = vpack.c.b16 %v5380, %v5379
      %v5390 = vpack.c.b16 %v5382, %v5381
      %5399 = vmatprep.subr.bf16.mxu0 0
      %5400 = vmatpush1.bf16.msra.mxu0 %v5383
      %5401 = vmatprep.subr.bf16.mxu0 0
      %5402 = vmatpush1.bf16.msra.mxu0 %v5384
      %5403 = vmatprep.subr.bf16.mxu0 0
      %5404 = vmatpush1.bf16.msra.mxu0 %v5385
      %5405 = vmatprep.subr.bf16.mxu0 0
      %5406 = vmatpush1.bf16.msra.mxu0 %v5386
      %5407 = vmatprep.subr.bf16.mxu0 0
      %5408 = vmatpush1.bf16.msra.mxu0 %v5387
      %5409 = vmatprep.subr.bf16.mxu0 0
      %5410 = vmatpush1.bf16.msra.mxu0 %v5388
      %5411 = vmatprep.subr.bf16.mxu0 0
      %5412 = vmatpush1.bf16.msra.mxu0 %v5389
      %5413 = vmatprep.subr.bf16.mxu0 0
      %5414 = vmatpush1.bf16.msra.mxu0 %v5390
      %5415 = vmatprep.subr.bf16.mxu0 0
      %5416 = vmatpush1.bf16.msra.mxu0 0
      %5417 = vmatprep.subr.bf16.mxu0 0
      %5418 = vmatpush1.bf16.msra.mxu0 0
      %5419 = vmatprep.subr.bf16.mxu0 0
      %5420 = vmatpush1.bf16.msra.mxu0 0
      %5421 = vmatprep.subr.bf16.mxu0 0
      %5422 = vmatpush1.bf16.msra.mxu0 0
      %5423 = vmatprep.subr.bf16.mxu0 0
      %5424 = vmatpush1.bf16.msra.mxu0 0
      %5425 = vmatprep.subr.bf16.mxu0 0
      %5426 = vmatpush1.bf16.msra.mxu0 0
      %5427 = vmatprep.subr.bf16.mxu0 0
      %5428 = vmatpush1.bf16.msra.mxu0 0
      %5429 = vmatprep.subr.bf16.mxu0 0
      %5430 = vmatpush1.bf16.msra.mxu0 0
      %5431 = vmatprep.mubr.bf16.mxu0 0
      %5432 = vmatmul.mubr.bf16.gmra.mrb[0].mxu0 %v5319
      %v5433 = vpop.f32.mrb[0].mxu0
      %v5434 = vadd.f32 0.0, %v5433
      %v5435 = vpop.f32.mrb[0].mxu0
      %v5436 = vpop.f32.mrb[0].mxu0
      %v5437 = vadd.f32 0.0, %v5436
      %v5438 = vpop.f32.mrb[0].mxu0
      %5439 = vmatprep.mubr.bf16.mxu0 0
      %5440 = vmatmul.mubr.bf16.gmra.mrb[0].mxu0 %v5320
      %v5441 = vpop.f32.mrb[0].mxu0
      %v5442 = vadd.f32 0.0, %v5441
      %v5443 = vpop.f32.mrb[0].mxu0
      %v5444 = vpop.f32.mrb[0].mxu0
      %v5445 = vadd.f32 0.0, %v5444
      %v5446 = vpop.f32.mrb[0].mxu0
      %5447 = vmatprep.mubr.bf16.mxu0 0
      %5448 = vmatmul.mubr.bf16.gmra.mrb[0].mxu0 %v5321
      %v5449 = vpop.f32.mrb[0].mxu0
      %v5450 = vadd.f32 0.0, %v5449
      %v5451 = vpop.f32.mrb[0].mxu0
      %v5452 = vpop.f32.mrb[0].mxu0
      %v5453 = vadd.f32 0.0, %v5452
      %v5454 = vpop.f32.mrb[0].mxu0
      %5455 = vmatprep.mubr.bf16.mxu0 0
      %5456 = vmatmul.mubr.bf16.gmra.mrb[0].mxu0 %v5322
      %v5457 = vpop.f32.mrb[0].mxu0
      %v5458 = vadd.f32 0.0, %v5457
      %v5459 = vpop.f32.mrb[0].mxu0
      %v5460 = vpop.f32.mrb[0].mxu0
      %v5461 = vadd.f32 0.0, %v5460
      %v5462 = vpop.f32.mrb[0].mxu0
      %5463 = vmatprep.mubr.bf16.mxu0 0
      %5464 = vmatmul.mubr.bf16.gmra.mrb[0].mxu0 %v5323
      %v5465 = vpop.f32.mrb[0].mxu0
      %v5466 = vadd.f32 0.0, %v5465
      %v5467 = vpop.f32.mrb[0].mxu0
      %v5468 = vpop.f32.mrb[0].mxu0
      %v5469 = vadd.f32 0.0, %v5468
      %v5470 = vpop.f32.mrb[0].mxu0
      %5471 = vmatprep.mubr.bf16.mxu0 0
      %5472 = vmatmul.mubr.bf16.gmra.mrb[0].mxu0 %v5324
      %v5473 = vpop.f32.mrb[0].mxu0
      %v5474 = vadd.f32 0.0, %v5473
      %v5475 = vpop.f32.mrb[0].mxu0
      %v5476 = vpop.f32.mrb[0].mxu0
      %v5477 = vadd.f32 0.0, %v5476
      %v5478 = vpop.f32.mrb[0].mxu0
      %5479 = vmatprep.mubr.bf16.mxu0 0
      %5480 = vmatmul.mubr.bf16.gmra.mrb[0].mxu0 %v5325
      %v5481 = vpop.f32.mrb[0].mxu0
      %v5482 = vadd.f32 0.0, %v5481
      %v5483 = vpop.f32.mrb[0].mxu0
      %v5484 = vpop.f32.mrb[0].mxu0
      %v5485 = vadd.f32 0.0, %v5484
      %v5486 = vpop.f32.mrb[0].mxu0
      %5487 = vmatprep.mubr.bf16.mxu0 0
      %5488 = vmatmul.mubr.bf16.gmra.mrb[0].mxu0 %v5326
      %v5489 = vpop.f32.mrb[0].mxu0
      %v5490 = vadd.f32 0.0, %v5489
      %v5491 = vpop.f32.mrb[0].mxu0
      %v5492 = vpop.f32.mrb[0].mxu0
      %v5493 = vadd.f32 0.0, %v5492
      %v5494 = vpop.f32.mrb[0].mxu0
      %5495 = vmatprep.mubr.bf16.mxu0 0
      %5496 = vmatmul.mubr.bf16.gmra.mrb[0].mxu0 %v5327
      %v5497 = vpop.f32.mrb[0].mxu0
      %v5498 = vadd.f32 0.0, %v5497
      %v5499 = vpop.f32.mrb[0].mxu0
      %v5500 = vpop.f32.mrb[0].mxu0
      %v5501 = vadd.f32 0.0, %v5500
      %v5502 = vpop.f32.mrb[0].mxu0
      %5503 = vmatprep.mubr.bf16.mxu0 0
      %5504 = vmatmul.mubr.bf16.gmra.mrb[0].mxu0 %v5328
      %v5505 = vpop.f32.mrb[0].mxu0
      %v5506 = vadd.f32 0.0, %v5505
      %v5507 = vpop.f32.mrb[0].mxu0
      %v5508 = vpop.f32.mrb[0].mxu0
      %v5509 = vadd.f32 0.0, %v5508
      %v5510 = vpop.f32.mrb[0].mxu0
      %5511 = vmatprep.mubr.bf16.mxu0 0
      %5512 = vmatmul.mubr.bf16.gmra.mrb[0].mxu0 %v5329
      %v5513 = vpop.f32.mrb[0].mxu0
      %v5514 = vadd.f32 0.0, %v5513
      %v5515 = vpop.f32.mrb[0].mxu0
      %v5516 = vpop.f32.mrb[0].mxu0
      %v5517 = vadd.f32 0.0, %v5516
      %v5518 = vpop.f32.mrb[0].mxu0
      %5519 = vmatprep.mubr.bf16.mxu0 0
      %5520 = vmatmul.mubr.bf16.gmra.mrb[0].mxu0 %v5330
      %v5521 = vpop.f32.mrb[0].mxu0
      %v5522 = vadd.f32 0.0, %v5521
      %v5523 = vpop.f32.mrb[0].mxu0
      %v5524 = vpop.f32.mrb[0].mxu0
      %v5525 = vadd.f32 0.0, %v5524
      %v5526 = vpop.f32.mrb[0].mxu0
      %5527 = vmatprep.mubr.bf16.mxu0 0
      %5528 = vmatmul.mubr.bf16.gmra.mrb[0].mxu0 %v5331
      %v5529 = vpop.f32.mrb[0].mxu0
      %v5530 = vadd.f32 0.0, %v5529
      %v5531 = vpop.f32.mrb[0].mxu0
      %v5532 = vpop.f32.mrb[0].mxu0
      %v5533 = vadd.f32 0.0, %v5532
      %v5534 = vpop.f32.mrb[0].mxu0
      %5535 = vmatprep.mubr.bf16.mxu0 0
      %5536 = vmatmul.mubr.bf16.gmra.mrb[0].mxu0 %v5332
      %v5537 = vpop.f32.mrb[0].mxu0
      %v5538 = vadd.f32 0.0, %v5537
      %v5539 = vpop.f32.mrb[0].mxu0
      %v5540 = vpop.f32.mrb[0].mxu0
      %v5541 = vadd.f32 0.0, %v5540
      %v5542 = vpop.f32.mrb[0].mxu0
      %5543 = vmatprep.mubr.bf16.mxu0 0
      %5544 = vmatmul.mubr.bf16.gmra.mrb[0].mxu0 %v5333
      %v5545 = vpop.f32.mrb[0].mxu0
      %v5546 = vadd.f32 0.0, %v5545
      %v5547 = vpop.f32.mrb[0].mxu0
      %v5548 = vpop.f32.mrb[0].mxu0
      %v5549 = vadd.f32 0.0, %v5548
      %v5550 = vpop.f32.mrb[0].mxu0
      %5551 = vmatprep.mubr.bf16.mxu0 0
      %5552 = vmatmul.mubr.bf16.gmra.mrb[0].mxu0 %v5334
      %v5553 = vpop.f32.mrb[0].mxu0
      %v5554 = vadd.f32 0.0, %v5553
      %v5555 = vpop.f32.mrb[0].mxu0
      %v5556 = vpop.f32.mrb[0].mxu0
      %v5557 = vadd.f32 0.0, %v5556
      %v5558 = vpop.f32.mrb[0].mxu0
      %5559 = vdwg.mxu0
      %v5560 = vld [vmem:[#allocation3] sm:$0xff]
      %v5561 = vld [vmem:[#allocation3 + $0x8] sm:$0xff]
      %v5562 = vld [vmem:[#allocation3 + $0x10] sm:$0xff]
      %v5563 = vld [vmem:[#allocation3 + $0x18] sm:$0xff]
      %v5564 = vld [vmem:[#allocation3 + $0x20] sm:$0xff]
      %v5565 = vld [vmem:[#allocation3 + $0x28] sm:$0xff]
      %v5566 = vld [vmem:[#allocation3 + $0x30] sm:$0xff]
      %v5567 = vld [vmem:[#allocation3 + $0x38] sm:$0xff]
      %v5568 = vld [vmem:[#allocation3 + $0x40] sm:$0xff]
      %v5569 = vld [vmem:[#allocation3 + $0x48] sm:$0xff]
      %v5570 = vld [vmem:[#allocation3 + $0x50] sm:$0xff]
      %v5571 = vld [vmem:[#allocation3 + $0x58] sm:$0xff]
      %v5572 = vld [vmem:[#allocation3 + $0x60] sm:$0xff]
      %v5573 = vld [vmem:[#allocation3 + $0x68] sm:$0xff]
      %v5574 = vld [vmem:[#allocation3 + $0x70] sm:$0xff]
      %v5575 = vld [vmem:[#allocation3 + $0x78] sm:$0xff]
      %v5576 = vld [vmem:[#allocation3 + $0x80] sm:$0xff]
      %v5577 = vld [vmem:[#allocation3 + $0x88] sm:$0xff]
      %v5578 = vld [vmem:[#allocation3 + $0x90] sm:$0xff]
      %v5579 = vld [vmem:[#allocation3 + $0x98] sm:$0xff]
      %v5580 = vld [vmem:[#allocation3 + $0xa0] sm:$0xff]
      %v5581 = vld [vmem:[#allocation3 + $0xa8] sm:$0xff]
      %v5582 = vld [vmem:[#allocation3 + $0xb0] sm:$0xff]
      %v5583 = vld [vmem:[#allocation3 + $0xb8] sm:$0xff]
      %v5584 = vld [vmem:[#allocation3 + $0xc0] sm:$0xff]
      %v5585 = vld [vmem:[#allocation3 + $0xc8] sm:$0xff]
      %v5586 = vld [vmem:[#allocation3 + $0xd0] sm:$0xff]
      %v5587 = vld [vmem:[#allocation3 + $0xd8] sm:$0xff]
      %v5588 = vld [vmem:[#allocation3 + $0xe0] sm:$0xff]
      %v5589 = vld [vmem:[#allocation3 + $0xe8] sm:$0xff]
      %v5590 = vld [vmem:[#allocation3 + $0xf0] sm:$0xff]
      %v5591 = vld [vmem:[#allocation3 + $0xf8] sm:$0xff]
      %v5592 = vadd.f32 %v5560, %v5434
      %v5593 = vadd.f32 %v5561, %v5437
      %v5594 = vadd.f32 %v5562, %v5442
      %v5595 = vadd.f32 %v5563, %v5445
      %v5596 = vadd.f32 %v5564, %v5450
      %v5597 = vadd.f32 %v5565, %v5453
      %v5598 = vadd.f32 %v5566, %v5458
      %v5599 = vadd.f32 %v5567, %v5461
      %v5600 = vadd.f32 %v5568, %v5466
      %v5601 = vadd.f32 %v5569, %v5469
      %v5602 = vadd.f32 %v5570, %v5474
      %v5603 = vadd.f32 %v5571, %v5477
      %v5604 = vadd.f32 %v5572, %v5482
      %v5605 = vadd.f32 %v5573, %v5485
      %v5606 = vadd.f32 %v5574, %v5490
      %v5607 = vadd.f32 %v5575, %v5493
      %v5608 = vadd.f32 %v5576, %v5498
      %v5609 = vadd.f32 %v5577, %v5501
      %v5610 = vadd.f32 %v5578, %v5506
      %v5611 = vadd.f32 %v5579, %v5509
      %v5612 = vadd.f32 %v5580, %v5514
      %v5613 = vadd.f32 %v5581, %v5517
      %v5614 = vadd.f32 %v5582, %v5522
      %v5615 = vadd.f32 %v5583, %v5525
      %v5616 = vadd.f32 %v5584, %v5530
      %v5617 = vadd.f32 %v5585, %v5533
      %v5618 = vadd.f32 %v5586, %v5538
      %v5619 = vadd.f32 %v5587, %v5541
      %v5620 = vadd.f32 %v5588, %v5546
      %v5621 = vadd.f32 %v5589, %v5549
      %v5622 = vadd.f32 %v5590, %v5554
      %v5623 = vadd.f32 %v5591, %v5557
      %5624 = vst [vmem:[#allocation3] sm:$0xff] %v5592
      %5625 = vst [vmem:[#allocation3 + $0x8] sm:$0xff] %v5593
      %5626 = vst [vmem:[#allocation3 + $0x10] sm:$0xff] %v5594
      %5627 = vst [vmem:[#allocation3 + $0x18] sm:$0xff] %v5595
      %5628 = vst [vmem:[#allocation3 + $0x20] sm:$0xff] %v5596
      %5629 = vst [vmem:[#allocation3 + $0x28] sm:$0xff] %v5597
      %5630 = vst [vmem:[#allocation3 + $0x30] sm:$0xff] %v5598
      %5631 = vst [vmem:[#allocation3 + $0x38] sm:$0xff] %v5599
      %5632 = vst [vmem:[#allocation3 + $0x40] sm:$0xff] %v5600
      %5633 = vst [vmem:[#allocation3 + $0x48] sm:$0xff] %v5601
      %5634 = vst [vmem:[#allocation3 + $0x50] sm:$0xff] %v5602
      %5635 = vst [vmem:[#allocation3 + $0x58] sm:$0xff] %v5603
      %5636 = vst [vmem:[#allocation3 + $0x60] sm:$0xff] %v5604
      %5637 = vst [vmem:[#allocation3 + $0x68] sm:$0xff] %v5605
      %5638 = vst [vmem:[#allocation3 + $0x70] sm:$0xff] %v5606
      %5639 = vst [vmem:[#allocation3 + $0x78] sm:$0xff] %v5607
      %5640 = vst [vmem:[#allocation3 + $0x80] sm:$0xff] %v5608
      %5641 = vst [vmem:[#allocation3 + $0x88] sm:$0xff] %v5609
      %5642 = vst [vmem:[#allocation3 + $0x90] sm:$0xff] %v5610
      %5643 = vst [vmem:[#allocation3 + $0x98] sm:$0xff] %v5611
      %5644 = vst [vmem:[#allocation3 + $0xa0] sm:$0xff] %v5612
      %5645 = vst [vmem:[#allocation3 + $0xa8] sm:$0xff] %v5613
      %5646 = vst [vmem:[#allocation3 + $0xb0] sm:$0xff] %v5614
      %5647 = vst [vmem:[#allocation3 + $0xb8] sm:$0xff] %v5615
      %5648 = vst [vmem:[#allocation3 + $0xc0] sm:$0xff] %v5616
      %5649 = vst [vmem:[#allocation3 + $0xc8] sm:$0xff] %v5617
      %5650 = vst [vmem:[#allocation3 + $0xd0] sm:$0xff] %v5618
      %5651 = vst [vmem:[#allocation3 + $0xd8] sm:$0xff] %v5619
      %5652 = vst [vmem:[#allocation3 + $0xe0] sm:$0xff] %v5620
      %5653 = vst [vmem:[#allocation3 + $0xe8] sm:$0xff] %v5621
      %5654 = vst [vmem:[#allocation3 + $0xf0] sm:$0xff] %v5622
      %5655 = vst [vmem:[#allocation3 + $0xf8] sm:$0xff] %v5623
      %v5656 = vld [vmem:[%s5205] sm:$0xf]
      %v5657 = vld [vmem:[%s5205 + $0x4] sm:$0xf]
      %v5658 = vld [vmem:[%s5205 + $0x8] sm:$0x1]
      %v5659 = vld [vmem:[%s5205 + $0xc] sm:$0xf]
      %v5660 = vld [vmem:[%s5205 + $0x10] sm:$0xf]
      %v5661 = vld [vmem:[%s5205 + $0x14] sm:$0x1]
      %v5662 = vld [vmem:[%s5205 + $0x18] sm:$0xf]
      %v5663 = vld [vmem:[%s5205 + $0x1c] sm:$0xf]
      %v5664 = vld [vmem:[%s5205 + $0x20] sm:$0x1]
      %v5665 = vld [vmem:[%s5205 + $0x24] sm:$0xf]
      %v5666 = vld [vmem:[%s5205 + $0x28] sm:$0xf]
      %v5667 = vld [vmem:[%s5205 + $0x2c] sm:$0x1]
      %v5668 = vld [vmem:[%s5205 + $0x30] sm:$0xf]
      %v5669 = vld [vmem:[%s5205 + $0x34] sm:$0xf]
      %v5670 = vld [vmem:[%s5205 + $0x38] sm:$0x1]
      %v5671 = vld [vmem:[%s5205 + $0x3c] sm:$0xf]
      %v5672 = vld [vmem:[%s5205 + $0x40] sm:$0xf]
      %v5673 = vld [vmem:[%s5205 + $0x44] sm:$0x1]
      %v5674 = vld [vmem:[%s5205 + $0x48] sm:$0xf]
      %v5675 = vld [vmem:[%s5205 + $0x4c] sm:$0xf]
      %v5676 = vld [vmem:[%s5205 + $0x50] sm:$0x1]
      %v5677 = vld [vmem:[%s5205 + $0x54] sm:$0xf]
      %v5678 = vld [vmem:[%s5205 + $0x58] sm:$0xf]
      %v5679 = vld [vmem:[%s5205 + $0x5c] sm:$0x1]
      %v5680 = vld [vmem:[%s5205 + $0x60] sm:$0xf]
      %v5681 = vld [vmem:[%s5205 + $0x64] sm:$0xf]
      %v5682 = vld [vmem:[%s5205 + $0x68] sm:$0x1]
      %v5683 = vld [vmem:[%s5205 + $0x6c] sm:$0xf]
      %v5684 = vld [vmem:[%s5205 + $0x70] sm:$0xf]
      %v5685 = vld [vmem:[%s5205 + $0x74] sm:$0x1]
      %v5686 = vld [vmem:[%s5205 + $0x78] sm:$0xf]
      %v5687 = vld [vmem:[%s5205 + $0x7c] sm:$0xf]
      %v5688 = vld [vmem:[%s5205 + $0x80] sm:$0x1]
      %v5689 = vld [vmem:[%s5205 + $0x84] sm:$0xf]
      %v5690 = vld [vmem:[%s5205 + $0x88] sm:$0xf]
      %v5691 = vld [vmem:[%s5205 + $0x8c] sm:$0x1]
      %v5692 = vld [vmem:[%s5205 + $0x90] sm:$0xf]
      %v5693 = vld [vmem:[%s5205 + $0x94] sm:$0xf]
      %v5694 = vld [vmem:[%s5205 + $0x98] sm:$0x1]
      %v5695 = vld [vmem:[%s5205 + $0x9c] sm:$0xf]
      %v5696 = vld [vmem:[%s5205 + $0xa0] sm:$0xf]
      %v5697 = vld [vmem:[%s5205 + $0xa4] sm:$0x1]
      %v5698 = vld [vmem:[%s5205 + $0xa8] sm:$0xf]
      %v5699 = vld [vmem:[%s5205 + $0xac] sm:$0xf]
      %v5700 = vld [vmem:[%s5205 + $0xb0] sm:$0x1]
      %v5701 = vld [vmem:[%s5205 + $0xb4] sm:$0xf]
      %v5702 = vld [vmem:[%s5205 + $0xb8] sm:$0xf]
      %v5703 = vld [vmem:[%s5205 + $0xbc] sm:$0x1]
      %v5705 = vshrl.u32 %v5656, 16
      %v5707 = vrot.slane %v5705, 4
      %v5708 = vshll.u32 %v5656, 16
      %v5710 = vrot.slane %v5708, 5
      %v5711 = vor.u32 %v5707, %v5710
      %v5712 = vrot.slane %v5711, 4
      %v5714 = vshll.u32 %v5657, 16
      %v5716 = vrot.slane %v5714, 5
      %v5717 = vsel %vm1975, %v5712, %v5716
      %v5718 = vshrl.u32 %v5657, 16
      %v5720 = vrot.slane %v5718, 4
      %v5721 = vor.u32 %v5720, %v5716
      %v5722 = vrot.slane %v5721, 4
      %v5724 = vshll.u32 %v5658, 16
      %v5726 = vrot.slane %v5724, 5
      %v5727 = vsel %vm1975, %v5722, %v5726
      %v5729 = vshrl.u32 %v5659, 16
      %v5731 = vrot.slane %v5729, 4
      %v5732 = vshll.u32 %v5659, 16
      %v5734 = vrot.slane %v5732, 5
      %v5735 = vor.u32 %v5731, %v5734
      %v5736 = vrot.slane %v5735, 4
      %v5738 = vshll.u32 %v5660, 16
      %v5740 = vrot.slane %v5738, 5
      %v5741 = vsel %vm1975, %v5736, %v5740
      %v5742 = vshrl.u32 %v5660, 16
      %v5744 = vrot.slane %v5742, 4
      %v5745 = vor.u32 %v5744, %v5740
      %v5746 = vrot.slane %v5745, 4
      %v5748 = vshll.u32 %v5661, 16
      %v5750 = vrot.slane %v5748, 5
      %v5751 = vsel %vm1975, %v5746, %v5750
      %v5753 = vshrl.u32 %v5662, 16
      %v5755 = vrot.slane %v5753, 4
      %v5756 = vshll.u32 %v5662, 16
      %v5758 = vrot.slane %v5756, 5
      %v5759 = vor.u32 %v5755, %v5758
      %v5760 = vrot.slane %v5759, 4
      %v5762 = vshll.u32 %v5663, 16
      %v5764 = vrot.slane %v5762, 5
      %v5765 = vsel %vm1975, %v5760, %v5764
      %v5766 = vshrl.u32 %v5663, 16
      %v5768 = vrot.slane %v5766, 4
      %v5769 = vor.u32 %v5768, %v5764
      %v5770 = vrot.slane %v5769, 4
      %v5772 = vshll.u32 %v5664, 16
      %v5774 = vrot.slane %v5772, 5
      %v5775 = vsel %vm1975, %v5770, %v5774
      %v5777 = vshrl.u32 %v5665, 16
      %v5779 = vrot.slane %v5777, 4
      %v5780 = vshll.u32 %v5665, 16
      %v5782 = vrot.slane %v5780, 5
      %v5783 = vor.u32 %v5779, %v5782
      %v5784 = vrot.slane %v5783, 4
      %v5786 = vshll.u32 %v5666, 16
      %v5788 = vrot.slane %v5786, 5
      %v5789 = vsel %vm1975, %v5784, %v5788
      %v5790 = vshrl.u32 %v5666, 16
      %v5792 = vrot.slane %v5790, 4
      %v5793 = vor.u32 %v5792, %v5788
      %v5794 = vrot.slane %v5793, 4
      %v5796 = vshll.u32 %v5667, 16
      %v5798 = vrot.slane %v5796, 5
      %v5799 = vsel %vm1975, %v5794, %v5798
      %v5801 = vshrl.u32 %v5668, 16
      %v5803 = vrot.slane %v5801, 4
      %v5804 = vshll.u32 %v5668, 16
      %v5806 = vrot.slane %v5804, 5
      %v5807 = vor.u32 %v5803, %v5806
      %v5808 = vrot.slane %v5807, 4
      %v5810 = vshll.u32 %v5669, 16
      %v5812 = vrot.slane %v5810, 5
      %v5813 = vsel %vm1975, %v5808, %v5812
      %v5814 = vshrl.u32 %v5669, 16
      %v5816 = vrot.slane %v5814, 4
      %v5817 = vor.u32 %v5816, %v5812
      %v5818 = vrot.slane %v5817, 4
      %v5820 = vshll.u32 %v5670, 16
      %v5822 = vrot.slane %v5820, 5
      %v5823 = vsel %vm1975, %v5818, %v5822
      %v5825 = vshrl.u32 %v5671, 16
      %v5827 = vrot.slane %v5825, 4
      %v5828 = vshll.u32 %v5671, 16
      %v5830 = vrot.slane %v5828, 5
      %v5831 = vor.u32 %v5827, %v5830
      %v5832 = vrot.slane %v5831, 4
      %v5834 = vshll.u32 %v5672, 16
      %v5836 = vrot.slane %v5834, 5
      %v5837 = vsel %vm1975, %v5832, %v5836
      %v5838 = vshrl.u32 %v5672, 16
      %v5840 = vrot.slane %v5838, 4
      %v5841 = vor.u32 %v5840, %v5836
      %v5842 = vrot.slane %v5841, 4
      %v5844 = vshll.u32 %v5673, 16
      %v5846 = vrot.slane %v5844, 5
      %v5847 = vsel %vm1975, %v5842, %v5846
      %v5849 = vshrl.u32 %v5674, 16
      %v5851 = vrot.slane %v5849, 4
      %v5852 = vshll.u32 %v5674, 16
      %v5854 = vrot.slane %v5852, 5
      %v5855 = vor.u32 %v5851, %v5854
      %v5856 = vrot.slane %v5855, 4
      %v5858 = vshll.u32 %v5675, 16
      %v5860 = vrot.slane %v5858, 5
      %v5861 = vsel %vm1975, %v5856, %v5860
      %v5862 = vshrl.u32 %v5675, 16
      %v5864 = vrot.slane %v5862, 4
      %v5865 = vor.u32 %v5864, %v5860
      %v5866 = vrot.slane %v5865, 4
      %v5868 = vshll.u32 %v5676, 16
      %v5870 = vrot.slane %v5868, 5
      %v5871 = vsel %vm1975, %v5866, %v5870
      %v5873 = vshrl.u32 %v5677, 16
      %v5875 = vrot.slane %v5873, 4
      %v5876 = vshll.u32 %v5677, 16
      %v5878 = vrot.slane %v5876, 5
      %v5879 = vor.u32 %v5875, %v5878
      %v5880 = vrot.slane %v5879, 4
      %v5882 = vshll.u32 %v5678, 16
      %v5884 = vrot.slane %v5882, 5
      %v5885 = vsel %vm1975, %v5880, %v5884
      %v5886 = vshrl.u32 %v5678, 16
      %v5888 = vrot.slane %v5886, 4
      %v5889 = vor.u32 %v5888, %v5884
      %v5890 = vrot.slane %v5889, 4
      %v5892 = vshll.u32 %v5679, 16
      %v5894 = vrot.slane %v5892, 5
      %v5895 = vsel %vm1975, %v5890, %v5894
      %v5897 = vshrl.u32 %v5680, 16
      %v5899 = vrot.slane %v5897, 4
      %v5900 = vshll.u32 %v5680, 16
      %v5902 = vrot.slane %v5900, 5
      %v5903 = vor.u32 %v5899, %v5902
      %v5904 = vrot.slane %v5903, 4
      %v5906 = vshll.u32 %v5681, 16
      %v5908 = vrot.slane %v5906, 5
      %v5909 = vsel %vm1975, %v5904, %v5908
      %v5910 = vshrl.u32 %v5681, 16
      %v5912 = vrot.slane %v5910, 4
      %v5913 = vor.u32 %v5912, %v5908
      %v5914 = vrot.slane %v5913, 4
      %v5916 = vshll.u32 %v5682, 16
      %v5918 = vrot.slane %v5916, 5
      %v5919 = vsel %vm1975, %v5914, %v5918
      %v5921 = vshrl.u32 %v5683, 16
      %v5923 = vrot.slane %v5921, 4
      %v5924 = vshll.u32 %v5683, 16
      %v5926 = vrot.slane %v5924, 5
      %v5927 = vor.u32 %v5923, %v5926
      %v5928 = vrot.slane %v5927, 4
      %v5930 = vshll.u32 %v5684, 16
      %v5932 = vrot.slane %v5930, 5
      %v5933 = vsel %vm1975, %v5928, %v5932
      %v5934 = vshrl.u32 %v5684, 16
      %v5936 = vrot.slane %v5934, 4
      %v5937 = vor.u32 %v5936, %v5932
      %v5938 = vrot.slane %v5937, 4
      %v5940 = vshll.u32 %v5685, 16
      %v5942 = vrot.slane %v5940, 5
      %v5943 = vsel %vm1975, %v5938, %v5942
      %v5945 = vshrl.u32 %v5686, 16
      %v5947 = vrot.slane %v5945, 4
      %v5948 = vshll.u32 %v5686, 16
      %v5950 = vrot.slane %v5948, 5
      %v5951 = vor.u32 %v5947, %v5950
      %v5952 = vrot.slane %v5951, 4
      %v5954 = vshll.u32 %v5687, 16
      %v5956 = vrot.slane %v5954, 5
      %v5957 = vsel %vm1975, %v5952, %v5956
      %v5958 = vshrl.u32 %v5687, 16
      %v5960 = vrot.slane %v5958, 4
      %v5961 = vor.u32 %v5960, %v5956
      %v5962 = vrot.slane %v5961, 4
      %v5964 = vshll.u32 %v5688, 16
      %v5966 = vrot.slane %v5964, 5
      %v5967 = vsel %vm1975, %v5962, %v5966
      %v5969 = vshrl.u32 %v5689, 16
      %v5971 = vrot.slane %v5969, 4
      %v5972 = vshll.u32 %v5689, 16
      %v5974 = vrot.slane %v5972, 5
      %v5975 = vor.u32 %v5971, %v5974
      %v5976 = vrot.slane %v5975, 4
      %v5978 = vshll.u32 %v5690, 16
      %v5980 = vrot.slane %v5978, 5
      %v5981 = vsel %vm1975, %v5976, %v5980
      %v5982 = vshrl.u32 %v5690, 16
      %v5984 = vrot.slane %v5982, 4
      %v5985 = vor.u32 %v5984, %v5980
      %v5986 = vrot.slane %v5985, 4
      %v5988 = vshll.u32 %v5691, 16
      %v5990 = vrot.slane %v5988, 5
      %v5991 = vsel %vm1975, %v5986, %v5990
      %v5993 = vshrl.u32 %v5692, 16
      %v5995 = vrot.slane %v5993, 4
      %v5996 = vshll.u32 %v5692, 16
      %v5998 = vrot.slane %v5996, 5
      %v5999 = vor.u32 %v5995, %v5998
      %v6000 = vrot.slane %v5999, 4
      %v6002 = vshll.u32 %v5693, 16
      %v6004 = vrot.slane %v6002, 5
      %v6005 = vsel %vm1975, %v6000, %v6004
      %v6006 = vshrl.u32 %v5693, 16
      %v6008 = vrot.slane %v6006, 4
      %v6009 = vor.u32 %v6008, %v6004
      %v6010 = vrot.slane %v6009, 4
      %v6012 = vshll.u32 %v5694, 16
      %v6014 = vrot.slane %v6012, 5
      %v6015 = vsel %vm1975, %v6010, %v6014
      %v6017 = vshrl.u32 %v5695, 16
      %v6019 = vrot.slane %v6017, 4
      %v6020 = vshll.u32 %v5695, 16
      %v6022 = vrot.slane %v6020, 5
      %v6023 = vor.u32 %v6019, %v6022
      %v6024 = vrot.slane %v6023, 4
      %v6026 = vshll.u32 %v5696, 16
      %v6028 = vrot.slane %v6026, 5
      %v6029 = vsel %vm1975, %v6024, %v6028
      %v6030 = vshrl.u32 %v5696, 16
      %v6032 = vrot.slane %v6030, 4
      %v6033 = vor.u32 %v6032, %v6028
      %v6034 = vrot.slane %v6033, 4
      %v6036 = vshll.u32 %v5697, 16
      %v6038 = vrot.slane %v6036, 5
      %v6039 = vsel %vm1975, %v6034, %v6038
      %v6041 = vshrl.u32 %v5698, 16
      %v6043 = vrot.slane %v6041, 4
      %v6044 = vshll.u32 %v5698, 16
      %v6046 = vrot.slane %v6044, 5
      %v6047 = vor.u32 %v6043, %v6046
      %v6048 = vrot.slane %v6047, 4
      %v6050 = vshll.u32 %v5699, 16
      %v6052 = vrot.slane %v6050, 5
      %v6053 = vsel %vm1975, %v6048, %v6052
      %v6054 = vshrl.u32 %v5699, 16
      %v6056 = vrot.slane %v6054, 4
      %v6057 = vor.u32 %v6056, %v6052
      %v6058 = vrot.slane %v6057, 4
      %v6060 = vshll.u32 %v5700, 16
      %v6062 = vrot.slane %v6060, 5
      %v6063 = vsel %vm1975, %v6058, %v6062
      %v6065 = vshrl.u32 %v5701, 16
      %v6067 = vrot.slane %v6065, 4
      %v6068 = vshll.u32 %v5701, 16
      %v6070 = vrot.slane %v6068, 5
      %v6071 = vor.u32 %v6067, %v6070
      %v6072 = vrot.slane %v6071, 4
      %v6074 = vshll.u32 %v5702, 16
      %v6076 = vrot.slane %v6074, 5
      %v6077 = vsel %vm1975, %v6072, %v6076
      %v6078 = vshrl.u32 %v5702, 16
      %v6080 = vrot.slane %v6078, 4
      %v6081 = vor.u32 %v6080, %v6076
      %v6082 = vrot.slane %v6081, 4
      %v6084 = vshll.u32 %v5703, 16
      %v6086 = vrot.slane %v6084, 5
      %v6087 = vsel %vm1975, %v6082, %v6086
      %s6088 = scalar_lea.vmem %s2, 448
      %v6089 = vld [vmem:[%s6088] sm:$0xf]
      %v6090 = vld [vmem:[%s6088 + $0x4] sm:$0xf]
      %v6091 = vld [vmem:[%s6088 + $0x8] sm:$0xf]
      %v6092 = vld [vmem:[%s6088 + $0xc] sm:$0xf]
      %v6093 = vld [vmem:[%s6088 + $0x10] sm:$0xf]
      %v6094 = vld [vmem:[%s6088 + $0x14] sm:$0xf]
      %v6095 = vld [vmem:[%s6088 + $0x18] sm:$0xf]
      %v6096 = vld [vmem:[%s6088 + $0x1c] sm:$0xf]
      %v6097 = vld [vmem:[%s6088 + $0x20] sm:$0xf]
      %v6098 = vld [vmem:[%s6088 + $0x24] sm:$0xf]
      %v6099 = vld [vmem:[%s6088 + $0x28] sm:$0xf]
      %v6100 = vld [vmem:[%s6088 + $0x2c] sm:$0xf]
      %v6101 = vld [vmem:[%s6088 + $0x30] sm:$0xf]
      %v6102 = vld [vmem:[%s6088 + $0x34] sm:$0xf]
      %v6103 = vld [vmem:[%s6088 + $0x38] sm:$0xf]
      %v6104 = vld [vmem:[%s6088 + $0x3c] sm:$0xf]
      %v6105 = vunpack.c.l.b16 %v5717
      %v6106 = vunpack.c.l.b16 %v5727
      %v6107 = vunpack.c.l.b16 %v5741
      %v6108 = vunpack.c.l.b16 %v5751
      %v6109 = vunpack.c.l.b16 %v5765
      %v6110 = vunpack.c.l.b16 %v5775
      %v6111 = vunpack.c.l.b16 %v5789
      %v6112 = vunpack.c.l.b16 %v5799
      %v6113 = vunpack.c.l.b16 %v5813
      %v6114 = vunpack.c.l.b16 %v5823
      %v6115 = vunpack.c.l.b16 %v5837
      %v6116 = vunpack.c.l.b16 %v5847
      %v6117 = vunpack.c.l.b16 %v5861
      %v6118 = vunpack.c.l.b16 %v5871
      %v6119 = vunpack.c.l.b16 %v5885
      %v6120 = vunpack.c.l.b16 %v5895
      %v6121 = vunpack.c.l.b16 %v5909
      %v6122 = vunpack.c.l.b16 %v5919
      %v6123 = vunpack.c.l.b16 %v5933
      %v6124 = vunpack.c.l.b16 %v5943
      %v6125 = vunpack.c.l.b16 %v5957
      %v6126 = vunpack.c.l.b16 %v5967
      %v6127 = vunpack.c.l.b16 %v5981
      %v6128 = vunpack.c.l.b16 %v5991
      %v6129 = vunpack.c.l.b16 %v6005
      %v6130 = vunpack.c.l.b16 %v6015
      %v6131 = vunpack.c.l.b16 %v6029
      %v6132 = vunpack.c.l.b16 %v6039
      %v6133 = vunpack.c.l.b16 %v6053
      %v6134 = vunpack.c.l.b16 %v6063
      %v6135 = vunpack.c.l.b16 %v6077
      %v6136 = vunpack.c.l.b16 %v6087
      %v6137 = vpack.c.b16 %v6106, %v6105
      %v6138 = vpack.c.b16 %v6108, %v6107
      %v6139 = vpack.c.b16 %v6110, %v6109
      %v6140 = vpack.c.b16 %v6112, %v6111
      %v6141 = vpack.c.b16 %v6114, %v6113
      %v6142 = vpack.c.b16 %v6116, %v6115
      %v6143 = vpack.c.b16 %v6118, %v6117
      %v6144 = vpack.c.b16 %v6120, %v6119
      %v6145 = vpack.c.b16 %v6122, %v6121
      %v6146 = vpack.c.b16 %v6124, %v6123
      %v6147 = vpack.c.b16 %v6126, %v6125
      %v6148 = vpack.c.b16 %v6128, %v6127
      %v6149 = vpack.c.b16 %v6130, %v6129
      %v6150 = vpack.c.b16 %v6132, %v6131
      %v6151 = vpack.c.b16 %v6134, %v6133
      %v6152 = vpack.c.b16 %v6136, %v6135
      %v6185 = vunpack.c.l.b16 %v6089
      %v6186 = vunpack.c.l.b16 %v6090
      %v6187 = vunpack.c.l.b16 %v6091
      %v6188 = vunpack.c.l.b16 %v6092
      %v6189 = vunpack.c.l.b16 %v6093
      %v6190 = vunpack.c.l.b16 %v6094
      %v6191 = vunpack.c.l.b16 %v6095
      %v6192 = vunpack.c.l.b16 %v6096
      %v6193 = vunpack.c.l.b16 %v6097
      %v6194 = vunpack.c.l.b16 %v6098
      %v6195 = vunpack.c.l.b16 %v6099
      %v6196 = vunpack.c.l.b16 %v6100
      %v6197 = vunpack.c.l.b16 %v6101
      %v6198 = vunpack.c.l.b16 %v6102
      %v6199 = vunpack.c.l.b16 %v6103
      %v6200 = vunpack.c.l.b16 %v6104
      %v6201 = vpack.c.b16 %v6186, %v6185
      %v6202 = vpack.c.b16 %v6188, %v6187
      %v6203 = vpack.c.b16 %v6190, %v6189
      %v6204 = vpack.c.b16 %v6192, %v6191
      %v6205 = vpack.c.b16 %v6194, %v6193
      %v6206 = vpack.c.b16 %v6196, %v6195
      %v6207 = vpack.c.b16 %v6198, %v6197
      %v6208 = vpack.c.b16 %v6200, %v6199
      %6217 = vmatprep.subr.bf16.mxu0 0
      %6218 = vmatpush1.bf16.msra.mxu0 %v6201
      %6219 = vmatprep.subr.bf16.mxu0 0
      %6220 = vmatpush1.bf16.msra.mxu0 %v6202
      %6221 = vmatprep.subr.bf16.mxu0 0
      %6222 = vmatpush1.bf16.msra.mxu0 %v6203
      %6223 = vmatprep.subr.bf16.mxu0 0
      %6224 = vmatpush1.bf16.msra.mxu0 %v6204
      %6225 = vmatprep.subr.bf16.mxu0 0
      %6226 = vmatpush1.bf16.msra.mxu0 %v6205
      %6227 = vmatprep.subr.bf16.mxu0 0
      %6228 = vmatpush1.bf16.msra.mxu0 %v6206
      %6229 = vmatprep.subr.bf16.mxu0 0
      %6230 = vmatpush1.bf16.msra.mxu0 %v6207
      %6231 = vmatprep.subr.bf16.mxu0 0
      %6232 = vmatpush1.bf16.msra.mxu0 %v6208
      %6233 = vmatprep.subr.bf16.mxu0 0
      %6234 = vmatpush1.bf16.msra.mxu0 0
      %6235 = vmatprep.subr.bf16.mxu0 0
      %6236 = vmatpush1.bf16.msra.mxu0 0
      %6237 = vmatprep.subr.bf16.mxu0 0
      %6238 = vmatpush1.bf16.msra.mxu0 0
      %6239 = vmatprep.subr.bf16.mxu0 0
      %6240 = vmatpush1.bf16.msra.mxu0 0
      %6241 = vmatprep.subr.bf16.mxu0 0
      %6242 = vmatpush1.bf16.msra.mxu0 0
      %6243 = vmatprep.subr.bf16.mxu0 0
      %6244 = vmatpush1.bf16.msra.mxu0 0
      %6245 = vmatprep.subr.bf16.mxu0 0
      %6246 = vmatpush1.bf16.msra.mxu0 0
      %6247 = vmatprep.subr.bf16.mxu0 0
      %6248 = vmatpush1.bf16.msra.mxu0 0
      %6249 = vmatprep.mubr.bf16.mxu0 0
      %6250 = vmatmul.mubr.bf16.gmra.mrb[0].mxu0 %v6137
      %v6251 = vpop.f32.mrb[0].mxu0
      %v6252 = vadd.f32 0.0, %v6251
      %v6253 = vpop.f32.mrb[0].mxu0
      %v6254 = vpop.f32.mrb[0].mxu0
      %v6255 = vadd.f32 0.0, %v6254
      %v6256 = vpop.f32.mrb[0].mxu0
      %6257 = vmatprep.mubr.bf16.mxu0 0
      %6258 = vmatmul.mubr.bf16.gmra.mrb[0].mxu0 %v6138
      %v6259 = vpop.f32.mrb[0].mxu0
      %v6260 = vadd.f32 0.0, %v6259
      %v6261 = vpop.f32.mrb[0].mxu0
      %v6262 = vpop.f32.mrb[0].mxu0
      %v6263 = vadd.f32 0.0, %v6262
      %v6264 = vpop.f32.mrb[0].mxu0
      %6265 = vmatprep.mubr.bf16.mxu0 0
      %6266 = vmatmul.mubr.bf16.gmra.mrb[0].mxu0 %v6139
      %v6267 = vpop.f32.mrb[0].mxu0
      %v6268 = vadd.f32 0.0, %v6267
      %v6269 = vpop.f32.mrb[0].mxu0
      %v6270 = vpop.f32.mrb[0].mxu0
      %v6271 = vadd.f32 0.0, %v6270
      %v6272 = vpop.f32.mrb[0].mxu0
      %6273 = vmatprep.mubr.bf16.mxu0 0
      %6274 = vmatmul.mubr.bf16.gmra.mrb[0].mxu0 %v6140
      %v6275 = vpop.f32.mrb[0].mxu0
      %v6276 = vadd.f32 0.0, %v6275
      %v6277 = vpop.f32.mrb[0].mxu0
      %v6278 = vpop.f32.mrb[0].mxu0
      %v6279 = vadd.f32 0.0, %v6278
      %v6280 = vpop.f32.mrb[0].mxu0
      %6281 = vmatprep.mubr.bf16.mxu0 0
      %6282 = vmatmul.mubr.bf16.gmra.mrb[0].mxu0 %v6141
      %v6283 = vpop.f32.mrb[0].mxu0
      %v6284 = vadd.f32 0.0, %v6283
      %v6285 = vpop.f32.mrb[0].mxu0
      %v6286 = vpop.f32.mrb[0].mxu0
      %v6287 = vadd.f32 0.0, %v6286
      %v6288 = vpop.f32.mrb[0].mxu0
      %6289 = vmatprep.mubr.bf16.mxu0 0
      %6290 = vmatmul.mubr.bf16.gmra.mrb[0].mxu0 %v6142
      %v6291 = vpop.f32.mrb[0].mxu0
      %v6292 = vadd.f32 0.0, %v6291
      %v6293 = vpop.f32.mrb[0].mxu0
      %v6294 = vpop.f32.mrb[0].mxu0
      %v6295 = vadd.f32 0.0, %v6294
      %v6296 = vpop.f32.mrb[0].mxu0
      %6297 = vmatprep.mubr.bf16.mxu0 0
      %6298 = vmatmul.mubr.bf16.gmra.mrb[0].mxu0 %v6143
      %v6299 = vpop.f32.mrb[0].mxu0
      %v6300 = vadd.f32 0.0, %v6299
      %v6301 = vpop.f32.mrb[0].mxu0
      %v6302 = vpop.f32.mrb[0].mxu0
      %v6303 = vadd.f32 0.0, %v6302
      %v6304 = vpop.f32.mrb[0].mxu0
      %6305 = vmatprep.mubr.bf16.mxu0 0
      %6306 = vmatmul.mubr.bf16.gmra.mrb[0].mxu0 %v6144
      %v6307 = vpop.f32.mrb[0].mxu0
      %v6308 = vadd.f32 0.0, %v6307
      %v6309 = vpop.f32.mrb[0].mxu0
      %v6310 = vpop.f32.mrb[0].mxu0
      %v6311 = vadd.f32 0.0, %v6310
      %v6312 = vpop.f32.mrb[0].mxu0
      %6313 = vmatprep.mubr.bf16.mxu0 0
      %6314 = vmatmul.mubr.bf16.gmra.mrb[0].mxu0 %v6145
      %v6315 = vpop.f32.mrb[0].mxu0
      %v6316 = vadd.f32 0.0, %v6315
      %v6317 = vpop.f32.mrb[0].mxu0
      %v6318 = vpop.f32.mrb[0].mxu0
      %v6319 = vadd.f32 0.0, %v6318
      %v6320 = vpop.f32.mrb[0].mxu0
      %6321 = vmatprep.mubr.bf16.mxu0 0
      %6322 = vmatmul.mubr.bf16.gmra.mrb[0].mxu0 %v6146
      %v6323 = vpop.f32.mrb[0].mxu0
      %v6324 = vadd.f32 0.0, %v6323
      %v6325 = vpop.f32.mrb[0].mxu0
      %v6326 = vpop.f32.mrb[0].mxu0
      %v6327 = vadd.f32 0.0, %v6326
      %v6328 = vpop.f32.mrb[0].mxu0
      %6329 = vmatprep.mubr.bf16.mxu0 0
      %6330 = vmatmul.mubr.bf16.gmra.mrb[0].mxu0 %v6147
      %v6331 = vpop.f32.mrb[0].mxu0
      %v6332 = vadd.f32 0.0, %v6331
      %v6333 = vpop.f32.mrb[0].mxu0
      %v6334 = vpop.f32.mrb[0].mxu0
      %v6335 = vadd.f32 0.0, %v6334
      %v6336 = vpop.f32.mrb[0].mxu0
      %6337 = vmatprep.mubr.bf16.mxu0 0
      %6338 = vmatmul.mubr.bf16.gmra.mrb[0].mxu0 %v6148
      %v6339 = vpop.f32.mrb[0].mxu0
      %v6340 = vadd.f32 0.0, %v6339
      %v6341 = vpop.f32.mrb[0].mxu0
      %v6342 = vpop.f32.mrb[0].mxu0
      %v6343 = vadd.f32 0.0, %v6342
      %v6344 = vpop.f32.mrb[0].mxu0
      %6345 = vmatprep.mubr.bf16.mxu0 0
      %6346 = vmatmul.mubr.bf16.gmra.mrb[0].mxu0 %v6149
      %v6347 = vpop.f32.mrb[0].mxu0
      %v6348 = vadd.f32 0.0, %v6347
      %v6349 = vpop.f32.mrb[0].mxu0
      %v6350 = vpop.f32.mrb[0].mxu0
      %v6351 = vadd.f32 0.0, %v6350
      %v6352 = vpop.f32.mrb[0].mxu0
      %6353 = vmatprep.mubr.bf16.mxu0 0
      %6354 = vmatmul.mubr.bf16.gmra.mrb[0].mxu0 %v6150
      %v6355 = vpop.f32.mrb[0].mxu0
      %v6356 = vadd.f32 0.0, %v6355
      %v6357 = vpop.f32.mrb[0].mxu0
      %v6358 = vpop.f32.mrb[0].mxu0
      %v6359 = vadd.f32 0.0, %v6358
      %v6360 = vpop.f32.mrb[0].mxu0
      %6361 = vmatprep.mubr.bf16.mxu0 0
      %6362 = vmatmul.mubr.bf16.gmra.mrb[0].mxu0 %v6151
      %v6363 = vpop.f32.mrb[0].mxu0
      %v6364 = vadd.f32 0.0, %v6363
      %v6365 = vpop.f32.mrb[0].mxu0
      %v6366 = vpop.f32.mrb[0].mxu0
      %v6367 = vadd.f32 0.0, %v6366
      %v6368 = vpop.f32.mrb[0].mxu0
      %6369 = vmatprep.mubr.bf16.mxu0 0
      %6370 = vmatmul.mubr.bf16.gmra.mrb[0].mxu0 %v6152
      %v6371 = vpop.f32.mrb[0].mxu0
      %v6372 = vadd.f32 0.0, %v6371
      %v6373 = vpop.f32.mrb[0].mxu0
      %v6374 = vpop.f32.mrb[0].mxu0
      %v6375 = vadd.f32 0.0, %v6374
      %v6376 = vpop.f32.mrb[0].mxu0
      %6377 = vdwg.mxu0
      %v6378 = vld [vmem:[#allocation3] sm:$0xff]
      %v6379 = vld [vmem:[#allocation3 + $0x8] sm:$0xff]
      %v6380 = vld [vmem:[#allocation3 + $0x10] sm:$0xff]
      %v6381 = vld [vmem:[#allocation3 + $0x18] sm:$0xff]
      %v6382 = vld [vmem:[#allocation3 + $0x20] sm:$0xff]
      %v6383 = vld [vmem:[#allocation3 + $0x28] sm:$0xff]
      %v6384 = vld [vmem:[#allocation3 + $0x30] sm:$0xff]
      %v6385 = vld [vmem:[#allocation3 + $0x38] sm:$0xff]
      %v6386 = vld [vmem:[#allocation3 + $0x40] sm:$0xff]
      %v6387 = vld [vmem:[#allocation3 + $0x48] sm:$0xff]
      %v6388 = vld [vmem:[#allocation3 + $0x50] sm:$0xff]
      %v6389 = vld [vmem:[#allocation3 + $0x58] sm:$0xff]
      %v6390 = vld [vmem:[#allocation3 + $0x60] sm:$0xff]
      %v6391 = vld [vmem:[#allocation3 + $0x68] sm:$0xff]
      %v6392 = vld [vmem:[#allocation3 + $0x70] sm:$0xff]
      %v6393 = vld [vmem:[#allocation3 + $0x78] sm:$0xff]
      %v6394 = vld [vmem:[#allocation3 + $0x80] sm:$0xff]
      %v6395 = vld [vmem:[#allocation3 + $0x88] sm:$0xff]
      %v6396 = vld [vmem:[#allocation3 + $0x90] sm:$0xff]
      %v6397 = vld [vmem:[#allocation3 + $0x98] sm:$0xff]
      %v6398 = vld [vmem:[#allocation3 + $0xa0] sm:$0xff]
      %v6399 = vld [vmem:[#allocation3 + $0xa8] sm:$0xff]
      %v6400 = vld [vmem:[#allocation3 + $0xb0] sm:$0xff]
      %v6401 = vld [vmem:[#allocation3 + $0xb8] sm:$0xff]
      %v6402 = vld [vmem:[#allocation3 + $0xc0] sm:$0xff]
      %v6403 = vld [vmem:[#allocation3 + $0xc8] sm:$0xff]
      %v6404 = vld [vmem:[#allocation3 + $0xd0] sm:$0xff]
      %v6405 = vld [vmem:[#allocation3 + $0xd8] sm:$0xff]
      %v6406 = vld [vmem:[#allocation3 + $0xe0] sm:$0xff]
      %v6407 = vld [vmem:[#allocation3 + $0xe8] sm:$0xff]
      %v6408 = vld [vmem:[#allocation3 + $0xf0] sm:$0xff]
      %v6409 = vld [vmem:[#allocation3 + $0xf8] sm:$0xff]
      %v6410 = vadd.f32 %v6378, %v6252
      %v6411 = vadd.f32 %v6379, %v6255
      %v6412 = vadd.f32 %v6380, %v6260
      %v6413 = vadd.f32 %v6381, %v6263
      %v6414 = vadd.f32 %v6382, %v6268
      %v6415 = vadd.f32 %v6383, %v6271
      %v6416 = vadd.f32 %v6384, %v6276
      %v6417 = vadd.f32 %v6385, %v6279
      %v6418 = vadd.f32 %v6386, %v6284
      %v6419 = vadd.f32 %v6387, %v6287
      %v6420 = vadd.f32 %v6388, %v6292
      %v6421 = vadd.f32 %v6389, %v6295
      %v6422 = vadd.f32 %v6390, %v6300
      %v6423 = vadd.f32 %v6391, %v6303
      %v6424 = vadd.f32 %v6392, %v6308
      %v6425 = vadd.f32 %v6393, %v6311
      %v6426 = vadd.f32 %v6394, %v6316
      %v6427 = vadd.f32 %v6395, %v6319
      %v6428 = vadd.f32 %v6396, %v6324
      %v6429 = vadd.f32 %v6397, %v6327
      %v6430 = vadd.f32 %v6398, %v6332
      %v6431 = vadd.f32 %v6399, %v6335
      %v6432 = vadd.f32 %v6400, %v6340
      %v6433 = vadd.f32 %v6401, %v6343
      %v6434 = vadd.f32 %v6402, %v6348
      %v6435 = vadd.f32 %v6403, %v6351
      %v6436 = vadd.f32 %v6404, %v6356
      %v6437 = vadd.f32 %v6405, %v6359
      %v6438 = vadd.f32 %v6406, %v6364
      %v6439 = vadd.f32 %v6407, %v6367
      %v6440 = vadd.f32 %v6408, %v6372
      %v6441 = vadd.f32 %v6409, %v6375
      %6442 = vst [vmem:[#allocation3] sm:$0xff] %v6410
      %6443 = vst [vmem:[#allocation3 + $0x8] sm:$0xff] %v6411
      %6444 = vst [vmem:[#allocation3 + $0x10] sm:$0xff] %v6412
      %6445 = vst [vmem:[#allocation3 + $0x18] sm:$0xff] %v6413
      %6446 = vst [vmem:[#allocation3 + $0x20] sm:$0xff] %v6414
      %6447 = vst [vmem:[#allocation3 + $0x28] sm:$0xff] %v6415
      %6448 = vst [vmem:[#allocation3 + $0x30] sm:$0xff] %v6416
      %6449 = vst [vmem:[#allocation3 + $0x38] sm:$0xff] %v6417
      %6450 = vst [vmem:[#allocation3 + $0x40] sm:$0xff] %v6418
      %6451 = vst [vmem:[#allocation3 + $0x48] sm:$0xff] %v6419
      %6452 = vst [vmem:[#allocation3 + $0x50] sm:$0xff] %v6420
      %6453 = vst [vmem:[#allocation3 + $0x58] sm:$0xff] %v6421
      %6454 = vst [vmem:[#allocation3 + $0x60] sm:$0xff] %v6422
      %6455 = vst [vmem:[#allocation3 + $0x68] sm:$0xff] %v6423
      %6456 = vst [vmem:[#allocation3 + $0x70] sm:$0xff] %v6424
      %6457 = vst [vmem:[#allocation3 + $0x78] sm:$0xff] %v6425
      %6458 = vst [vmem:[#allocation3 + $0x80] sm:$0xff] %v6426
      %6459 = vst [vmem:[#allocation3 + $0x88] sm:$0xff] %v6427
      %6460 = vst [vmem:[#allocation3 + $0x90] sm:$0xff] %v6428
      %6461 = vst [vmem:[#allocation3 + $0x98] sm:$0xff] %v6429
      %6462 = vst [vmem:[#allocation3 + $0xa0] sm:$0xff] %v6430
      %6463 = vst [vmem:[#allocation3 + $0xa8] sm:$0xff] %v6431
      %6464 = vst [vmem:[#allocation3 + $0xb0] sm:$0xff] %v6432
      %6465 = vst [vmem:[#allocation3 + $0xb8] sm:$0xff] %v6433
      %6466 = vst [vmem:[#allocation3 + $0xc0] sm:$0xff] %v6434
      %6467 = vst [vmem:[#allocation3 + $0xc8] sm:$0xff] %v6435
      %6468 = vst [vmem:[#allocation3 + $0xd0] sm:$0xff] %v6436
      %6469 = vst [vmem:[#allocation3 + $0xd8] sm:$0xff] %v6437
      %6470 = vst [vmem:[#allocation3 + $0xe0] sm:$0xff] %v6438
      %6471 = vst [vmem:[#allocation3 + $0xe8] sm:$0xff] %v6439
      %6472 = vst [vmem:[#allocation3 + $0xf0] sm:$0xff] %v6440
      %6473 = vst [vmem:[#allocation3 + $0xf8] sm:$0xff] %v6441
      %v6474 = vld [vmem:[%s5205] sm:$0xe]
      %v6475 = vld [vmem:[%s5205 + $0x4] sm:$0xf]
      %v6476 = vld [vmem:[%s5205 + $0x8] sm:$0x1]
      %v6477 = vld [vmem:[%s5205 + $0xc] sm:$0xe]
      %v6478 = vld [vmem:[%s5205 + $0x10] sm:$0xf]
      %v6479 = vld [vmem:[%s5205 + $0x14] sm:$0x1]
      %v6480 = vld [vmem:[%s5205 + $0x18] sm:$0xe]
      %v6481 = vld [vmem:[%s5205 + $0x1c] sm:$0xf]
      %v6482 = vld [vmem:[%s5205 + $0x20] sm:$0x1]
      %v6483 = vld [vmem:[%s5205 + $0x24] sm:$0xe]
      %v6484 = vld [vmem:[%s5205 + $0x28] sm:$0xf]
      %v6485 = vld [vmem:[%s5205 + $0x2c] sm:$0x1]
      %v6486 = vld [vmem:[%s5205 + $0x30] sm:$0xe]
      %v6487 = vld [vmem:[%s5205 + $0x34] sm:$0xf]
      %v6488 = vld [vmem:[%s5205 + $0x38] sm:$0x1]
      %v6489 = vld [vmem:[%s5205 + $0x3c] sm:$0xe]
      %v6490 = vld [vmem:[%s5205 + $0x40] sm:$0xf]
      %v6491 = vld [vmem:[%s5205 + $0x44] sm:$0x1]
      %v6492 = vld [vmem:[%s5205 + $0x48] sm:$0xe]
      %v6493 = vld [vmem:[%s5205 + $0x4c] sm:$0xf]
      %v6494 = vld [vmem:[%s5205 + $0x50] sm:$0x1]
      %v6495 = vld [vmem:[%s5205 + $0x54] sm:$0xe]
      %v6496 = vld [vmem:[%s5205 + $0x58] sm:$0xf]
      %v6497 = vld [vmem:[%s5205 + $0x5c] sm:$0x1]
      %v6498 = vld [vmem:[%s5205 + $0x60] sm:$0xe]
      %v6499 = vld [vmem:[%s5205 + $0x64] sm:$0xf]
      %v6500 = vld [vmem:[%s5205 + $0x68] sm:$0x1]
      %v6501 = vld [vmem:[%s5205 + $0x6c] sm:$0xe]
      %v6502 = vld [vmem:[%s5205 + $0x70] sm:$0xf]
      %v6503 = vld [vmem:[%s5205 + $0x74] sm:$0x1]
      %v6504 = vld [vmem:[%s5205 + $0x78] sm:$0xe]
      %v6505 = vld [vmem:[%s5205 + $0x7c] sm:$0xf]
      %v6506 = vld [vmem:[%s5205 + $0x80] sm:$0x1]
      %v6507 = vld [vmem:[%s5205 + $0x84] sm:$0xe]
      %v6508 = vld [vmem:[%s5205 + $0x88] sm:$0xf]
      %v6509 = vld [vmem:[%s5205 + $0x8c] sm:$0x1]
      %v6510 = vld [vmem:[%s5205 + $0x90] sm:$0xe]
      %v6511 = vld [vmem:[%s5205 + $0x94] sm:$0xf]
      %v6512 = vld [vmem:[%s5205 + $0x98] sm:$0x1]
      %v6513 = vld [vmem:[%s5205 + $0x9c] sm:$0xe]
      %v6514 = vld [vmem:[%s5205 + $0xa0] sm:$0xf]
      %v6515 = vld [vmem:[%s5205 + $0xa4] sm:$0x1]
      %v6516 = vld [vmem:[%s5205 + $0xa8] sm:$0xe]
      %v6517 = vld [vmem:[%s5205 + $0xac] sm:$0xf]
      %v6518 = vld [vmem:[%s5205 + $0xb0] sm:$0x1]
      %v6519 = vld [vmem:[%s5205 + $0xb4] sm:$0xe]
      %v6520 = vld [vmem:[%s5205 + $0xb8] sm:$0xf]
      %v6521 = vld [vmem:[%s5205 + $0xbc] sm:$0x1]
      %v6570 = vrot.slane %v6474, 5
      %v6571 = vrot.slane %v6570, 4
      %v6572 = vrot.slane %v6475, 5
      %v6573 = vsel %vm2844, %v6571, %v6572
      %v6574 = vrot.slane %v6572, 4
      %v6575 = vrot.slane %v6476, 5
      %v6576 = vsel %vm2844, %v6574, %v6575
      %v6577 = vrot.slane %v6477, 5
      %v6578 = vrot.slane %v6577, 4
      %v6579 = vrot.slane %v6478, 5
      %v6580 = vsel %vm2844, %v6578, %v6579
      %v6581 = vrot.slane %v6579, 4
      %v6582 = vrot.slane %v6479, 5
      %v6583 = vsel %vm2844, %v6581, %v6582
      %v6584 = vrot.slane %v6480, 5
      %v6585 = vrot.slane %v6584, 4
      %v6586 = vrot.slane %v6481, 5
      %v6587 = vsel %vm2844, %v6585, %v6586
      %v6588 = vrot.slane %v6586, 4
      %v6589 = vrot.slane %v6482, 5
      %v6590 = vsel %vm2844, %v6588, %v6589
      %v6591 = vrot.slane %v6483, 5
      %v6592 = vrot.slane %v6591, 4
      %v6593 = vrot.slane %v6484, 5
      %v6594 = vsel %vm2844, %v6592, %v6593
      %v6595 = vrot.slane %v6593, 4
      %v6596 = vrot.slane %v6485, 5
      %v6597 = vsel %vm2844, %v6595, %v6596
      %v6598 = vrot.slane %v6486, 5
      %v6599 = vrot.slane %v6598, 4
      %v6600 = vrot.slane %v6487, 5
      %v6601 = vsel %vm2844, %v6599, %v6600
      %v6602 = vrot.slane %v6600, 4
      %v6603 = vrot.slane %v6488, 5
      %v6604 = vsel %vm2844, %v6602, %v6603
      %v6605 = vrot.slane %v6489, 5
      %v6606 = vrot.slane %v6605, 4
      %v6607 = vrot.slane %v6490, 5
      %v6608 = vsel %vm2844, %v6606, %v6607
      %v6609 = vrot.slane %v6607, 4
      %v6610 = vrot.slane %v6491, 5
      %v6611 = vsel %vm2844, %v6609, %v6610
      %v6612 = vrot.slane %v6492, 5
      %v6613 = vrot.slane %v6612, 4
      %v6614 = vrot.slane %v6493, 5
      %v6615 = vsel %vm2844, %v6613, %v6614
      %v6616 = vrot.slane %v6614, 4
      %v6617 = vrot.slane %v6494, 5
      %v6618 = vsel %vm2844, %v6616, %v6617
      %v6619 = vrot.slane %v6495, 5
      %v6620 = vrot.slane %v6619, 4
      %v6621 = vrot.slane %v6496, 5
      %v6622 = vsel %vm2844, %v6620, %v6621
      %v6623 = vrot.slane %v6621, 4
      %v6624 = vrot.slane %v6497, 5
      %v6625 = vsel %vm2844, %v6623, %v6624
      %v6626 = vrot.slane %v6498, 5
      %v6627 = vrot.slane %v6626, 4
      %v6628 = vrot.slane %v6499, 5
      %v6629 = vsel %vm2844, %v6627, %v6628
      %v6630 = vrot.slane %v6628, 4
      %v6631 = vrot.slane %v6500, 5
      %v6632 = vsel %vm2844, %v6630, %v6631
      %v6633 = vrot.slane %v6501, 5
      %v6634 = vrot.slane %v6633, 4
      %v6635 = vrot.slane %v6502, 5
      %v6636 = vsel %vm2844, %v6634, %v6635
      %v6637 = vrot.slane %v6635, 4
      %v6638 = vrot.slane %v6503, 5
      %v6639 = vsel %vm2844, %v6637, %v6638
      %v6640 = vrot.slane %v6504, 5
      %v6641 = vrot.slane %v6640, 4
      %v6642 = vrot.slane %v6505, 5
      %v6643 = vsel %vm2844, %v6641, %v6642
      %v6644 = vrot.slane %v6642, 4
      %v6645 = vrot.slane %v6506, 5
      %v6646 = vsel %vm2844, %v6644, %v6645
      %v6647 = vrot.slane %v6507, 5
      %v6648 = vrot.slane %v6647, 4
      %v6649 = vrot.slane %v6508, 5
      %v6650 = vsel %vm2844, %v6648, %v6649
      %v6651 = vrot.slane %v6649, 4
      %v6652 = vrot.slane %v6509, 5
      %v6653 = vsel %vm2844, %v6651, %v6652
      %v6654 = vrot.slane %v6510, 5
      %v6655 = vrot.slane %v6654, 4
      %v6656 = vrot.slane %v6511, 5
      %v6657 = vsel %vm2844, %v6655, %v6656
      %v6658 = vrot.slane %v6656, 4
      %v6659 = vrot.slane %v6512, 5
      %v6660 = vsel %vm2844, %v6658, %v6659
      %v6661 = vrot.slane %v6513, 5
      %v6662 = vrot.slane %v6661, 4
      %v6663 = vrot.slane %v6514, 5
      %v6664 = vsel %vm2844, %v6662, %v6663
      %v6665 = vrot.slane %v6663, 4
      %v6666 = vrot.slane %v6515, 5
      %v6667 = vsel %vm2844, %v6665, %v6666
      %v6668 = vrot.slane %v6516, 5
      %v6669 = vrot.slane %v6668, 4
      %v6670 = vrot.slane %v6517, 5
      %v6671 = vsel %vm2844, %v6669, %v6670
      %v6672 = vrot.slane %v6670, 4
      %v6673 = vrot.slane %v6518, 5
      %v6674 = vsel %vm2844, %v6672, %v6673
      %v6675 = vrot.slane %v6519, 5
      %v6676 = vrot.slane %v6675, 4
      %v6677 = vrot.slane %v6520, 5
      %v6678 = vsel %vm2844, %v6676, %v6677
      %v6679 = vrot.slane %v6677, 4
      %v6680 = vrot.slane %v6521, 5
      %v6681 = vsel %vm2844, %v6679, %v6680
      %s6682 = scalar_lea.vmem %s2, 512
      %v6683 = vld [vmem:[%s6682] sm:$0xf]
      %v6684 = vld [vmem:[%s6682 + $0x4] sm:$0xf]
      %v6685 = vld [vmem:[%s6682 + $0x8] sm:$0xf]
      %v6686 = vld [vmem:[%s6682 + $0xc] sm:$0xf]
      %v6687 = vld [vmem:[%s6682 + $0x10] sm:$0xf]
      %v6688 = vld [vmem:[%s6682 + $0x14] sm:$0xf]
      %v6689 = vld [vmem:[%s6682 + $0x18] sm:$0xf]
      %v6690 = vld [vmem:[%s6682 + $0x1c] sm:$0xf]
      %v6691 = vld [vmem:[%s6682 + $0x20] sm:$0xf]
      %v6692 = vld [vmem:[%s6682 + $0x24] sm:$0xf]
      %v6693 = vld [vmem:[%s6682 + $0x28] sm:$0xf]
      %v6694 = vld [vmem:[%s6682 + $0x2c] sm:$0xf]
      %v6695 = vld [vmem:[%s6682 + $0x30] sm:$0xf]
      %v6696 = vld [vmem:[%s6682 + $0x34] sm:$0xf]
      %v6697 = vld [vmem:[%s6682 + $0x38] sm:$0xf]
      %v6698 = vld [vmem:[%s6682 + $0x3c] sm:$0xf]
      %v6699 = vunpack.c.l.b16 %v6573
      %v6700 = vunpack.c.l.b16 %v6576
      %v6701 = vunpack.c.l.b16 %v6580
      %v6702 = vunpack.c.l.b16 %v6583
      %v6703 = vunpack.c.l.b16 %v6587
      %v6704 = vunpack.c.l.b16 %v6590
      %v6705 = vunpack.c.l.b16 %v6594
      %v6706 = vunpack.c.l.b16 %v6597
      %v6707 = vunpack.c.l.b16 %v6601
      %v6708 = vunpack.c.l.b16 %v6604
      %v6709 = vunpack.c.l.b16 %v6608
      %v6710 = vunpack.c.l.b16 %v6611
      %v6711 = vunpack.c.l.b16 %v6615
      %v6712 = vunpack.c.l.b16 %v6618
      %v6713 = vunpack.c.l.b16 %v6622
      %v6714 = vunpack.c.l.b16 %v6625
      %v6715 = vunpack.c.l.b16 %v6629
      %v6716 = vunpack.c.l.b16 %v6632
      %v6717 = vunpack.c.l.b16 %v6636
      %v6718 = vunpack.c.l.b16 %v6639
      %v6719 = vunpack.c.l.b16 %v6643
      %v6720 = vunpack.c.l.b16 %v6646
      %v6721 = vunpack.c.l.b16 %v6650
      %v6722 = vunpack.c.l.b16 %v6653
      %v6723 = vunpack.c.l.b16 %v6657
      %v6724 = vunpack.c.l.b16 %v6660
      %v6725 = vunpack.c.l.b16 %v6664
      %v6726 = vunpack.c.l.b16 %v6667
      %v6727 = vunpack.c.l.b16 %v6671
      %v6728 = vunpack.c.l.b16 %v6674
      %v6729 = vunpack.c.l.b16 %v6678
      %v6730 = vunpack.c.l.b16 %v6681
      %v6731 = vpack.c.b16 %v6700, %v6699
      %v6732 = vpack.c.b16 %v6702, %v6701
      %v6733 = vpack.c.b16 %v6704, %v6703
      %v6734 = vpack.c.b16 %v6706, %v6705
      %v6735 = vpack.c.b16 %v6708, %v6707
      %v6736 = vpack.c.b16 %v6710, %v6709
      %v6737 = vpack.c.b16 %v6712, %v6711
      %v6738 = vpack.c.b16 %v6714, %v6713
      %v6739 = vpack.c.b16 %v6716, %v6715
      %v6740 = vpack.c.b16 %v6718, %v6717
      %v6741 = vpack.c.b16 %v6720, %v6719
      %v6742 = vpack.c.b16 %v6722, %v6721
      %v6743 = vpack.c.b16 %v6724, %v6723
      %v6744 = vpack.c.b16 %v6726, %v6725
      %v6745 = vpack.c.b16 %v6728, %v6727
      %v6746 = vpack.c.b16 %v6730, %v6729
      %v6779 = vunpack.c.l.b16 %v6683
      %v6780 = vunpack.c.l.b16 %v6684
      %v6781 = vunpack.c.l.b16 %v6685
      %v6782 = vunpack.c.l.b16 %v6686
      %v6783 = vunpack.c.l.b16 %v6687
      %v6784 = vunpack.c.l.b16 %v6688
      %v6785 = vunpack.c.l.b16 %v6689
      %v6786 = vunpack.c.l.b16 %v6690
      %v6787 = vunpack.c.l.b16 %v6691
      %v6788 = vunpack.c.l.b16 %v6692
      %v6789 = vunpack.c.l.b16 %v6693
      %v6790 = vunpack.c.l.b16 %v6694
      %v6791 = vunpack.c.l.b16 %v6695
      %v6792 = vunpack.c.l.b16 %v6696
      %v6793 = vunpack.c.l.b16 %v6697
      %v6794 = vunpack.c.l.b16 %v6698
      %v6795 = vpack.c.b16 %v6780, %v6779
      %v6796 = vpack.c.b16 %v6782, %v6781
      %v6797 = vpack.c.b16 %v6784, %v6783
      %v6798 = vpack.c.b16 %v6786, %v6785
      %v6799 = vpack.c.b16 %v6788, %v6787
      %v6800 = vpack.c.b16 %v6790, %v6789
      %v6801 = vpack.c.b16 %v6792, %v6791
      %v6802 = vpack.c.b16 %v6794, %v6793
      %6811 = vmatprep.subr.bf16.mxu0 0
      %6812 = vmatpush1.bf16.msra.mxu0 %v6795
      %6813 = vmatprep.subr.bf16.mxu0 0
      %6814 = vmatpush1.bf16.msra.mxu0 %v6796
      %6815 = vmatprep.subr.bf16.mxu0 0
      %6816 = vmatpush1.bf16.msra.mxu0 %v6797
      %6817 = vmatprep.subr.bf16.mxu0 0
      %6818 = vmatpush1.bf16.msra.mxu0 %v6798
      %6819 = vmatprep.subr.bf16.mxu0 0
      %6820 = vmatpush1.bf16.msra.mxu0 %v6799
      %6821 = vmatprep.subr.bf16.mxu0 0
      %6822 = vmatpush1.bf16.msra.mxu0 %v6800
      %6823 = vmatprep.subr.bf16.mxu0 0
      %6824 = vmatpush1.bf16.msra.mxu0 %v6801
      %6825 = vmatprep.subr.bf16.mxu0 0
      %6826 = vmatpush1.bf16.msra.mxu0 %v6802
      %6827 = vmatprep.subr.bf16.mxu0 0
      %6828 = vmatpush1.bf16.msra.mxu0 0
      %6829 = vmatprep.subr.bf16.mxu0 0
      %6830 = vmatpush1.bf16.msra.mxu0 0
      %6831 = vmatprep.subr.bf16.mxu0 0
      %6832 = vmatpush1.bf16.msra.mxu0 0
      %6833 = vmatprep.subr.bf16.mxu0 0
      %6834 = vmatpush1.bf16.msra.mxu0 0
      %6835 = vmatprep.subr.bf16.mxu0 0
      %6836 = vmatpush1.bf16.msra.mxu0 0
      %6837 = vmatprep.subr.bf16.mxu0 0
      %6838 = vmatpush1.bf16.msra.mxu0 0
      %6839 = vmatprep.subr.bf16.mxu0 0
      %6840 = vmatpush1.bf16.msra.mxu0 0
      %6841 = vmatprep.subr.bf16.mxu0 0
      %6842 = vmatpush1.bf16.msra.mxu0 0
      %6843 = vmatprep.mubr.bf16.mxu0 0
      %6844 = vmatmul.mubr.bf16.gmra.mrb[0].mxu0 %v6731
      %v6845 = vpop.f32.mrb[0].mxu0
      %v6846 = vadd.f32 0.0, %v6845
      %v6847 = vpop.f32.mrb[0].mxu0
      %v6848 = vpop.f32.mrb[0].mxu0
      %v6849 = vadd.f32 0.0, %v6848
      %v6850 = vpop.f32.mrb[0].mxu0
      %6851 = vmatprep.mubr.bf16.mxu0 0
      %6852 = vmatmul.mubr.bf16.gmra.mrb[0].mxu0 %v6732
      %v6853 = vpop.f32.mrb[0].mxu0
      %v6854 = vadd.f32 0.0, %v6853
      %v6855 = vpop.f32.mrb[0].mxu0
      %v6856 = vpop.f32.mrb[0].mxu0
      %v6857 = vadd.f32 0.0, %v6856
      %v6858 = vpop.f32.mrb[0].mxu0
      %6859 = vmatprep.mubr.bf16.mxu0 0
      %6860 = vmatmul.mubr.bf16.gmra.mrb[0].mxu0 %v6733
      %v6861 = vpop.f32.mrb[0].mxu0
      %v6862 = vadd.f32 0.0, %v6861
      %v6863 = vpop.f32.mrb[0].mxu0
      %v6864 = vpop.f32.mrb[0].mxu0
      %v6865 = vadd.f32 0.0, %v6864
      %v6866 = vpop.f32.mrb[0].mxu0
      %6867 = vmatprep.mubr.bf16.mxu0 0
      %6868 = vmatmul.mubr.bf16.gmra.mrb[0].mxu0 %v6734
      %v6869 = vpop.f32.mrb[0].mxu0
      %v6870 = vadd.f32 0.0, %v6869
      %v6871 = vpop.f32.mrb[0].mxu0
      %v6872 = vpop.f32.mrb[0].mxu0
      %v6873 = vadd.f32 0.0, %v6872
      %v6874 = vpop.f32.mrb[0].mxu0
      %6875 = vmatprep.mubr.bf16.mxu0 0
      %6876 = vmatmul.mubr.bf16.gmra.mrb[0].mxu0 %v6735
      %v6877 = vpop.f32.mrb[0].mxu0
      %v6878 = vadd.f32 0.0, %v6877
      %v6879 = vpop.f32.mrb[0].mxu0
      %v6880 = vpop.f32.mrb[0].mxu0
      %v6881 = vadd.f32 0.0, %v6880
      %v6882 = vpop.f32.mrb[0].mxu0
      %6883 = vmatprep.mubr.bf16.mxu0 0
      %6884 = vmatmul.mubr.bf16.gmra.mrb[0].mxu0 %v6736
      %v6885 = vpop.f32.mrb[0].mxu0
      %v6886 = vadd.f32 0.0, %v6885
      %v6887 = vpop.f32.mrb[0].mxu0
      %v6888 = vpop.f32.mrb[0].mxu0
      %v6889 = vadd.f32 0.0, %v6888
      %v6890 = vpop.f32.mrb[0].mxu0
      %6891 = vmatprep.mubr.bf16.mxu0 0
      %6892 = vmatmul.mubr.bf16.gmra.mrb[0].mxu0 %v6737
      %v6893 = vpop.f32.mrb[0].mxu0
      %v6894 = vadd.f32 0.0, %v6893
      %v6895 = vpop.f32.mrb[0].mxu0
      %v6896 = vpop.f32.mrb[0].mxu0
      %v6897 = vadd.f32 0.0, %v6896
      %v6898 = vpop.f32.mrb[0].mxu0
      %6899 = vmatprep.mubr.bf16.mxu0 0
      %6900 = vmatmul.mubr.bf16.gmra.mrb[0].mxu0 %v6738
      %v6901 = vpop.f32.mrb[0].mxu0
      %v6902 = vadd.f32 0.0, %v6901
      %v6903 = vpop.f32.mrb[0].mxu0
      %v6904 = vpop.f32.mrb[0].mxu0
      %v6905 = vadd.f32 0.0, %v6904
      %v6906 = vpop.f32.mrb[0].mxu0
      %6907 = vmatprep.mubr.bf16.mxu0 0
      %6908 = vmatmul.mubr.bf16.gmra.mrb[0].mxu0 %v6739
      %v6909 = vpop.f32.mrb[0].mxu0
      %v6910 = vadd.f32 0.0, %v6909
      %v6911 = vpop.f32.mrb[0].mxu0
      %v6912 = vpop.f32.mrb[0].mxu0
      %v6913 = vadd.f32 0.0, %v6912
      %v6914 = vpop.f32.mrb[0].mxu0
      %6915 = vmatprep.mubr.bf16.mxu0 0
      %6916 = vmatmul.mubr.bf16.gmra.mrb[0].mxu0 %v6740
      %v6917 = vpop.f32.mrb[0].mxu0
      %v6918 = vadd.f32 0.0, %v6917
      %v6919 = vpop.f32.mrb[0].mxu0
      %v6920 = vpop.f32.mrb[0].mxu0
      %v6921 = vadd.f32 0.0, %v6920
      %v6922 = vpop.f32.mrb[0].mxu0
      %6923 = vmatprep.mubr.bf16.mxu0 0
      %6924 = vmatmul.mubr.bf16.gmra.mrb[0].mxu0 %v6741
      %v6925 = vpop.f32.mrb[0].mxu0
      %v6926 = vadd.f32 0.0, %v6925
      %v6927 = vpop.f32.mrb[0].mxu0
      %v6928 = vpop.f32.mrb[0].mxu0
      %v6929 = vadd.f32 0.0, %v6928
      %v6930 = vpop.f32.mrb[0].mxu0
      %6931 = vmatprep.mubr.bf16.mxu0 0
      %6932 = vmatmul.mubr.bf16.gmra.mrb[0].mxu0 %v6742
      %v6933 = vpop.f32.mrb[0].mxu0
      %v6934 = vadd.f32 0.0, %v6933
      %v6935 = vpop.f32.mrb[0].mxu0
      %v6936 = vpop.f32.mrb[0].mxu0
      %v6937 = vadd.f32 0.0, %v6936
      %v6938 = vpop.f32.mrb[0].mxu0
      %6939 = vmatprep.mubr.bf16.mxu0 0
      %6940 = vmatmul.mubr.bf16.gmra.mrb[0].mxu0 %v6743
      %v6941 = vpop.f32.mrb[0].mxu0
      %v6942 = vadd.f32 0.0, %v6941
      %v6943 = vpop.f32.mrb[0].mxu0
      %v6944 = vpop.f32.mrb[0].mxu0
      %v6945 = vadd.f32 0.0, %v6944
      %v6946 = vpop.f32.mrb[0].mxu0
      %6947 = vmatprep.mubr.bf16.mxu0 0
      %6948 = vmatmul.mubr.bf16.gmra.mrb[0].mxu0 %v6744
      %v6949 = vpop.f32.mrb[0].mxu0
      %v6950 = vadd.f32 0.0, %v6949
      %v6951 = vpop.f32.mrb[0].mxu0
      %v6952 = vpop.f32.mrb[0].mxu0
      %v6953 = vadd.f32 0.0, %v6952
      %v6954 = vpop.f32.mrb[0].mxu0
      %6955 = vmatprep.mubr.bf16.mxu0 0
      %6956 = vmatmul.mubr.bf16.gmra.mrb[0].mxu0 %v6745
      %v6957 = vpop.f32.mrb[0].mxu0
      %v6958 = vadd.f32 0.0, %v6957
      %v6959 = vpop.f32.mrb[0].mxu0
      %v6960 = vpop.f32.mrb[0].mxu0
      %v6961 = vadd.f32 0.0, %v6960
      %v6962 = vpop.f32.mrb[0].mxu0
      %6963 = vmatprep.mubr.bf16.mxu0 0
      %6964 = vmatmul.mubr.bf16.gmra.mrb[0].mxu0 %v6746
      %v6965 = vpop.f32.mrb[0].mxu0
      %v6966 = vadd.f32 0.0, %v6965
      %v6967 = vpop.f32.mrb[0].mxu0
      %v6968 = vpop.f32.mrb[0].mxu0
      %v6969 = vadd.f32 0.0, %v6968
      %v6970 = vpop.f32.mrb[0].mxu0
      %6971 = vdwg.mxu0
      %v6972 = vld [vmem:[#allocation3] sm:$0xff]
      %v6973 = vld [vmem:[#allocation3 + $0x8] sm:$0xff]
      %v6974 = vld [vmem:[#allocation3 + $0x10] sm:$0xff]
      %v6975 = vld [vmem:[#allocation3 + $0x18] sm:$0xff]
      %v6976 = vld [vmem:[#allocation3 + $0x20] sm:$0xff]
      %v6977 = vld [vmem:[#allocation3 + $0x28] sm:$0xff]
      %v6978 = vld [vmem:[#allocation3 + $0x30] sm:$0xff]
      %v6979 = vld [vmem:[#allocation3 + $0x38] sm:$0xff]
      %v6980 = vld [vmem:[#allocation3 + $0x40] sm:$0xff]
      %v6981 = vld [vmem:[#allocation3 + $0x48] sm:$0xff]
      %v6982 = vld [vmem:[#allocation3 + $0x50] sm:$0xff]
      %v6983 = vld [vmem:[#allocation3 + $0x58] sm:$0xff]
      %v6984 = vld [vmem:[#allocation3 + $0x60] sm:$0xff]
      %v6985 = vld [vmem:[#allocation3 + $0x68] sm:$0xff]
      %v6986 = vld [vmem:[#allocation3 + $0x70] sm:$0xff]
      %v6987 = vld [vmem:[#allocation3 + $0x78] sm:$0xff]
      %v6988 = vld [vmem:[#allocation3 + $0x80] sm:$0xff]
      %v6989 = vld [vmem:[#allocation3 + $0x88] sm:$0xff]
      %v6990 = vld [vmem:[#allocation3 + $0x90] sm:$0xff]
      %v6991 = vld [vmem:[#allocation3 + $0x98] sm:$0xff]
      %v6992 = vld [vmem:[#allocation3 + $0xa0] sm:$0xff]
      %v6993 = vld [vmem:[#allocation3 + $0xa8] sm:$0xff]
      %v6994 = vld [vmem:[#allocation3 + $0xb0] sm:$0xff]
      %v6995 = vld [vmem:[#allocation3 + $0xb8] sm:$0xff]
      %v6996 = vld [vmem:[#allocation3 + $0xc0] sm:$0xff]
      %v6997 = vld [vmem:[#allocation3 + $0xc8] sm:$0xff]
      %v6998 = vld [vmem:[#allocation3 + $0xd0] sm:$0xff]
      %v6999 = vld [vmem:[#allocation3 + $0xd8] sm:$0xff]
      %v7000 = vld [vmem:[#allocation3 + $0xe0] sm:$0xff]
      %v7001 = vld [vmem:[#allocation3 + $0xe8] sm:$0xff]
      %v7002 = vld [vmem:[#allocation3 + $0xf0] sm:$0xff]
      %v7003 = vld [vmem:[#allocation3 + $0xf8] sm:$0xff]
      %v7004 = vadd.f32 %v6972, %v6846
      %v7005 = vadd.f32 %v6973, %v6849
      %v7006 = vadd.f32 %v6974, %v6854
      %v7007 = vadd.f32 %v6975, %v6857
      %v7008 = vadd.f32 %v6976, %v6862
      %v7009 = vadd.f32 %v6977, %v6865
      %v7010 = vadd.f32 %v6978, %v6870
      %v7011 = vadd.f32 %v6979, %v6873
      %v7012 = vadd.f32 %v6980, %v6878
      %v7013 = vadd.f32 %v6981, %v6881
      %v7014 = vadd.f32 %v6982, %v6886
      %v7015 = vadd.f32 %v6983, %v6889
      %v7016 = vadd.f32 %v6984, %v6894
      %v7017 = vadd.f32 %v6985, %v6897
      %v7018 = vadd.f32 %v6986, %v6902
      %v7019 = vadd.f32 %v6987, %v6905
      %v7020 = vadd.f32 %v6988, %v6910
      %v7021 = vadd.f32 %v6989, %v6913
      %v7022 = vadd.f32 %v6990, %v6918
      %v7023 = vadd.f32 %v6991, %v6921
      %v7024 = vadd.f32 %v6992, %v6926
      %v7025 = vadd.f32 %v6993, %v6929
      %v7026 = vadd.f32 %v6994, %v6934
      %v7027 = vadd.f32 %v6995, %v6937
      %v7028 = vadd.f32 %v6996, %v6942
      %v7029 = vadd.f32 %v6997, %v6945
      %v7030 = vadd.f32 %v6998, %v6950
      %v7031 = vadd.f32 %v6999, %v6953
      %v7032 = vadd.f32 %v7000, %v6958
      %v7033 = vadd.f32 %v7001, %v6961
      %v7034 = vadd.f32 %v7002, %v6966
      %v7035 = vadd.f32 %v7003, %v6969
      %7036 = vst [vmem:[#allocation3] sm:$0xff] %v7004
      %7037 = vst [vmem:[#allocation3 + $0x8] sm:$0xff] %v7005
      %7038 = vst [vmem:[#allocation3 + $0x10] sm:$0xff] %v7006
      %7039 = vst [vmem:[#allocation3 + $0x18] sm:$0xff] %v7007
      %7040 = vst [vmem:[#allocation3 + $0x20] sm:$0xff] %v7008
      %7041 = vst [vmem:[#allocation3 + $0x28] sm:$0xff] %v7009
      %7042 = vst [vmem:[#allocation3 + $0x30] sm:$0xff] %v7010
      %7043 = vst [vmem:[#allocation3 + $0x38] sm:$0xff] %v7011
      %7044 = vst [vmem:[#allocation3 + $0x40] sm:$0xff] %v7012
      %7045 = vst [vmem:[#allocation3 + $0x48] sm:$0xff] %v7013
      %7046 = vst [vmem:[#allocation3 + $0x50] sm:$0xff] %v7014
      %7047 = vst [vmem:[#allocation3 + $0x58] sm:$0xff] %v7015
      %7048 = vst [vmem:[#allocation3 + $0x60] sm:$0xff] %v7016
      %7049 = vst [vmem:[#allocation3 + $0x68] sm:$0xff] %v7017
      %7050 = vst [vmem:[#allocation3 + $0x70] sm:$0xff] %v7018
      %7051 = vst [vmem:[#allocation3 + $0x78] sm:$0xff] %v7019
      %7052 = vst [vmem:[#allocation3 + $0x80] sm:$0xff] %v7020
      %7053 = vst [vmem:[#allocation3 + $0x88] sm:$0xff] %v7021
      %7054 = vst [vmem:[#allocation3 + $0x90] sm:$0xff] %v7022
      %7055 = vst [vmem:[#allocation3 + $0x98] sm:$0xff] %v7023
      %7056 = vst [vmem:[#allocation3 + $0xa0] sm:$0xff] %v7024
      %7057 = vst [vmem:[#allocation3 + $0xa8] sm:$0xff] %v7025
      %7058 = vst [vmem:[#allocation3 + $0xb0] sm:$0xff] %v7026
      %7059 = vst [vmem:[#allocation3 + $0xb8] sm:$0xff] %v7027
      %7060 = vst [vmem:[#allocation3 + $0xc0] sm:$0xff] %v7028
      %7061 = vst [vmem:[#allocation3 + $0xc8] sm:$0xff] %v7029
      %7062 = vst [vmem:[#allocation3 + $0xd0] sm:$0xff] %v7030
      %7063 = vst [vmem:[#allocation3 + $0xd8] sm:$0xff] %v7031
      %7064 = vst [vmem:[#allocation3 + $0xe0] sm:$0xff] %v7032
      %7065 = vst [vmem:[#allocation3 + $0xe8] sm:$0xff] %v7033
      %7066 = vst [vmem:[#allocation3 + $0xf0] sm:$0xff] %v7034
      %7067 = vst [vmem:[#allocation3 + $0xf8] sm:$0xff] %v7035
      %v7068 = vld [vmem:[#allocation3] sm:$0xff]
      %v7069 = vld [vmem:[#allocation3 + $0x8] sm:$0xff]
      %v7070 = vld [vmem:[#allocation3 + $0x10] sm:$0xff]
      %v7071 = vld [vmem:[#allocation3 + $0x18] sm:$0xff]
      %v7072 = vld [vmem:[#allocation3 + $0x20] sm:$0xff]
      %v7073 = vld [vmem:[#allocation3 + $0x28] sm:$0xff]
      %v7074 = vld [vmem:[#allocation3 + $0x30] sm:$0xff]
      %v7075 = vld [vmem:[#allocation3 + $0x38] sm:$0xff]
      %v7076 = vld [vmem:[#allocation3 + $0x40] sm:$0xff]
      %v7077 = vld [vmem:[#allocation3 + $0x48] sm:$0xff]
      %v7078 = vld [vmem:[#allocation3 + $0x50] sm:$0xff]
      %v7079 = vld [vmem:[#allocation3 + $0x58] sm:$0xff]
      %v7080 = vld [vmem:[#allocation3 + $0x60] sm:$0xff]
      %v7081 = vld [vmem:[#allocation3 + $0x68] sm:$0xff]
      %v7082 = vld [vmem:[#allocation3 + $0x70] sm:$0xff]
      %v7083 = vld [vmem:[#allocation3 + $0x78] sm:$0xff]
      %v7084 = vld [vmem:[#allocation3 + $0x80] sm:$0xff]
      %v7085 = vld [vmem:[#allocation3 + $0x88] sm:$0xff]
      %v7086 = vld [vmem:[#allocation3 + $0x90] sm:$0xff]
      %v7087 = vld [vmem:[#allocation3 + $0x98] sm:$0xff]
      %v7088 = vld [vmem:[#allocation3 + $0xa0] sm:$0xff]
      %v7089 = vld [vmem:[#allocation3 + $0xa8] sm:$0xff]
      %v7090 = vld [vmem:[#allocation3 + $0xb0] sm:$0xff]
      %v7091 = vld [vmem:[#allocation3 + $0xb8] sm:$0xff]
      %v7092 = vld [vmem:[#allocation3 + $0xc0] sm:$0xff]
      %v7093 = vld [vmem:[#allocation3 + $0xc8] sm:$0xff]
      %v7094 = vld [vmem:[#allocation3 + $0xd0] sm:$0xff]
      %v7095 = vld [vmem:[#allocation3 + $0xd8] sm:$0xff]
      %v7096 = vld [vmem:[#allocation3 + $0xe0] sm:$0xff]
      %v7097 = vld [vmem:[#allocation3 + $0xe8] sm:$0xff]
      %v7098 = vld [vmem:[#allocation3 + $0xf0] sm:$0xff]
      %v7099 = vld [vmem:[#allocation3 + $0xf8] sm:$0xff]
      %v7100 = vld [vmem:[%s7] sm:$0x1]
      %v7102 = vlaneseq
      %v7103 = vshrl.u32 %v7102, 7
      %v7104 = vsub.s32 0, %v7103
      %v7105 = vrot.slane %v7100, %v7104
      %v7107 = vmul.f32 %v7068, %v7105
      %v7108 = vmul.f32 %v7069, %v7105
      %v7109 = vmul.f32 %v7070, %v7105
      %v7110 = vmul.f32 %v7071, %v7105
      %v7111 = vmul.f32 %v7072, %v7105
      %v7112 = vmul.f32 %v7073, %v7105
      %v7113 = vmul.f32 %v7074, %v7105
      %v7114 = vmul.f32 %v7075, %v7105
      %v7115 = vmul.f32 %v7076, %v7105
      %v7116 = vmul.f32 %v7077, %v7105
      %v7117 = vmul.f32 %v7078, %v7105
      %v7118 = vmul.f32 %v7079, %v7105
      %v7119 = vmul.f32 %v7080, %v7105
      %v7120 = vmul.f32 %v7081, %v7105
      %v7121 = vmul.f32 %v7082, %v7105
      %v7122 = vmul.f32 %v7083, %v7105
      %v7123 = vmul.f32 %v7084, %v7105
      %v7124 = vmul.f32 %v7085, %v7105
      %v7125 = vmul.f32 %v7086, %v7105
      %v7126 = vmul.f32 %v7087, %v7105
      %v7127 = vmul.f32 %v7088, %v7105
      %v7128 = vmul.f32 %v7089, %v7105
      %v7129 = vmul.f32 %v7090, %v7105
      %v7130 = vmul.f32 %v7091, %v7105
      %v7131 = vmul.f32 %v7092, %v7105
      %v7132 = vmul.f32 %v7093, %v7105
      %v7133 = vmul.f32 %v7094, %v7105
      %v7134 = vmul.f32 %v7095, %v7105
      %v7135 = vmul.f32 %v7096, %v7105
      %v7136 = vmul.f32 %v7097, %v7105
      %v7137 = vmul.f32 %v7098, %v7105
      %v7138 = vmul.f32 %v7099, %v7105
      %v7139 = vld [vmem:[%s8] sm:$0x1]
      %v7141 = vlaneseq
      %v7142 = vshrl.u32 %v7141, 7
      %v7143 = vsub.s32 0, %v7142
      %v7144 = vrot.slane %v7139, %v7143
      %v7146 = vadd.f32 %v7107, %v7144
      %v7147 = vadd.f32 %v7108, %v7144
      %v7148 = vadd.f32 %v7109, %v7144
      %v7149 = vadd.f32 %v7110, %v7144
      %v7150 = vadd.f32 %v7111, %v7144
      %v7151 = vadd.f32 %v7112, %v7144
      %v7152 = vadd.f32 %v7113, %v7144
      %v7153 = vadd.f32 %v7114, %v7144
      %v7154 = vadd.f32 %v7115, %v7144
      %v7155 = vadd.f32 %v7116, %v7144
      %v7156 = vadd.f32 %v7117, %v7144
      %v7157 = vadd.f32 %v7118, %v7144
      %v7158 = vadd.f32 %v7119, %v7144
      %v7159 = vadd.f32 %v7120, %v7144
      %v7160 = vadd.f32 %v7121, %v7144
      %v7161 = vadd.f32 %v7122, %v7144
      %v7162 = vadd.f32 %v7123, %v7144
      %v7163 = vadd.f32 %v7124, %v7144
      %v7164 = vadd.f32 %v7125, %v7144
      %v7165 = vadd.f32 %v7126, %v7144
      %v7166 = vadd.f32 %v7127, %v7144
      %v7167 = vadd.f32 %v7128, %v7144
      %v7168 = vadd.f32 %v7129, %v7144
      %v7169 = vadd.f32 %v7130, %v7144
      %v7170 = vadd.f32 %v7131, %v7144
      %v7171 = vadd.f32 %v7132, %v7144
      %v7172 = vadd.f32 %v7133, %v7144
      %v7173 = vadd.f32 %v7134, %v7144
      %v7174 = vadd.f32 %v7135, %v7144
      %v7175 = vadd.f32 %v7136, %v7144
      %v7176 = vadd.f32 %v7137, %v7144
      %v7177 = vadd.f32 %v7138, %v7144
      %v7178 = vmax.f32 %v7146, 0.0
      %v7179 = vmax.f32 %v7147, 0.0
      %v7180 = vmax.f32 %v7148, 0.0
      %v7181 = vmax.f32 %v7149, 0.0
      %v7182 = vmax.f32 %v7150, 0.0
      %v7183 = vmax.f32 %v7151, 0.0
      %v7184 = vmax.f32 %v7152, 0.0
      %v7185 = vmax.f32 %v7153, 0.0
      %v7186 = vmax.f32 %v7154, 0.0
      %v7187 = vmax.f32 %v7155, 0.0
      %v7188 = vmax.f32 %v7156, 0.0
      %v7189 = vmax.f32 %v7157, 0.0
      %v7190 = vmax.f32 %v7158, 0.0
      %v7191 = vmax.f32 %v7159, 0.0
      %v7192 = vmax.f32 %v7160, 0.0
      %v7193 = vmax.f32 %v7161, 0.0
      %v7194 = vmax.f32 %v7162, 0.0
      %v7195 = vmax.f32 %v7163, 0.0
      %v7196 = vmax.f32 %v7164, 0.0
      %v7197 = vmax.f32 %v7165, 0.0
      %v7198 = vmax.f32 %v7166, 0.0
      %v7199 = vmax.f32 %v7167, 0.0
      %v7200 = vmax.f32 %v7168, 0.0
      %v7201 = vmax.f32 %v7169, 0.0
      %v7202 = vmax.f32 %v7170, 0.0
      %v7203 = vmax.f32 %v7171, 0.0
      %v7204 = vmax.f32 %v7172, 0.0
      %v7205 = vmax.f32 %v7173, 0.0
      %v7206 = vmax.f32 %v7174, 0.0
      %v7207 = vmax.f32 %v7175, 0.0
      %v7208 = vmax.f32 %v7176, 0.0
      %v7209 = vmax.f32 %v7177, 0.0
      %v7210 = vpack.c.bf16 %v7179, %v7178
      %v7211 = vpack.c.bf16 %v7181, %v7180
      %v7212 = vpack.c.bf16 %v7183, %v7182
      %v7213 = vpack.c.bf16 %v7185, %v7184
      %v7214 = vpack.c.bf16 %v7187, %v7186
      %v7215 = vpack.c.bf16 %v7189, %v7188
      %v7216 = vpack.c.bf16 %v7191, %v7190
      %v7217 = vpack.c.bf16 %v7193, %v7192
      %v7218 = vpack.c.bf16 %v7195, %v7194
      %v7219 = vpack.c.bf16 %v7197, %v7196
      %v7220 = vpack.c.bf16 %v7199, %v7198
      %v7221 = vpack.c.bf16 %v7201, %v7200
      %v7222 = vpack.c.bf16 %v7203, %v7202
      %v7223 = vpack.c.bf16 %v7205, %v7204
      %v7224 = vpack.c.bf16 %v7207, %v7206
      %v7225 = vpack.c.bf16 %v7209, %v7208
      %v7226 = vld [vmem:[%s3] sm:$0xf]
      %v7227 = vld [vmem:[%s3 + $0x4] sm:$0xf]
      %v7228 = vld [vmem:[%s3 + $0x8] sm:$0xf]
      %v7229 = vld [vmem:[%s3 + $0xc] sm:$0xf]
      %v7230 = vld [vmem:[%s3 + $0x10] sm:$0xf]
      %v7231 = vld [vmem:[%s3 + $0x14] sm:$0xf]
      %v7232 = vld [vmem:[%s3 + $0x18] sm:$0xf]
      %v7233 = vld [vmem:[%s3 + $0x1c] sm:$0xf]
      %v7234 = vld [vmem:[%s3 + $0x20] sm:$0xf]
      %v7235 = vld [vmem:[%s3 + $0x24] sm:$0xf]
      %v7236 = vld [vmem:[%s3 + $0x28] sm:$0xf]
      %v7237 = vld [vmem:[%s3 + $0x2c] sm:$0xf]
      %v7238 = vld [vmem:[%s3 + $0x30] sm:$0xf]
      %v7239 = vld [vmem:[%s3 + $0x34] sm:$0xf]
      %v7240 = vld [vmem:[%s3 + $0x38] sm:$0xf]
      %v7241 = vld [vmem:[%s3 + $0x3c] sm:$0xf]
      %v7258 = vunpack.c.l.b16 %v7226
      %v7259 = vunpack.c.l.b16 %v7227
      %v7260 = vunpack.c.l.b16 %v7228
      %v7261 = vunpack.c.l.b16 %v7229
      %v7262 = vunpack.c.l.b16 %v7230
      %v7263 = vunpack.c.l.b16 %v7231
      %v7264 = vunpack.c.l.b16 %v7232
      %v7265 = vunpack.c.l.b16 %v7233
      %v7266 = vunpack.c.l.b16 %v7234
      %v7267 = vunpack.c.l.b16 %v7235
      %v7268 = vunpack.c.l.b16 %v7236
      %v7269 = vunpack.c.l.b16 %v7237
      %v7270 = vunpack.c.l.b16 %v7238
      %v7271 = vunpack.c.l.b16 %v7239
      %v7272 = vunpack.c.l.b16 %v7240
      %v7273 = vunpack.c.l.b16 %v7241
      %v7274 = vpack.c.b16 %v7259, %v7258
      %v7275 = vpack.c.b16 %v7261, %v7260
      %v7276 = vpack.c.b16 %v7263, %v7262
      %v7277 = vpack.c.b16 %v7265, %v7264
      %v7278 = vpack.c.b16 %v7267, %v7266
      %v7279 = vpack.c.b16 %v7269, %v7268
      %v7280 = vpack.c.b16 %v7271, %v7270
      %v7281 = vpack.c.b16 %v7273, %v7272
      %7290 = vmatprep.subr.bf16.mxu0 0
      %7291 = vmatpush1.bf16.msra.mxu0 %v7274
      %7292 = vmatprep.subr.bf16.mxu0 0
      %7293 = vmatpush1.bf16.msra.mxu0 %v7275
      %7294 = vmatprep.subr.bf16.mxu0 0
      %7295 = vmatpush1.bf16.msra.mxu0 %v7276
      %7296 = vmatprep.subr.bf16.mxu0 0
      %7297 = vmatpush1.bf16.msra.mxu0 %v7277
      %7298 = vmatprep.subr.bf16.mxu0 0
      %7299 = vmatpush1.bf16.msra.mxu0 %v7278
      %7300 = vmatprep.subr.bf16.mxu0 0
      %7301 = vmatpush1.bf16.msra.mxu0 %v7279
      %7302 = vmatprep.subr.bf16.mxu0 0
      %7303 = vmatpush1.bf16.msra.mxu0 %v7280
      %7304 = vmatprep.subr.bf16.mxu0 0
      %7305 = vmatpush1.bf16.msra.mxu0 %v7281
      %7306 = vmatprep.subr.bf16.mxu0 0
      %7307 = vmatpush1.bf16.msra.mxu0 0
      %7308 = vmatprep.subr.bf16.mxu0 0
      %7309 = vmatpush1.bf16.msra.mxu0 0
      %7310 = vmatprep.subr.bf16.mxu0 0
      %7311 = vmatpush1.bf16.msra.mxu0 0
      %7312 = vmatprep.subr.bf16.mxu0 0
      %7313 = vmatpush1.bf16.msra.mxu0 0
      %7314 = vmatprep.subr.bf16.mxu0 0
      %7315 = vmatpush1.bf16.msra.mxu0 0
      %7316 = vmatprep.subr.bf16.mxu0 0
      %7317 = vmatpush1.bf16.msra.mxu0 0
      %7318 = vmatprep.subr.bf16.mxu0 0
      %7319 = vmatpush1.bf16.msra.mxu0 0
      %7320 = vmatprep.subr.bf16.mxu0 0
      %7321 = vmatpush1.bf16.msra.mxu0 0
      %7322 = vmatprep.mubr.bf16.mxu0 0
      %7323 = vmatmul.mubr.bf16.gmra.mrb[0].mxu0 %v7210
      %v7324 = vpop.f32.mrb[0].mxu0
      %v7325 = vadd.f32 0.0, %v7324
      %v7326 = vpop.f32.mrb[0].mxu0
      %v7327 = vpop.f32.mrb[0].mxu0
      %v7328 = vadd.f32 0.0, %v7327
      %v7329 = vpop.f32.mrb[0].mxu0
      %7330 = vmatprep.mubr.bf16.mxu0 0
      %7331 = vmatmul.mubr.bf16.gmra.mrb[0].mxu0 %v7211
      %v7332 = vpop.f32.mrb[0].mxu0
      %v7333 = vadd.f32 0.0, %v7332
      %v7334 = vpop.f32.mrb[0].mxu0
      %v7335 = vpop.f32.mrb[0].mxu0
      %v7336 = vadd.f32 0.0, %v7335
      %v7337 = vpop.f32.mrb[0].mxu0
      %7338 = vmatprep.mubr.bf16.mxu0 0
      %7339 = vmatmul.mubr.bf16.gmra.mrb[0].mxu0 %v7212
      %v7340 = vpop.f32.mrb[0].mxu0
      %v7341 = vadd.f32 0.0, %v7340
      %v7342 = vpop.f32.mrb[0].mxu0
      %v7343 = vpop.f32.mrb[0].mxu0
      %v7344 = vadd.f32 0.0, %v7343
      %v7345 = vpop.f32.mrb[0].mxu0
      %7346 = vmatprep.mubr.bf16.mxu0 0
      %7347 = vmatmul.mubr.bf16.gmra.mrb[0].mxu0 %v7213
      %v7348 = vpop.f32.mrb[0].mxu0
      %v7349 = vadd.f32 0.0, %v7348
      %v7350 = vpop.f32.mrb[0].mxu0
      %v7351 = vpop.f32.mrb[0].mxu0
      %v7352 = vadd.f32 0.0, %v7351
      %v7353 = vpop.f32.mrb[0].mxu0
      %7354 = vmatprep.mubr.bf16.mxu0 0
      %7355 = vmatmul.mubr.bf16.gmra.mrb[0].mxu0 %v7214
      %v7356 = vpop.f32.mrb[0].mxu0
      %v7357 = vadd.f32 0.0, %v7356
      %v7358 = vpop.f32.mrb[0].mxu0
      %v7359 = vpop.f32.mrb[0].mxu0
      %v7360 = vadd.f32 0.0, %v7359
      %v7361 = vpop.f32.mrb[0].mxu0
      %7362 = vmatprep.mubr.bf16.mxu0 0
      %7363 = vmatmul.mubr.bf16.gmra.mrb[0].mxu0 %v7215
      %v7364 = vpop.f32.mrb[0].mxu0
      %v7365 = vadd.f32 0.0, %v7364
      %v7366 = vpop.f32.mrb[0].mxu0
      %v7367 = vpop.f32.mrb[0].mxu0
      %v7368 = vadd.f32 0.0, %v7367
      %v7369 = vpop.f32.mrb[0].mxu0
      %7370 = vmatprep.mubr.bf16.mxu0 0
      %7371 = vmatmul.mubr.bf16.gmra.mrb[0].mxu0 %v7216
      %v7372 = vpop.f32.mrb[0].mxu0
      %v7373 = vadd.f32 0.0, %v7372
      %v7374 = vpop.f32.mrb[0].mxu0
      %v7375 = vpop.f32.mrb[0].mxu0
      %v7376 = vadd.f32 0.0, %v7375
      %v7377 = vpop.f32.mrb[0].mxu0
      %7378 = vmatprep.mubr.bf16.mxu0 0
      %7379 = vmatmul.mubr.bf16.gmra.mrb[0].mxu0 %v7217
      %v7380 = vpop.f32.mrb[0].mxu0
      %v7381 = vadd.f32 0.0, %v7380
      %v7382 = vpop.f32.mrb[0].mxu0
      %v7383 = vpop.f32.mrb[0].mxu0
      %v7384 = vadd.f32 0.0, %v7383
      %v7385 = vpop.f32.mrb[0].mxu0
      %7386 = vmatprep.mubr.bf16.mxu0 0
      %7387 = vmatmul.mubr.bf16.gmra.mrb[0].mxu0 %v7218
      %v7388 = vpop.f32.mrb[0].mxu0
      %v7389 = vadd.f32 0.0, %v7388
      %v7390 = vpop.f32.mrb[0].mxu0
      %v7391 = vpop.f32.mrb[0].mxu0
      %v7392 = vadd.f32 0.0, %v7391
      %v7393 = vpop.f32.mrb[0].mxu0
      %7394 = vmatprep.mubr.bf16.mxu0 0
      %7395 = vmatmul.mubr.bf16.gmra.mrb[0].mxu0 %v7219
      %v7396 = vpop.f32.mrb[0].mxu0
      %v7397 = vadd.f32 0.0, %v7396
      %v7398 = vpop.f32.mrb[0].mxu0
      %v7399 = vpop.f32.mrb[0].mxu0
      %v7400 = vadd.f32 0.0, %v7399
      %v7401 = vpop.f32.mrb[0].mxu0
      %7402 = vmatprep.mubr.bf16.mxu0 0
      %7403 = vmatmul.mubr.bf16.gmra.mrb[0].mxu0 %v7220
      %v7404 = vpop.f32.mrb[0].mxu0
      %v7405 = vadd.f32 0.0, %v7404
      %v7406 = vpop.f32.mrb[0].mxu0
      %v7407 = vpop.f32.mrb[0].mxu0
      %v7408 = vadd.f32 0.0, %v7407
      %v7409 = vpop.f32.mrb[0].mxu0
      %7410 = vmatprep.mubr.bf16.mxu0 0
      %7411 = vmatmul.mubr.bf16.gmra.mrb[0].mxu0 %v7221
      %v7412 = vpop.f32.mrb[0].mxu0
      %v7413 = vadd.f32 0.0, %v7412
      %v7414 = vpop.f32.mrb[0].mxu0
      %v7415 = vpop.f32.mrb[0].mxu0
      %v7416 = vadd.f32 0.0, %v7415
      %v7417 = vpop.f32.mrb[0].mxu0
      %7418 = vmatprep.mubr.bf16.mxu0 0
      %7419 = vmatmul.mubr.bf16.gmra.mrb[0].mxu0 %v7222
      %v7420 = vpop.f32.mrb[0].mxu0
      %v7421 = vadd.f32 0.0, %v7420
      %v7422 = vpop.f32.mrb[0].mxu0
      %v7423 = vpop.f32.mrb[0].mxu0
      %v7424 = vadd.f32 0.0, %v7423
      %v7425 = vpop.f32.mrb[0].mxu0
      %7426 = vmatprep.mubr.bf16.mxu0 0
      %7427 = vmatmul.mubr.bf16.gmra.mrb[0].mxu0 %v7223
      %v7428 = vpop.f32.mrb[0].mxu0
      %v7429 = vadd.f32 0.0, %v7428
      %v7430 = vpop.f32.mrb[0].mxu0
      %v7431 = vpop.f32.mrb[0].mxu0
      %v7432 = vadd.f32 0.0, %v7431
      %v7433 = vpop.f32.mrb[0].mxu0
      %7434 = vmatprep.mubr.bf16.mxu0 0
      %7435 = vmatmul.mubr.bf16.gmra.mrb[0].mxu0 %v7224
      %v7436 = vpop.f32.mrb[0].mxu0
      %v7437 = vadd.f32 0.0, %v7436
      %v7438 = vpop.f32.mrb[0].mxu0
      %v7439 = vpop.f32.mrb[0].mxu0
      %v7440 = vadd.f32 0.0, %v7439
      %v7441 = vpop.f32.mrb[0].mxu0
      %7442 = vmatprep.mubr.bf16.mxu0 0
      %7443 = vmatmul.mubr.bf16.gmra.mrb[0].mxu0 %v7225
      %v7444 = vpop.f32.mrb[0].mxu0
      %v7445 = vadd.f32 0.0, %v7444
      %v7446 = vpop.f32.mrb[0].mxu0
      %v7447 = vpop.f32.mrb[0].mxu0
      %v7448 = vadd.f32 0.0, %v7447
      %v7449 = vpop.f32.mrb[0].mxu0
      %7450 = vdwg.mxu0
      %v7451 = vld [vmem:[%s9] sm:$0x1]
      %v7453 = vlaneseq
      %v7454 = vshrl.u32 %v7453, 7
      %v7455 = vsub.s32 0, %v7454
      %v7456 = vrot.slane %v7451, %v7455
      %v7458 = vmul.f32 %v7325, %v7456
      %v7459 = vmul.f32 %v7328, %v7456
      %v7460 = vmul.f32 %v7333, %v7456
      %v7461 = vmul.f32 %v7336, %v7456
      %v7462 = vmul.f32 %v7341, %v7456
      %v7463 = vmul.f32 %v7344, %v7456
      %v7464 = vmul.f32 %v7349, %v7456
      %v7465 = vmul.f32 %v7352, %v7456
      %v7466 = vmul.f32 %v7357, %v7456
      %v7467 = vmul.f32 %v7360, %v7456
      %v7468 = vmul.f32 %v7365, %v7456
      %v7469 = vmul.f32 %v7368, %v7456
      %v7470 = vmul.f32 %v7373, %v7456
      %v7471 = vmul.f32 %v7376, %v7456
      %v7472 = vmul.f32 %v7381, %v7456
      %v7473 = vmul.f32 %v7384, %v7456
      %v7474 = vmul.f32 %v7389, %v7456
      %v7475 = vmul.f32 %v7392, %v7456
      %v7476 = vmul.f32 %v7397, %v7456
      %v7477 = vmul.f32 %v7400, %v7456
      %v7478 = vmul.f32 %v7405, %v7456
      %v7479 = vmul.f32 %v7408, %v7456
      %v7480 = vmul.f32 %v7413, %v7456
      %v7481 = vmul.f32 %v7416, %v7456
      %v7482 = vmul.f32 %v7421, %v7456
      %v7483 = vmul.f32 %v7424, %v7456
      %v7484 = vmul.f32 %v7429, %v7456
      %v7485 = vmul.f32 %v7432, %v7456
      %v7486 = vmul.f32 %v7437, %v7456
      %v7487 = vmul.f32 %v7440, %v7456
      %v7488 = vmul.f32 %v7445, %v7456
      %v7489 = vmul.f32 %v7448, %v7456
      %v7490 = vld [vmem:[%s10] sm:$0x1]
      %v7492 = vlaneseq
      %v7493 = vshrl.u32 %v7492, 7
      %v7494 = vsub.s32 0, %v7493
      %v7495 = vrot.slane %v7490, %v7494
      %v7497 = vadd.f32 %v7458, %v7495
      %v7498 = vadd.f32 %v7459, %v7495
      %v7499 = vadd.f32 %v7460, %v7495
      %v7500 = vadd.f32 %v7461, %v7495
      %v7501 = vadd.f32 %v7462, %v7495
      %v7502 = vadd.f32 %v7463, %v7495
      %v7503 = vadd.f32 %v7464, %v7495
      %v7504 = vadd.f32 %v7465, %v7495
      %v7505 = vadd.f32 %v7466, %v7495
      %v7506 = vadd.f32 %v7467, %v7495
      %v7507 = vadd.f32 %v7468, %v7495
      %v7508 = vadd.f32 %v7469, %v7495
      %v7509 = vadd.f32 %v7470, %v7495
      %v7510 = vadd.f32 %v7471, %v7495
      %v7511 = vadd.f32 %v7472, %v7495
      %v7512 = vadd.f32 %v7473, %v7495
      %v7513 = vadd.f32 %v7474, %v7495
      %v7514 = vadd.f32 %v7475, %v7495
      %v7515 = vadd.f32 %v7476, %v7495
      %v7516 = vadd.f32 %v7477, %v7495
      %v7517 = vadd.f32 %v7478, %v7495
      %v7518 = vadd.f32 %v7479, %v7495
      %v7519 = vadd.f32 %v7480, %v7495
      %v7520 = vadd.f32 %v7481, %v7495
      %v7521 = vadd.f32 %v7482, %v7495
      %v7522 = vadd.f32 %v7483, %v7495
      %v7523 = vadd.f32 %v7484, %v7495
      %v7524 = vadd.f32 %v7485, %v7495
      %v7525 = vadd.f32 %v7486, %v7495
      %v7526 = vadd.f32 %v7487, %v7495
      %v7527 = vadd.f32 %v7488, %v7495
      %v7528 = vadd.f32 %v7489, %v7495
      %v7529 = vld [vmem:[%s4] sm:$0xf]
      %v7530 = vld [vmem:[%s4 + $0x4] sm:$0xf]
      %v7531 = vld [vmem:[%s4 + $0x8] sm:$0xf]
      %v7532 = vld [vmem:[%s4 + $0xc] sm:$0xf]
      %v7533 = vld [vmem:[%s4 + $0x10] sm:$0xf]
      %v7534 = vld [vmem:[%s4 + $0x14] sm:$0xf]
      %v7535 = vld [vmem:[%s4 + $0x18] sm:$0xf]
      %v7536 = vld [vmem:[%s4 + $0x1c] sm:$0xf]
      %v7537 = vld [vmem:[%s4 + $0x20] sm:$0xf]
      %v7538 = vld [vmem:[%s4 + $0x24] sm:$0xf]
      %v7539 = vld [vmem:[%s4 + $0x28] sm:$0xf]
      %v7540 = vld [vmem:[%s4 + $0x2c] sm:$0xf]
      %v7541 = vld [vmem:[%s4 + $0x30] sm:$0xf]
      %v7542 = vld [vmem:[%s4 + $0x34] sm:$0xf]
      %v7543 = vld [vmem:[%s4 + $0x38] sm:$0xf]
      %v7544 = vld [vmem:[%s4 + $0x3c] sm:$0xf]
      %v7561 = vunpack.c.l.b16 %v7529
      %v7562 = vunpack.c.l.b16 %v7530
      %v7563 = vunpack.c.l.b16 %v7531
      %v7564 = vunpack.c.l.b16 %v7532
      %v7565 = vunpack.c.l.b16 %v7533
      %v7566 = vunpack.c.l.b16 %v7534
      %v7567 = vunpack.c.l.b16 %v7535
      %v7568 = vunpack.c.l.b16 %v7536
      %v7569 = vunpack.c.l.b16 %v7537
      %v7570 = vunpack.c.l.b16 %v7538
      %v7571 = vunpack.c.l.b16 %v7539
      %v7572 = vunpack.c.l.b16 %v7540
      %v7573 = vunpack.c.l.b16 %v7541
      %v7574 = vunpack.c.l.b16 %v7542
      %v7575 = vunpack.c.l.b16 %v7543
      %v7576 = vunpack.c.l.b16 %v7544
      %v7577 = vpack.c.b16 %v7562, %v7561
      %v7578 = vpack.c.b16 %v7564, %v7563
      %v7579 = vpack.c.b16 %v7566, %v7565
      %v7580 = vpack.c.b16 %v7568, %v7567
      %v7581 = vpack.c.b16 %v7570, %v7569
      %v7582 = vpack.c.b16 %v7572, %v7571
      %v7583 = vpack.c.b16 %v7574, %v7573
      %v7584 = vpack.c.b16 %v7576, %v7575
      %7593 = vmatprep.subr.bf16.mxu0 0
      %7594 = vmatpush1.bf16.msra.mxu0 %v7577
      %7595 = vmatprep.subr.bf16.mxu0 0
      %7596 = vmatpush1.bf16.msra.mxu0 %v7578
      %7597 = vmatprep.subr.bf16.mxu0 0
      %7598 = vmatpush1.bf16.msra.mxu0 %v7579
      %7599 = vmatprep.subr.bf16.mxu0 0
      %7600 = vmatpush1.bf16.msra.mxu0 %v7580
      %7601 = vmatprep.subr.bf16.mxu0 0
      %7602 = vmatpush1.bf16.msra.mxu0 %v7581
      %7603 = vmatprep.subr.bf16.mxu0 0
      %7604 = vmatpush1.bf16.msra.mxu0 %v7582
      %7605 = vmatprep.subr.bf16.mxu0 0
      %7606 = vmatpush1.bf16.msra.mxu0 %v7583
      %7607 = vmatprep.subr.bf16.mxu0 0
      %7608 = vmatpush1.bf16.msra.mxu0 %v7584
      %7609 = vmatprep.subr.bf16.mxu0 0
      %7610 = vmatpush1.bf16.msra.mxu0 0
      %7611 = vmatprep.subr.bf16.mxu0 0
      %7612 = vmatpush1.bf16.msra.mxu0 0
      %7613 = vmatprep.subr.bf16.mxu0 0
      %7614 = vmatpush1.bf16.msra.mxu0 0
      %7615 = vmatprep.subr.bf16.mxu0 0
      %7616 = vmatpush1.bf16.msra.mxu0 0
      %7617 = vmatprep.subr.bf16.mxu0 0
      %7618 = vmatpush1.bf16.msra.mxu0 0
      %7619 = vmatprep.subr.bf16.mxu0 0
      %7620 = vmatpush1.bf16.msra.mxu0 0
      %7621 = vmatprep.subr.bf16.mxu0 0
      %7622 = vmatpush1.bf16.msra.mxu0 0
      %7623 = vmatprep.subr.bf16.mxu0 0
      %7624 = vmatpush1.bf16.msra.mxu0 0
      %7625 = vmatprep.mubr.bf16.mxu0 0
      %7626 = vmatmul.mubr.bf16.gmra.mrb[0].mxu0 %v598
      %v7627 = vpop.f32.mrb[0].mxu0
      %v7628 = vadd.f32 0.0, %v7627
      %v7629 = vpop.f32.mrb[0].mxu0
      %v7630 = vpop.f32.mrb[0].mxu0
      %v7631 = vadd.f32 0.0, %v7630
      %v7632 = vpop.f32.mrb[0].mxu0
      %7633 = vmatprep.mubr.bf16.mxu0 0
      %7634 = vmatmul.mubr.bf16.gmra.mrb[0].mxu0 %v599
      %v7635 = vpop.f32.mrb[0].mxu0
      %v7636 = vadd.f32 0.0, %v7635
      %v7637 = vpop.f32.mrb[0].mxu0
      %v7638 = vpop.f32.mrb[0].mxu0
      %v7639 = vadd.f32 0.0, %v7638
      %v7640 = vpop.f32.mrb[0].mxu0
      %7641 = vmatprep.mubr.bf16.mxu0 0
      %7642 = vmatmul.mubr.bf16.gmra.mrb[0].mxu0 %v600
      %v7643 = vpop.f32.mrb[0].mxu0
      %v7644 = vadd.f32 0.0, %v7643
      %v7645 = vpop.f32.mrb[0].mxu0
      %v7646 = vpop.f32.mrb[0].mxu0
      %v7647 = vadd.f32 0.0, %v7646
      %v7648 = vpop.f32.mrb[0].mxu0
      %7649 = vmatprep.mubr.bf16.mxu0 0
      %7650 = vmatmul.mubr.bf16.gmra.mrb[0].mxu0 %v601
      %v7651 = vpop.f32.mrb[0].mxu0
      %v7652 = vadd.f32 0.0, %v7651
      %v7653 = vpop.f32.mrb[0].mxu0
      %v7654 = vpop.f32.mrb[0].mxu0
      %v7655 = vadd.f32 0.0, %v7654
      %v7656 = vpop.f32.mrb[0].mxu0
      %7657 = vmatprep.mubr.bf16.mxu0 0
      %7658 = vmatmul.mubr.bf16.gmra.mrb[0].mxu0 %v602
      %v7659 = vpop.f32.mrb[0].mxu0
      %v7660 = vadd.f32 0.0, %v7659
      %v7661 = vpop.f32.mrb[0].mxu0
      %v7662 = vpop.f32.mrb[0].mxu0
      %v7663 = vadd.f32 0.0, %v7662
      %v7664 = vpop.f32.mrb[0].mxu0
      %7665 = vmatprep.mubr.bf16.mxu0 0
      %7666 = vmatmul.mubr.bf16.gmra.mrb[0].mxu0 %v603
      %v7667 = vpop.f32.mrb[0].mxu0
      %v7668 = vadd.f32 0.0, %v7667
      %v7669 = vpop.f32.mrb[0].mxu0
      %v7670 = vpop.f32.mrb[0].mxu0
      %v7671 = vadd.f32 0.0, %v7670
      %v7672 = vpop.f32.mrb[0].mxu0
      %7673 = vmatprep.mubr.bf16.mxu0 0
      %7674 = vmatmul.mubr.bf16.gmra.mrb[0].mxu0 %v604
      %v7675 = vpop.f32.mrb[0].mxu0
      %v7676 = vadd.f32 0.0, %v7675
      %v7677 = vpop.f32.mrb[0].mxu0
      %v7678 = vpop.f32.mrb[0].mxu0
      %v7679 = vadd.f32 0.0, %v7678
      %v7680 = vpop.f32.mrb[0].mxu0
      %7681 = vmatprep.mubr.bf16.mxu0 0
      %7682 = vmatmul.mubr.bf16.gmra.mrb[0].mxu0 %v605
      %v7683 = vpop.f32.mrb[0].mxu0
      %v7684 = vadd.f32 0.0, %v7683
      %v7685 = vpop.f32.mrb[0].mxu0
      %v7686 = vpop.f32.mrb[0].mxu0
      %v7687 = vadd.f32 0.0, %v7686
      %v7688 = vpop.f32.mrb[0].mxu0
      %7689 = vmatprep.mubr.bf16.mxu0 0
      %7690 = vmatmul.mubr.bf16.gmra.mrb[0].mxu0 %v606
      %v7691 = vpop.f32.mrb[0].mxu0
      %v7692 = vadd.f32 0.0, %v7691
      %v7693 = vpop.f32.mrb[0].mxu0
      %v7694 = vpop.f32.mrb[0].mxu0
      %v7695 = vadd.f32 0.0, %v7694
      %v7696 = vpop.f32.mrb[0].mxu0
      %7697 = vmatprep.mubr.bf16.mxu0 0
      %7698 = vmatmul.mubr.bf16.gmra.mrb[0].mxu0 %v607
      %v7699 = vpop.f32.mrb[0].mxu0
      %v7700 = vadd.f32 0.0, %v7699
      %v7701 = vpop.f32.mrb[0].mxu0
      %v7702 = vpop.f32.mrb[0].mxu0
      %v7703 = vadd.f32 0.0, %v7702
      %v7704 = vpop.f32.mrb[0].mxu0
      %7705 = vmatprep.mubr.bf16.mxu0 0
      %7706 = vmatmul.mubr.bf16.gmra.mrb[0].mxu0 %v608
      %v7707 = vpop.f32.mrb[0].mxu0
      %v7708 = vadd.f32 0.0, %v7707
      %v7709 = vpop.f32.mrb[0].mxu0
      %v7710 = vpop.f32.mrb[0].mxu0
      %v7711 = vadd.f32 0.0, %v7710
      %v7712 = vpop.f32.mrb[0].mxu0
      %7713 = vmatprep.mubr.bf16.mxu0 0
      %7714 = vmatmul.mubr.bf16.gmra.mrb[0].mxu0 %v609
      %v7715 = vpop.f32.mrb[0].mxu0
      %v7716 = vadd.f32 0.0, %v7715
      %v7717 = vpop.f32.mrb[0].mxu0
      %v7718 = vpop.f32.mrb[0].mxu0
      %v7719 = vadd.f32 0.0, %v7718
      %v7720 = vpop.f32.mrb[0].mxu0
      %7721 = vmatprep.mubr.bf16.mxu0 0
      %7722 = vmatmul.mubr.bf16.gmra.mrb[0].mxu0 %v610
      %v7723 = vpop.f32.mrb[0].mxu0
      %v7724 = vadd.f32 0.0, %v7723
      %v7725 = vpop.f32.mrb[0].mxu0
      %v7726 = vpop.f32.mrb[0].mxu0
      %v7727 = vadd.f32 0.0, %v7726
      %v7728 = vpop.f32.mrb[0].mxu0
      %7729 = vmatprep.mubr.bf16.mxu0 0
      %7730 = vmatmul.mubr.bf16.gmra.mrb[0].mxu0 %v611
      %v7731 = vpop.f32.mrb[0].mxu0
      %v7732 = vadd.f32 0.0, %v7731
      %v7733 = vpop.f32.mrb[0].mxu0
      %v7734 = vpop.f32.mrb[0].mxu0
      %v7735 = vadd.f32 0.0, %v7734
      %v7736 = vpop.f32.mrb[0].mxu0
      %7737 = vmatprep.mubr.bf16.mxu0 0
      %7738 = vmatmul.mubr.bf16.gmra.mrb[0].mxu0 %v612
      %v7739 = vpop.f32.mrb[0].mxu0
      %v7740 = vadd.f32 0.0, %v7739
      %v7741 = vpop.f32.mrb[0].mxu0
      %v7742 = vpop.f32.mrb[0].mxu0
      %v7743 = vadd.f32 0.0, %v7742
      %v7744 = vpop.f32.mrb[0].mxu0
      %7745 = vmatprep.mubr.bf16.mxu0 0
      %7746 = vmatmul.mubr.bf16.gmra.mrb[0].mxu0 %v613
      %v7747 = vpop.f32.mrb[0].mxu0
      %v7748 = vadd.f32 0.0, %v7747
      %v7749 = vpop.f32.mrb[0].mxu0
      %v7750 = vpop.f32.mrb[0].mxu0
      %v7751 = vadd.f32 0.0, %v7750
      %v7752 = vpop.f32.mrb[0].mxu0
      %7753 = vdwg.mxu0
      %v7754 = vld [vmem:[%s11] sm:$0x1]
      %v7756 = vlaneseq
      %v7757 = vshrl.u32 %v7756, 7
      %v7758 = vsub.s32 0, %v7757
      %v7759 = vrot.slane %v7754, %v7758
      %v7761 = vmul.f32 %v7628, %v7759
      %v7762 = vmul.f32 %v7631, %v7759
      %v7763 = vmul.f32 %v7636, %v7759
      %v7764 = vmul.f32 %v7639, %v7759
      %v7765 = vmul.f32 %v7644, %v7759
      %v7766 = vmul.f32 %v7647, %v7759
      %v7767 = vmul.f32 %v7652, %v7759
      %v7768 = vmul.f32 %v7655, %v7759
      %v7769 = vmul.f32 %v7660, %v7759
      %v7770 = vmul.f32 %v7663, %v7759
      %v7771 = vmul.f32 %v7668, %v7759
      %v7772 = vmul.f32 %v7671, %v7759
      %v7773 = vmul.f32 %v7676, %v7759
      %v7774 = vmul.f32 %v7679, %v7759
      %v7775 = vmul.f32 %v7684, %v7759
      %v7776 = vmul.f32 %v7687, %v7759
      %v7777 = vmul.f32 %v7692, %v7759
      %v7778 = vmul.f32 %v7695, %v7759
      %v7779 = vmul.f32 %v7700, %v7759
      %v7780 = vmul.f32 %v7703, %v7759
      %v7781 = vmul.f32 %v7708, %v7759
      %v7782 = vmul.f32 %v7711, %v7759
      %v7783 = vmul.f32 %v7716, %v7759
      %v7784 = vmul.f32 %v7719, %v7759
      %v7785 = vmul.f32 %v7724, %v7759
      %v7786 = vmul.f32 %v7727, %v7759
      %v7787 = vmul.f32 %v7732, %v7759
      %v7788 = vmul.f32 %v7735, %v7759
      %v7789 = vmul.f32 %v7740, %v7759
      %v7790 = vmul.f32 %v7743, %v7759
      %v7791 = vmul.f32 %v7748, %v7759
      %v7792 = vmul.f32 %v7751, %v7759
      %v7793 = vld [vmem:[%s12] sm:$0x1]
      %v7795 = vlaneseq
      %v7796 = vshrl.u32 %v7795, 7
      %v7797 = vsub.s32 0, %v7796
      %v7798 = vrot.slane %v7793, %v7797
      %v7800 = vadd.f32 %v7761, %v7798
      %v7801 = vadd.f32 %v7762, %v7798
      %v7802 = vadd.f32 %v7763, %v7798
      %v7803 = vadd.f32 %v7764, %v7798
      %v7804 = vadd.f32 %v7765, %v7798
      %v7805 = vadd.f32 %v7766, %v7798
      %v7806 = vadd.f32 %v7767, %v7798
      %v7807 = vadd.f32 %v7768, %v7798
      %v7808 = vadd.f32 %v7769, %v7798
      %v7809 = vadd.f32 %v7770, %v7798
      %v7810 = vadd.f32 %v7771, %v7798
      %v7811 = vadd.f32 %v7772, %v7798
      %v7812 = vadd.f32 %v7773, %v7798
      %v7813 = vadd.f32 %v7774, %v7798
      %v7814 = vadd.f32 %v7775, %v7798
      %v7815 = vadd.f32 %v7776, %v7798
      %v7816 = vadd.f32 %v7777, %v7798
      %v7817 = vadd.f32 %v7778, %v7798
      %v7818 = vadd.f32 %v7779, %v7798
      %v7819 = vadd.f32 %v7780, %v7798
      %v7820 = vadd.f32 %v7781, %v7798
      %v7821 = vadd.f32 %v7782, %v7798
      %v7822 = vadd.f32 %v7783, %v7798
      %v7823 = vadd.f32 %v7784, %v7798
      %v7824 = vadd.f32 %v7785, %v7798
      %v7825 = vadd.f32 %v7786, %v7798
      %v7826 = vadd.f32 %v7787, %v7798
      %v7827 = vadd.f32 %v7788, %v7798
      %v7828 = vadd.f32 %v7789, %v7798
      %v7829 = vadd.f32 %v7790, %v7798
      %v7830 = vadd.f32 %v7791, %v7798
      %v7831 = vadd.f32 %v7792, %v7798
      %v7832 = vadd.f32 %v7497, %v7800
      %v7833 = vadd.f32 %v7498, %v7801
      %v7834 = vadd.f32 %v7499, %v7802
      %v7835 = vadd.f32 %v7500, %v7803
      %v7836 = vadd.f32 %v7501, %v7804
      %v7837 = vadd.f32 %v7502, %v7805
      %v7838 = vadd.f32 %v7503, %v7806
      %v7839 = vadd.f32 %v7504, %v7807
      %v7840 = vadd.f32 %v7505, %v7808
      %v7841 = vadd.f32 %v7506, %v7809
      %v7842 = vadd.f32 %v7507, %v7810
      %v7843 = vadd.f32 %v7508, %v7811
      %v7844 = vadd.f32 %v7509, %v7812
      %v7845 = vadd.f32 %v7510, %v7813
      %v7846 = vadd.f32 %v7511, %v7814
      %v7847 = vadd.f32 %v7512, %v7815
      %v7848 = vadd.f32 %v7513, %v7816
      %v7849 = vadd.f32 %v7514, %v7817
      %v7850 = vadd.f32 %v7515, %v7818
      %v7851 = vadd.f32 %v7516, %v7819
      %v7852 = vadd.f32 %v7517, %v7820
      %v7853 = vadd.f32 %v7518, %v7821
      %v7854 = vadd.f32 %v7519, %v7822
      %v7855 = vadd.f32 %v7520, %v7823
      %v7856 = vadd.f32 %v7521, %v7824
      %v7857 = vadd.f32 %v7522, %v7825
      %v7858 = vadd.f32 %v7523, %v7826
      %v7859 = vadd.f32 %v7524, %v7827
      %v7860 = vadd.f32 %v7525, %v7828
      %v7861 = vadd.f32 %v7526, %v7829
      %v7862 = vadd.f32 %v7527, %v7830
      %v7863 = vadd.f32 %v7528, %v7831
      %v7864 = vmax.f32 %v7832, 0.0
      %v7865 = vmax.f32 %v7833, 0.0
      %v7866 = vmax.f32 %v7834, 0.0
      %v7867 = vmax.f32 %v7835, 0.0
      %v7868 = vmax.f32 %v7836, 0.0
      %v7869 = vmax.f32 %v7837, 0.0
      %v7870 = vmax.f32 %v7838, 0.0
      %v7871 = vmax.f32 %v7839, 0.0
      %v7872 = vmax.f32 %v7840, 0.0
      %v7873 = vmax.f32 %v7841, 0.0
      %v7874 = vmax.f32 %v7842, 0.0
      %v7875 = vmax.f32 %v7843, 0.0
      %v7876 = vmax.f32 %v7844, 0.0
      %v7877 = vmax.f32 %v7845, 0.0
      %v7878 = vmax.f32 %v7846, 0.0
      %v7879 = vmax.f32 %v7847, 0.0
      %v7880 = vmax.f32 %v7848, 0.0
      %v7881 = vmax.f32 %v7849, 0.0
      %v7882 = vmax.f32 %v7850, 0.0
      %v7883 = vmax.f32 %v7851, 0.0
      %v7884 = vmax.f32 %v7852, 0.0
      %v7885 = vmax.f32 %v7853, 0.0
      %v7886 = vmax.f32 %v7854, 0.0
      %v7887 = vmax.f32 %v7855, 0.0
      %v7888 = vmax.f32 %v7856, 0.0
      %v7889 = vmax.f32 %v7857, 0.0
      %v7890 = vmax.f32 %v7858, 0.0
      %v7891 = vmax.f32 %v7859, 0.0
      %v7892 = vmax.f32 %v7860, 0.0
      %v7893 = vmax.f32 %v7861, 0.0
      %v7894 = vmax.f32 %v7862, 0.0
      %v7895 = vmax.f32 %v7863, 0.0
      %7896 = vst [vmem:[%s477] sm:$0xff] %v7864
      %7897 = vst [vmem:[%s477 + $0x8] sm:$0xff] %v7865
      %7898 = vst [vmem:[%s477 + $0x10] sm:$0xff] %v7866
      %7899 = vst [vmem:[%s477 + $0x18] sm:$0xff] %v7867
      %7900 = vst [vmem:[%s477 + $0x20] sm:$0xff] %v7868
      %7901 = vst [vmem:[%s477 + $0x28] sm:$0xff] %v7869
      %7902 = vst [vmem:[%s477 + $0x30] sm:$0xff] %v7870
      %7903 = vst [vmem:[%s477 + $0x38] sm:$0xff] %v7871
      %7904 = vst [vmem:[%s477 + $0x40] sm:$0xff] %v7872
      %7905 = vst [vmem:[%s477 + $0x48] sm:$0xff] %v7873
      %7906 = vst [vmem:[%s477 + $0x50] sm:$0xff] %v7874
      %7907 = vst [vmem:[%s477 + $0x58] sm:$0xff] %v7875
      %7908 = vst [vmem:[%s477 + $0x60] sm:$0xff] %v7876
      %7909 = vst [vmem:[%s477 + $0x68] sm:$0xff] %v7877
      %7910 = vst [vmem:[%s477 + $0x70] sm:$0xff] %v7878
      %7911 = vst [vmem:[%s477 + $0x78] sm:$0xff] %v7879
      %7912 = vst [vmem:[%s477 + $0x80] sm:$0xff] %v7880
      %7913 = vst [vmem:[%s477 + $0x88] sm:$0xff] %v7881
      %7914 = vst [vmem:[%s477 + $0x90] sm:$0xff] %v7882
      %7915 = vst [vmem:[%s477 + $0x98] sm:$0xff] %v7883
      %7916 = vst [vmem:[%s477 + $0xa0] sm:$0xff] %v7884
      %7917 = vst [vmem:[%s477 + $0xa8] sm:$0xff] %v7885
      %7918 = vst [vmem:[%s477 + $0xb0] sm:$0xff] %v7886
      %7919 = vst [vmem:[%s477 + $0xb8] sm:$0xff] %v7887
      %7920 = vst [vmem:[%s477 + $0xc0] sm:$0xff] %v7888
      %7921 = vst [vmem:[%s477 + $0xc8] sm:$0xff] %v7889
      %7922 = vst [vmem:[%s477 + $0xd0] sm:$0xff] %v7890
      %7923 = vst [vmem:[%s477 + $0xd8] sm:$0xff] %v7891
      %7924 = vst [vmem:[%s477 + $0xe0] sm:$0xff] %v7892
      %7925 = vst [vmem:[%s477 + $0xe8] sm:$0xff] %v7893
      %7926 = vst [vmem:[%s477 + $0xf0] sm:$0xff] %v7894
      %7927 = vst [vmem:[%s477 + $0xf8] sm:$0xff] %v7895
      %7928 = vst [vmem:[%s483] sm:$0xff] %v7832
      %7929 = vst [vmem:[%s483 + $0x8] sm:$0xff] %v7833
      %7930 = vst [vmem:[%s483 + $0x10] sm:$0xff] %v7834
      %7931 = vst [vmem:[%s483 + $0x18] sm:$0xff] %v7835
      %7932 = vst [vmem:[%s483 + $0x20] sm:$0xff] %v7836
      %7933 = vst [vmem:[%s483 + $0x28] sm:$0xff] %v7837
      %7934 = vst [vmem:[%s483 + $0x30] sm:$0xff] %v7838
      %7935 = vst [vmem:[%s483 + $0x38] sm:$0xff] %v7839
      %7936 = vst [vmem:[%s483 + $0x40] sm:$0xff] %v7840
      %7937 = vst [vmem:[%s483 + $0x48] sm:$0xff] %v7841
      %7938 = vst [vmem:[%s483 + $0x50] sm:$0xff] %v7842
      %7939 = vst [vmem:[%s483 + $0x58] sm:$0xff] %v7843
      %7940 = vst [vmem:[%s483 + $0x60] sm:$0xff] %v7844
      %7941 = vst [vmem:[%s483 + $0x68] sm:$0xff] %v7845
      %7942 = vst [vmem:[%s483 + $0x70] sm:$0xff] %v7846
      %7943 = vst [vmem:[%s483 + $0x78] sm:$0xff] %v7847
      %7944 = vst [vmem:[%s483 + $0x80] sm:$0xff] %v7848
      %7945 = vst [vmem:[%s483 + $0x88] sm:$0xff] %v7849
      %7946 = vst [vmem:[%s483 + $0x90] sm:$0xff] %v7850
      %7947 = vst [vmem:[%s483 + $0x98] sm:$0xff] %v7851
      %7948 = vst [vmem:[%s483 + $0xa0] sm:$0xff] %v7852
      %7949 = vst [vmem:[%s483 + $0xa8] sm:$0xff] %v7853
      %7950 = vst [vmem:[%s483 + $0xb0] sm:$0xff] %v7854
      %7951 = vst [vmem:[%s483 + $0xb8] sm:$0xff] %v7855
      %7952 = vst [vmem:[%s483 + $0xc0] sm:$0xff] %v7856
      %7953 = vst [vmem:[%s483 + $0xc8] sm:$0xff] %v7857
      %7954 = vst [vmem:[%s483 + $0xd0] sm:$0xff] %v7858
      %7955 = vst [vmem:[%s483 + $0xd8] sm:$0xff] %v7859
      %7956 = vst [vmem:[%s483 + $0xe0] sm:$0xff] %v7860
      %7957 = vst [vmem:[%s483 + $0xe8] sm:$0xff] %v7861
      %7958 = vst [vmem:[%s483 + $0xf0] sm:$0xff] %v7862
      %7959 = vst [vmem:[%s483 + $0xf8] sm:$0xff] %v7863
      %s7960 = smul.u32 32, %s26
      %p7961 = scmp.lt.s32.totalorder %s7960, 63
      %s7962 = scalar_select %p7961, %s7960, 63
      %s7963 = smul.addr %s7962, 8
      %s7964 = scalar_lea.vmem %s13, %s7963
      %s7965 = smul.u32 32, %s26
      %p7966 = scmp.lt.s32.totalorder %s7965, 63
      %s7967 = scalar_select %p7966, %s7965, 63
      %s7968 = smul.addr %s7967, 8
      %s7969 = scalar_lea.vmem %s14, %s7968
      // Predicated region
      $region73: #{bottleneck_forward.1} parent=71 // pred_check
        %p7970 = pneg %p322
      $region74: #{bottleneck_forward.1} parent=71 // pred_check_branch
        %7972 = sbr.rel (%p7970) target = $region76
      $region75: #{bottleneck_forward.1} parent=71 // pred_region
        %s7973 = smul.u32 32, %s26
      $region76: #{bottleneck_forward.1} parent=71 // pred_fallthru
        _
      // Predicated region
      $region77: #{bottleneck_forward.1} parent=71 // pred_check
        %p7974 = pneg %p348
      $region78: #{bottleneck_forward.1} parent=71 // pred_check_branch
        %7976 = sbr.rel (%p7974) target = $region80
      $region79: #{bottleneck_forward.1} parent=71 // pred_region
        %s7977 = smul.u32 32, %s26
      $region80: #{bottleneck_forward.1} parent=71 // pred_fallthru
        _
    $region72: #{bottleneck_forward.1} parent=5 // pred_fallthru
      _
    %p7978 = scmp.le.s32.totalorder 2, %s21
    // Predicated region
    $region81: #{bottleneck_forward.1} parent=5 // pred_check
      %p7979 = pneg %p7978
    $region82: #{bottleneck_forward.1} parent=5 // pred_check_branch
      %7981 = sbr.rel (%p7979) target = $region84
    $region83: #{bottleneck_forward.1} parent=5 // pred_region
      %s7982 = ssub.s32 %s21, 2
      // Predicated region
      $region85: #{bottleneck_forward.1} parent=83 // pred_check
        %p7983 = pneg %p328
      $region86: #{bottleneck_forward.1} parent=83 // pred_check_branch
        %7985 = sbr.rel (%p7983) target = $region88
      $region87: #{bottleneck_forward.1} parent=83 // pred_region
        %s7986 = smul.u32 32, %s27
        %p7987 = scmp.lt.s32.totalorder %s7986, 63
        %s7988 = scalar_select %p7987, %s7986, 63
        %s7989 = smul.addr %s7988, 8
        %s7990 = scalar_lea.vmem %s13, %s7989
      $region88: #{bottleneck_forward.1} parent=83 // pred_fallthru
        _
      // Predicated region
      $region89: #{bottleneck_forward.1} parent=83 // pred_check
        %p7991 = pneg %p354
      $region90: #{bottleneck_forward.1} parent=83 // pred_check_branch
        %7993 = sbr.rel (%p7991) target = $region92
      $region91: #{bottleneck_forward.1} parent=83 // pred_region
        %s7994 = smul.u32 32, %s27
        %p7995 = scmp.lt.s32.totalorder %s7994, 63
        %s7996 = scalar_select %p7995, %s7994, 63
        %s7997 = smul.addr %s7996, 8
        %s7998 = scalar_lea.vmem %s14, %s7997
      $region92: #{bottleneck_forward.1} parent=83 // pred_fallthru
        _
    $region84: #{bottleneck_forward.1} parent=5 // pred_fallthru
      _
  $region6: #{bottleneck_forward.1} parent=0 // loop_footer
    %s25 = sadd.s32 1, %s21
  $region7: #{bottleneck_forward.1} parent=0 // loop_footer_branch
    %20 = sbr.rel target = $region3
  $region8: #{bottleneck_forward.1} parent=0 // loop_exit
    _

</llo_original>
